<compile_context>
chip_gen: v7x
topology: tpu7x:2x2x1
jax: 0.10.0
libtpu: 0.0.40
codegen_flags: <defaults>
</compile_context>

<pallas_src>
import functools

import jax
import jax.numpy as jnp
from jax.experimental import pallas as pl
from jax.experimental.pallas import tpu as pltpu


def _round_up(x, m):
    return ((x + m - 1) // m) * m


# ----------------------------------------------------------------------------
# Pallas kernel 1: single-block  out = relu(x @ w + b)  (used for the convs).
# ----------------------------------------------------------------------------
def _matmul_bias_relu_kernel(x_ref, w_ref, b_ref, o_ref):
    y = jnp.dot(x_ref[...], w_ref[...], preferred_element_type=jnp.float32)
    y = jnp.maximum(y + b_ref[...], 0.0)
    o_ref[...] = y.astype(o_ref.dtype)


def matmul_bias_relu(x, w, b):
    """x: [M, K], w: [K, N], b: [1, N] -> relu(x @ w + b): [M, N].

    Whole problem in one block (everything fits VMEM comfortably; <=820 KB).
    No M split: single TensorCore on v5e/v6e, and the matmul is far too small
    for a second core on v7x to matter.
    """
    M, K = x.shape
    N = w.shape[1]
    return pl.pallas_call(
        _matmul_bias_relu_kernel,
        out_shape=jax.ShapeDtypeStruct((M, N), x.dtype),
        grid=(1,),
        in_specs=[
            pl.BlockSpec((M, K), lambda i: (0, 0)),
            pl.BlockSpec((K, N), lambda i: (0, 0)),   # weight resident
            pl.BlockSpec((1, N), lambda i: (0, 0)),   # bias resident
        ],
        out_specs=pl.BlockSpec((M, N), lambda i: (0, 0)),
        compiler_params=pltpu.CompilerParams(
            dimension_semantics=("arbitrary",),
        ),
    )(x, w, b)


# ----------------------------------------------------------------------------
# Pallas kernel 2: fused dense1 + ReLU + dense2, single block.
#   out = relu(x @ w1 + b1) @ w2 + b2     (x, w1 in bf16; f32 accumulation)
# ----------------------------------------------------------------------------
def _dense_fused_kernel(x_ref, w1_ref, b1_ref, w2_ref, b2_ref, o_ref):
    h = jnp.dot(x_ref[...], w1_ref[...], preferred_element_type=jnp.float32)
    h = jnp.maximum(h + b1_ref[...], 0.0)
    o = jnp.dot(h, w2_ref[...], preferred_element_type=jnp.float32)
    o_ref[...] = (o + b2_ref[...]).astype(o_ref.dtype)


def dense_fused(x, w1, b1, w2, b2):
    """x: [B, K] bf16, w1: [K, H] bf16, b1: [1, H], w2: [H, Np], b2: [1, Np]
    -> f32 [B, Np]."""
    M, K = x.shape
    H = w1.shape[1]
    N = w2.shape[1]
    return pl.pallas_call(
        _dense_fused_kernel,
        out_shape=jax.ShapeDtypeStruct((M, N), jnp.float32),
        grid=(1,),
        in_specs=[
            pl.BlockSpec((M, K), lambda i: (0, 0)),
            pl.BlockSpec((K, H), lambda i: (0, 0)),   # wd1 bf16, 6.55 MB
            pl.BlockSpec((1, H), lambda i: (0, 0)),   # bias1 resident
            pl.BlockSpec((H, N), lambda i: (0, 0)),   # wd2 resident (~256 KB)
            pl.BlockSpec((1, N), lambda i: (0, 0)),   # bias2 resident
        ],
        out_specs=pl.BlockSpec((M, N), lambda i: (0, 0)),
        compiler_params=pltpu.CompilerParams(
            dimension_semantics=("arbitrary",),
            # ~6.6 MB weight block x 2 buffers + wd2: above v5e's 16 MiB scoped
            # default, well within 32 MiB on every generation (v7x: 64 MiB phys).
            vmem_limit_bytes=32 * 1024 * 1024,
        ),
    )(x, w1, b1, w2, b2)


# ----------------------------------------------------------------------------
# im2col glue in NHWC (plain JAX, static slicing only).
# Patch feature order is (KH, KW, C), matching the offline weight reorder.
# ----------------------------------------------------------------------------
def im2col_nhwc(x_nhwc, kh, kw, stride, pad):
    if pad:
        x_nhwc = jnp.pad(x_nhwc, ((0, 0), (pad, pad), (pad, pad), (0, 0)))
    B, H, W, C = x_nhwc.shape
    OH = (H - kh) // stride + 1
    OW = (W - kw) // stride + 1
    cols = []
    for i in range(kh):
        for j in range(kw):
            cols.append(
                x_nhwc[:, i : i + stride * OH : stride,
                       j : j + stride * OW : stride, :]
            )
    patches = jnp.stack(cols, axis=3)                    # [B, OH, OW, kh*kw, C]
    patches = patches.reshape(B * OH * OW, kh * kw * C)  # (kh, kw, C) order
    return patches, OH, OW


# ----------------------------------------------------------------------------
# Offline parameter prep (done once, outside jit): layout reorders, lane
# padding, wd1 -> bf16.  Input params are in exact PyTorch layout
# (OIHW convs, [out, in] linears).
# ----------------------------------------------------------------------------
def prepare_params(p):
    def conv_w(w_oihw):
        oc = w_oihw.shape[0]
        # [KH, KW, C, OC] -> [KH*KW*C, OC]; no K padding (full-extent blocks).
        return jnp.transpose(w_oihw, (2, 3, 1, 0)).reshape(-1, oc)

    wp = {
        "w1": conv_w(p["w1"]), "b1": p["b1"].reshape(1, -1),
        "w2": conv_w(p["w2"]), "b2": p["b2"].reshape(1, -1),
        "w3": conv_w(p["w3"]), "b3": p["b3"].reshape(1, -1),
    }

    # dense1: permute the 6400 input columns from torch's NCHW flatten order
    # (C, H, W) to our NHWC flatten order (H, W, C), transpose to [K, H],
    # and store in bf16 (f32 accumulation happens in the kernel).
    d1_out, d1_in = p["wd1"].shape
    c3 = p["w3"].shape[0]
    side = int(round((d1_in // c3) ** 0.5))
    wd1 = p["wd1"].reshape(d1_out, c3, side, side)
    wd1 = jnp.transpose(wd1, (0, 2, 3, 1)).reshape(d1_out, d1_in)
    wp["wd1"] = wd1.T.astype(jnp.bfloat16)              # [6400, 512] bf16
    wp["bd1"] = p["bd1"].reshape(1, d1_out)

    # dense2: transpose to [512, out_dim] and zero-pad to 128 lanes
    # (lane-dense store; the padding is sliced off outside the kernel).
    out_dim = p["wd2"].shape[0]
    n2p = _round_up(out_dim, 128)
    wp["wd2"] = jnp.pad(p["wd2"].T, ((0, 0), (0, n2p - out_dim)))
    wp["bd2"] = jnp.pad(p["bd2"], (0, n2p - out_dim)).reshape(1, n2p)
    return wp


# ----------------------------------------------------------------------------
# EncoderLikeDQN forward (Pallas matmuls; NHWC internal layout).
# ----------------------------------------------------------------------------
def encoder_like_dqn_forward(x_nchw, wp, *, out_dim):
    B = x_nchw.shape[0]
    h = jnp.transpose(x_nchw, (0, 2, 3, 1))  # single NCHW->NHWC at the boundary

    def conv_block(h_nhwc, w_mat, b, kh, kw, stride, pad):
        patches, OH, OW = im2col_nhwc(h_nhwc, kh, kw, stride, pad)
        y = matmul_bias_relu(patches, w_mat, b)          # [B*OH*OW, OC]
        return y.reshape(B, OH, OW, w_mat.shape[1])      # NHWC, no transpose

    h = conv_block(h, wp["w1"], wp["b1"], 8, 8, 4, 0)    # [B, 20, 20, 32]
    h = conv_block(h, wp["w2"], wp["b2"], 4, 4, 2, 1)    # [B, 10, 10, 32]
    h = conv_block(h, wp["w3"], wp["b3"], 3, 3, 1, 1)    # [B, 10, 10, 64]

    h = h.reshape(B, -1).astype(jnp.bfloat16)            # (H,W,C) flat: [B, 6400] bf16
    out_p = dense_fused(h, wp["wd1"], wp["bd1"], wp["wd2"], wp["bd2"])  # [B, 128]
    return out_p[:, :out_dim]                            # drop lane padding


# ----------------------------------------------------------------------------
# Deterministic parameter init (PyTorch-default-style uniform, torch layout).
# ----------------------------------------------------------------------------
def init_params(key, num_channels, latent_dim):
    def uni(k, shape, fan_in):
        bound = 1.0 / jnp.sqrt(fan_in)
        return jax.random.uniform(k, shape, jnp.float32, -bound, bound)

    ks = jax.random.split(key, 10)
    p = {}
    p["w1"] = uni(ks[0], (32, num_channels, 8, 8), num_channels * 64)
    p["b1"] = uni(ks[1], (32,), num_channels * 64)
    p["w2"] = uni(ks[2], (32, 32, 4, 4), 32 * 16)
    p["b2"] = uni(ks[3], (32,), 32 * 16)
    p["w3"] = uni(ks[4], (64, 32, 3, 3), 32 * 9)
    p["b3"] = uni(ks[5], (64,), 32 * 9)
    p["wd1"] = uni(ks[6], (512, 6400), 6400)
    p["bd1"] = uni(ks[7], (512,), 6400)
    p["wd2"] = uni(ks[8], (latent_dim * 2, 512), 512)
    p["bd2"] = uni(ks[9], (latent_dim * 2,), 512)
    return p


# ----------------------------------------------------------------------------
# Pure-JAX reference (original torch layout, f32) for correctness checking.
# ----------------------------------------------------------------------------
def reference_forward(x, p):
    def conv(h, w, b, stride, pad):
        y = jax.lax.conv_general_dilated(
            h, w, (stride, stride), [(pad, pad), (pad, pad)],
            dimension_numbers=("NCHW", "OIHW", "NCHW"),
        )
        return y + b[None, :, None, None]

    h = jax.nn.relu(conv(x, p["w1"], p["b1"], 4, 0))
    h = jax.nn.relu(conv(h, p["w2"], p["b2"], 2, 1))
    h = jax.nn.relu(conv(h, p["w3"], p["b3"], 1, 1))
    h = h.reshape(h.shape[0], -1)
    h = jax.nn.relu(h @ p["wd1"].T + p["bd1"])
    return h @ p["wd2"].T + p["bd2"]


if __name__ == "__main__":
    batch, num_channels, latent_dim, output_dim = 2, 4, 32, 6
    out_dim = latent_dim * 2
    key = jax.random.PRNGKey(0)
    kx, kp = jax.random.split(key)

    # Input must be 84x84 spatially so the flattened conv features are 6400.
    x = jax.random.normal(kx, (batch, num_channels, 84, 84), jnp.float32)
    params = init_params(kp, num_channels, latent_dim)
    wp = prepare_params(params)  # offline layout reorders / lane padding / bf16

    fwd = jax.jit(functools.partial(encoder_like_dqn_forward, out_dim=out_dim))
    out = jax.block_until_ready(fwd(x, wp))

    assert out.shape == (batch, out_dim), out.shape

    ref = jax.block_until_ready(reference_forward(x, params))
    assert jnp.allclose(out, ref, rtol=1e-3, atol=1e-3), (
        float(jnp.max(jnp.abs(out - ref)))
    )

    print("KERNEL_OK")
</pallas_src>

<mosaic_0001>
module attributes {stable_mosaic.version = 11 : i64} {
  func.func @_matmul_bias_relu_kernel(%arg0: i32, %arg1: memref<800x256xf32, #tpu.memory_space<vmem>>, %arg2: memref<256x32xf32, #tpu.memory_space<vmem>>, %arg3: memref<1x32xf32, #tpu.memory_space<vmem>>, %arg4: memref<800x32xf32, #tpu.memory_space<vmem>>) attributes {dimension_semantics = [#tpu.dimension_semantics<arbitrary>], iteration_bounds = array<i64: 1>, scalar_prefetch = 0 : i64, scratch_operands = 0 : i64, tpu.core_type = #tpu.core_type<tc>, window_params = [{pipeline_mode = #tpu.pipeline_mode<synchronous>, transform_indices = @transform_0, window_bounds = array<i64: 800, 256>}, {pipeline_mode = #tpu.pipeline_mode<synchronous>, transform_indices = @transform_1, window_bounds = array<i64: 256, 32>}, {pipeline_mode = #tpu.pipeline_mode<synchronous>, transform_indices = @transform_2, window_bounds = array<i64: 1, 32>}, {pipeline_mode = #tpu.pipeline_mode<synchronous>, transform_indices = @transform_3, window_bounds = array<i64: 800, 32>}]} {
    %c0 = arith.constant 0 : index
    %c0_0 = arith.constant 0 : index
    %0 = vector.load %arg1[%c0, %c0_0] : memref<800x256xf32, #tpu.memory_space<vmem>>, vector<800x256xf32>
    %c0_1 = arith.constant 0 : index
    %c0_2 = arith.constant 0 : index
    %1 = vector.load %arg2[%c0_1, %c0_2] : memref<256x32xf32, #tpu.memory_space<vmem>>, vector<256x32xf32>
    %cst = arith.constant dense<0.000000e+00> : vector<800x32xf32>
    %2 = tpu.matmul %0, %1, %cst {dimension_numbers = #tpu.dot_dimension_numbers<[1], [0], [0], [1], [0, 0, 1, 1], [], []>} : vector<800x256xf32>, vector<256x32xf32>, vector<800x32xf32> -> vector<800x32xf32>
    %c0_3 = arith.constant 0 : index
    %c0_4 = arith.constant 0 : index
    %3 = vector.load %arg3[%c0_3, %c0_4] : memref<1x32xf32, #tpu.memory_space<vmem>>, vector<1x32xf32>
    %4 = vector.broadcast %3 : vector<1x32xf32> to vector<800x32xf32>
    %5 = arith.addf %2, %4 : vector<800x32xf32>
    %cst_5 = arith.constant 0.000000e+00 : f32
    %6 = vector.broadcast %cst_5 : f32 to vector<800x32xf32>
    %7 = arith.maximumf %5, %6 : vector<800x32xf32>
    %c0_6 = arith.constant 0 : index
    %c0_7 = arith.constant 0 : index
    %8 = vector.load %arg4[%c0_6, %c0_7] : memref<800x32xf32, #tpu.memory_space<vmem>>, vector<800x32xf32>
    tpu.vector_store %arg4[%c0_6, %c0_7], %7 {strides = array<i32>} : memref<800x32xf32, #tpu.memory_space<vmem>>, vector<800x32xf32>,
    return
  }
  func.func @transform_0(%arg0: i32) -> (i32, i32) {
    %c0_i32 = arith.constant 0 : i32
    %c0_i32_0 = arith.constant 0 : i32
    %c0_i32_1 = arith.constant 0 : i32
    return %c0_i32, %c0_i32_0 : i32, i32
  }
  func.func @transform_1(%arg0: i32) -> (i32, i32) {
    %c0_i32 = arith.constant 0 : i32
    %c0_i32_0 = arith.constant 0 : i32
    %c0_i32_1 = arith.constant 0 : i32
    return %c0_i32, %c0_i32_0 : i32, i32
  }
  func.func @transform_2(%arg0: i32) -> (i32, i32) {
    %c0_i32 = arith.constant 0 : i32
    %c0_i32_0 = arith.constant 0 : i32
    %c0_i32_1 = arith.constant 0 : i32
    return %c0_i32, %c0_i32_0 : i32, i32
  }
  func.func @transform_3(%arg0: i32) -> (i32, i32) {
    %c0_i32 = arith.constant 0 : i32
    %c0_i32_0 = arith.constant 0 : i32
    %c0_i32_1 = arith.constant 0 : i32
    return %c0_i32, %c0_i32_0 : i32, i32
  }
}

module attributes {stable_mosaic.version = 11 : i64} {
  func.func @_matmul_bias_relu_kernel(%arg0: i32, %arg1: memref<200x512xf32, #tpu.memory_space<vmem>>, %arg2: memref<512x32xf32, #tpu.memory_space<vmem>>, %arg3: memref<1x32xf32, #tpu.memory_space<vmem>>, %arg4: memref<200x32xf32, #tpu.memory_space<vmem>>) attributes {dimension_semantics = [#tpu.dimension_semantics<arbitrary>], iteration_bounds = array<i64: 1>, scalar_prefetch = 0 : i64, scratch_operands = 0 : i64, tpu.core_type = #tpu.core_type<tc>, window_params = [{pipeline_mode = #tpu.pipeline_mode<synchronous>, transform_indices = @transform_0, window_bounds = array<i64: 200, 512>}, {pipeline_mode = #tpu.pipeline_mode<synchronous>, transform_indices = @transform_1, window_bounds = array<i64: 512, 32>}, {pipeline_mode = #tpu.pipeline_mode<synchronous>, transform_indices = @transform_2, window_bounds = array<i64: 1, 32>}, {pipeline_mode = #tpu.pipeline_mode<synchronous>, transform_indices = @transform_3, window_bounds = array<i64: 200, 32>}]} {
    %c0 = arith.constant 0 : index
    %c0_0 = arith.constant 0 : index
    %0 = vector.load %arg1[%c0, %c0_0] : memref<200x512xf32, #tpu.memory_space<vmem>>, vector<200x512xf32>
    %c0_1 = arith.constant 0 : index
    %c0_2 = arith.constant 0 : index
    %1 = vector.load %arg2[%c0_1, %c0_2] : memref<512x32xf32, #tpu.memory_space<vmem>>, vector<512x32xf32>
    %cst = arith.constant dense<0.000000e+00> : vector<200x32xf32>
    %2 = tpu.matmul %0, %1, %cst {dimension_numbers = #tpu.dot_dimension_numbers<[1], [0], [0], [1], [0, 0, 1, 1], [], []>} : vector<200x512xf32>, vector<512x32xf32>, vector<200x32xf32> -> vector<200x32xf32>
    %c0_3 = arith.constant 0 : index
    %c0_4 = arith.constant 0 : index
    %3 = vector.load %arg3[%c0_3, %c0_4] : memref<1x32xf32, #tpu.memory_space<vmem>>, vector<1x32xf32>
    %4 = vector.broadcast %3 : vector<1x32xf32> to vector<200x32xf32>
    %5 = arith.addf %2, %4 : vector<200x32xf32>
    %cst_5 = arith.constant 0.000000e+00 : f32
    %6 = vector.broadcast %cst_5 : f32 to vector<200x32xf32>
    %7 = arith.maximumf %5, %6 : vector<200x32xf32>
    %c0_6 = arith.constant 0 : index
    %c0_7 = arith.constant 0 : index
    %8 = vector.load %arg4[%c0_6, %c0_7] : memref<200x32xf32, #tpu.memory_space<vmem>>, vector<200x32xf32>
    tpu.vector_store %arg4[%c0_6, %c0_7], %7 {strides = array<i32>} : memref<200x32xf32, #tpu.memory_space<vmem>>, vector<200x32xf32>,
    return
  }
  func.func @transform_0(%arg0: i32) -> (i32, i32) {
    %c0_i32 = arith.constant 0 : i32
    %c0_i32_0 = arith.constant 0 : i32
    %c0_i32_1 = arith.constant 0 : i32
    return %c0_i32, %c0_i32_0 : i32, i32
  }
  func.func @transform_1(%arg0: i32) -> (i32, i32) {
    %c0_i32 = arith.constant 0 : i32
    %c0_i32_0 = arith.constant 0 : i32
    %c0_i32_1 = arith.constant 0 : i32
    return %c0_i32, %c0_i32_0 : i32, i32
  }
  func.func @transform_2(%arg0: i32) -> (i32, i32) {
    %c0_i32 = arith.constant 0 : i32
    %c0_i32_0 = arith.constant 0 : i32
    %c0_i32_1 = arith.constant 0 : i32
    return %c0_i32, %c0_i32_0 : i32, i32
  }
  func.func @transform_3(%arg0: i32) -> (i32, i32) {
    %c0_i32 = arith.constant 0 : i32
    %c0_i32_0 = arith.constant 0 : i32
    %c0_i32_1 = arith.constant 0 : i32
    return %c0_i32, %c0_i32_0 : i32, i32
  }
}

module attributes {stable_mosaic.version = 11 : i64} {
  func.func @_matmul_bias_relu_kernel(%arg0: i32, %arg1: memref<200x288xf32, #tpu.memory_space<vmem>>, %arg2: memref<288x64xf32, #tpu.memory_space<vmem>>, %arg3: memref<1x64xf32, #tpu.memory_space<vmem>>, %arg4: memref<200x64xf32, #tpu.memory_space<vmem>>) attributes {dimension_semantics = [#tpu.dimension_semantics<arbitrary>], iteration_bounds = array<i64: 1>, scalar_prefetch = 0 : i64, scratch_operands = 0 : i64, tpu.core_type = #tpu.core_type<tc>, window_params = [{pipeline_mode = #tpu.pipeline_mode<synchronous>, transform_indices = @transform_0, window_bounds = array<i64: 200, 288>}, {pipeline_mode = #tpu.pipeline_mode<synchronous>, transform_indices = @transform_1, window_bounds = array<i64: 288, 64>}, {pipeline_mode = #tpu.pipeline_mode<synchronous>, transform_indices = @transform_2, window_bounds = array<i64: 1, 64>}, {pipeline_mode = #tpu.pipeline_mode<synchronous>, transform_indices = @transform_3, window_bounds = array<i64: 200, 64>}]} {
    %c0 = arith.constant 0 : index
    %c0_0 = arith.constant 0 : index
    %0 = vector.load %arg1[%c0, %c0_0] : memref<200x288xf32, #tpu.memory_space<vmem>>, vector<200x288xf32>
    %c0_1 = arith.constant 0 : index
    %c0_2 = arith.constant 0 : index
    %1 = vector.load %arg2[%c0_1, %c0_2] : memref<288x64xf32, #tpu.memory_space<vmem>>, vector<288x64xf32>
    %cst = arith.constant dense<0.000000e+00> : vector<200x64xf32>
    %2 = tpu.matmul %0, %1, %cst {dimension_numbers = #tpu.dot_dimension_numbers<[1], [0], [0], [1], [0, 0, 1, 1], [], []>} : vector<200x288xf32>, vector<288x64xf32>, vector<200x64xf32> -> vector<200x64xf32>
    %c0_3 = arith.constant 0 : index
    %c0_4 = arith.constant 0 : index
    %3 = vector.load %arg3[%c0_3, %c0_4] : memref<1x64xf32, #tpu.memory_space<vmem>>, vector<1x64xf32>
    %4 = vector.broadcast %3 : vector<1x64xf32> to vector<200x64xf32>
    %5 = arith.addf %2, %4 : vector<200x64xf32>
    %cst_5 = arith.constant 0.000000e+00 : f32
    %6 = vector.broadcast %cst_5 : f32 to vector<200x64xf32>
    %7 = arith.maximumf %5, %6 : vector<200x64xf32>
    %c0_6 = arith.constant 0 : index
    %c0_7 = arith.constant 0 : index
    %8 = vector.load %arg4[%c0_6, %c0_7] : memref<200x64xf32, #tpu.memory_space<vmem>>, vector<200x64xf32>
    tpu.vector_store %arg4[%c0_6, %c0_7], %7 {strides = array<i32>} : memref<200x64xf32, #tpu.memory_space<vmem>>, vector<200x64xf32>,
    return
  }
  func.func @transform_0(%arg0: i32) -> (i32, i32) {
    %c0_i32 = arith.constant 0 : i32
    %c0_i32_0 = arith.constant 0 : i32
    %c0_i32_1 = arith.constant 0 : i32
    return %c0_i32, %c0_i32_0 : i32, i32
  }
  func.func @transform_1(%arg0: i32) -> (i32, i32) {
    %c0_i32 = arith.constant 0 : i32
    %c0_i32_0 = arith.constant 0 : i32
    %c0_i32_1 = arith.constant 0 : i32
    return %c0_i32, %c0_i32_0 : i32, i32
  }
  func.func @transform_2(%arg0: i32) -> (i32, i32) {
    %c0_i32 = arith.constant 0 : i32
    %c0_i32_0 = arith.constant 0 : i32
    %c0_i32_1 = arith.constant 0 : i32
    return %c0_i32, %c0_i32_0 : i32, i32
  }
  func.func @transform_3(%arg0: i32) -> (i32, i32) {
    %c0_i32 = arith.constant 0 : i32
    %c0_i32_0 = arith.constant 0 : i32
    %c0_i32_1 = arith.constant 0 : i32
    return %c0_i32, %c0_i32_0 : i32, i32
  }
}

module attributes {stable_mosaic.version = 11 : i64} {
  func.func @_dense_fused_kernel(%arg0: i32, %arg1: memref<2x6400xbf16, #tpu.memory_space<vmem>>, %arg2: memref<6400x512xbf16, #tpu.memory_space<vmem>>, %arg3: memref<1x512xf32, #tpu.memory_space<vmem>>, %arg4: memref<512x128xf32, #tpu.memory_space<vmem>>, %arg5: memref<1x128xf32, #tpu.memory_space<vmem>>, %arg6: memref<2x128xf32, #tpu.memory_space<vmem>>) attributes {dimension_semantics = [#tpu.dimension_semantics<arbitrary>], iteration_bounds = array<i64: 1>, scalar_prefetch = 0 : i64, scratch_operands = 0 : i64, tpu.core_type = #tpu.core_type<tc>, window_params = [{pipeline_mode = #tpu.pipeline_mode<synchronous>, transform_indices = @transform_0, window_bounds = array<i64: 2, 6400>}, {pipeline_mode = #tpu.pipeline_mode<synchronous>, transform_indices = @transform_1, window_bounds = array<i64: 6400, 512>}, {pipeline_mode = #tpu.pipeline_mode<synchronous>, transform_indices = @transform_2, window_bounds = array<i64: 1, 512>}, {pipeline_mode = #tpu.pipeline_mode<synchronous>, transform_indices = @transform_3, window_bounds = array<i64: 512, 128>}, {pipeline_mode = #tpu.pipeline_mode<synchronous>, transform_indices = @transform_4, window_bounds = array<i64: 1, 128>}, {pipeline_mode = #tpu.pipeline_mode<synchronous>, transform_indices = @transform_5, window_bounds = array<i64: 2, 128>}]} {
    %c0 = arith.constant 0 : index
    %c0_0 = arith.constant 0 : index
    %0 = vector.load %arg1[%c0, %c0_0] : memref<2x6400xbf16, #tpu.memory_space<vmem>>, vector<2x6400xbf16>
    %c0_1 = arith.constant 0 : index
    %c0_2 = arith.constant 0 : index
    %1 = vector.load %arg2[%c0_1, %c0_2] : memref<6400x512xbf16, #tpu.memory_space<vmem>>, vector<6400x512xbf16>
    %cst = arith.constant dense<0.000000e+00> : vector<2x512xf32>
    %2 = tpu.matmul %0, %1, %cst {dimension_numbers = #tpu.dot_dimension_numbers<[1], [0], [0], [1], [0, 0, 1, 1], [], []>} : vector<2x6400xbf16>, vector<6400x512xbf16>, vector<2x512xf32> -> vector<2x512xf32>
    %c0_3 = arith.constant 0 : index
    %c0_4 = arith.constant 0 : index
    %3 = vector.load %arg3[%c0_3, %c0_4] : memref<1x512xf32, #tpu.memory_space<vmem>>, vector<1x512xf32>
    %4 = vector.broadcast %3 : vector<1x512xf32> to vector<2x512xf32>
    %5 = arith.addf %2, %4 : vector<2x512xf32>
    %cst_5 = arith.constant 0.000000e+00 : f32
    %6 = vector.broadcast %cst_5 : f32 to vector<2x512xf32>
    %7 = arith.maximumf %5, %6 : vector<2x512xf32>
    %c0_6 = arith.constant 0 : index
    %c0_7 = arith.constant 0 : index
    %8 = vector.load %arg4[%c0_6, %c0_7] : memref<512x128xf32, #tpu.memory_space<vmem>>, vector<512x128xf32>
    %cst_8 = arith.constant dense<0.000000e+00> : vector<2x128xf32>
    %9 = tpu.matmul %7, %8, %cst_8 {dimension_numbers = #tpu.dot_dimension_numbers<[1], [0], [0], [1], [0, 0, 1, 1], [], []>} : vector<2x512xf32>, vector<512x128xf32>, vector<2x128xf32> -> vector<2x128xf32>
    %c0_9 = arith.constant 0 : index
    %c0_10 = arith.constant 0 : index
    %10 = vector.load %arg5[%c0_9, %c0_10] : memref<1x128xf32, #tpu.memory_space<vmem>>, vector<1x128xf32>
    %11 = vector.broadcast %10 : vector<1x128xf32> to vector<2x128xf32>
    %12 = arith.addf %9, %11 : vector<2x128xf32>
    %c0_11 = arith.constant 0 : index
    %c0_12 = arith.constant 0 : index
    %13 = vector.load %arg6[%c0_11, %c0_12] : memref<2x128xf32, #tpu.memory_space<vmem>>, vector<2x128xf32>
    tpu.vector_store %arg6[%c0_11, %c0_12], %12 {strides = array<i32>} : memref<2x128xf32, #tpu.memory_space<vmem>>, vector<2x128xf32>,
    return
  }
  func.func @transform_0(%arg0: i32) -> (i32, i32) {
    %c0_i32 = arith.constant 0 : i32
    %c0_i32_0 = arith.constant 0 : i32
    %c0_i32_1 = arith.constant 0 : i32
    return %c0_i32, %c0_i32_0 : i32, i32
  }
  func.func @transform_1(%arg0: i32) -> (i32, i32) {
    %c0_i32 = arith.constant 0 : i32
    %c0_i32_0 = arith.constant 0 : i32
    %c0_i32_1 = arith.constant 0 : i32
    return %c0_i32, %c0_i32_0 : i32, i32
  }
  func.func @transform_2(%arg0: i32) -> (i32, i32) {
    %c0_i32 = arith.constant 0 : i32
    %c0_i32_0 = arith.constant 0 : i32
    %c0_i32_1 = arith.constant 0 : i32
    return %c0_i32, %c0_i32_0 : i32, i32
  }
  func.func @transform_3(%arg0: i32) -> (i32, i32) {
    %c0_i32 = arith.constant 0 : i32
    %c0_i32_0 = arith.constant 0 : i32
    %c0_i32_1 = arith.constant 0 : i32
    return %c0_i32, %c0_i32_0 : i32, i32
  }
  func.func @transform_4(%arg0: i32) -> (i32, i32) {
    %c0_i32 = arith.constant 0 : i32
    %c0_i32_0 = arith.constant 0 : i32
    %c0_i32_1 = arith.constant 0 : i32
    return %c0_i32, %c0_i32_0 : i32, i32
  }
  func.func @transform_5(%arg0: i32) -> (i32, i32) {
    %c0_i32 = arith.constant 0 : i32
    %c0_i32_0 = arith.constant 0 : i32
    %c0_i32_1 = arith.constant 0 : i32
    return %c0_i32, %c0_i32_0 : i32, i32
  }
}

</mosaic_0001>

<llo_original>
// kernel: encoder_like_dqn_forward.4
$region0: #{encoder_like_dqn_forward.4}
  #allocation0 [shape = 'u32[]', space=smem, size = 0x4, offset = 0x4, fixed_abs, tag = 'smem constant byte address 0x4 - core index']
  #allocation1 [shape = 'u32[144,128]{1,0:T(1,128)}', space=vmem, size = 0x12000, scoped, tag = 'internal scratch']
  %s0 = inlined_call_operand.vmem [shape: f32[800,256], index: 0, kind: input, shape index: {}]
  %s1 = inlined_call_operand.vmem [shape: f32[256,32], index: 1, kind: input, shape index: {}]
  %s2 = inlined_call_operand.vmem [shape: f32[1,32], index: 2, kind: input, shape index: {}]
  %s3 = inlined_call_operand.vmem [shape: f32[800,32], index: 3, kind: output, shape index: {}]
  %s4 = sld [smem:[#allocation0]]
  $region22: #{encoder_like_dqn_forward.4} parent=0
    _
  %s6 = ssub.s32 1, %s4
  %s7 = scalar_select 0, %s6, %s4
  // Predicated region
  $region2: #{encoder_like_dqn_forward.4} parent=0 // pred_check
    _
  $region3: #{encoder_like_dqn_forward.4} parent=0 // pred_check_branch
    %9 = sbr.rel (0) target = $region5
  $region4: #{encoder_like_dqn_forward.4} parent=0 // pred_region
    _
  $region5: #{encoder_like_dqn_forward.4} parent=0 // pred_fallthru
    _
  // Predicated region
  $region6: #{encoder_like_dqn_forward.4} parent=0 // pred_check
    _
  $region7: #{encoder_like_dqn_forward.4} parent=0 // pred_check_branch
    %11 = sbr.rel (0) target = $region9
  $region8: #{encoder_like_dqn_forward.4} parent=0 // pred_region
    _
  $region9: #{encoder_like_dqn_forward.4} parent=0 // pred_fallthru
    _
  // Predicated region
  $region10: #{encoder_like_dqn_forward.4} parent=0 // pred_check
    _
  $region11: #{encoder_like_dqn_forward.4} parent=0 // pred_check_branch
    %13 = sbr.rel (0) target = $region13
  $region12: #{encoder_like_dqn_forward.4} parent=0 // pred_region
    _
  $region13: #{encoder_like_dqn_forward.4} parent=0 // pred_fallthru
    _
  %v14 = vld [vmem:[%s0] sm:$0xff]
  %v15 = vld [vmem:[%s0 + $0x8] sm:$0xff]
  %v16 = vld [vmem:[%s0 + $0x10] sm:$0xff]
  %v17 = vld [vmem:[%s0 + $0x18] sm:$0xff]
  %v18 = vld [vmem:[%s0 + $0x20] sm:$0xff]
  %v19 = vld [vmem:[%s0 + $0x28] sm:$0xff]
  %v20 = vld [vmem:[%s0 + $0x30] sm:$0xff]
  %v21 = vld [vmem:[%s0 + $0x38] sm:$0xff]
  %v22 = vld [vmem:[%s0 + $0x40] sm:$0xff]
  %v23 = vld [vmem:[%s0 + $0x48] sm:$0xff]
  %v24 = vld [vmem:[%s0 + $0x50] sm:$0xff]
  %v25 = vld [vmem:[%s0 + $0x58] sm:$0xff]
  %v26 = vld [vmem:[%s0 + $0x60] sm:$0xff]
  %v27 = vld [vmem:[%s0 + $0x68] sm:$0xff]
  %v28 = vld [vmem:[%s0 + $0x70] sm:$0xff]
  %v29 = vld [vmem:[%s0 + $0x78] sm:$0xff]
  %v30 = vld [vmem:[%s0 + $0x80] sm:$0xff]
  %v31 = vld [vmem:[%s0 + $0x88] sm:$0xff]
  %v32 = vld [vmem:[%s0 + $0x90] sm:$0xff]
  %v33 = vld [vmem:[%s0 + $0x98] sm:$0xff]
  %v34 = vld [vmem:[%s0 + $0xa0] sm:$0xff]
  %v35 = vld [vmem:[%s0 + $0xa8] sm:$0xff]
  %v36 = vld [vmem:[%s0 + $0xb0] sm:$0xff]
  %v37 = vld [vmem:[%s0 + $0xb8] sm:$0xff]
  %v38 = vld [vmem:[%s0 + $0xc0] sm:$0xff]
  %v39 = vld [vmem:[%s0 + $0xc8] sm:$0xff]
  %v40 = vld [vmem:[%s0 + $0xd0] sm:$0xff]
  %v41 = vld [vmem:[%s0 + $0xd8] sm:$0xff]
  %v42 = vld [vmem:[%s0 + $0xe0] sm:$0xff]
  %v43 = vld [vmem:[%s0 + $0xe8] sm:$0xff]
  %v44 = vld [vmem:[%s0 + $0xf0] sm:$0xff]
  %v45 = vld [vmem:[%s0 + $0xf8] sm:$0xff]
  %v46 = vld [vmem:[%s0 + $0x100] sm:$0xff]
  %v47 = vld [vmem:[%s0 + $0x108] sm:$0xff]
  %v48 = vld [vmem:[%s0 + $0x110] sm:$0xff]
  %v49 = vld [vmem:[%s0 + $0x118] sm:$0xff]
  %v50 = vld [vmem:[%s0 + $0x120] sm:$0xff]
  %v51 = vld [vmem:[%s0 + $0x128] sm:$0xff]
  %v52 = vld [vmem:[%s0 + $0x130] sm:$0xff]
  %v53 = vld [vmem:[%s0 + $0x138] sm:$0xff]
  %v54 = vld [vmem:[%s0 + $0x140] sm:$0xff]
  %v55 = vld [vmem:[%s0 + $0x148] sm:$0xff]
  %v56 = vld [vmem:[%s0 + $0x150] sm:$0xff]
  %v57 = vld [vmem:[%s0 + $0x158] sm:$0xff]
  %v58 = vld [vmem:[%s0 + $0x160] sm:$0xff]
  %v59 = vld [vmem:[%s0 + $0x168] sm:$0xff]
  %v60 = vld [vmem:[%s0 + $0x170] sm:$0xff]
  %v61 = vld [vmem:[%s0 + $0x178] sm:$0xff]
  %v62 = vld [vmem:[%s0 + $0x180] sm:$0xff]
  %v63 = vld [vmem:[%s0 + $0x188] sm:$0xff]
  %v64 = vld [vmem:[%s0 + $0x190] sm:$0xff]
  %v65 = vld [vmem:[%s0 + $0x198] sm:$0xff]
  %v66 = vld [vmem:[%s0 + $0x1a0] sm:$0xff]
  %v67 = vld [vmem:[%s0 + $0x1a8] sm:$0xff]
  %v68 = vld [vmem:[%s0 + $0x1b0] sm:$0xff]
  %v69 = vld [vmem:[%s0 + $0x1b8] sm:$0xff]
  %v70 = vld [vmem:[%s0 + $0x1c0] sm:$0xff]
  %v71 = vld [vmem:[%s0 + $0x1c8] sm:$0xff]
  %v72 = vld [vmem:[%s0 + $0x1d0] sm:$0xff]
  %v73 = vld [vmem:[%s0 + $0x1d8] sm:$0xff]
  %v74 = vld [vmem:[%s0 + $0x1e0] sm:$0xff]
  %v75 = vld [vmem:[%s0 + $0x1e8] sm:$0xff]
  %v76 = vld [vmem:[%s0 + $0x1f0] sm:$0xff]
  %v77 = vld [vmem:[%s0 + $0x1f8] sm:$0xff]
  %v78 = vld [vmem:[%s0 + $0x200] sm:$0xff]
  %v79 = vld [vmem:[%s0 + $0x208] sm:$0xff]
  %v80 = vld [vmem:[%s0 + $0x210] sm:$0xff]
  %v81 = vld [vmem:[%s0 + $0x218] sm:$0xff]
  %v82 = vld [vmem:[%s0 + $0x220] sm:$0xff]
  %v83 = vld [vmem:[%s0 + $0x228] sm:$0xff]
  %v84 = vld [vmem:[%s0 + $0x230] sm:$0xff]
  %v85 = vld [vmem:[%s0 + $0x238] sm:$0xff]
  %v86 = vld [vmem:[%s0 + $0x240] sm:$0xff]
  %v87 = vld [vmem:[%s0 + $0x248] sm:$0xff]
  %v88 = vld [vmem:[%s0 + $0x250] sm:$0xff]
  %v89 = vld [vmem:[%s0 + $0x258] sm:$0xff]
  %v90 = vld [vmem:[%s0 + $0x260] sm:$0xff]
  %v91 = vld [vmem:[%s0 + $0x268] sm:$0xff]
  %v92 = vld [vmem:[%s0 + $0x270] sm:$0xff]
  %v93 = vld [vmem:[%s0 + $0x278] sm:$0xff]
  %v94 = vld [vmem:[%s0 + $0x280] sm:$0xff]
  %v95 = vld [vmem:[%s0 + $0x288] sm:$0xff]
  %v96 = vld [vmem:[%s0 + $0x290] sm:$0xff]
  %v97 = vld [vmem:[%s0 + $0x298] sm:$0xff]
  %v98 = vld [vmem:[%s0 + $0x2a0] sm:$0xff]
  %v99 = vld [vmem:[%s0 + $0x2a8] sm:$0xff]
  %v100 = vld [vmem:[%s0 + $0x2b0] sm:$0xff]
  %v101 = vld [vmem:[%s0 + $0x2b8] sm:$0xff]
  %v102 = vld [vmem:[%s0 + $0x2c0] sm:$0xff]
  %v103 = vld [vmem:[%s0 + $0x2c8] sm:$0xff]
  %v104 = vld [vmem:[%s0 + $0x2d0] sm:$0xff]
  %v105 = vld [vmem:[%s0 + $0x2d8] sm:$0xff]
  %v106 = vld [vmem:[%s0 + $0x2e0] sm:$0xff]
  %v107 = vld [vmem:[%s0 + $0x2e8] sm:$0xff]
  %v108 = vld [vmem:[%s0 + $0x2f0] sm:$0xff]
  %v109 = vld [vmem:[%s0 + $0x2f8] sm:$0xff]
  %v110 = vld [vmem:[%s0 + $0x300] sm:$0xff]
  %v111 = vld [vmem:[%s0 + $0x308] sm:$0xff]
  %v112 = vld [vmem:[%s0 + $0x310] sm:$0xff]
  %v113 = vld [vmem:[%s0 + $0x318] sm:$0xff]
  %v114 = vld [vmem:[%s0 + $0x320] sm:$0xff]
  %v115 = vld [vmem:[%s0 + $0x328] sm:$0xff]
  %v116 = vld [vmem:[%s0 + $0x330] sm:$0xff]
  %v117 = vld [vmem:[%s0 + $0x338] sm:$0xff]
  %v118 = vld [vmem:[%s0 + $0x340] sm:$0xff]
  %v119 = vld [vmem:[%s0 + $0x348] sm:$0xff]
  %v120 = vld [vmem:[%s0 + $0x350] sm:$0xff]
  %v121 = vld [vmem:[%s0 + $0x358] sm:$0xff]
  %v122 = vld [vmem:[%s0 + $0x360] sm:$0xff]
  %v123 = vld [vmem:[%s0 + $0x368] sm:$0xff]
  %v124 = vld [vmem:[%s0 + $0x370] sm:$0xff]
  %v125 = vld [vmem:[%s0 + $0x378] sm:$0xff]
  %v126 = vld [vmem:[%s0 + $0x380] sm:$0xff]
  %v127 = vld [vmem:[%s0 + $0x388] sm:$0xff]
  %v128 = vld [vmem:[%s0 + $0x390] sm:$0xff]
  %v129 = vld [vmem:[%s0 + $0x398] sm:$0xff]
  %v130 = vld [vmem:[%s0 + $0x3a0] sm:$0xff]
  %v131 = vld [vmem:[%s0 + $0x3a8] sm:$0xff]
  %v132 = vld [vmem:[%s0 + $0x3b0] sm:$0xff]
  %v133 = vld [vmem:[%s0 + $0x3b8] sm:$0xff]
  %v134 = vld [vmem:[%s0 + $0x3c0] sm:$0xff]
  %v135 = vld [vmem:[%s0 + $0x3c8] sm:$0xff]
  %v136 = vld [vmem:[%s0 + $0x3d0] sm:$0xff]
  %v137 = vld [vmem:[%s0 + $0x3d8] sm:$0xff]
  %v138 = vld [vmem:[%s0 + $0x3e0] sm:$0xff]
  %v139 = vld [vmem:[%s0 + $0x3e8] sm:$0xff]
  %v140 = vld [vmem:[%s0 + $0x3f0] sm:$0xff]
  %v141 = vld [vmem:[%s0 + $0x3f8] sm:$0xff]
  %v142 = vld [vmem:[%s0 + $0x400] sm:$0xff]
  %v143 = vld [vmem:[%s0 + $0x408] sm:$0xff]
  %v144 = vld [vmem:[%s0 + $0x410] sm:$0xff]
  %v145 = vld [vmem:[%s0 + $0x418] sm:$0xff]
  %v146 = vld [vmem:[%s0 + $0x420] sm:$0xff]
  %v147 = vld [vmem:[%s0 + $0x428] sm:$0xff]
  %v148 = vld [vmem:[%s0 + $0x430] sm:$0xff]
  %v149 = vld [vmem:[%s0 + $0x438] sm:$0xff]
  %v150 = vld [vmem:[%s0 + $0x440] sm:$0xff]
  %v151 = vld [vmem:[%s0 + $0x448] sm:$0xff]
  %v152 = vld [vmem:[%s0 + $0x450] sm:$0xff]
  %v153 = vld [vmem:[%s0 + $0x458] sm:$0xff]
  %v154 = vld [vmem:[%s0 + $0x460] sm:$0xff]
  %v155 = vld [vmem:[%s0 + $0x468] sm:$0xff]
  %v156 = vld [vmem:[%s0 + $0x470] sm:$0xff]
  %v157 = vld [vmem:[%s0 + $0x478] sm:$0xff]
  %v158 = vld [vmem:[%s0 + $0x480] sm:$0xff]
  %v159 = vld [vmem:[%s0 + $0x488] sm:$0xff]
  %v160 = vld [vmem:[%s0 + $0x490] sm:$0xff]
  %v161 = vld [vmem:[%s0 + $0x498] sm:$0xff]
  %v162 = vld [vmem:[%s0 + $0x4a0] sm:$0xff]
  %v163 = vld [vmem:[%s0 + $0x4a8] sm:$0xff]
  %v164 = vld [vmem:[%s0 + $0x4b0] sm:$0xff]
  %v165 = vld [vmem:[%s0 + $0x4b8] sm:$0xff]
  %v166 = vld [vmem:[%s0 + $0x4c0] sm:$0xff]
  %v167 = vld [vmem:[%s0 + $0x4c8] sm:$0xff]
  %v168 = vld [vmem:[%s0 + $0x4d0] sm:$0xff]
  %v169 = vld [vmem:[%s0 + $0x4d8] sm:$0xff]
  %v170 = vld [vmem:[%s0 + $0x4e0] sm:$0xff]
  %v171 = vld [vmem:[%s0 + $0x4e8] sm:$0xff]
  %v172 = vld [vmem:[%s0 + $0x4f0] sm:$0xff]
  %v173 = vld [vmem:[%s0 + $0x4f8] sm:$0xff]
  %v174 = vld [vmem:[%s0 + $0x500] sm:$0xff]
  %v175 = vld [vmem:[%s0 + $0x508] sm:$0xff]
  %v176 = vld [vmem:[%s0 + $0x510] sm:$0xff]
  %v177 = vld [vmem:[%s0 + $0x518] sm:$0xff]
  %v178 = vld [vmem:[%s0 + $0x520] sm:$0xff]
  %v179 = vld [vmem:[%s0 + $0x528] sm:$0xff]
  %v180 = vld [vmem:[%s0 + $0x530] sm:$0xff]
  %v181 = vld [vmem:[%s0 + $0x538] sm:$0xff]
  %v182 = vld [vmem:[%s0 + $0x540] sm:$0xff]
  %v183 = vld [vmem:[%s0 + $0x548] sm:$0xff]
  %v184 = vld [vmem:[%s0 + $0x550] sm:$0xff]
  %v185 = vld [vmem:[%s0 + $0x558] sm:$0xff]
  %v186 = vld [vmem:[%s0 + $0x560] sm:$0xff]
  %v187 = vld [vmem:[%s0 + $0x568] sm:$0xff]
  %v188 = vld [vmem:[%s0 + $0x570] sm:$0xff]
  %v189 = vld [vmem:[%s0 + $0x578] sm:$0xff]
  %v190 = vld [vmem:[%s0 + $0x580] sm:$0xff]
  %v191 = vld [vmem:[%s0 + $0x588] sm:$0xff]
  %v192 = vld [vmem:[%s0 + $0x590] sm:$0xff]
  %v193 = vld [vmem:[%s0 + $0x598] sm:$0xff]
  %v194 = vld [vmem:[%s0 + $0x5a0] sm:$0xff]
  %v195 = vld [vmem:[%s0 + $0x5a8] sm:$0xff]
  %v196 = vld [vmem:[%s0 + $0x5b0] sm:$0xff]
  %v197 = vld [vmem:[%s0 + $0x5b8] sm:$0xff]
  %v198 = vld [vmem:[%s0 + $0x5c0] sm:$0xff]
  %v199 = vld [vmem:[%s0 + $0x5c8] sm:$0xff]
  %v200 = vld [vmem:[%s0 + $0x5d0] sm:$0xff]
  %v201 = vld [vmem:[%s0 + $0x5d8] sm:$0xff]
  %v202 = vld [vmem:[%s0 + $0x5e0] sm:$0xff]
  %v203 = vld [vmem:[%s0 + $0x5e8] sm:$0xff]
  %v204 = vld [vmem:[%s0 + $0x5f0] sm:$0xff]
  %v205 = vld [vmem:[%s0 + $0x5f8] sm:$0xff]
  %v206 = vld [vmem:[%s0 + $0x600] sm:$0xff]
  %v207 = vld [vmem:[%s0 + $0x608] sm:$0xff]
  %v208 = vld [vmem:[%s0 + $0x610] sm:$0xff]
  %v209 = vld [vmem:[%s0 + $0x618] sm:$0xff]
  %v210 = vld [vmem:[%s0 + $0x620] sm:$0xff]
  %v211 = vld [vmem:[%s0 + $0x628] sm:$0xff]
  %v212 = vld [vmem:[%s0 + $0x630] sm:$0xff]
  %v213 = vld [vmem:[%s0 + $0x638] sm:$0xff]
  %v214 = vld [vmem:[%s1] sm:$0xff]
  %v215 = vld [vmem:[%s1 + $0x8] sm:$0xff]
  %v216 = vld [vmem:[%s1 + $0x10] sm:$0xff]
  %v217 = vld [vmem:[%s1 + $0x18] sm:$0xff]
  %v218 = vld [vmem:[%s1 + $0x20] sm:$0xff]
  %v219 = vld [vmem:[%s1 + $0x28] sm:$0xff]
  %v220 = vld [vmem:[%s1 + $0x30] sm:$0xff]
  %v221 = vld [vmem:[%s1 + $0x38] sm:$0xff]
  %v222 = vld [vmem:[%s1 + $0x40] sm:$0xff]
  %v223 = vld [vmem:[%s1 + $0x48] sm:$0xff]
  %v224 = vld [vmem:[%s1 + $0x50] sm:$0xff]
  %v225 = vld [vmem:[%s1 + $0x58] sm:$0xff]
  %v226 = vld [vmem:[%s1 + $0x60] sm:$0xff]
  %v227 = vld [vmem:[%s1 + $0x68] sm:$0xff]
  %v228 = vld [vmem:[%s1 + $0x70] sm:$0xff]
  %v229 = vld [vmem:[%s1 + $0x78] sm:$0xff]
  %v230 = vld [vmem:[%s1 + $0x80] sm:$0xff]
  %v231 = vld [vmem:[%s1 + $0x88] sm:$0xff]
  %v232 = vld [vmem:[%s1 + $0x90] sm:$0xff]
  %v233 = vld [vmem:[%s1 + $0x98] sm:$0xff]
  %v234 = vld [vmem:[%s1 + $0xa0] sm:$0xff]
  %v235 = vld [vmem:[%s1 + $0xa8] sm:$0xff]
  %v236 = vld [vmem:[%s1 + $0xb0] sm:$0xff]
  %v237 = vld [vmem:[%s1 + $0xb8] sm:$0xff]
  %v238 = vld [vmem:[%s1 + $0xc0] sm:$0xff]
  %v239 = vld [vmem:[%s1 + $0xc8] sm:$0xff]
  %v240 = vld [vmem:[%s1 + $0xd0] sm:$0xff]
  %v241 = vld [vmem:[%s1 + $0xd8] sm:$0xff]
  %v242 = vld [vmem:[%s1 + $0xe0] sm:$0xff]
  %v243 = vld [vmem:[%s1 + $0xe8] sm:$0xff]
  %v244 = vld [vmem:[%s1 + $0xf0] sm:$0xff]
  %v245 = vld [vmem:[%s1 + $0xf8] sm:$0xff]
  %v246 = vld [vmem:[%s2] sm:$0x1]
  %v248 = vlaneseq
  %v249 = vshrl.u32 %v248, 7
  %v250 = vsub.s32 0, %v249
  %v251 = vrot.slane %v246, %v250
  %253 = vmatprep.subr.mxu0 0.0
  %254 = vmatpush1.msra.mxu0 %v214
  %255 = vmatprep.subr.mxu0 0.0
  %256 = vmatpush1.msra.mxu0 %v215
  %257 = vmatprep.subr.mxu0 0.0
  %258 = vmatpush1.msra.mxu0 %v216
  %259 = vmatprep.subr.mxu0 0.0
  %260 = vmatpush1.msra.mxu0 %v217
  %261 = vmatprep.subr.mxu0 0.0
  %262 = vmatpush1.msra.mxu0 %v218
  %263 = vmatprep.subr.mxu0 0.0
  %264 = vmatpush1.msra.mxu0 %v219
  %265 = vmatprep.subr.mxu0 0.0
  %266 = vmatpush1.msra.mxu0 %v220
  %267 = vmatprep.subr.mxu0 0.0
  %268 = vmatpush1.msra.mxu0 %v221
  %269 = vmatprep.subr.mxu0 0.0
  %270 = vmatpush1.msra.mxu0 %v222
  %271 = vmatprep.subr.mxu0 0.0
  %272 = vmatpush1.msra.mxu0 %v223
  %273 = vmatprep.subr.mxu0 0.0
  %274 = vmatpush1.msra.mxu0 %v224
  %275 = vmatprep.subr.mxu0 0.0
  %276 = vmatpush1.msra.mxu0 %v225
  %277 = vmatprep.subr.mxu0 0.0
  %278 = vmatpush1.msra.mxu0 %v226
  %279 = vmatprep.subr.mxu0 0.0
  %280 = vmatpush1.msra.mxu0 %v227
  %281 = vmatprep.subr.mxu0 0.0
  %282 = vmatpush1.msra.mxu0 %v228
  %283 = vmatprep.subr.mxu0 0.0
  %284 = vmatpush1.msra.mxu0 %v229
  %285 = vmatprep.subr.mxu0 0.0
  %286 = vmatpush1.msra.mxu0 %v230
  %287 = vmatprep.subr.mxu0 0.0
  %288 = vmatpush1.msra.mxu0 %v231
  %289 = vmatprep.subr.mxu0 0.0
  %290 = vmatpush1.msra.mxu0 %v232
  %291 = vmatprep.subr.mxu0 0.0
  %292 = vmatpush1.msra.mxu0 %v233
  %293 = vmatprep.subr.mxu0 0.0
  %294 = vmatpush1.msra.mxu0 %v234
  %295 = vmatprep.subr.mxu0 0.0
  %296 = vmatpush1.msra.mxu0 %v235
  %297 = vmatprep.subr.mxu0 0.0
  %298 = vmatpush1.msra.mxu0 %v236
  %299 = vmatprep.subr.mxu0 0.0
  %300 = vmatpush1.msra.mxu0 %v237
  %301 = vmatprep.subr.mxu0 0.0
  %302 = vmatpush1.msra.mxu0 %v238
  %303 = vmatprep.subr.mxu0 0.0
  %304 = vmatpush1.msra.mxu0 %v239
  %305 = vmatprep.subr.mxu0 0.0
  %306 = vmatpush1.msra.mxu0 %v240
  %307 = vmatprep.subr.mxu0 0.0
  %308 = vmatpush1.msra.mxu0 %v241
  %309 = vmatprep.subr.mxu0 0.0
  %310 = vmatpush1.msra.mxu0 %v242
  %311 = vmatprep.subr.mxu0 0.0
  %312 = vmatpush1.msra.mxu0 %v243
  %313 = vmatprep.subr.mxu0 0.0
  %314 = vmatpush1.msra.mxu0 %v244
  %315 = vmatprep.subr.mxu0 0.0
  %316 = vmatpush1.msra.mxu0 %v245
  %317 = vmatprep.mubr.f32.mxu0 %v15
  %318 = vmatmul.mubr.f32.gmra.mrb[0].mxu0 %v14
  %v319 = vpop.f32.mrb[0].mxu0
  %v320 = vadd.f32 %v251, %v319
  %v321 = vpop.f32.mrb[0].mxu0
  %322 = vmatprep.mubr.f32.mxu0 %v17
  %323 = vmatmul.mubr.f32.gmra.mrb[0].mxu0 %v16
  %v324 = vpop.f32.mrb[0].mxu0
  %v325 = vadd.f32 %v251, %v324
  %v326 = vpop.f32.mrb[0].mxu0
  %327 = vmatprep.mubr.f32.mxu0 %v19
  %328 = vmatmul.mubr.f32.gmra.mrb[0].mxu0 %v18
  %v329 = vpop.f32.mrb[0].mxu0
  %v330 = vadd.f32 %v251, %v329
  %v331 = vpop.f32.mrb[0].mxu0
  %332 = vmatprep.mubr.f32.mxu0 %v21
  %333 = vmatmul.mubr.f32.gmra.mrb[0].mxu0 %v20
  %v334 = vpop.f32.mrb[0].mxu0
  %v335 = vadd.f32 %v251, %v334
  %v336 = vpop.f32.mrb[0].mxu0
  %337 = vmatprep.mubr.f32.mxu0 %v23
  %338 = vmatmul.mubr.f32.gmra.mrb[0].mxu0 %v22
  %v339 = vpop.f32.mrb[0].mxu0
  %v340 = vadd.f32 %v251, %v339
  %v341 = vpop.f32.mrb[0].mxu0
  %342 = vmatprep.mubr.f32.mxu0 %v25
  %343 = vmatmul.mubr.f32.gmra.mrb[0].mxu0 %v24
  %v344 = vpop.f32.mrb[0].mxu0
  %v345 = vadd.f32 %v251, %v344
  %v346 = vpop.f32.mrb[0].mxu0
  %347 = vmatprep.mubr.f32.mxu0 %v27
  %348 = vmatmul.mubr.f32.gmra.mrb[0].mxu0 %v26
  %v349 = vpop.f32.mrb[0].mxu0
  %v350 = vadd.f32 %v251, %v349
  %v351 = vpop.f32.mrb[0].mxu0
  %352 = vmatprep.mubr.f32.mxu0 %v29
  %353 = vmatmul.mubr.f32.gmra.mrb[0].mxu0 %v28
  %v354 = vpop.f32.mrb[0].mxu0
  %v355 = vadd.f32 %v251, %v354
  %v356 = vpop.f32.mrb[0].mxu0
  %357 = vmatprep.mubr.f32.mxu0 %v31
  %358 = vmatmul.mubr.f32.gmra.mrb[0].mxu0 %v30
  %v359 = vpop.f32.mrb[0].mxu0
  %v360 = vadd.f32 %v251, %v359
  %v361 = vpop.f32.mrb[0].mxu0
  %362 = vmatprep.mubr.f32.mxu0 %v33
  %363 = vmatmul.mubr.f32.gmra.mrb[0].mxu0 %v32
  %v364 = vpop.f32.mrb[0].mxu0
  %v365 = vadd.f32 %v251, %v364
  %v366 = vpop.f32.mrb[0].mxu0
  %367 = vmatprep.mubr.f32.mxu0 %v35
  %368 = vmatmul.mubr.f32.gmra.mrb[0].mxu0 %v34
  %v369 = vpop.f32.mrb[0].mxu0
  %v370 = vadd.f32 %v251, %v369
  %v371 = vpop.f32.mrb[0].mxu0
  %372 = vmatprep.mubr.f32.mxu0 %v37
  %373 = vmatmul.mubr.f32.gmra.mrb[0].mxu0 %v36
  %v374 = vpop.f32.mrb[0].mxu0
  %v375 = vadd.f32 %v251, %v374
  %v376 = vpop.f32.mrb[0].mxu0
  %377 = vmatprep.mubr.f32.mxu0 %v39
  %378 = vmatmul.mubr.f32.gmra.mrb[0].mxu0 %v38
  %v379 = vpop.f32.mrb[0].mxu0
  %v380 = vadd.f32 %v251, %v379
  %v381 = vpop.f32.mrb[0].mxu0
  %382 = vmatprep.mubr.f32.mxu0 %v41
  %383 = vmatmul.mubr.f32.gmra.mrb[0].mxu0 %v40
  %v384 = vpop.f32.mrb[0].mxu0
  %v385 = vadd.f32 %v251, %v384
  %v386 = vpop.f32.mrb[0].mxu0
  %387 = vmatprep.mubr.f32.mxu0 %v43
  %388 = vmatmul.mubr.f32.gmra.mrb[0].mxu0 %v42
  %v389 = vpop.f32.mrb[0].mxu0
  %v390 = vadd.f32 %v251, %v389
  %v391 = vpop.f32.mrb[0].mxu0
  %392 = vmatprep.mubr.f32.mxu0 %v45
  %393 = vmatmul.mubr.f32.gmra.mrb[0].mxu0 %v44
  %v394 = vpop.f32.mrb[0].mxu0
  %v395 = vadd.f32 %v251, %v394
  %v396 = vpop.f32.mrb[0].mxu0
  %397 = vmatprep.mubr.f32.mxu0 %v47
  %398 = vmatmul.mubr.f32.gmra.mrb[0].mxu0 %v46
  %v399 = vpop.f32.mrb[0].mxu0
  %v400 = vadd.f32 %v251, %v399
  %v401 = vpop.f32.mrb[0].mxu0
  %402 = vmatprep.mubr.f32.mxu0 %v49
  %403 = vmatmul.mubr.f32.gmra.mrb[0].mxu0 %v48
  %v404 = vpop.f32.mrb[0].mxu0
  %v405 = vadd.f32 %v251, %v404
  %v406 = vpop.f32.mrb[0].mxu0
  %407 = vmatprep.mubr.f32.mxu0 %v51
  %408 = vmatmul.mubr.f32.gmra.mrb[0].mxu0 %v50
  %v409 = vpop.f32.mrb[0].mxu0
  %v410 = vadd.f32 %v251, %v409
  %v411 = vpop.f32.mrb[0].mxu0
  %412 = vmatprep.mubr.f32.mxu0 %v53
  %413 = vmatmul.mubr.f32.gmra.mrb[0].mxu0 %v52
  %v414 = vpop.f32.mrb[0].mxu0
  %v415 = vadd.f32 %v251, %v414
  %v416 = vpop.f32.mrb[0].mxu0
  %417 = vmatprep.mubr.f32.mxu0 %v55
  %418 = vmatmul.mubr.f32.gmra.mrb[0].mxu0 %v54
  %v419 = vpop.f32.mrb[0].mxu0
  %v420 = vadd.f32 %v251, %v419
  %v421 = vpop.f32.mrb[0].mxu0
  %422 = vmatprep.mubr.f32.mxu0 %v57
  %423 = vmatmul.mubr.f32.gmra.mrb[0].mxu0 %v56
  %v424 = vpop.f32.mrb[0].mxu0
  %v425 = vadd.f32 %v251, %v424
  %v426 = vpop.f32.mrb[0].mxu0
  %427 = vmatprep.mubr.f32.mxu0 %v59
  %428 = vmatmul.mubr.f32.gmra.mrb[0].mxu0 %v58
  %v429 = vpop.f32.mrb[0].mxu0
  %v430 = vadd.f32 %v251, %v429
  %v431 = vpop.f32.mrb[0].mxu0
  %432 = vmatprep.mubr.f32.mxu0 %v61
  %433 = vmatmul.mubr.f32.gmra.mrb[0].mxu0 %v60
  %v434 = vpop.f32.mrb[0].mxu0
  %v435 = vadd.f32 %v251, %v434
  %v436 = vpop.f32.mrb[0].mxu0
  %437 = vmatprep.mubr.f32.mxu0 %v63
  %438 = vmatmul.mubr.f32.gmra.mrb[0].mxu0 %v62
  %v439 = vpop.f32.mrb[0].mxu0
  %v440 = vadd.f32 %v251, %v439
  %v441 = vpop.f32.mrb[0].mxu0
  %442 = vmatprep.mubr.f32.mxu0 %v65
  %443 = vmatmul.mubr.f32.gmra.mrb[0].mxu0 %v64
  %v444 = vpop.f32.mrb[0].mxu0
  %v445 = vadd.f32 %v251, %v444
  %v446 = vpop.f32.mrb[0].mxu0
  %447 = vmatprep.mubr.f32.mxu0 %v67
  %448 = vmatmul.mubr.f32.gmra.mrb[0].mxu0 %v66
  %v449 = vpop.f32.mrb[0].mxu0
  %v450 = vadd.f32 %v251, %v449
  %v451 = vpop.f32.mrb[0].mxu0
  %452 = vmatprep.mubr.f32.mxu0 %v69
  %453 = vmatmul.mubr.f32.gmra.mrb[0].mxu0 %v68
  %v454 = vpop.f32.mrb[0].mxu0
  %v455 = vadd.f32 %v251, %v454
  %v456 = vpop.f32.mrb[0].mxu0
  %457 = vmatprep.mubr.f32.mxu0 %v71
  %458 = vmatmul.mubr.f32.gmra.mrb[0].mxu0 %v70
  %v459 = vpop.f32.mrb[0].mxu0
  %v460 = vadd.f32 %v251, %v459
  %v461 = vpop.f32.mrb[0].mxu0
  %462 = vmatprep.mubr.f32.mxu0 %v73
  %463 = vmatmul.mubr.f32.gmra.mrb[0].mxu0 %v72
  %v464 = vpop.f32.mrb[0].mxu0
  %v465 = vadd.f32 %v251, %v464
  %v466 = vpop.f32.mrb[0].mxu0
  %467 = vmatprep.mubr.f32.mxu0 %v75
  %468 = vmatmul.mubr.f32.gmra.mrb[0].mxu0 %v74
  %v469 = vpop.f32.mrb[0].mxu0
  %v470 = vadd.f32 %v251, %v469
  %v471 = vpop.f32.mrb[0].mxu0
  %472 = vmatprep.mubr.f32.mxu0 %v77
  %473 = vmatmul.mubr.f32.gmra.mrb[0].mxu0 %v76
  %v474 = vpop.f32.mrb[0].mxu0
  %v475 = vadd.f32 %v251, %v474
  %v476 = vpop.f32.mrb[0].mxu0
  %477 = vmatprep.mubr.f32.mxu0 %v79
  %478 = vmatmul.mubr.f32.gmra.mrb[0].mxu0 %v78
  %v479 = vpop.f32.mrb[0].mxu0
  %v480 = vadd.f32 %v251, %v479
  %v481 = vpop.f32.mrb[0].mxu0
  %482 = vmatprep.mubr.f32.mxu0 %v81
  %483 = vmatmul.mubr.f32.gmra.mrb[0].mxu0 %v80
  %v484 = vpop.f32.mrb[0].mxu0
  %v485 = vadd.f32 %v251, %v484
  %v486 = vpop.f32.mrb[0].mxu0
  %487 = vmatprep.mubr.f32.mxu0 %v83
  %488 = vmatmul.mubr.f32.gmra.mrb[0].mxu0 %v82
  %v489 = vpop.f32.mrb[0].mxu0
  %v490 = vadd.f32 %v251, %v489
  %v491 = vpop.f32.mrb[0].mxu0
  %492 = vmatprep.mubr.f32.mxu0 %v85
  %493 = vmatmul.mubr.f32.gmra.mrb[0].mxu0 %v84
  %v494 = vpop.f32.mrb[0].mxu0
  %v495 = vadd.f32 %v251, %v494
  %v496 = vpop.f32.mrb[0].mxu0
  %497 = vmatprep.mubr.f32.mxu0 %v87
  %498 = vmatmul.mubr.f32.gmra.mrb[0].mxu0 %v86
  %v499 = vpop.f32.mrb[0].mxu0
  %v500 = vadd.f32 %v251, %v499
  %v501 = vpop.f32.mrb[0].mxu0
  %502 = vmatprep.mubr.f32.mxu0 %v89
  %503 = vmatmul.mubr.f32.gmra.mrb[0].mxu0 %v88
  %v504 = vpop.f32.mrb[0].mxu0
  %v505 = vadd.f32 %v251, %v504
  %v506 = vpop.f32.mrb[0].mxu0
  %507 = vmatprep.mubr.f32.mxu0 %v91
  %508 = vmatmul.mubr.f32.gmra.mrb[0].mxu0 %v90
  %v509 = vpop.f32.mrb[0].mxu0
  %v510 = vadd.f32 %v251, %v509
  %v511 = vpop.f32.mrb[0].mxu0
  %512 = vmatprep.mubr.f32.mxu0 %v93
  %513 = vmatmul.mubr.f32.gmra.mrb[0].mxu0 %v92
  %v514 = vpop.f32.mrb[0].mxu0
  %v515 = vadd.f32 %v251, %v514
  %v516 = vpop.f32.mrb[0].mxu0
  %517 = vmatprep.mubr.f32.mxu0 %v95
  %518 = vmatmul.mubr.f32.gmra.mrb[0].mxu0 %v94
  %v519 = vpop.f32.mrb[0].mxu0
  %v520 = vadd.f32 %v251, %v519
  %v521 = vpop.f32.mrb[0].mxu0
  %522 = vmatprep.mubr.f32.mxu0 %v97
  %523 = vmatmul.mubr.f32.gmra.mrb[0].mxu0 %v96
  %v524 = vpop.f32.mrb[0].mxu0
  %v525 = vadd.f32 %v251, %v524
  %v526 = vpop.f32.mrb[0].mxu0
  %527 = vmatprep.mubr.f32.mxu0 %v99
  %528 = vmatmul.mubr.f32.gmra.mrb[0].mxu0 %v98
  %v529 = vpop.f32.mrb[0].mxu0
  %v530 = vadd.f32 %v251, %v529
  %v531 = vpop.f32.mrb[0].mxu0
  %532 = vmatprep.mubr.f32.mxu0 %v101
  %533 = vmatmul.mubr.f32.gmra.mrb[0].mxu0 %v100
  %v534 = vpop.f32.mrb[0].mxu0
  %v535 = vadd.f32 %v251, %v534
  %v536 = vpop.f32.mrb[0].mxu0
  %537 = vmatprep.mubr.f32.mxu0 %v103
  %538 = vmatmul.mubr.f32.gmra.mrb[0].mxu0 %v102
  %v539 = vpop.f32.mrb[0].mxu0
  %v540 = vadd.f32 %v251, %v539
  %v541 = vpop.f32.mrb[0].mxu0
  %542 = vmatprep.mubr.f32.mxu0 %v105
  %543 = vmatmul.mubr.f32.gmra.mrb[0].mxu0 %v104
  %v544 = vpop.f32.mrb[0].mxu0
  %v545 = vadd.f32 %v251, %v544
  %v546 = vpop.f32.mrb[0].mxu0
  %547 = vmatprep.mubr.f32.mxu0 %v107
  %548 = vmatmul.mubr.f32.gmra.mrb[0].mxu0 %v106
  %v549 = vpop.f32.mrb[0].mxu0
  %v550 = vadd.f32 %v251, %v549
  %v551 = vpop.f32.mrb[0].mxu0
  %552 = vmatprep.mubr.f32.mxu0 %v109
  %553 = vmatmul.mubr.f32.gmra.mrb[0].mxu0 %v108
  %v554 = vpop.f32.mrb[0].mxu0
  %v555 = vadd.f32 %v251, %v554
  %v556 = vpop.f32.mrb[0].mxu0
  %557 = vmatprep.mubr.f32.mxu0 %v111
  %558 = vmatmul.mubr.f32.gmra.mrb[0].mxu0 %v110
  %v559 = vpop.f32.mrb[0].mxu0
  %v560 = vadd.f32 %v251, %v559
  %v561 = vpop.f32.mrb[0].mxu0
  %562 = vmatprep.mubr.f32.mxu0 %v113
  %563 = vmatmul.mubr.f32.gmra.mrb[0].mxu0 %v112
  %v564 = vpop.f32.mrb[0].mxu0
  %v565 = vadd.f32 %v251, %v564
  %v566 = vpop.f32.mrb[0].mxu0
  %567 = vmatprep.mubr.f32.mxu0 %v115
  %568 = vmatmul.mubr.f32.gmra.mrb[0].mxu0 %v114
  %v569 = vpop.f32.mrb[0].mxu0
  %v570 = vadd.f32 %v251, %v569
  %v571 = vpop.f32.mrb[0].mxu0
  %572 = vmatprep.mubr.f32.mxu0 %v117
  %573 = vmatmul.mubr.f32.gmra.mrb[0].mxu0 %v116
  %v574 = vpop.f32.mrb[0].mxu0
  %v575 = vadd.f32 %v251, %v574
  %v576 = vpop.f32.mrb[0].mxu0
  %577 = vmatprep.mubr.f32.mxu0 %v119
  %578 = vmatmul.mubr.f32.gmra.mrb[0].mxu0 %v118
  %v579 = vpop.f32.mrb[0].mxu0
  %v580 = vadd.f32 %v251, %v579
  %v581 = vpop.f32.mrb[0].mxu0
  %582 = vmatprep.mubr.f32.mxu0 %v121
  %583 = vmatmul.mubr.f32.gmra.mrb[0].mxu0 %v120
  %v584 = vpop.f32.mrb[0].mxu0
  %v585 = vadd.f32 %v251, %v584
  %v586 = vpop.f32.mrb[0].mxu0
  %587 = vmatprep.mubr.f32.mxu0 %v123
  %588 = vmatmul.mubr.f32.gmra.mrb[0].mxu0 %v122
  %v589 = vpop.f32.mrb[0].mxu0
  %v590 = vadd.f32 %v251, %v589
  %v591 = vpop.f32.mrb[0].mxu0
  %592 = vmatprep.mubr.f32.mxu0 %v125
  %593 = vmatmul.mubr.f32.gmra.mrb[0].mxu0 %v124
  %v594 = vpop.f32.mrb[0].mxu0
  %v595 = vadd.f32 %v251, %v594
  %v596 = vpop.f32.mrb[0].mxu0
  %597 = vmatprep.mubr.f32.mxu0 %v127
  %598 = vmatmul.mubr.f32.gmra.mrb[0].mxu0 %v126
  %v599 = vpop.f32.mrb[0].mxu0
  %v600 = vadd.f32 %v251, %v599
  %v601 = vpop.f32.mrb[0].mxu0
  %602 = vmatprep.mubr.f32.mxu0 %v129
  %603 = vmatmul.mubr.f32.gmra.mrb[0].mxu0 %v128
  %v604 = vpop.f32.mrb[0].mxu0
  %v605 = vadd.f32 %v251, %v604
  %v606 = vpop.f32.mrb[0].mxu0
  %607 = vmatprep.mubr.f32.mxu0 %v131
  %608 = vmatmul.mubr.f32.gmra.mrb[0].mxu0 %v130
  %v609 = vpop.f32.mrb[0].mxu0
  %v610 = vadd.f32 %v251, %v609
  %v611 = vpop.f32.mrb[0].mxu0
  %612 = vmatprep.mubr.f32.mxu0 %v133
  %613 = vmatmul.mubr.f32.gmra.mrb[0].mxu0 %v132
  %v614 = vpop.f32.mrb[0].mxu0
  %v615 = vadd.f32 %v251, %v614
  %v616 = vpop.f32.mrb[0].mxu0
  %617 = vmatprep.mubr.f32.mxu0 %v135
  %618 = vmatmul.mubr.f32.gmra.mrb[0].mxu0 %v134
  %v619 = vpop.f32.mrb[0].mxu0
  %v620 = vadd.f32 %v251, %v619
  %v621 = vpop.f32.mrb[0].mxu0
  %622 = vmatprep.mubr.f32.mxu0 %v137
  %623 = vmatmul.mubr.f32.gmra.mrb[0].mxu0 %v136
  %v624 = vpop.f32.mrb[0].mxu0
  %v625 = vadd.f32 %v251, %v624
  %v626 = vpop.f32.mrb[0].mxu0
  %627 = vmatprep.mubr.f32.mxu0 %v139
  %628 = vmatmul.mubr.f32.gmra.mrb[0].mxu0 %v138
  %v629 = vpop.f32.mrb[0].mxu0
  %v630 = vadd.f32 %v251, %v629
  %v631 = vpop.f32.mrb[0].mxu0
  %632 = vmatprep.mubr.f32.mxu0 %v141
  %633 = vmatmul.mubr.f32.gmra.mrb[0].mxu0 %v140
  %v634 = vpop.f32.mrb[0].mxu0
  %v635 = vadd.f32 %v251, %v634
  %v636 = vpop.f32.mrb[0].mxu0
  %637 = vmatprep.mubr.f32.mxu0 %v143
  %638 = vmatmul.mubr.f32.gmra.mrb[0].mxu0 %v142
  %v639 = vpop.f32.mrb[0].mxu0
  %v640 = vadd.f32 %v251, %v639
  %v641 = vpop.f32.mrb[0].mxu0
  %642 = vmatprep.mubr.f32.mxu0 %v145
  %643 = vmatmul.mubr.f32.gmra.mrb[0].mxu0 %v144
  %v644 = vpop.f32.mrb[0].mxu0
  %v645 = vadd.f32 %v251, %v644
  %v646 = vpop.f32.mrb[0].mxu0
  %647 = vmatprep.mubr.f32.mxu0 %v147
  %648 = vmatmul.mubr.f32.gmra.mrb[0].mxu0 %v146
  %v649 = vpop.f32.mrb[0].mxu0
  %v650 = vadd.f32 %v251, %v649
  %v651 = vpop.f32.mrb[0].mxu0
  %652 = vmatprep.mubr.f32.mxu0 %v149
  %653 = vmatmul.mubr.f32.gmra.mrb[0].mxu0 %v148
  %v654 = vpop.f32.mrb[0].mxu0
  %v655 = vadd.f32 %v251, %v654
  %v656 = vpop.f32.mrb[0].mxu0
  %657 = vmatprep.mubr.f32.mxu0 %v151
  %658 = vmatmul.mubr.f32.gmra.mrb[0].mxu0 %v150
  %v659 = vpop.f32.mrb[0].mxu0
  %v660 = vadd.f32 %v251, %v659
  %v661 = vpop.f32.mrb[0].mxu0
  %662 = vmatprep.mubr.f32.mxu0 %v153
  %663 = vmatmul.mubr.f32.gmra.mrb[0].mxu0 %v152
  %v664 = vpop.f32.mrb[0].mxu0
  %v665 = vadd.f32 %v251, %v664
  %v666 = vpop.f32.mrb[0].mxu0
  %667 = vmatprep.mubr.f32.mxu0 %v155
  %668 = vmatmul.mubr.f32.gmra.mrb[0].mxu0 %v154
  %v669 = vpop.f32.mrb[0].mxu0
  %v670 = vadd.f32 %v251, %v669
  %v671 = vpop.f32.mrb[0].mxu0
  %672 = vmatprep.mubr.f32.mxu0 %v157
  %673 = vmatmul.mubr.f32.gmra.mrb[0].mxu0 %v156
  %v674 = vpop.f32.mrb[0].mxu0
  %v675 = vadd.f32 %v251, %v674
  %v676 = vpop.f32.mrb[0].mxu0
  %677 = vmatprep.mubr.f32.mxu0 %v159
  %678 = vmatmul.mubr.f32.gmra.mrb[0].mxu0 %v158
  %v679 = vpop.f32.mrb[0].mxu0
  %v680 = vadd.f32 %v251, %v679
  %v681 = vpop.f32.mrb[0].mxu0
  %682 = vmatprep.mubr.f32.mxu0 %v161
  %683 = vmatmul.mubr.f32.gmra.mrb[0].mxu0 %v160
  %v684 = vpop.f32.mrb[0].mxu0
  %v685 = vadd.f32 %v251, %v684
  %v686 = vpop.f32.mrb[0].mxu0
  %687 = vmatprep.mubr.f32.mxu0 %v163
  %688 = vmatmul.mubr.f32.gmra.mrb[0].mxu0 %v162
  %v689 = vpop.f32.mrb[0].mxu0
  %v690 = vadd.f32 %v251, %v689
  %v691 = vpop.f32.mrb[0].mxu0
  %692 = vmatprep.mubr.f32.mxu0 %v165
  %693 = vmatmul.mubr.f32.gmra.mrb[0].mxu0 %v164
  %v694 = vpop.f32.mrb[0].mxu0
  %v695 = vadd.f32 %v251, %v694
  %v696 = vpop.f32.mrb[0].mxu0
  %697 = vmatprep.mubr.f32.mxu0 %v167
  %698 = vmatmul.mubr.f32.gmra.mrb[0].mxu0 %v166
  %v699 = vpop.f32.mrb[0].mxu0
  %v700 = vadd.f32 %v251, %v699
  %v701 = vpop.f32.mrb[0].mxu0
  %702 = vmatprep.mubr.f32.mxu0 %v169
  %703 = vmatmul.mubr.f32.gmra.mrb[0].mxu0 %v168
  %v704 = vpop.f32.mrb[0].mxu0
  %v705 = vadd.f32 %v251, %v704
  %v706 = vpop.f32.mrb[0].mxu0
  %707 = vmatprep.mubr.f32.mxu0 %v171
  %708 = vmatmul.mubr.f32.gmra.mrb[0].mxu0 %v170
  %v709 = vpop.f32.mrb[0].mxu0
  %v710 = vadd.f32 %v251, %v709
  %v711 = vpop.f32.mrb[0].mxu0
  %712 = vmatprep.mubr.f32.mxu0 %v173
  %713 = vmatmul.mubr.f32.gmra.mrb[0].mxu0 %v172
  %v714 = vpop.f32.mrb[0].mxu0
  %v715 = vadd.f32 %v251, %v714
  %v716 = vpop.f32.mrb[0].mxu0
  %717 = vmatprep.mubr.f32.mxu0 %v175
  %718 = vmatmul.mubr.f32.gmra.mrb[0].mxu0 %v174
  %v719 = vpop.f32.mrb[0].mxu0
  %v720 = vadd.f32 %v251, %v719
  %v721 = vpop.f32.mrb[0].mxu0
  %722 = vmatprep.mubr.f32.mxu0 %v177
  %723 = vmatmul.mubr.f32.gmra.mrb[0].mxu0 %v176
  %v724 = vpop.f32.mrb[0].mxu0
  %v725 = vadd.f32 %v251, %v724
  %v726 = vpop.f32.mrb[0].mxu0
  %727 = vmatprep.mubr.f32.mxu0 %v179
  %728 = vmatmul.mubr.f32.gmra.mrb[0].mxu0 %v178
  %v729 = vpop.f32.mrb[0].mxu0
  %v730 = vadd.f32 %v251, %v729
  %v731 = vpop.f32.mrb[0].mxu0
  %732 = vmatprep.mubr.f32.mxu0 %v181
  %733 = vmatmul.mubr.f32.gmra.mrb[0].mxu0 %v180
  %v734 = vpop.f32.mrb[0].mxu0
  %v735 = vadd.f32 %v251, %v734
  %v736 = vpop.f32.mrb[0].mxu0
  %737 = vmatprep.mubr.f32.mxu0 %v183
  %738 = vmatmul.mubr.f32.gmra.mrb[0].mxu0 %v182
  %v739 = vpop.f32.mrb[0].mxu0
  %v740 = vadd.f32 %v251, %v739
  %v741 = vpop.f32.mrb[0].mxu0
  %742 = vmatprep.mubr.f32.mxu0 %v185
  %743 = vmatmul.mubr.f32.gmra.mrb[0].mxu0 %v184
  %v744 = vpop.f32.mrb[0].mxu0
  %v745 = vadd.f32 %v251, %v744
  %v746 = vpop.f32.mrb[0].mxu0
  %747 = vmatprep.mubr.f32.mxu0 %v187
  %748 = vmatmul.mubr.f32.gmra.mrb[0].mxu0 %v186
  %v749 = vpop.f32.mrb[0].mxu0
  %v750 = vadd.f32 %v251, %v749
  %v751 = vpop.f32.mrb[0].mxu0
  %752 = vmatprep.mubr.f32.mxu0 %v189
  %753 = vmatmul.mubr.f32.gmra.mrb[0].mxu0 %v188
  %v754 = vpop.f32.mrb[0].mxu0
  %v755 = vadd.f32 %v251, %v754
  %v756 = vpop.f32.mrb[0].mxu0
  %757 = vmatprep.mubr.f32.mxu0 %v191
  %758 = vmatmul.mubr.f32.gmra.mrb[0].mxu0 %v190
  %v759 = vpop.f32.mrb[0].mxu0
  %v760 = vadd.f32 %v251, %v759
  %v761 = vpop.f32.mrb[0].mxu0
  %762 = vmatprep.mubr.f32.mxu0 %v193
  %763 = vmatmul.mubr.f32.gmra.mrb[0].mxu0 %v192
  %v764 = vpop.f32.mrb[0].mxu0
  %v765 = vadd.f32 %v251, %v764
  %v766 = vpop.f32.mrb[0].mxu0
  %767 = vmatprep.mubr.f32.mxu0 %v195
  %768 = vmatmul.mubr.f32.gmra.mrb[0].mxu0 %v194
  %v769 = vpop.f32.mrb[0].mxu0
  %v770 = vadd.f32 %v251, %v769
  %v771 = vpop.f32.mrb[0].mxu0
  %772 = vmatprep.mubr.f32.mxu0 %v197
  %773 = vmatmul.mubr.f32.gmra.mrb[0].mxu0 %v196
  %v774 = vpop.f32.mrb[0].mxu0
  %v775 = vadd.f32 %v251, %v774
  %v776 = vpop.f32.mrb[0].mxu0
  %777 = vmatprep.mubr.f32.mxu0 %v199
  %778 = vmatmul.mubr.f32.gmra.mrb[0].mxu0 %v198
  %v779 = vpop.f32.mrb[0].mxu0
  %v780 = vadd.f32 %v251, %v779
  %v781 = vpop.f32.mrb[0].mxu0
  %782 = vmatprep.mubr.f32.mxu0 %v201
  %783 = vmatmul.mubr.f32.gmra.mrb[0].mxu0 %v200
  %v784 = vpop.f32.mrb[0].mxu0
  %v785 = vadd.f32 %v251, %v784
  %v786 = vpop.f32.mrb[0].mxu0
  %787 = vmatprep.mubr.f32.mxu0 %v203
  %788 = vmatmul.mubr.f32.gmra.mrb[0].mxu0 %v202
  %v789 = vpop.f32.mrb[0].mxu0
  %v790 = vadd.f32 %v251, %v789
  %v791 = vpop.f32.mrb[0].mxu0
  %792 = vmatprep.mubr.f32.mxu0 %v205
  %793 = vmatmul.mubr.f32.gmra.mrb[0].mxu0 %v204
  %v794 = vpop.f32.mrb[0].mxu0
  %v795 = vadd.f32 %v251, %v794
  %v796 = vpop.f32.mrb[0].mxu0
  %797 = vmatprep.mubr.f32.mxu0 %v207
  %798 = vmatmul.mubr.f32.gmra.mrb[0].mxu0 %v206
  %v799 = vpop.f32.mrb[0].mxu0
  %v800 = vadd.f32 %v251, %v799
  %v801 = vpop.f32.mrb[0].mxu0
  %802 = vmatprep.mubr.f32.mxu0 %v209
  %803 = vmatmul.mubr.f32.gmra.mrb[0].mxu0 %v208
  %v804 = vpop.f32.mrb[0].mxu0
  %v805 = vadd.f32 %v251, %v804
  %v806 = vpop.f32.mrb[0].mxu0
  %807 = vmatprep.mubr.f32.mxu0 %v211
  %808 = vmatmul.mubr.f32.gmra.mrb[0].mxu0 %v210
  %v809 = vpop.f32.mrb[0].mxu0
  %v810 = vadd.f32 %v251, %v809
  %v811 = vpop.f32.mrb[0].mxu0
  %812 = vmatprep.mubr.f32.mxu0 %v213
  %813 = vmatmul.mubr.f32.gmra.mrb[0].mxu0 %v212
  %v814 = vpop.f32.mrb[0].mxu0
  %v815 = vadd.f32 %v251, %v814
  %v816 = vpop.f32.mrb[0].mxu0
  %817 = vdwg.mxu0
  %v818 = vmax.f32 %v320, 0.0
  %v819 = vmax.f32 %v325, 0.0
  %v820 = vmax.f32 %v330, 0.0
  %v821 = vmax.f32 %v335, 0.0
  %v822 = vmax.f32 %v340, 0.0
  %v823 = vmax.f32 %v345, 0.0
  %v824 = vmax.f32 %v350, 0.0
  %v825 = vmax.f32 %v355, 0.0
  %v826 = vmax.f32 %v360, 0.0
  %v827 = vmax.f32 %v365, 0.0
  %v828 = vmax.f32 %v370, 0.0
  %v829 = vmax.f32 %v375, 0.0
  %v830 = vmax.f32 %v380, 0.0
  %v831 = vmax.f32 %v385, 0.0
  %v832 = vmax.f32 %v390, 0.0
  %v833 = vmax.f32 %v395, 0.0
  %v834 = vmax.f32 %v400, 0.0
  %v835 = vmax.f32 %v405, 0.0
  %v836 = vmax.f32 %v410, 0.0
  %v837 = vmax.f32 %v415, 0.0
  %v838 = vmax.f32 %v420, 0.0
  %v839 = vmax.f32 %v425, 0.0
  %v840 = vmax.f32 %v430, 0.0
  %v841 = vmax.f32 %v435, 0.0
  %v842 = vmax.f32 %v440, 0.0
  %v843 = vmax.f32 %v445, 0.0
  %v844 = vmax.f32 %v450, 0.0
  %v845 = vmax.f32 %v455, 0.0
  %v846 = vmax.f32 %v460, 0.0
  %v847 = vmax.f32 %v465, 0.0
  %v848 = vmax.f32 %v470, 0.0
  %v849 = vmax.f32 %v475, 0.0
  %v850 = vmax.f32 %v480, 0.0
  %v851 = vmax.f32 %v485, 0.0
  %v852 = vmax.f32 %v490, 0.0
  %v853 = vmax.f32 %v495, 0.0
  %v854 = vmax.f32 %v500, 0.0
  %v855 = vmax.f32 %v505, 0.0
  %v856 = vmax.f32 %v510, 0.0
  %v857 = vmax.f32 %v515, 0.0
  %v858 = vmax.f32 %v520, 0.0
  %v859 = vmax.f32 %v525, 0.0
  %v860 = vmax.f32 %v530, 0.0
  %v861 = vmax.f32 %v535, 0.0
  %v862 = vmax.f32 %v540, 0.0
  %v863 = vmax.f32 %v545, 0.0
  %v864 = vmax.f32 %v550, 0.0
  %v865 = vmax.f32 %v555, 0.0
  %v866 = vmax.f32 %v560, 0.0
  %v867 = vmax.f32 %v565, 0.0
  %v868 = vmax.f32 %v570, 0.0
  %v869 = vmax.f32 %v575, 0.0
  %v870 = vmax.f32 %v580, 0.0
  %v871 = vmax.f32 %v585, 0.0
  %v872 = vmax.f32 %v590, 0.0
  %v873 = vmax.f32 %v595, 0.0
  %v874 = vmax.f32 %v600, 0.0
  %v875 = vmax.f32 %v605, 0.0
  %v876 = vmax.f32 %v610, 0.0
  %v877 = vmax.f32 %v615, 0.0
  %v878 = vmax.f32 %v620, 0.0
  %v879 = vmax.f32 %v625, 0.0
  %v880 = vmax.f32 %v630, 0.0
  %v881 = vmax.f32 %v635, 0.0
  %v882 = vmax.f32 %v640, 0.0
  %v883 = vmax.f32 %v645, 0.0
  %v884 = vmax.f32 %v650, 0.0
  %v885 = vmax.f32 %v655, 0.0
  %v886 = vmax.f32 %v660, 0.0
  %v887 = vmax.f32 %v665, 0.0
  %v888 = vmax.f32 %v670, 0.0
  %v889 = vmax.f32 %v675, 0.0
  %v890 = vmax.f32 %v680, 0.0
  %v891 = vmax.f32 %v685, 0.0
  %v892 = vmax.f32 %v690, 0.0
  %v893 = vmax.f32 %v695, 0.0
  %v894 = vmax.f32 %v700, 0.0
  %v895 = vmax.f32 %v705, 0.0
  %v896 = vmax.f32 %v710, 0.0
  %v897 = vmax.f32 %v715, 0.0
  %v898 = vmax.f32 %v720, 0.0
  %v899 = vmax.f32 %v725, 0.0
  %v900 = vmax.f32 %v730, 0.0
  %v901 = vmax.f32 %v735, 0.0
  %v902 = vmax.f32 %v740, 0.0
  %v903 = vmax.f32 %v745, 0.0
  %v904 = vmax.f32 %v750, 0.0
  %v905 = vmax.f32 %v755, 0.0
  %v906 = vmax.f32 %v760, 0.0
  %v907 = vmax.f32 %v765, 0.0
  %v908 = vmax.f32 %v770, 0.0
  %v909 = vmax.f32 %v775, 0.0
  %v910 = vmax.f32 %v780, 0.0
  %v911 = vmax.f32 %v785, 0.0
  %v912 = vmax.f32 %v790, 0.0
  %v913 = vmax.f32 %v795, 0.0
  %v914 = vmax.f32 %v800, 0.0
  %v915 = vmax.f32 %v805, 0.0
  %v916 = vmax.f32 %v810, 0.0
  %v917 = vmax.f32 %v815, 0.0
  %vm918 = vcmask 261120
  %919 = vst.msk [vmem:[%s3] sm:$0xff] %vm918, %v818
  %920 = vst.msk [vmem:[%s3 + $0x8] sm:$0xff] %vm918, %v819
  %921 = vst.msk [vmem:[%s3 + $0x10] sm:$0xff] %vm918, %v820
  %922 = vst.msk [vmem:[%s3 + $0x18] sm:$0xff] %vm918, %v821
  %923 = vst.msk [vmem:[%s3 + $0x20] sm:$0xff] %vm918, %v822
  %924 = vst.msk [vmem:[%s3 + $0x28] sm:$0xff] %vm918, %v823
  %925 = vst.msk [vmem:[%s3 + $0x30] sm:$0xff] %vm918, %v824
  %926 = vst.msk [vmem:[%s3 + $0x38] sm:$0xff] %vm918, %v825
  %927 = vst.msk [vmem:[%s3 + $0x40] sm:$0xff] %vm918, %v826
  %928 = vst.msk [vmem:[%s3 + $0x48] sm:$0xff] %vm918, %v827
  %929 = vst.msk [vmem:[%s3 + $0x50] sm:$0xff] %vm918, %v828
  %930 = vst.msk [vmem:[%s3 + $0x58] sm:$0xff] %vm918, %v829
  %931 = vst.msk [vmem:[%s3 + $0x60] sm:$0xff] %vm918, %v830
  %932 = vst.msk [vmem:[%s3 + $0x68] sm:$0xff] %vm918, %v831
  %933 = vst.msk [vmem:[%s3 + $0x70] sm:$0xff] %vm918, %v832
  %934 = vst.msk [vmem:[%s3 + $0x78] sm:$0xff] %vm918, %v833
  %935 = vst.msk [vmem:[%s3 + $0x80] sm:$0xff] %vm918, %v834
  %936 = vst.msk [vmem:[%s3 + $0x88] sm:$0xff] %vm918, %v835
  %937 = vst.msk [vmem:[%s3 + $0x90] sm:$0xff] %vm918, %v836
  %938 = vst.msk [vmem:[%s3 + $0x98] sm:$0xff] %vm918, %v837
  %939 = vst.msk [vmem:[%s3 + $0xa0] sm:$0xff] %vm918, %v838
  %940 = vst.msk [vmem:[%s3 + $0xa8] sm:$0xff] %vm918, %v839
  %941 = vst.msk [vmem:[%s3 + $0xb0] sm:$0xff] %vm918, %v840
  %942 = vst.msk [vmem:[%s3 + $0xb8] sm:$0xff] %vm918, %v841
  %943 = vst.msk [vmem:[%s3 + $0xc0] sm:$0xff] %vm918, %v842
  %944 = vst.msk [vmem:[%s3 + $0xc8] sm:$0xff] %vm918, %v843
  %945 = vst.msk [vmem:[%s3 + $0xd0] sm:$0xff] %vm918, %v844
  %946 = vst.msk [vmem:[%s3 + $0xd8] sm:$0xff] %vm918, %v845
  %947 = vst.msk [vmem:[%s3 + $0xe0] sm:$0xff] %vm918, %v846
  %948 = vst.msk [vmem:[%s3 + $0xe8] sm:$0xff] %vm918, %v847
  %949 = vst.msk [vmem:[%s3 + $0xf0] sm:$0xff] %vm918, %v848
  %950 = vst.msk [vmem:[%s3 + $0xf8] sm:$0xff] %vm918, %v849
  %951 = vst.msk [vmem:[%s3 + $0x100] sm:$0xff] %vm918, %v850
  %952 = vst.msk [vmem:[%s3 + $0x108] sm:$0xff] %vm918, %v851
  %953 = vst.msk [vmem:[%s3 + $0x110] sm:$0xff] %vm918, %v852
  %954 = vst.msk [vmem:[%s3 + $0x118] sm:$0xff] %vm918, %v853
  %955 = vst.msk [vmem:[%s3 + $0x120] sm:$0xff] %vm918, %v854
  %956 = vst.msk [vmem:[%s3 + $0x128] sm:$0xff] %vm918, %v855
  %957 = vst.msk [vmem:[%s3 + $0x130] sm:$0xff] %vm918, %v856
  %958 = vst.msk [vmem:[%s3 + $0x138] sm:$0xff] %vm918, %v857
  %959 = vst.msk [vmem:[%s3 + $0x140] sm:$0xff] %vm918, %v858
  %960 = vst.msk [vmem:[%s3 + $0x148] sm:$0xff] %vm918, %v859
  %961 = vst.msk [vmem:[%s3 + $0x150] sm:$0xff] %vm918, %v860
  %962 = vst.msk [vmem:[%s3 + $0x158] sm:$0xff] %vm918, %v861
  %963 = vst.msk [vmem:[%s3 + $0x160] sm:$0xff] %vm918, %v862
  %964 = vst.msk [vmem:[%s3 + $0x168] sm:$0xff] %vm918, %v863
  %965 = vst.msk [vmem:[%s3 + $0x170] sm:$0xff] %vm918, %v864
  %966 = vst.msk [vmem:[%s3 + $0x178] sm:$0xff] %vm918, %v865
  %967 = vst.msk [vmem:[%s3 + $0x180] sm:$0xff] %vm918, %v866
  %968 = vst.msk [vmem:[%s3 + $0x188] sm:$0xff] %vm918, %v867
  %969 = vst.msk [vmem:[%s3 + $0x190] sm:$0xff] %vm918, %v868
  %970 = vst.msk [vmem:[%s3 + $0x198] sm:$0xff] %vm918, %v869
  %971 = vst.msk [vmem:[%s3 + $0x1a0] sm:$0xff] %vm918, %v870
  %972 = vst.msk [vmem:[%s3 + $0x1a8] sm:$0xff] %vm918, %v871
  %973 = vst.msk [vmem:[%s3 + $0x1b0] sm:$0xff] %vm918, %v872
  %974 = vst.msk [vmem:[%s3 + $0x1b8] sm:$0xff] %vm918, %v873
  %975 = vst.msk [vmem:[%s3 + $0x1c0] sm:$0xff] %vm918, %v874
  %976 = vst.msk [vmem:[%s3 + $0x1c8] sm:$0xff] %vm918, %v875
  %977 = vst.msk [vmem:[%s3 + $0x1d0] sm:$0xff] %vm918, %v876
  %978 = vst.msk [vmem:[%s3 + $0x1d8] sm:$0xff] %vm918, %v877
  %979 = vst.msk [vmem:[%s3 + $0x1e0] sm:$0xff] %vm918, %v878
  %980 = vst.msk [vmem:[%s3 + $0x1e8] sm:$0xff] %vm918, %v879
  %981 = vst.msk [vmem:[%s3 + $0x1f0] sm:$0xff] %vm918, %v880
  %982 = vst.msk [vmem:[%s3 + $0x1f8] sm:$0xff] %vm918, %v881
  %983 = vst.msk [vmem:[%s3 + $0x200] sm:$0xff] %vm918, %v882
  %984 = vst.msk [vmem:[%s3 + $0x208] sm:$0xff] %vm918, %v883
  %985 = vst.msk [vmem:[%s3 + $0x210] sm:$0xff] %vm918, %v884
  %986 = vst.msk [vmem:[%s3 + $0x218] sm:$0xff] %vm918, %v885
  %987 = vst.msk [vmem:[%s3 + $0x220] sm:$0xff] %vm918, %v886
  %988 = vst.msk [vmem:[%s3 + $0x228] sm:$0xff] %vm918, %v887
  %989 = vst.msk [vmem:[%s3 + $0x230] sm:$0xff] %vm918, %v888
  %990 = vst.msk [vmem:[%s3 + $0x238] sm:$0xff] %vm918, %v889
  %991 = vst.msk [vmem:[%s3 + $0x240] sm:$0xff] %vm918, %v890
  %992 = vst.msk [vmem:[%s3 + $0x248] sm:$0xff] %vm918, %v891
  %993 = vst.msk [vmem:[%s3 + $0x250] sm:$0xff] %vm918, %v892
  %994 = vst.msk [vmem:[%s3 + $0x258] sm:$0xff] %vm918, %v893
  %995 = vst.msk [vmem:[%s3 + $0x260] sm:$0xff] %vm918, %v894
  %996 = vst.msk [vmem:[%s3 + $0x268] sm:$0xff] %vm918, %v895
  %997 = vst.msk [vmem:[%s3 + $0x270] sm:$0xff] %vm918, %v896
  %998 = vst.msk [vmem:[%s3 + $0x278] sm:$0xff] %vm918, %v897
  %999 = vst.msk [vmem:[%s3 + $0x280] sm:$0xff] %vm918, %v898
  %1000 = vst.msk [vmem:[%s3 + $0x288] sm:$0xff] %vm918, %v899
  %1001 = vst.msk [vmem:[%s3 + $0x290] sm:$0xff] %vm918, %v900
  %1002 = vst.msk [vmem:[%s3 + $0x298] sm:$0xff] %vm918, %v901
  %1003 = vst.msk [vmem:[%s3 + $0x2a0] sm:$0xff] %vm918, %v902
  %1004 = vst.msk [vmem:[%s3 + $0x2a8] sm:$0xff] %vm918, %v903
  %1005 = vst.msk [vmem:[%s3 + $0x2b0] sm:$0xff] %vm918, %v904
  %1006 = vst.msk [vmem:[%s3 + $0x2b8] sm:$0xff] %vm918, %v905
  %1007 = vst.msk [vmem:[%s3 + $0x2c0] sm:$0xff] %vm918, %v906
  %1008 = vst.msk [vmem:[%s3 + $0x2c8] sm:$0xff] %vm918, %v907
  %1009 = vst.msk [vmem:[%s3 + $0x2d0] sm:$0xff] %vm918, %v908
  %1010 = vst.msk [vmem:[%s3 + $0x2d8] sm:$0xff] %vm918, %v909
  %1011 = vst.msk [vmem:[%s3 + $0x2e0] sm:$0xff] %vm918, %v910
  %1012 = vst.msk [vmem:[%s3 + $0x2e8] sm:$0xff] %vm918, %v911
  %1013 = vst.msk [vmem:[%s3 + $0x2f0] sm:$0xff] %vm918, %v912
  %1014 = vst.msk [vmem:[%s3 + $0x2f8] sm:$0xff] %vm918, %v913
  %1015 = vst.msk [vmem:[%s3 + $0x300] sm:$0xff] %vm918, %v914
  %1016 = vst.msk [vmem:[%s3 + $0x308] sm:$0xff] %vm918, %v915
  %1017 = vst.msk [vmem:[%s3 + $0x310] sm:$0xff] %vm918, %v916
  %1018 = vst.msk [vmem:[%s3 + $0x318] sm:$0xff] %vm918, %v917
  // Predicated region
  $region14: #{encoder_like_dqn_forward.4} parent=0 // pred_check
    _
  $region15: #{encoder_like_dqn_forward.4} parent=0 // pred_check_branch
    %1020 = sbr.rel (0) target = $region17
  $region16: #{encoder_like_dqn_forward.4} parent=0 // pred_region
    _
  $region17: #{encoder_like_dqn_forward.4} parent=0 // pred_fallthru
    _
  // Predicated region
  $region18: #{encoder_like_dqn_forward.4} parent=0 // pred_check
    _
  $region19: #{encoder_like_dqn_forward.4} parent=0 // pred_check_branch
    %1022 = sbr.rel (0) target = $region21
  $region20: #{encoder_like_dqn_forward.4} parent=0 // pred_region
    _
  $region21: #{encoder_like_dqn_forward.4} parent=0 // pred_fallthru
    _

// kernel: encoder_like_dqn_forward.5
$region0: #{encoder_like_dqn_forward.5}
  #allocation0 [shape = 'u32[]', space=smem, size = 0x4, offset = 0x4, fixed_abs, tag = 'smem constant byte address 0x4 - core index']
  #allocation1 [shape = 'u32[144,128]{1,0:T(1,128)}', space=vmem, size = 0x12000, scoped, tag = 'internal scratch']
  %s0 = inlined_call_operand.vmem [shape: f32[200,512], index: 0, kind: input, shape index: {}]
  %s1 = inlined_call_operand.vmem [shape: f32[512,32], index: 1, kind: input, shape index: {}]
  %s2 = inlined_call_operand.vmem [shape: f32[1,32], index: 2, kind: input, shape index: {}]
  %s3 = inlined_call_operand.vmem [shape: f32[200,32], index: 3, kind: output, shape index: {}]
  %s4 = sld [smem:[#allocation0]]
  $region22: #{encoder_like_dqn_forward.5} parent=0
    _
  %s6 = ssub.s32 1, %s4
  %s7 = scalar_select 0, %s6, %s4
  // Predicated region
  $region2: #{encoder_like_dqn_forward.5} parent=0 // pred_check
    _
  $region3: #{encoder_like_dqn_forward.5} parent=0 // pred_check_branch
    %9 = sbr.rel (0) target = $region5
  $region4: #{encoder_like_dqn_forward.5} parent=0 // pred_region
    _
  $region5: #{encoder_like_dqn_forward.5} parent=0 // pred_fallthru
    _
  // Predicated region
  $region6: #{encoder_like_dqn_forward.5} parent=0 // pred_check
    _
  $region7: #{encoder_like_dqn_forward.5} parent=0 // pred_check_branch
    %11 = sbr.rel (0) target = $region9
  $region8: #{encoder_like_dqn_forward.5} parent=0 // pred_region
    _
  $region9: #{encoder_like_dqn_forward.5} parent=0 // pred_fallthru
    _
  // Predicated region
  $region10: #{encoder_like_dqn_forward.5} parent=0 // pred_check
    _
  $region11: #{encoder_like_dqn_forward.5} parent=0 // pred_check_branch
    %13 = sbr.rel (0) target = $region13
  $region12: #{encoder_like_dqn_forward.5} parent=0 // pred_region
    _
  $region13: #{encoder_like_dqn_forward.5} parent=0 // pred_fallthru
    _
  %v14 = vld [vmem:[%s0] sm:$0xff]
  %v15 = vld [vmem:[%s0 + $0x8] sm:$0xff]
  %v16 = vld [vmem:[%s0 + $0x10] sm:$0xff]
  %v17 = vld [vmem:[%s0 + $0x18] sm:$0xff]
  %v18 = vld [vmem:[%s0 + $0x20] sm:$0xff]
  %v19 = vld [vmem:[%s0 + $0x28] sm:$0xff]
  %v20 = vld [vmem:[%s0 + $0x30] sm:$0xff]
  %v21 = vld [vmem:[%s0 + $0x38] sm:$0xff]
  %v22 = vld [vmem:[%s0 + $0x40] sm:$0xff]
  %v23 = vld [vmem:[%s0 + $0x48] sm:$0xff]
  %v24 = vld [vmem:[%s0 + $0x50] sm:$0xff]
  %v25 = vld [vmem:[%s0 + $0x58] sm:$0xff]
  %v26 = vld [vmem:[%s0 + $0x60] sm:$0xff]
  %v27 = vld [vmem:[%s0 + $0x68] sm:$0xff]
  %v28 = vld [vmem:[%s0 + $0x70] sm:$0xff]
  %v29 = vld [vmem:[%s0 + $0x78] sm:$0xff]
  %v30 = vld [vmem:[%s0 + $0x80] sm:$0xff]
  %v31 = vld [vmem:[%s0 + $0x88] sm:$0xff]
  %v32 = vld [vmem:[%s0 + $0x90] sm:$0xff]
  %v33 = vld [vmem:[%s0 + $0x98] sm:$0xff]
  %v34 = vld [vmem:[%s0 + $0xa0] sm:$0xff]
  %v35 = vld [vmem:[%s0 + $0xa8] sm:$0xff]
  %v36 = vld [vmem:[%s0 + $0xb0] sm:$0xff]
  %v37 = vld [vmem:[%s0 + $0xb8] sm:$0xff]
  %v38 = vld [vmem:[%s0 + $0xc0] sm:$0xff]
  %v39 = vld [vmem:[%s0 + $0xc8] sm:$0xff]
  %v40 = vld [vmem:[%s0 + $0xd0] sm:$0xff]
  %v41 = vld [vmem:[%s0 + $0xd8] sm:$0xff]
  %v42 = vld [vmem:[%s0 + $0xe0] sm:$0xff]
  %v43 = vld [vmem:[%s0 + $0xe8] sm:$0xff]
  %v44 = vld [vmem:[%s0 + $0xf0] sm:$0xff]
  %v45 = vld [vmem:[%s0 + $0xf8] sm:$0xff]
  %v46 = vld [vmem:[%s0 + $0x100] sm:$0xff]
  %v47 = vld [vmem:[%s0 + $0x108] sm:$0xff]
  %v48 = vld [vmem:[%s0 + $0x110] sm:$0xff]
  %v49 = vld [vmem:[%s0 + $0x118] sm:$0xff]
  %v50 = vld [vmem:[%s0 + $0x120] sm:$0xff]
  %v51 = vld [vmem:[%s0 + $0x128] sm:$0xff]
  %v52 = vld [vmem:[%s0 + $0x130] sm:$0xff]
  %v53 = vld [vmem:[%s0 + $0x138] sm:$0xff]
  %v54 = vld [vmem:[%s0 + $0x140] sm:$0xff]
  %v55 = vld [vmem:[%s0 + $0x148] sm:$0xff]
  %v56 = vld [vmem:[%s0 + $0x150] sm:$0xff]
  %v57 = vld [vmem:[%s0 + $0x158] sm:$0xff]
  %v58 = vld [vmem:[%s0 + $0x160] sm:$0xff]
  %v59 = vld [vmem:[%s0 + $0x168] sm:$0xff]
  %v60 = vld [vmem:[%s0 + $0x170] sm:$0xff]
  %v61 = vld [vmem:[%s0 + $0x178] sm:$0xff]
  %v62 = vld [vmem:[%s0 + $0x180] sm:$0xff]
  %v63 = vld [vmem:[%s0 + $0x188] sm:$0xff]
  %v64 = vld [vmem:[%s0 + $0x190] sm:$0xff]
  %v65 = vld [vmem:[%s0 + $0x198] sm:$0xff]
  %v66 = vld [vmem:[%s0 + $0x1a0] sm:$0xff]
  %v67 = vld [vmem:[%s0 + $0x1a8] sm:$0xff]
  %v68 = vld [vmem:[%s0 + $0x1b0] sm:$0xff]
  %v69 = vld [vmem:[%s0 + $0x1b8] sm:$0xff]
  %v70 = vld [vmem:[%s0 + $0x1c0] sm:$0xff]
  %v71 = vld [vmem:[%s0 + $0x1c8] sm:$0xff]
  %v72 = vld [vmem:[%s0 + $0x1d0] sm:$0xff]
  %v73 = vld [vmem:[%s0 + $0x1d8] sm:$0xff]
  %v74 = vld [vmem:[%s0 + $0x1e0] sm:$0xff]
  %v75 = vld [vmem:[%s0 + $0x1e8] sm:$0xff]
  %v76 = vld [vmem:[%s0 + $0x1f0] sm:$0xff]
  %v77 = vld [vmem:[%s0 + $0x1f8] sm:$0xff]
  %v78 = vld [vmem:[%s0 + $0x200] sm:$0xff]
  %v79 = vld [vmem:[%s0 + $0x208] sm:$0xff]
  %v80 = vld [vmem:[%s0 + $0x210] sm:$0xff]
  %v81 = vld [vmem:[%s0 + $0x218] sm:$0xff]
  %v82 = vld [vmem:[%s0 + $0x220] sm:$0xff]
  %v83 = vld [vmem:[%s0 + $0x228] sm:$0xff]
  %v84 = vld [vmem:[%s0 + $0x230] sm:$0xff]
  %v85 = vld [vmem:[%s0 + $0x238] sm:$0xff]
  %v86 = vld [vmem:[%s0 + $0x240] sm:$0xff]
  %v87 = vld [vmem:[%s0 + $0x248] sm:$0xff]
  %v88 = vld [vmem:[%s0 + $0x250] sm:$0xff]
  %v89 = vld [vmem:[%s0 + $0x258] sm:$0xff]
  %v90 = vld [vmem:[%s0 + $0x260] sm:$0xff]
  %v91 = vld [vmem:[%s0 + $0x268] sm:$0xff]
  %v92 = vld [vmem:[%s0 + $0x270] sm:$0xff]
  %v93 = vld [vmem:[%s0 + $0x278] sm:$0xff]
  %v94 = vld [vmem:[%s0 + $0x280] sm:$0xff]
  %v95 = vld [vmem:[%s0 + $0x288] sm:$0xff]
  %v96 = vld [vmem:[%s0 + $0x290] sm:$0xff]
  %v97 = vld [vmem:[%s0 + $0x298] sm:$0xff]
  %v98 = vld [vmem:[%s0 + $0x2a0] sm:$0xff]
  %v99 = vld [vmem:[%s0 + $0x2a8] sm:$0xff]
  %v100 = vld [vmem:[%s0 + $0x2b0] sm:$0xff]
  %v101 = vld [vmem:[%s0 + $0x2b8] sm:$0xff]
  %v102 = vld [vmem:[%s0 + $0x2c0] sm:$0xff]
  %v103 = vld [vmem:[%s0 + $0x2c8] sm:$0xff]
  %v104 = vld [vmem:[%s0 + $0x2d0] sm:$0xff]
  %v105 = vld [vmem:[%s0 + $0x2d8] sm:$0xff]
  %v106 = vld [vmem:[%s0 + $0x2e0] sm:$0xff]
  %v107 = vld [vmem:[%s0 + $0x2e8] sm:$0xff]
  %v108 = vld [vmem:[%s0 + $0x2f0] sm:$0xff]
  %v109 = vld [vmem:[%s0 + $0x2f8] sm:$0xff]
  %v110 = vld [vmem:[%s0 + $0x300] sm:$0xff]
  %v111 = vld [vmem:[%s0 + $0x308] sm:$0xff]
  %v112 = vld [vmem:[%s0 + $0x310] sm:$0xff]
  %v113 = vld [vmem:[%s0 + $0x318] sm:$0xff]
  %v114 = vld [vmem:[%s1] sm:$0xff]
  %v115 = vld [vmem:[%s1 + $0x8] sm:$0xff]
  %v116 = vld [vmem:[%s1 + $0x10] sm:$0xff]
  %v117 = vld [vmem:[%s1 + $0x18] sm:$0xff]
  %v118 = vld [vmem:[%s1 + $0x20] sm:$0xff]
  %v119 = vld [vmem:[%s1 + $0x28] sm:$0xff]
  %v120 = vld [vmem:[%s1 + $0x30] sm:$0xff]
  %v121 = vld [vmem:[%s1 + $0x38] sm:$0xff]
  %v122 = vld [vmem:[%s1 + $0x40] sm:$0xff]
  %v123 = vld [vmem:[%s1 + $0x48] sm:$0xff]
  %v124 = vld [vmem:[%s1 + $0x50] sm:$0xff]
  %v125 = vld [vmem:[%s1 + $0x58] sm:$0xff]
  %v126 = vld [vmem:[%s1 + $0x60] sm:$0xff]
  %v127 = vld [vmem:[%s1 + $0x68] sm:$0xff]
  %v128 = vld [vmem:[%s1 + $0x70] sm:$0xff]
  %v129 = vld [vmem:[%s1 + $0x78] sm:$0xff]
  %v130 = vld [vmem:[%s1 + $0x80] sm:$0xff]
  %v131 = vld [vmem:[%s1 + $0x88] sm:$0xff]
  %v132 = vld [vmem:[%s1 + $0x90] sm:$0xff]
  %v133 = vld [vmem:[%s1 + $0x98] sm:$0xff]
  %v134 = vld [vmem:[%s1 + $0xa0] sm:$0xff]
  %v135 = vld [vmem:[%s1 + $0xa8] sm:$0xff]
  %v136 = vld [vmem:[%s1 + $0xb0] sm:$0xff]
  %v137 = vld [vmem:[%s1 + $0xb8] sm:$0xff]
  %v138 = vld [vmem:[%s1 + $0xc0] sm:$0xff]
  %v139 = vld [vmem:[%s1 + $0xc8] sm:$0xff]
  %v140 = vld [vmem:[%s1 + $0xd0] sm:$0xff]
  %v141 = vld [vmem:[%s1 + $0xd8] sm:$0xff]
  %v142 = vld [vmem:[%s1 + $0xe0] sm:$0xff]
  %v143 = vld [vmem:[%s1 + $0xe8] sm:$0xff]
  %v144 = vld [vmem:[%s1 + $0xf0] sm:$0xff]
  %v145 = vld [vmem:[%s1 + $0xf8] sm:$0xff]
  %v146 = vld [vmem:[%s1 + $0x100] sm:$0xff]
  %v147 = vld [vmem:[%s1 + $0x108] sm:$0xff]
  %v148 = vld [vmem:[%s1 + $0x110] sm:$0xff]
  %v149 = vld [vmem:[%s1 + $0x118] sm:$0xff]
  %v150 = vld [vmem:[%s1 + $0x120] sm:$0xff]
  %v151 = vld [vmem:[%s1 + $0x128] sm:$0xff]
  %v152 = vld [vmem:[%s1 + $0x130] sm:$0xff]
  %v153 = vld [vmem:[%s1 + $0x138] sm:$0xff]
  %v154 = vld [vmem:[%s1 + $0x140] sm:$0xff]
  %v155 = vld [vmem:[%s1 + $0x148] sm:$0xff]
  %v156 = vld [vmem:[%s1 + $0x150] sm:$0xff]
  %v157 = vld [vmem:[%s1 + $0x158] sm:$0xff]
  %v158 = vld [vmem:[%s1 + $0x160] sm:$0xff]
  %v159 = vld [vmem:[%s1 + $0x168] sm:$0xff]
  %v160 = vld [vmem:[%s1 + $0x170] sm:$0xff]
  %v161 = vld [vmem:[%s1 + $0x178] sm:$0xff]
  %v162 = vld [vmem:[%s1 + $0x180] sm:$0xff]
  %v163 = vld [vmem:[%s1 + $0x188] sm:$0xff]
  %v164 = vld [vmem:[%s1 + $0x190] sm:$0xff]
  %v165 = vld [vmem:[%s1 + $0x198] sm:$0xff]
  %v166 = vld [vmem:[%s1 + $0x1a0] sm:$0xff]
  %v167 = vld [vmem:[%s1 + $0x1a8] sm:$0xff]
  %v168 = vld [vmem:[%s1 + $0x1b0] sm:$0xff]
  %v169 = vld [vmem:[%s1 + $0x1b8] sm:$0xff]
  %v170 = vld [vmem:[%s1 + $0x1c0] sm:$0xff]
  %v171 = vld [vmem:[%s1 + $0x1c8] sm:$0xff]
  %v172 = vld [vmem:[%s1 + $0x1d0] sm:$0xff]
  %v173 = vld [vmem:[%s1 + $0x1d8] sm:$0xff]
  %v174 = vld [vmem:[%s1 + $0x1e0] sm:$0xff]
  %v175 = vld [vmem:[%s1 + $0x1e8] sm:$0xff]
  %v176 = vld [vmem:[%s1 + $0x1f0] sm:$0xff]
  %v177 = vld [vmem:[%s1 + $0x1f8] sm:$0xff]
  %v178 = vld [vmem:[%s2] sm:$0x1]
  %v180 = vlaneseq
  %v181 = vshrl.u32 %v180, 7
  %v182 = vsub.s32 0, %v181
  %v183 = vrot.slane %v178, %v182
  %185 = vmatprep.subr.mxu0 0.0
  %186 = vmatpush1.msra.mxu0 %v114
  %187 = vmatprep.subr.mxu0 0.0
  %188 = vmatpush1.msra.mxu0 %v115
  %189 = vmatprep.subr.mxu0 0.0
  %190 = vmatpush1.msra.mxu0 %v116
  %191 = vmatprep.subr.mxu0 0.0
  %192 = vmatpush1.msra.mxu0 %v117
  %193 = vmatprep.subr.mxu0 0.0
  %194 = vmatpush1.msra.mxu0 %v118
  %195 = vmatprep.subr.mxu0 0.0
  %196 = vmatpush1.msra.mxu0 %v119
  %197 = vmatprep.subr.mxu0 0.0
  %198 = vmatpush1.msra.mxu0 %v120
  %199 = vmatprep.subr.mxu0 0.0
  %200 = vmatpush1.msra.mxu0 %v121
  %201 = vmatprep.subr.mxu0 0.0
  %202 = vmatpush1.msra.mxu0 %v122
  %203 = vmatprep.subr.mxu0 0.0
  %204 = vmatpush1.msra.mxu0 %v123
  %205 = vmatprep.subr.mxu0 0.0
  %206 = vmatpush1.msra.mxu0 %v124
  %207 = vmatprep.subr.mxu0 0.0
  %208 = vmatpush1.msra.mxu0 %v125
  %209 = vmatprep.subr.mxu0 0.0
  %210 = vmatpush1.msra.mxu0 %v126
  %211 = vmatprep.subr.mxu0 0.0
  %212 = vmatpush1.msra.mxu0 %v127
  %213 = vmatprep.subr.mxu0 0.0
  %214 = vmatpush1.msra.mxu0 %v128
  %215 = vmatprep.subr.mxu0 0.0
  %216 = vmatpush1.msra.mxu0 %v129
  %217 = vmatprep.subr.mxu0 0.0
  %218 = vmatpush1.msra.mxu0 %v130
  %219 = vmatprep.subr.mxu0 0.0
  %220 = vmatpush1.msra.mxu0 %v131
  %221 = vmatprep.subr.mxu0 0.0
  %222 = vmatpush1.msra.mxu0 %v132
  %223 = vmatprep.subr.mxu0 0.0
  %224 = vmatpush1.msra.mxu0 %v133
  %225 = vmatprep.subr.mxu0 0.0
  %226 = vmatpush1.msra.mxu0 %v134
  %227 = vmatprep.subr.mxu0 0.0
  %228 = vmatpush1.msra.mxu0 %v135
  %229 = vmatprep.subr.mxu0 0.0
  %230 = vmatpush1.msra.mxu0 %v136
  %231 = vmatprep.subr.mxu0 0.0
  %232 = vmatpush1.msra.mxu0 %v137
  %233 = vmatprep.subr.mxu0 0.0
  %234 = vmatpush1.msra.mxu0 %v138
  %235 = vmatprep.subr.mxu0 0.0
  %236 = vmatpush1.msra.mxu0 %v139
  %237 = vmatprep.subr.mxu0 0.0
  %238 = vmatpush1.msra.mxu0 %v140
  %239 = vmatprep.subr.mxu0 0.0
  %240 = vmatpush1.msra.mxu0 %v141
  %241 = vmatprep.subr.mxu0 0.0
  %242 = vmatpush1.msra.mxu0 %v142
  %243 = vmatprep.subr.mxu0 0.0
  %244 = vmatpush1.msra.mxu0 %v143
  %245 = vmatprep.subr.mxu0 0.0
  %246 = vmatpush1.msra.mxu0 %v144
  %247 = vmatprep.subr.mxu0 0.0
  %248 = vmatpush1.msra.mxu0 %v145
  %249 = vmatprep.mubr.f32.mxu0 %v15
  %250 = vmatmul.mubr.f32.gmra.mrb[0].mxu0 %v14
  %v251 = vpop.f32.mrb[0].mxu0
  %v252 = vadd.f32 %v183, %v251
  %v253 = vpop.f32.mrb[0].mxu0
  %254 = vmatprep.mubr.f32.mxu0 %v19
  %255 = vmatmul.mubr.f32.gmra.mrb[0].mxu0 %v18
  %v256 = vpop.f32.mrb[0].mxu0
  %v257 = vadd.f32 %v183, %v256
  %v258 = vpop.f32.mrb[0].mxu0
  %259 = vmatprep.mubr.f32.mxu0 %v23
  %260 = vmatmul.mubr.f32.gmra.mrb[0].mxu0 %v22
  %v261 = vpop.f32.mrb[0].mxu0
  %v262 = vadd.f32 %v183, %v261
  %v263 = vpop.f32.mrb[0].mxu0
  %264 = vmatprep.mubr.f32.mxu0 %v27
  %265 = vmatmul.mubr.f32.gmra.mrb[0].mxu0 %v26
  %v266 = vpop.f32.mrb[0].mxu0
  %v267 = vadd.f32 %v183, %v266
  %v268 = vpop.f32.mrb[0].mxu0
  %269 = vmatprep.mubr.f32.mxu0 %v31
  %270 = vmatmul.mubr.f32.gmra.mrb[0].mxu0 %v30
  %v271 = vpop.f32.mrb[0].mxu0
  %v272 = vadd.f32 %v183, %v271
  %v273 = vpop.f32.mrb[0].mxu0
  %274 = vmatprep.mubr.f32.mxu0 %v35
  %275 = vmatmul.mubr.f32.gmra.mrb[0].mxu0 %v34
  %v276 = vpop.f32.mrb[0].mxu0
  %v277 = vadd.f32 %v183, %v276
  %v278 = vpop.f32.mrb[0].mxu0
  %279 = vmatprep.mubr.f32.mxu0 %v39
  %280 = vmatmul.mubr.f32.gmra.mrb[0].mxu0 %v38
  %v281 = vpop.f32.mrb[0].mxu0
  %v282 = vadd.f32 %v183, %v281
  %v283 = vpop.f32.mrb[0].mxu0
  %284 = vmatprep.mubr.f32.mxu0 %v43
  %285 = vmatmul.mubr.f32.gmra.mrb[0].mxu0 %v42
  %v286 = vpop.f32.mrb[0].mxu0
  %v287 = vadd.f32 %v183, %v286
  %v288 = vpop.f32.mrb[0].mxu0
  %289 = vmatprep.mubr.f32.mxu0 %v47
  %290 = vmatmul.mubr.f32.gmra.mrb[0].mxu0 %v46
  %v291 = vpop.f32.mrb[0].mxu0
  %v292 = vadd.f32 %v183, %v291
  %v293 = vpop.f32.mrb[0].mxu0
  %294 = vmatprep.mubr.f32.mxu0 %v51
  %295 = vmatmul.mubr.f32.gmra.mrb[0].mxu0 %v50
  %v296 = vpop.f32.mrb[0].mxu0
  %v297 = vadd.f32 %v183, %v296
  %v298 = vpop.f32.mrb[0].mxu0
  %299 = vmatprep.mubr.f32.mxu0 %v55
  %300 = vmatmul.mubr.f32.gmra.mrb[0].mxu0 %v54
  %v301 = vpop.f32.mrb[0].mxu0
  %v302 = vadd.f32 %v183, %v301
  %v303 = vpop.f32.mrb[0].mxu0
  %304 = vmatprep.mubr.f32.mxu0 %v59
  %305 = vmatmul.mubr.f32.gmra.mrb[0].mxu0 %v58
  %v306 = vpop.f32.mrb[0].mxu0
  %v307 = vadd.f32 %v183, %v306
  %v308 = vpop.f32.mrb[0].mxu0
  %309 = vmatprep.mubr.f32.mxu0 %v63
  %310 = vmatmul.mubr.f32.gmra.mrb[0].mxu0 %v62
  %v311 = vpop.f32.mrb[0].mxu0
  %v312 = vadd.f32 %v183, %v311
  %v313 = vpop.f32.mrb[0].mxu0
  %314 = vmatprep.mubr.f32.mxu0 %v67
  %315 = vmatmul.mubr.f32.gmra.mrb[0].mxu0 %v66
  %v316 = vpop.f32.mrb[0].mxu0
  %v317 = vadd.f32 %v183, %v316
  %v318 = vpop.f32.mrb[0].mxu0
  %319 = vmatprep.mubr.f32.mxu0 %v71
  %320 = vmatmul.mubr.f32.gmra.mrb[0].mxu0 %v70
  %v321 = vpop.f32.mrb[0].mxu0
  %v322 = vadd.f32 %v183, %v321
  %v323 = vpop.f32.mrb[0].mxu0
  %324 = vmatprep.mubr.f32.mxu0 %v75
  %325 = vmatmul.mubr.f32.gmra.mrb[0].mxu0 %v74
  %v326 = vpop.f32.mrb[0].mxu0
  %v327 = vadd.f32 %v183, %v326
  %v328 = vpop.f32.mrb[0].mxu0
  %329 = vmatprep.mubr.f32.mxu0 %v79
  %330 = vmatmul.mubr.f32.gmra.mrb[0].mxu0 %v78
  %v331 = vpop.f32.mrb[0].mxu0
  %v332 = vadd.f32 %v183, %v331
  %v333 = vpop.f32.mrb[0].mxu0
  %334 = vmatprep.mubr.f32.mxu0 %v83
  %335 = vmatmul.mubr.f32.gmra.mrb[0].mxu0 %v82
  %v336 = vpop.f32.mrb[0].mxu0
  %v337 = vadd.f32 %v183, %v336
  %v338 = vpop.f32.mrb[0].mxu0
  %339 = vmatprep.mubr.f32.mxu0 %v87
  %340 = vmatmul.mubr.f32.gmra.mrb[0].mxu0 %v86
  %v341 = vpop.f32.mrb[0].mxu0
  %v342 = vadd.f32 %v183, %v341
  %v343 = vpop.f32.mrb[0].mxu0
  %344 = vmatprep.mubr.f32.mxu0 %v91
  %345 = vmatmul.mubr.f32.gmra.mrb[0].mxu0 %v90
  %v346 = vpop.f32.mrb[0].mxu0
  %v347 = vadd.f32 %v183, %v346
  %v348 = vpop.f32.mrb[0].mxu0
  %349 = vmatprep.mubr.f32.mxu0 %v95
  %350 = vmatmul.mubr.f32.gmra.mrb[0].mxu0 %v94
  %v351 = vpop.f32.mrb[0].mxu0
  %v352 = vadd.f32 %v183, %v351
  %v353 = vpop.f32.mrb[0].mxu0
  %354 = vmatprep.mubr.f32.mxu0 %v99
  %355 = vmatmul.mubr.f32.gmra.mrb[0].mxu0 %v98
  %v356 = vpop.f32.mrb[0].mxu0
  %v357 = vadd.f32 %v183, %v356
  %v358 = vpop.f32.mrb[0].mxu0
  %359 = vmatprep.mubr.f32.mxu0 %v103
  %360 = vmatmul.mubr.f32.gmra.mrb[0].mxu0 %v102
  %v361 = vpop.f32.mrb[0].mxu0
  %v362 = vadd.f32 %v183, %v361
  %v363 = vpop.f32.mrb[0].mxu0
  %364 = vmatprep.mubr.f32.mxu0 %v107
  %365 = vmatmul.mubr.f32.gmra.mrb[0].mxu0 %v106
  %v366 = vpop.f32.mrb[0].mxu0
  %v367 = vadd.f32 %v183, %v366
  %v368 = vpop.f32.mrb[0].mxu0
  %369 = vmatprep.mubr.f32.mxu0 %v111
  %370 = vmatmul.mubr.f32.gmra.mrb[0].mxu0 %v110
  %v371 = vpop.f32.mrb[0].mxu0
  %v372 = vadd.f32 %v183, %v371
  %v373 = vpop.f32.mrb[0].mxu0
  %374 = vdwg.mxu0
  %375 = vmatprep.subr.mxu0 0.0
  %376 = vmatpush1.msra.mxu0 %v146
  %377 = vmatprep.subr.mxu0 0.0
  %378 = vmatpush1.msra.mxu0 %v147
  %379 = vmatprep.subr.mxu0 0.0
  %380 = vmatpush1.msra.mxu0 %v148
  %381 = vmatprep.subr.mxu0 0.0
  %382 = vmatpush1.msra.mxu0 %v149
  %383 = vmatprep.subr.mxu0 0.0
  %384 = vmatpush1.msra.mxu0 %v150
  %385 = vmatprep.subr.mxu0 0.0
  %386 = vmatpush1.msra.mxu0 %v151
  %387 = vmatprep.subr.mxu0 0.0
  %388 = vmatpush1.msra.mxu0 %v152
  %389 = vmatprep.subr.mxu0 0.0
  %390 = vmatpush1.msra.mxu0 %v153
  %391 = vmatprep.subr.mxu0 0.0
  %392 = vmatpush1.msra.mxu0 %v154
  %393 = vmatprep.subr.mxu0 0.0
  %394 = vmatpush1.msra.mxu0 %v155
  %395 = vmatprep.subr.mxu0 0.0
  %396 = vmatpush1.msra.mxu0 %v156
  %397 = vmatprep.subr.mxu0 0.0
  %398 = vmatpush1.msra.mxu0 %v157
  %399 = vmatprep.subr.mxu0 0.0
  %400 = vmatpush1.msra.mxu0 %v158
  %401 = vmatprep.subr.mxu0 0.0
  %402 = vmatpush1.msra.mxu0 %v159
  %403 = vmatprep.subr.mxu0 0.0
  %404 = vmatpush1.msra.mxu0 %v160
  %405 = vmatprep.subr.mxu0 0.0
  %406 = vmatpush1.msra.mxu0 %v161
  %407 = vmatprep.subr.mxu0 0.0
  %408 = vmatpush1.msra.mxu0 %v162
  %409 = vmatprep.subr.mxu0 0.0
  %410 = vmatpush1.msra.mxu0 %v163
  %411 = vmatprep.subr.mxu0 0.0
  %412 = vmatpush1.msra.mxu0 %v164
  %413 = vmatprep.subr.mxu0 0.0
  %414 = vmatpush1.msra.mxu0 %v165
  %415 = vmatprep.subr.mxu0 0.0
  %416 = vmatpush1.msra.mxu0 %v166
  %417 = vmatprep.subr.mxu0 0.0
  %418 = vmatpush1.msra.mxu0 %v167
  %419 = vmatprep.subr.mxu0 0.0
  %420 = vmatpush1.msra.mxu0 %v168
  %421 = vmatprep.subr.mxu0 0.0
  %422 = vmatpush1.msra.mxu0 %v169
  %423 = vmatprep.subr.mxu0 0.0
  %424 = vmatpush1.msra.mxu0 %v170
  %425 = vmatprep.subr.mxu0 0.0
  %426 = vmatpush1.msra.mxu0 %v171
  %427 = vmatprep.subr.mxu0 0.0
  %428 = vmatpush1.msra.mxu0 %v172
  %429 = vmatprep.subr.mxu0 0.0
  %430 = vmatpush1.msra.mxu0 %v173
  %431 = vmatprep.subr.mxu0 0.0
  %432 = vmatpush1.msra.mxu0 %v174
  %433 = vmatprep.subr.mxu0 0.0
  %434 = vmatpush1.msra.mxu0 %v175
  %435 = vmatprep.subr.mxu0 0.0
  %436 = vmatpush1.msra.mxu0 %v176
  %437 = vmatprep.subr.mxu0 0.0
  %438 = vmatpush1.msra.mxu0 %v177
  %439 = vmatprep.mubr.f32.mxu0 %v17
  %440 = vmatmul.mubr.f32.gmra.mrb[0].mxu0 %v16
  %v441 = vpop.f32.mrb[0].mxu0
  %v442 = vadd.f32 %v252, %v441
  %v443 = vpop.f32.mrb[0].mxu0
  %444 = vmatprep.mubr.f32.mxu0 %v21
  %445 = vmatmul.mubr.f32.gmra.mrb[0].mxu0 %v20
  %v446 = vpop.f32.mrb[0].mxu0
  %v447 = vadd.f32 %v257, %v446
  %v448 = vpop.f32.mrb[0].mxu0
  %449 = vmatprep.mubr.f32.mxu0 %v25
  %450 = vmatmul.mubr.f32.gmra.mrb[0].mxu0 %v24
  %v451 = vpop.f32.mrb[0].mxu0
  %v452 = vadd.f32 %v262, %v451
  %v453 = vpop.f32.mrb[0].mxu0
  %454 = vmatprep.mubr.f32.mxu0 %v29
  %455 = vmatmul.mubr.f32.gmra.mrb[0].mxu0 %v28
  %v456 = vpop.f32.mrb[0].mxu0
  %v457 = vadd.f32 %v267, %v456
  %v458 = vpop.f32.mrb[0].mxu0
  %459 = vmatprep.mubr.f32.mxu0 %v33
  %460 = vmatmul.mubr.f32.gmra.mrb[0].mxu0 %v32
  %v461 = vpop.f32.mrb[0].mxu0
  %v462 = vadd.f32 %v272, %v461
  %v463 = vpop.f32.mrb[0].mxu0
  %464 = vmatprep.mubr.f32.mxu0 %v37
  %465 = vmatmul.mubr.f32.gmra.mrb[0].mxu0 %v36
  %v466 = vpop.f32.mrb[0].mxu0
  %v467 = vadd.f32 %v277, %v466
  %v468 = vpop.f32.mrb[0].mxu0
  %469 = vmatprep.mubr.f32.mxu0 %v41
  %470 = vmatmul.mubr.f32.gmra.mrb[0].mxu0 %v40
  %v471 = vpop.f32.mrb[0].mxu0
  %v472 = vadd.f32 %v282, %v471
  %v473 = vpop.f32.mrb[0].mxu0
  %474 = vmatprep.mubr.f32.mxu0 %v45
  %475 = vmatmul.mubr.f32.gmra.mrb[0].mxu0 %v44
  %v476 = vpop.f32.mrb[0].mxu0
  %v477 = vadd.f32 %v287, %v476
  %v478 = vpop.f32.mrb[0].mxu0
  %479 = vmatprep.mubr.f32.mxu0 %v49
  %480 = vmatmul.mubr.f32.gmra.mrb[0].mxu0 %v48
  %v481 = vpop.f32.mrb[0].mxu0
  %v482 = vadd.f32 %v292, %v481
  %v483 = vpop.f32.mrb[0].mxu0
  %484 = vmatprep.mubr.f32.mxu0 %v53
  %485 = vmatmul.mubr.f32.gmra.mrb[0].mxu0 %v52
  %v486 = vpop.f32.mrb[0].mxu0
  %v487 = vadd.f32 %v297, %v486
  %v488 = vpop.f32.mrb[0].mxu0
  %489 = vmatprep.mubr.f32.mxu0 %v57
  %490 = vmatmul.mubr.f32.gmra.mrb[0].mxu0 %v56
  %v491 = vpop.f32.mrb[0].mxu0
  %v492 = vadd.f32 %v302, %v491
  %v493 = vpop.f32.mrb[0].mxu0
  %494 = vmatprep.mubr.f32.mxu0 %v61
  %495 = vmatmul.mubr.f32.gmra.mrb[0].mxu0 %v60
  %v496 = vpop.f32.mrb[0].mxu0
  %v497 = vadd.f32 %v307, %v496
  %v498 = vpop.f32.mrb[0].mxu0
  %499 = vmatprep.mubr.f32.mxu0 %v65
  %500 = vmatmul.mubr.f32.gmra.mrb[0].mxu0 %v64
  %v501 = vpop.f32.mrb[0].mxu0
  %v502 = vadd.f32 %v312, %v501
  %v503 = vpop.f32.mrb[0].mxu0
  %504 = vmatprep.mubr.f32.mxu0 %v69
  %505 = vmatmul.mubr.f32.gmra.mrb[0].mxu0 %v68
  %v506 = vpop.f32.mrb[0].mxu0
  %v507 = vadd.f32 %v317, %v506
  %v508 = vpop.f32.mrb[0].mxu0
  %509 = vmatprep.mubr.f32.mxu0 %v73
  %510 = vmatmul.mubr.f32.gmra.mrb[0].mxu0 %v72
  %v511 = vpop.f32.mrb[0].mxu0
  %v512 = vadd.f32 %v322, %v511
  %v513 = vpop.f32.mrb[0].mxu0
  %514 = vmatprep.mubr.f32.mxu0 %v77
  %515 = vmatmul.mubr.f32.gmra.mrb[0].mxu0 %v76
  %v516 = vpop.f32.mrb[0].mxu0
  %v517 = vadd.f32 %v327, %v516
  %v518 = vpop.f32.mrb[0].mxu0
  %519 = vmatprep.mubr.f32.mxu0 %v81
  %520 = vmatmul.mubr.f32.gmra.mrb[0].mxu0 %v80
  %v521 = vpop.f32.mrb[0].mxu0
  %v522 = vadd.f32 %v332, %v521
  %v523 = vpop.f32.mrb[0].mxu0
  %524 = vmatprep.mubr.f32.mxu0 %v85
  %525 = vmatmul.mubr.f32.gmra.mrb[0].mxu0 %v84
  %v526 = vpop.f32.mrb[0].mxu0
  %v527 = vadd.f32 %v337, %v526
  %v528 = vpop.f32.mrb[0].mxu0
  %529 = vmatprep.mubr.f32.mxu0 %v89
  %530 = vmatmul.mubr.f32.gmra.mrb[0].mxu0 %v88
  %v531 = vpop.f32.mrb[0].mxu0
  %v532 = vadd.f32 %v342, %v531
  %v533 = vpop.f32.mrb[0].mxu0
  %534 = vmatprep.mubr.f32.mxu0 %v93
  %535 = vmatmul.mubr.f32.gmra.mrb[0].mxu0 %v92
  %v536 = vpop.f32.mrb[0].mxu0
  %v537 = vadd.f32 %v347, %v536
  %v538 = vpop.f32.mrb[0].mxu0
  %539 = vmatprep.mubr.f32.mxu0 %v97
  %540 = vmatmul.mubr.f32.gmra.mrb[0].mxu0 %v96
  %v541 = vpop.f32.mrb[0].mxu0
  %v542 = vadd.f32 %v352, %v541
  %v543 = vpop.f32.mrb[0].mxu0
  %544 = vmatprep.mubr.f32.mxu0 %v101
  %545 = vmatmul.mubr.f32.gmra.mrb[0].mxu0 %v100
  %v546 = vpop.f32.mrb[0].mxu0
  %v547 = vadd.f32 %v357, %v546
  %v548 = vpop.f32.mrb[0].mxu0
  %549 = vmatprep.mubr.f32.mxu0 %v105
  %550 = vmatmul.mubr.f32.gmra.mrb[0].mxu0 %v104
  %v551 = vpop.f32.mrb[0].mxu0
  %v552 = vadd.f32 %v362, %v551
  %v553 = vpop.f32.mrb[0].mxu0
  %554 = vmatprep.mubr.f32.mxu0 %v109
  %555 = vmatmul.mubr.f32.gmra.mrb[0].mxu0 %v108
  %v556 = vpop.f32.mrb[0].mxu0
  %v557 = vadd.f32 %v367, %v556
  %v558 = vpop.f32.mrb[0].mxu0
  %559 = vmatprep.mubr.f32.mxu0 %v113
  %560 = vmatmul.mubr.f32.gmra.mrb[0].mxu0 %v112
  %v561 = vpop.f32.mrb[0].mxu0
  %v562 = vadd.f32 %v372, %v561
  %v563 = vpop.f32.mrb[0].mxu0
  %564 = vdwg.mxu0
  %v565 = vmax.f32 %v442, 0.0
  %v566 = vmax.f32 %v447, 0.0
  %v567 = vmax.f32 %v452, 0.0
  %v568 = vmax.f32 %v457, 0.0
  %v569 = vmax.f32 %v462, 0.0
  %v570 = vmax.f32 %v467, 0.0
  %v571 = vmax.f32 %v472, 0.0
  %v572 = vmax.f32 %v477, 0.0
  %v573 = vmax.f32 %v482, 0.0
  %v574 = vmax.f32 %v487, 0.0
  %v575 = vmax.f32 %v492, 0.0
  %v576 = vmax.f32 %v497, 0.0
  %v577 = vmax.f32 %v502, 0.0
  %v578 = vmax.f32 %v507, 0.0
  %v579 = vmax.f32 %v512, 0.0
  %v580 = vmax.f32 %v517, 0.0
  %v581 = vmax.f32 %v522, 0.0
  %v582 = vmax.f32 %v527, 0.0
  %v583 = vmax.f32 %v532, 0.0
  %v584 = vmax.f32 %v537, 0.0
  %v585 = vmax.f32 %v542, 0.0
  %v586 = vmax.f32 %v547, 0.0
  %v587 = vmax.f32 %v552, 0.0
  %v588 = vmax.f32 %v557, 0.0
  %v589 = vmax.f32 %v562, 0.0
  %vm590 = vcmask 261120
  %591 = vst.msk [vmem:[%s3] sm:$0xff] %vm590, %v565
  %592 = vst.msk [vmem:[%s3 + $0x8] sm:$0xff] %vm590, %v566
  %593 = vst.msk [vmem:[%s3 + $0x10] sm:$0xff] %vm590, %v567
  %594 = vst.msk [vmem:[%s3 + $0x18] sm:$0xff] %vm590, %v568
  %595 = vst.msk [vmem:[%s3 + $0x20] sm:$0xff] %vm590, %v569
  %596 = vst.msk [vmem:[%s3 + $0x28] sm:$0xff] %vm590, %v570
  %597 = vst.msk [vmem:[%s3 + $0x30] sm:$0xff] %vm590, %v571
  %598 = vst.msk [vmem:[%s3 + $0x38] sm:$0xff] %vm590, %v572
  %599 = vst.msk [vmem:[%s3 + $0x40] sm:$0xff] %vm590, %v573
  %600 = vst.msk [vmem:[%s3 + $0x48] sm:$0xff] %vm590, %v574
  %601 = vst.msk [vmem:[%s3 + $0x50] sm:$0xff] %vm590, %v575
  %602 = vst.msk [vmem:[%s3 + $0x58] sm:$0xff] %vm590, %v576
  %603 = vst.msk [vmem:[%s3 + $0x60] sm:$0xff] %vm590, %v577
  %604 = vst.msk [vmem:[%s3 + $0x68] sm:$0xff] %vm590, %v578
  %605 = vst.msk [vmem:[%s3 + $0x70] sm:$0xff] %vm590, %v579
  %606 = vst.msk [vmem:[%s3 + $0x78] sm:$0xff] %vm590, %v580
  %607 = vst.msk [vmem:[%s3 + $0x80] sm:$0xff] %vm590, %v581
  %608 = vst.msk [vmem:[%s3 + $0x88] sm:$0xff] %vm590, %v582
  %609 = vst.msk [vmem:[%s3 + $0x90] sm:$0xff] %vm590, %v583
  %610 = vst.msk [vmem:[%s3 + $0x98] sm:$0xff] %vm590, %v584
  %611 = vst.msk [vmem:[%s3 + $0xa0] sm:$0xff] %vm590, %v585
  %612 = vst.msk [vmem:[%s3 + $0xa8] sm:$0xff] %vm590, %v586
  %613 = vst.msk [vmem:[%s3 + $0xb0] sm:$0xff] %vm590, %v587
  %614 = vst.msk [vmem:[%s3 + $0xb8] sm:$0xff] %vm590, %v588
  %615 = vst.msk [vmem:[%s3 + $0xc0] sm:$0xff] %vm590, %v589
  // Predicated region
  $region14: #{encoder_like_dqn_forward.5} parent=0 // pred_check
    _
  $region15: #{encoder_like_dqn_forward.5} parent=0 // pred_check_branch
    %617 = sbr.rel (0) target = $region17
  $region16: #{encoder_like_dqn_forward.5} parent=0 // pred_region
    _
  $region17: #{encoder_like_dqn_forward.5} parent=0 // pred_fallthru
    _
  // Predicated region
  $region18: #{encoder_like_dqn_forward.5} parent=0 // pred_check
    _
  $region19: #{encoder_like_dqn_forward.5} parent=0 // pred_check_branch
    %619 = sbr.rel (0) target = $region21
  $region20: #{encoder_like_dqn_forward.5} parent=0 // pred_region
    _
  $region21: #{encoder_like_dqn_forward.5} parent=0 // pred_fallthru
    _

// kernel: encoder_like_dqn_forward.6
$region0: #{encoder_like_dqn_forward.6}
  #allocation0 [shape = 'u32[]', space=smem, size = 0x4, offset = 0x4, fixed_abs, tag = 'smem constant byte address 0x4 - core index']
  #allocation1 [shape = 'u32[144,128]{1,0:T(1,128)}', space=vmem, size = 0x12000, scoped, tag = 'internal scratch']
  %s0 = inlined_call_operand.vmem [shape: f32[200,288], index: 0, kind: input, shape index: {}]
  %s1 = inlined_call_operand.vmem [shape: f32[288,64], index: 1, kind: input, shape index: {}]
  %s2 = inlined_call_operand.vmem [shape: f32[1,64], index: 2, kind: input, shape index: {}]
  %s3 = inlined_call_operand.vmem [shape: f32[200,64], index: 3, kind: output, shape index: {}]
  %s4 = sld [smem:[#allocation0]]
  $region22: #{encoder_like_dqn_forward.6} parent=0
    _
  %s6 = ssub.s32 1, %s4
  %s7 = scalar_select 0, %s6, %s4
  // Predicated region
  $region2: #{encoder_like_dqn_forward.6} parent=0 // pred_check
    _
  $region3: #{encoder_like_dqn_forward.6} parent=0 // pred_check_branch
    %9 = sbr.rel (0) target = $region5
  $region4: #{encoder_like_dqn_forward.6} parent=0 // pred_region
    _
  $region5: #{encoder_like_dqn_forward.6} parent=0 // pred_fallthru
    _
  // Predicated region
  $region6: #{encoder_like_dqn_forward.6} parent=0 // pred_check
    _
  $region7: #{encoder_like_dqn_forward.6} parent=0 // pred_check_branch
    %11 = sbr.rel (0) target = $region9
  $region8: #{encoder_like_dqn_forward.6} parent=0 // pred_region
    _
  $region9: #{encoder_like_dqn_forward.6} parent=0 // pred_fallthru
    _
  // Predicated region
  $region10: #{encoder_like_dqn_forward.6} parent=0 // pred_check
    _
  $region11: #{encoder_like_dqn_forward.6} parent=0 // pred_check_branch
    %13 = sbr.rel (0) target = $region13
  $region12: #{encoder_like_dqn_forward.6} parent=0 // pred_region
    _
  $region13: #{encoder_like_dqn_forward.6} parent=0 // pred_fallthru
    _
  %v14 = vld [vmem:[%s0] sm:$0xff]
  %v15 = vld [vmem:[%s0 + $0x8] sm:$0xff]
  %v16 = vld [vmem:[%s0 + $0x10] sm:$0xff]
  %v17 = vld [vmem:[%s0 + $0x18] sm:$0xff]
  %v18 = vld [vmem:[%s0 + $0x20] sm:$0xff]
  %v19 = vld [vmem:[%s0 + $0x28] sm:$0xff]
  %v20 = vld [vmem:[%s0 + $0x30] sm:$0xff]
  %v21 = vld [vmem:[%s0 + $0x38] sm:$0xff]
  %v22 = vld [vmem:[%s0 + $0x40] sm:$0xff]
  %v23 = vld [vmem:[%s0 + $0x48] sm:$0xff]
  %v24 = vld [vmem:[%s0 + $0x50] sm:$0xff]
  %v25 = vld [vmem:[%s0 + $0x58] sm:$0xff]
  %v26 = vld [vmem:[%s0 + $0x60] sm:$0xff]
  %v27 = vld [vmem:[%s0 + $0x68] sm:$0xff]
  %v28 = vld [vmem:[%s0 + $0x70] sm:$0xff]
  %v29 = vld [vmem:[%s0 + $0x78] sm:$0xff]
  %v30 = vld [vmem:[%s0 + $0x80] sm:$0xff]
  %v31 = vld [vmem:[%s0 + $0x88] sm:$0xff]
  %v32 = vld [vmem:[%s0 + $0x90] sm:$0xff]
  %v33 = vld [vmem:[%s0 + $0x98] sm:$0xff]
  %v34 = vld [vmem:[%s0 + $0xa0] sm:$0xff]
  %v35 = vld [vmem:[%s0 + $0xa8] sm:$0xff]
  %v36 = vld [vmem:[%s0 + $0xb0] sm:$0xff]
  %v37 = vld [vmem:[%s0 + $0xb8] sm:$0xff]
  %v38 = vld [vmem:[%s0 + $0xc0] sm:$0xff]
  %v39 = vld [vmem:[%s0 + $0xc8] sm:$0xff]
  %v40 = vld [vmem:[%s0 + $0xd0] sm:$0xff]
  %v41 = vld [vmem:[%s0 + $0xd8] sm:$0xff]
  %v42 = vld [vmem:[%s0 + $0xe0] sm:$0xff]
  %v43 = vld [vmem:[%s0 + $0xe8] sm:$0xff]
  %v44 = vld [vmem:[%s0 + $0xf0] sm:$0xff]
  %v45 = vld [vmem:[%s0 + $0xf8] sm:$0xff]
  %v46 = vld [vmem:[%s0 + $0x100] sm:$0xff]
  %v47 = vld [vmem:[%s0 + $0x108] sm:$0xff]
  %v48 = vld [vmem:[%s0 + $0x110] sm:$0xff]
  %v49 = vld [vmem:[%s0 + $0x118] sm:$0xff]
  %v50 = vld [vmem:[%s0 + $0x120] sm:$0xff]
  %v51 = vld [vmem:[%s0 + $0x128] sm:$0xff]
  %v52 = vld [vmem:[%s0 + $0x130] sm:$0xff]
  %v53 = vld [vmem:[%s0 + $0x138] sm:$0xff]
  %v54 = vld [vmem:[%s0 + $0x140] sm:$0xff]
  %v55 = vld [vmem:[%s0 + $0x148] sm:$0xff]
  %v56 = vld [vmem:[%s0 + $0x150] sm:$0xff]
  %v57 = vld [vmem:[%s0 + $0x158] sm:$0xff]
  %v58 = vld [vmem:[%s0 + $0x160] sm:$0xff]
  %v59 = vld [vmem:[%s0 + $0x168] sm:$0xff]
  %v60 = vld [vmem:[%s0 + $0x170] sm:$0xff]
  %v61 = vld [vmem:[%s0 + $0x178] sm:$0xff]
  %v62 = vld [vmem:[%s0 + $0x180] sm:$0xff]
  %v63 = vld [vmem:[%s0 + $0x188] sm:$0xff]
  %v64 = vld [vmem:[%s0 + $0x190] sm:$0xff]
  %v65 = vld [vmem:[%s0 + $0x198] sm:$0xff]
  %v66 = vld [vmem:[%s0 + $0x1a0] sm:$0xff]
  %v67 = vld [vmem:[%s0 + $0x1a8] sm:$0xff]
  %v68 = vld [vmem:[%s0 + $0x1b0] sm:$0xff]
  %v69 = vld [vmem:[%s0 + $0x1b8] sm:$0xff]
  %v70 = vld [vmem:[%s0 + $0x1c0] sm:$0xff]
  %v71 = vld [vmem:[%s0 + $0x1c8] sm:$0xff]
  %v72 = vld [vmem:[%s0 + $0x1d0] sm:$0xff]
  %v73 = vld [vmem:[%s0 + $0x1d8] sm:$0xff]
  %v74 = vld [vmem:[%s0 + $0x1e0] sm:$0xff]
  %v75 = vld [vmem:[%s0 + $0x1e8] sm:$0xff]
  %v76 = vld [vmem:[%s0 + $0x1f0] sm:$0xff]
  %v77 = vld [vmem:[%s0 + $0x1f8] sm:$0xff]
  %v78 = vld [vmem:[%s0 + $0x200] sm:$0xff]
  %v79 = vld [vmem:[%s0 + $0x208] sm:$0xff]
  %v80 = vld [vmem:[%s0 + $0x210] sm:$0xff]
  %v81 = vld [vmem:[%s0 + $0x218] sm:$0xff]
  %v82 = vld [vmem:[%s0 + $0x220] sm:$0xff]
  %v83 = vld [vmem:[%s0 + $0x228] sm:$0xff]
  %v84 = vld [vmem:[%s0 + $0x230] sm:$0xff]
  %v85 = vld [vmem:[%s0 + $0x238] sm:$0xff]
  %v86 = vld [vmem:[%s0 + $0x240] sm:$0xff]
  %v87 = vld [vmem:[%s0 + $0x248] sm:$0xff]
  %v88 = vld [vmem:[%s0 + $0x250] sm:$0xff]
  %v89 = vld [vmem:[%s1] sm:$0xff]
  %v90 = vld [vmem:[%s1 + $0x8] sm:$0xff]
  %v91 = vld [vmem:[%s1 + $0x10] sm:$0xff]
  %v92 = vld [vmem:[%s1 + $0x18] sm:$0xff]
  %v93 = vld [vmem:[%s1 + $0x20] sm:$0xff]
  %v94 = vld [vmem:[%s1 + $0x28] sm:$0xff]
  %v95 = vld [vmem:[%s1 + $0x30] sm:$0xff]
  %v96 = vld [vmem:[%s1 + $0x38] sm:$0xff]
  %v97 = vld [vmem:[%s1 + $0x40] sm:$0xff]
  %v98 = vld [vmem:[%s1 + $0x48] sm:$0xff]
  %v99 = vld [vmem:[%s1 + $0x50] sm:$0xff]
  %v100 = vld [vmem:[%s1 + $0x58] sm:$0xff]
  %v101 = vld [vmem:[%s1 + $0x60] sm:$0xff]
  %v102 = vld [vmem:[%s1 + $0x68] sm:$0xff]
  %v103 = vld [vmem:[%s1 + $0x70] sm:$0xff]
  %v104 = vld [vmem:[%s1 + $0x78] sm:$0xff]
  %v105 = vld [vmem:[%s1 + $0x80] sm:$0xff]
  %v106 = vld [vmem:[%s1 + $0x88] sm:$0xff]
  %v107 = vld [vmem:[%s1 + $0x90] sm:$0xff]
  %v108 = vld [vmem:[%s1 + $0x98] sm:$0xff]
  %v109 = vld [vmem:[%s1 + $0xa0] sm:$0xff]
  %v110 = vld [vmem:[%s1 + $0xa8] sm:$0xff]
  %v111 = vld [vmem:[%s1 + $0xb0] sm:$0xff]
  %v112 = vld [vmem:[%s1 + $0xb8] sm:$0xff]
  %v113 = vld [vmem:[%s1 + $0xc0] sm:$0xff]
  %v114 = vld [vmem:[%s1 + $0xc8] sm:$0xff]
  %v115 = vld [vmem:[%s1 + $0xd0] sm:$0xff]
  %v116 = vld [vmem:[%s1 + $0xd8] sm:$0xff]
  %v117 = vld [vmem:[%s1 + $0xe0] sm:$0xff]
  %v118 = vld [vmem:[%s1 + $0xe8] sm:$0xff]
  %v119 = vld [vmem:[%s1 + $0xf0] sm:$0xff]
  %v120 = vld [vmem:[%s1 + $0xf8] sm:$0xff]
  %v121 = vld [vmem:[%s1 + $0x100] sm:$0xff]
  %v122 = vld [vmem:[%s1 + $0x108] sm:$0xff]
  %v123 = vld [vmem:[%s1 + $0x110] sm:$0xff]
  %v124 = vld [vmem:[%s1 + $0x118] sm:$0xff]
  %v125 = vld [vmem:[%s2] sm:$0x1]
  %v127 = vlaneseq
  %v128 = vshrl.u32 %v127, 7
  %v129 = vsub.s32 0, %v128
  %v130 = vrot.slane %v125, %v129
  %vm132 = vcmask 261120
  %v134 = vsel %vm132, %v16, 0
  %v137 = vsel %vm132, %v19, 0
  %v140 = vsel %vm132, %v22, 0
  %v143 = vsel %vm132, %v25, 0
  %v146 = vsel %vm132, %v28, 0
  %v149 = vsel %vm132, %v31, 0
  %v152 = vsel %vm132, %v34, 0
  %v155 = vsel %vm132, %v37, 0
  %v158 = vsel %vm132, %v40, 0
  %v161 = vsel %vm132, %v43, 0
  %v164 = vsel %vm132, %v46, 0
  %v167 = vsel %vm132, %v49, 0
  %v170 = vsel %vm132, %v52, 0
  %v173 = vsel %vm132, %v55, 0
  %v176 = vsel %vm132, %v58, 0
  %v179 = vsel %vm132, %v61, 0
  %v182 = vsel %vm132, %v64, 0
  %v185 = vsel %vm132, %v67, 0
  %v188 = vsel %vm132, %v70, 0
  %v191 = vsel %vm132, %v73, 0
  %v194 = vsel %vm132, %v76, 0
  %v197 = vsel %vm132, %v79, 0
  %v200 = vsel %vm132, %v82, 0
  %v203 = vsel %vm132, %v85, 0
  %v206 = vsel %vm132, %v88, 0
  %208 = vmatprep.subr.mxu0 0.0
  %209 = vmatpush1.msra.mxu0 %v89
  %210 = vmatprep.subr.mxu0 0.0
  %211 = vmatpush1.msra.mxu0 %v90
  %212 = vmatprep.subr.mxu0 0.0
  %213 = vmatpush1.msra.mxu0 %v91
  %214 = vmatprep.subr.mxu0 0.0
  %215 = vmatpush1.msra.mxu0 %v92
  %216 = vmatprep.subr.mxu0 0.0
  %217 = vmatpush1.msra.mxu0 %v93
  %218 = vmatprep.subr.mxu0 0.0
  %219 = vmatpush1.msra.mxu0 %v94
  %220 = vmatprep.subr.mxu0 0.0
  %221 = vmatpush1.msra.mxu0 %v95
  %222 = vmatprep.subr.mxu0 0.0
  %223 = vmatpush1.msra.mxu0 %v96
  %224 = vmatprep.subr.mxu0 0.0
  %225 = vmatpush1.msra.mxu0 %v97
  %226 = vmatprep.subr.mxu0 0.0
  %227 = vmatpush1.msra.mxu0 %v98
  %228 = vmatprep.subr.mxu0 0.0
  %229 = vmatpush1.msra.mxu0 %v99
  %230 = vmatprep.subr.mxu0 0.0
  %231 = vmatpush1.msra.mxu0 %v100
  %232 = vmatprep.subr.mxu0 0.0
  %233 = vmatpush1.msra.mxu0 %v101
  %234 = vmatprep.subr.mxu0 0.0
  %235 = vmatpush1.msra.mxu0 %v102
  %236 = vmatprep.subr.mxu0 0.0
  %237 = vmatpush1.msra.mxu0 %v103
  %238 = vmatprep.subr.mxu0 0.0
  %239 = vmatpush1.msra.mxu0 %v104
  %240 = vmatprep.subr.mxu0 0.0
  %241 = vmatpush1.msra.mxu0 %v105
  %242 = vmatprep.subr.mxu0 0.0
  %243 = vmatpush1.msra.mxu0 %v106
  %244 = vmatprep.subr.mxu0 0.0
  %245 = vmatpush1.msra.mxu0 %v107
  %246 = vmatprep.subr.mxu0 0.0
  %247 = vmatpush1.msra.mxu0 %v108
  %248 = vmatprep.subr.mxu0 0.0
  %249 = vmatpush1.msra.mxu0 %v109
  %250 = vmatprep.subr.mxu0 0.0
  %251 = vmatpush1.msra.mxu0 %v110
  %252 = vmatprep.subr.mxu0 0.0
  %253 = vmatpush1.msra.mxu0 %v111
  %254 = vmatprep.subr.mxu0 0.0
  %255 = vmatpush1.msra.mxu0 %v112
  %256 = vmatprep.subr.mxu0 0.0
  %257 = vmatpush1.msra.mxu0 %v113
  %258 = vmatprep.subr.mxu0 0.0
  %259 = vmatpush1.msra.mxu0 %v114
  %260 = vmatprep.subr.mxu0 0.0
  %261 = vmatpush1.msra.mxu0 %v115
  %262 = vmatprep.subr.mxu0 0.0
  %263 = vmatpush1.msra.mxu0 %v116
  %264 = vmatprep.subr.mxu0 0.0
  %265 = vmatpush1.msra.mxu0 %v117
  %266 = vmatprep.subr.mxu0 0.0
  %267 = vmatpush1.msra.mxu0 %v118
  %268 = vmatprep.subr.mxu0 0.0
  %269 = vmatpush1.msra.mxu0 %v119
  %270 = vmatprep.subr.mxu0 0.0
  %271 = vmatpush1.msra.mxu0 %v120
  %272 = vmatprep.mubr.f32.mxu0 %v15
  %273 = vmatmul.mubr.f32.gmra.mrb[0].mxu0 %v14
  %v274 = vpop.f32.mrb[0].mxu0
  %v275 = vadd.f32 %v130, %v274
  %v276 = vpop.f32.mrb[0].mxu0
  %277 = vmatprep.mubr.f32.mxu0 %v18
  %278 = vmatmul.mubr.f32.gmra.mrb[0].mxu0 %v17
  %v279 = vpop.f32.mrb[0].mxu0
  %v280 = vadd.f32 %v130, %v279
  %v281 = vpop.f32.mrb[0].mxu0
  %282 = vmatprep.mubr.f32.mxu0 %v21
  %283 = vmatmul.mubr.f32.gmra.mrb[0].mxu0 %v20
  %v284 = vpop.f32.mrb[0].mxu0
  %v285 = vadd.f32 %v130, %v284
  %v286 = vpop.f32.mrb[0].mxu0
  %287 = vmatprep.mubr.f32.mxu0 %v24
  %288 = vmatmul.mubr.f32.gmra.mrb[0].mxu0 %v23
  %v289 = vpop.f32.mrb[0].mxu0
  %v290 = vadd.f32 %v130, %v289
  %v291 = vpop.f32.mrb[0].mxu0
  %292 = vmatprep.mubr.f32.mxu0 %v27
  %293 = vmatmul.mubr.f32.gmra.mrb[0].mxu0 %v26
  %v294 = vpop.f32.mrb[0].mxu0
  %v295 = vadd.f32 %v130, %v294
  %v296 = vpop.f32.mrb[0].mxu0
  %297 = vmatprep.mubr.f32.mxu0 %v30
  %298 = vmatmul.mubr.f32.gmra.mrb[0].mxu0 %v29
  %v299 = vpop.f32.mrb[0].mxu0
  %v300 = vadd.f32 %v130, %v299
  %v301 = vpop.f32.mrb[0].mxu0
  %302 = vmatprep.mubr.f32.mxu0 %v33
  %303 = vmatmul.mubr.f32.gmra.mrb[0].mxu0 %v32
  %v304 = vpop.f32.mrb[0].mxu0
  %v305 = vadd.f32 %v130, %v304
  %v306 = vpop.f32.mrb[0].mxu0
  %307 = vmatprep.mubr.f32.mxu0 %v36
  %308 = vmatmul.mubr.f32.gmra.mrb[0].mxu0 %v35
  %v309 = vpop.f32.mrb[0].mxu0
  %v310 = vadd.f32 %v130, %v309
  %v311 = vpop.f32.mrb[0].mxu0
  %312 = vmatprep.mubr.f32.mxu0 %v39
  %313 = vmatmul.mubr.f32.gmra.mrb[0].mxu0 %v38
  %v314 = vpop.f32.mrb[0].mxu0
  %v315 = vadd.f32 %v130, %v314
  %v316 = vpop.f32.mrb[0].mxu0
  %317 = vmatprep.mubr.f32.mxu0 %v42
  %318 = vmatmul.mubr.f32.gmra.mrb[0].mxu0 %v41
  %v319 = vpop.f32.mrb[0].mxu0
  %v320 = vadd.f32 %v130, %v319
  %v321 = vpop.f32.mrb[0].mxu0
  %322 = vmatprep.mubr.f32.mxu0 %v45
  %323 = vmatmul.mubr.f32.gmra.mrb[0].mxu0 %v44
  %v324 = vpop.f32.mrb[0].mxu0
  %v325 = vadd.f32 %v130, %v324
  %v326 = vpop.f32.mrb[0].mxu0
  %327 = vmatprep.mubr.f32.mxu0 %v48
  %328 = vmatmul.mubr.f32.gmra.mrb[0].mxu0 %v47
  %v329 = vpop.f32.mrb[0].mxu0
  %v330 = vadd.f32 %v130, %v329
  %v331 = vpop.f32.mrb[0].mxu0
  %332 = vmatprep.mubr.f32.mxu0 %v51
  %333 = vmatmul.mubr.f32.gmra.mrb[0].mxu0 %v50
  %v334 = vpop.f32.mrb[0].mxu0
  %v335 = vadd.f32 %v130, %v334
  %v336 = vpop.f32.mrb[0].mxu0
  %337 = vmatprep.mubr.f32.mxu0 %v54
  %338 = vmatmul.mubr.f32.gmra.mrb[0].mxu0 %v53
  %v339 = vpop.f32.mrb[0].mxu0
  %v340 = vadd.f32 %v130, %v339
  %v341 = vpop.f32.mrb[0].mxu0
  %342 = vmatprep.mubr.f32.mxu0 %v57
  %343 = vmatmul.mubr.f32.gmra.mrb[0].mxu0 %v56
  %v344 = vpop.f32.mrb[0].mxu0
  %v345 = vadd.f32 %v130, %v344
  %v346 = vpop.f32.mrb[0].mxu0
  %347 = vmatprep.mubr.f32.mxu0 %v60
  %348 = vmatmul.mubr.f32.gmra.mrb[0].mxu0 %v59
  %v349 = vpop.f32.mrb[0].mxu0
  %v350 = vadd.f32 %v130, %v349
  %v351 = vpop.f32.mrb[0].mxu0
  %352 = vmatprep.mubr.f32.mxu0 %v63
  %353 = vmatmul.mubr.f32.gmra.mrb[0].mxu0 %v62
  %v354 = vpop.f32.mrb[0].mxu0
  %v355 = vadd.f32 %v130, %v354
  %v356 = vpop.f32.mrb[0].mxu0
  %357 = vmatprep.mubr.f32.mxu0 %v66
  %358 = vmatmul.mubr.f32.gmra.mrb[0].mxu0 %v65
  %v359 = vpop.f32.mrb[0].mxu0
  %v360 = vadd.f32 %v130, %v359
  %v361 = vpop.f32.mrb[0].mxu0
  %362 = vmatprep.mubr.f32.mxu0 %v69
  %363 = vmatmul.mubr.f32.gmra.mrb[0].mxu0 %v68
  %v364 = vpop.f32.mrb[0].mxu0
  %v365 = vadd.f32 %v130, %v364
  %v366 = vpop.f32.mrb[0].mxu0
  %367 = vmatprep.mubr.f32.mxu0 %v72
  %368 = vmatmul.mubr.f32.gmra.mrb[0].mxu0 %v71
  %v369 = vpop.f32.mrb[0].mxu0
  %v370 = vadd.f32 %v130, %v369
  %v371 = vpop.f32.mrb[0].mxu0
  %372 = vmatprep.mubr.f32.mxu0 %v75
  %373 = vmatmul.mubr.f32.gmra.mrb[0].mxu0 %v74
  %v374 = vpop.f32.mrb[0].mxu0
  %v375 = vadd.f32 %v130, %v374
  %v376 = vpop.f32.mrb[0].mxu0
  %377 = vmatprep.mubr.f32.mxu0 %v78
  %378 = vmatmul.mubr.f32.gmra.mrb[0].mxu0 %v77
  %v379 = vpop.f32.mrb[0].mxu0
  %v380 = vadd.f32 %v130, %v379
  %v381 = vpop.f32.mrb[0].mxu0
  %382 = vmatprep.mubr.f32.mxu0 %v81
  %383 = vmatmul.mubr.f32.gmra.mrb[0].mxu0 %v80
  %v384 = vpop.f32.mrb[0].mxu0
  %v385 = vadd.f32 %v130, %v384
  %v386 = vpop.f32.mrb[0].mxu0
  %387 = vmatprep.mubr.f32.mxu0 %v84
  %388 = vmatmul.mubr.f32.gmra.mrb[0].mxu0 %v83
  %v389 = vpop.f32.mrb[0].mxu0
  %v390 = vadd.f32 %v130, %v389
  %v391 = vpop.f32.mrb[0].mxu0
  %392 = vmatprep.mubr.f32.mxu0 %v87
  %393 = vmatmul.mubr.f32.gmra.mrb[0].mxu0 %v86
  %v394 = vpop.f32.mrb[0].mxu0
  %v395 = vadd.f32 %v130, %v394
  %v396 = vpop.f32.mrb[0].mxu0
  %397 = vdwg.mxu0
  %398 = vmatprep.subr.mxu0 0.0
  %399 = vmatpush1.msra.mxu0 %v121
  %400 = vmatprep.subr.mxu0 0.0
  %401 = vmatpush1.msra.mxu0 %v122
  %402 = vmatprep.subr.mxu0 0.0
  %403 = vmatpush1.msra.mxu0 %v123
  %404 = vmatprep.subr.mxu0 0.0
  %405 = vmatpush1.msra.mxu0 %v124
  %406 = vmatprep.subr.mxu0 0.0
  %407 = vmatpush1.msra.mxu0 0.0
  %408 = vmatprep.subr.mxu0 0.0
  %409 = vmatpush1.msra.mxu0 0.0
  %410 = vmatprep.subr.mxu0 0.0
  %411 = vmatpush1.msra.mxu0 0.0
  %412 = vmatprep.subr.mxu0 0.0
  %413 = vmatpush1.msra.mxu0 0.0
  %414 = vmatprep.subr.mxu0 0.0
  %415 = vmatpush1.msra.mxu0 0.0
  %416 = vmatprep.subr.mxu0 0.0
  %417 = vmatpush1.msra.mxu0 0.0
  %418 = vmatprep.subr.mxu0 0.0
  %419 = vmatpush1.msra.mxu0 0.0
  %420 = vmatprep.subr.mxu0 0.0
  %421 = vmatpush1.msra.mxu0 0.0
  %422 = vmatprep.subr.mxu0 0.0
  %423 = vmatpush1.msra.mxu0 0.0
  %424 = vmatprep.subr.mxu0 0.0
  %425 = vmatpush1.msra.mxu0 0.0
  %426 = vmatprep.subr.mxu0 0.0
  %427 = vmatpush1.msra.mxu0 0.0
  %428 = vmatprep.subr.mxu0 0.0
  %429 = vmatpush1.msra.mxu0 0.0
  %430 = vmatprep.subr.mxu0 0.0
  %431 = vmatpush1.msra.mxu0 0.0
  %432 = vmatprep.subr.mxu0 0.0
  %433 = vmatpush1.msra.mxu0 0.0
  %434 = vmatprep.subr.mxu0 0.0
  %435 = vmatpush1.msra.mxu0 0.0
  %436 = vmatprep.subr.mxu0 0.0
  %437 = vmatpush1.msra.mxu0 0.0
  %438 = vmatprep.subr.mxu0 0.0
  %439 = vmatpush1.msra.mxu0 0.0
  %440 = vmatprep.subr.mxu0 0.0
  %441 = vmatpush1.msra.mxu0 0.0
  %442 = vmatprep.subr.mxu0 0.0
  %443 = vmatpush1.msra.mxu0 0.0
  %444 = vmatprep.subr.mxu0 0.0
  %445 = vmatpush1.msra.mxu0 0.0
  %446 = vmatprep.subr.mxu0 0.0
  %447 = vmatpush1.msra.mxu0 0.0
  %448 = vmatprep.subr.mxu0 0.0
  %449 = vmatpush1.msra.mxu0 0.0
  %450 = vmatprep.subr.mxu0 0.0
  %451 = vmatpush1.msra.mxu0 0.0
  %452 = vmatprep.subr.mxu0 0.0
  %453 = vmatpush1.msra.mxu0 0.0
  %454 = vmatprep.subr.mxu0 0.0
  %455 = vmatpush1.msra.mxu0 0.0
  %456 = vmatprep.subr.mxu0 0.0
  %457 = vmatpush1.msra.mxu0 0.0
  %458 = vmatprep.subr.mxu0 0.0
  %459 = vmatpush1.msra.mxu0 0.0
  %460 = vmatprep.subr.mxu0 0.0
  %461 = vmatpush1.msra.mxu0 0.0
  %462 = vmatprep.mubr.f32.mxu0 0.0
  %463 = vmatmul.mubr.f32.gmra.mrb[0].mxu0 %v134
  %v464 = vpop.f32.mrb[0].mxu0
  %v465 = vadd.f32 %v275, %v464
  %v466 = vpop.f32.mrb[0].mxu0
  %467 = vmatprep.mubr.f32.mxu0 0.0
  %468 = vmatmul.mubr.f32.gmra.mrb[0].mxu0 %v137
  %v469 = vpop.f32.mrb[0].mxu0
  %v470 = vadd.f32 %v280, %v469
  %v471 = vpop.f32.mrb[0].mxu0
  %472 = vmatprep.mubr.f32.mxu0 0.0
  %473 = vmatmul.mubr.f32.gmra.mrb[0].mxu0 %v140
  %v474 = vpop.f32.mrb[0].mxu0
  %v475 = vadd.f32 %v285, %v474
  %v476 = vpop.f32.mrb[0].mxu0
  %477 = vmatprep.mubr.f32.mxu0 0.0
  %478 = vmatmul.mubr.f32.gmra.mrb[0].mxu0 %v143
  %v479 = vpop.f32.mrb[0].mxu0
  %v480 = vadd.f32 %v290, %v479
  %v481 = vpop.f32.mrb[0].mxu0
  %482 = vmatprep.mubr.f32.mxu0 0.0
  %483 = vmatmul.mubr.f32.gmra.mrb[0].mxu0 %v146
  %v484 = vpop.f32.mrb[0].mxu0
  %v485 = vadd.f32 %v295, %v484
  %v486 = vpop.f32.mrb[0].mxu0
  %487 = vmatprep.mubr.f32.mxu0 0.0
  %488 = vmatmul.mubr.f32.gmra.mrb[0].mxu0 %v149
  %v489 = vpop.f32.mrb[0].mxu0
  %v490 = vadd.f32 %v300, %v489
  %v491 = vpop.f32.mrb[0].mxu0
  %492 = vmatprep.mubr.f32.mxu0 0.0
  %493 = vmatmul.mubr.f32.gmra.mrb[0].mxu0 %v152
  %v494 = vpop.f32.mrb[0].mxu0
  %v495 = vadd.f32 %v305, %v494
  %v496 = vpop.f32.mrb[0].mxu0
  %497 = vmatprep.mubr.f32.mxu0 0.0
  %498 = vmatmul.mubr.f32.gmra.mrb[0].mxu0 %v155
  %v499 = vpop.f32.mrb[0].mxu0
  %v500 = vadd.f32 %v310, %v499
  %v501 = vpop.f32.mrb[0].mxu0
  %502 = vmatprep.mubr.f32.mxu0 0.0
  %503 = vmatmul.mubr.f32.gmra.mrb[0].mxu0 %v158
  %v504 = vpop.f32.mrb[0].mxu0
  %v505 = vadd.f32 %v315, %v504
  %v506 = vpop.f32.mrb[0].mxu0
  %507 = vmatprep.mubr.f32.mxu0 0.0
  %508 = vmatmul.mubr.f32.gmra.mrb[0].mxu0 %v161
  %v509 = vpop.f32.mrb[0].mxu0
  %v510 = vadd.f32 %v320, %v509
  %v511 = vpop.f32.mrb[0].mxu0
  %512 = vmatprep.mubr.f32.mxu0 0.0
  %513 = vmatmul.mubr.f32.gmra.mrb[0].mxu0 %v164
  %v514 = vpop.f32.mrb[0].mxu0
  %v515 = vadd.f32 %v325, %v514
  %v516 = vpop.f32.mrb[0].mxu0
  %517 = vmatprep.mubr.f32.mxu0 0.0
  %518 = vmatmul.mubr.f32.gmra.mrb[0].mxu0 %v167
  %v519 = vpop.f32.mrb[0].mxu0
  %v520 = vadd.f32 %v330, %v519
  %v521 = vpop.f32.mrb[0].mxu0
  %522 = vmatprep.mubr.f32.mxu0 0.0
  %523 = vmatmul.mubr.f32.gmra.mrb[0].mxu0 %v170
  %v524 = vpop.f32.mrb[0].mxu0
  %v525 = vadd.f32 %v335, %v524
  %v526 = vpop.f32.mrb[0].mxu0
  %527 = vmatprep.mubr.f32.mxu0 0.0
  %528 = vmatmul.mubr.f32.gmra.mrb[0].mxu0 %v173
  %v529 = vpop.f32.mrb[0].mxu0
  %v530 = vadd.f32 %v340, %v529
  %v531 = vpop.f32.mrb[0].mxu0
  %532 = vmatprep.mubr.f32.mxu0 0.0
  %533 = vmatmul.mubr.f32.gmra.mrb[0].mxu0 %v176
  %v534 = vpop.f32.mrb[0].mxu0
  %v535 = vadd.f32 %v345, %v534
  %v536 = vpop.f32.mrb[0].mxu0
  %537 = vmatprep.mubr.f32.mxu0 0.0
  %538 = vmatmul.mubr.f32.gmra.mrb[0].mxu0 %v179
  %v539 = vpop.f32.mrb[0].mxu0
  %v540 = vadd.f32 %v350, %v539
  %v541 = vpop.f32.mrb[0].mxu0
  %542 = vmatprep.mubr.f32.mxu0 0.0
  %543 = vmatmul.mubr.f32.gmra.mrb[0].mxu0 %v182
  %v544 = vpop.f32.mrb[0].mxu0
  %v545 = vadd.f32 %v355, %v544
  %v546 = vpop.f32.mrb[0].mxu0
  %547 = vmatprep.mubr.f32.mxu0 0.0
  %548 = vmatmul.mubr.f32.gmra.mrb[0].mxu0 %v185
  %v549 = vpop.f32.mrb[0].mxu0
  %v550 = vadd.f32 %v360, %v549
  %v551 = vpop.f32.mrb[0].mxu0
  %552 = vmatprep.mubr.f32.mxu0 0.0
  %553 = vmatmul.mubr.f32.gmra.mrb[0].mxu0 %v188
  %v554 = vpop.f32.mrb[0].mxu0
  %v555 = vadd.f32 %v365, %v554
  %v556 = vpop.f32.mrb[0].mxu0
  %557 = vmatprep.mubr.f32.mxu0 0.0
  %558 = vmatmul.mubr.f32.gmra.mrb[0].mxu0 %v191
  %v559 = vpop.f32.mrb[0].mxu0
  %v560 = vadd.f32 %v370, %v559
  %v561 = vpop.f32.mrb[0].mxu0
  %562 = vmatprep.mubr.f32.mxu0 0.0
  %563 = vmatmul.mubr.f32.gmra.mrb[0].mxu0 %v194
  %v564 = vpop.f32.mrb[0].mxu0
  %v565 = vadd.f32 %v375, %v564
  %v566 = vpop.f32.mrb[0].mxu0
  %567 = vmatprep.mubr.f32.mxu0 0.0
  %568 = vmatmul.mubr.f32.gmra.mrb[0].mxu0 %v197
  %v569 = vpop.f32.mrb[0].mxu0
  %v570 = vadd.f32 %v380, %v569
  %v571 = vpop.f32.mrb[0].mxu0
  %572 = vmatprep.mubr.f32.mxu0 0.0
  %573 = vmatmul.mubr.f32.gmra.mrb[0].mxu0 %v200
  %v574 = vpop.f32.mrb[0].mxu0
  %v575 = vadd.f32 %v385, %v574
  %v576 = vpop.f32.mrb[0].mxu0
  %577 = vmatprep.mubr.f32.mxu0 0.0
  %578 = vmatmul.mubr.f32.gmra.mrb[0].mxu0 %v203
  %v579 = vpop.f32.mrb[0].mxu0
  %v580 = vadd.f32 %v390, %v579
  %v581 = vpop.f32.mrb[0].mxu0
  %582 = vmatprep.mubr.f32.mxu0 0.0
  %583 = vmatmul.mubr.f32.gmra.mrb[0].mxu0 %v206
  %v584 = vpop.f32.mrb[0].mxu0
  %v585 = vadd.f32 %v395, %v584
  %v586 = vpop.f32.mrb[0].mxu0
  %587 = vdwg.mxu0
  %v588 = vmax.f32 %v465, 0.0
  %v589 = vmax.f32 %v470, 0.0
  %v590 = vmax.f32 %v475, 0.0
  %v591 = vmax.f32 %v480, 0.0
  %v592 = vmax.f32 %v485, 0.0
  %v593 = vmax.f32 %v490, 0.0
  %v594 = vmax.f32 %v495, 0.0
  %v595 = vmax.f32 %v500, 0.0
  %v596 = vmax.f32 %v505, 0.0
  %v597 = vmax.f32 %v510, 0.0
  %v598 = vmax.f32 %v515, 0.0
  %v599 = vmax.f32 %v520, 0.0
  %v600 = vmax.f32 %v525, 0.0
  %v601 = vmax.f32 %v530, 0.0
  %v602 = vmax.f32 %v535, 0.0
  %v603 = vmax.f32 %v540, 0.0
  %v604 = vmax.f32 %v545, 0.0
  %v605 = vmax.f32 %v550, 0.0
  %v606 = vmax.f32 %v555, 0.0
  %v607 = vmax.f32 %v560, 0.0
  %v608 = vmax.f32 %v565, 0.0
  %v609 = vmax.f32 %v570, 0.0
  %v610 = vmax.f32 %v575, 0.0
  %v611 = vmax.f32 %v580, 0.0
  %v612 = vmax.f32 %v585, 0.0
  %vm613 = vcmask 523264
  %614 = vst.msk [vmem:[%s3] sm:$0xff] %vm613, %v588
  %615 = vst.msk [vmem:[%s3 + $0x8] sm:$0xff] %vm613, %v589
  %616 = vst.msk [vmem:[%s3 + $0x10] sm:$0xff] %vm613, %v590
  %617 = vst.msk [vmem:[%s3 + $0x18] sm:$0xff] %vm613, %v591
  %618 = vst.msk [vmem:[%s3 + $0x20] sm:$0xff] %vm613, %v592
  %619 = vst.msk [vmem:[%s3 + $0x28] sm:$0xff] %vm613, %v593
  %620 = vst.msk [vmem:[%s3 + $0x30] sm:$0xff] %vm613, %v594
  %621 = vst.msk [vmem:[%s3 + $0x38] sm:$0xff] %vm613, %v595
  %622 = vst.msk [vmem:[%s3 + $0x40] sm:$0xff] %vm613, %v596
  %623 = vst.msk [vmem:[%s3 + $0x48] sm:$0xff] %vm613, %v597
  %624 = vst.msk [vmem:[%s3 + $0x50] sm:$0xff] %vm613, %v598
  %625 = vst.msk [vmem:[%s3 + $0x58] sm:$0xff] %vm613, %v599
  %626 = vst.msk [vmem:[%s3 + $0x60] sm:$0xff] %vm613, %v600
  %627 = vst.msk [vmem:[%s3 + $0x68] sm:$0xff] %vm613, %v601
  %628 = vst.msk [vmem:[%s3 + $0x70] sm:$0xff] %vm613, %v602
  %629 = vst.msk [vmem:[%s3 + $0x78] sm:$0xff] %vm613, %v603
  %630 = vst.msk [vmem:[%s3 + $0x80] sm:$0xff] %vm613, %v604
  %631 = vst.msk [vmem:[%s3 + $0x88] sm:$0xff] %vm613, %v605
  %632 = vst.msk [vmem:[%s3 + $0x90] sm:$0xff] %vm613, %v606
  %633 = vst.msk [vmem:[%s3 + $0x98] sm:$0xff] %vm613, %v607
  %634 = vst.msk [vmem:[%s3 + $0xa0] sm:$0xff] %vm613, %v608
  %635 = vst.msk [vmem:[%s3 + $0xa8] sm:$0xff] %vm613, %v609
  %636 = vst.msk [vmem:[%s3 + $0xb0] sm:$0xff] %vm613, %v610
  %637 = vst.msk [vmem:[%s3 + $0xb8] sm:$0xff] %vm613, %v611
  %638 = vst.msk [vmem:[%s3 + $0xc0] sm:$0xff] %vm613, %v612
  // Predicated region
  $region14: #{encoder_like_dqn_forward.6} parent=0 // pred_check
    _
  $region15: #{encoder_like_dqn_forward.6} parent=0 // pred_check_branch
    %640 = sbr.rel (0) target = $region17
  $region16: #{encoder_like_dqn_forward.6} parent=0 // pred_region
    _
  $region17: #{encoder_like_dqn_forward.6} parent=0 // pred_fallthru
    _
  // Predicated region
  $region18: #{encoder_like_dqn_forward.6} parent=0 // pred_check
    _
  $region19: #{encoder_like_dqn_forward.6} parent=0 // pred_check_branch
    %642 = sbr.rel (0) target = $region21
  $region20: #{encoder_like_dqn_forward.6} parent=0 // pred_region
    _
  $region21: #{encoder_like_dqn_forward.6} parent=0 // pred_fallthru
    _

// kernel: encoder_like_dqn_forward.7
$region0: #{encoder_like_dqn_forward.7}
  #allocation0 [shape = 'u32[]', space=smem, size = 0x4, offset = 0x4, fixed_abs, tag = 'smem constant byte address 0x4 - core index']
  #allocation1 [shape = 'u32[144,128]{1,0:T(1,128)}', space=vmem, size = 0x12000, scoped, tag = 'internal scratch']
  %s0 = inlined_call_operand.vmem [shape: bf16[2,6400], index: 0, kind: input, shape index: {}]
  %s1 = inlined_call_operand.vmem [shape: bf16[6400,512], index: 1, kind: input, shape index: {}]
  %s2 = inlined_call_operand.vmem [shape: f32[1,512], index: 2, kind: input, shape index: {}]
  %s3 = inlined_call_operand.vmem [shape: f32[512,128], index: 3, kind: input, shape index: {}]
  %s4 = inlined_call_operand.vmem [shape: f32[1,128], index: 4, kind: input, shape index: {}]
  %s5 = inlined_call_operand.hbm [shape: f32[2,128], index: 5, kind: output, shape index: {}]
  %s6 = sld [smem:[#allocation0]]
  $region30: #{encoder_like_dqn_forward.7} parent=0
    _
  %s8 = ssub.s32 1, %s6
  %s9 = scalar_select 0, %s8, %s6
  $region1: #{encoder_like_dqn_forward.7} parent=0
    #allocation2 [shape = 'u8[1024]{0}', space=vmem, size = 0x400, scoped, tag = 'output window, operand 0, single buffered']
    #allocation3 [shape = 's32[1]{0}', space=sflag, size = 0x4, scoped, tag = 'scoped memory for encoder_like_dqn_forward.7']
    %10 = vsyncpa [#allocation3], 0
    // Predicated region
    $region2: #{encoder_like_dqn_forward.7} parent=1 // pred_check
      _
    $region3: #{encoder_like_dqn_forward.7} parent=1 // pred_check_branch
      %12 = sbr.rel (0) target = $region5
    $region4: #{encoder_like_dqn_forward.7} parent=1 // pred_region
      _
    $region5: #{encoder_like_dqn_forward.7} parent=1 // pred_fallthru
      _
    // Predicated region
    $region6: #{encoder_like_dqn_forward.7} parent=1 // pred_check
      _
    $region7: #{encoder_like_dqn_forward.7} parent=1 // pred_check_branch
      %14 = sbr.rel (0) target = $region9
    $region8: #{encoder_like_dqn_forward.7} parent=1 // pred_region
      _
    $region9: #{encoder_like_dqn_forward.7} parent=1 // pred_fallthru
      _
    // Predicated region
    $region10: #{encoder_like_dqn_forward.7} parent=1 // pred_check
      _
    $region11: #{encoder_like_dqn_forward.7} parent=1 // pred_check_branch
      %16 = sbr.rel (0) target = $region13
    $region12: #{encoder_like_dqn_forward.7} parent=1 // pred_region
      _
    $region13: #{encoder_like_dqn_forward.7} parent=1 // pred_fallthru
      _
    // Predicated region
    $region14: #{encoder_like_dqn_forward.7} parent=1 // pred_check
      _
    $region15: #{encoder_like_dqn_forward.7} parent=1 // pred_check_branch
      %18 = sbr.rel (0) target = $region17
    $region16: #{encoder_like_dqn_forward.7} parent=1 // pred_region
      _
    $region17: #{encoder_like_dqn_forward.7} parent=1 // pred_fallthru
      _
    // Predicated region
    $region18: #{encoder_like_dqn_forward.7} parent=1 // pred_check
      _
    $region19: #{encoder_like_dqn_forward.7} parent=1 // pred_check_branch
      %20 = sbr.rel (0) target = $region21
    $region20: #{encoder_like_dqn_forward.7} parent=1 // pred_region
      _
    $region21: #{encoder_like_dqn_forward.7} parent=1 // pred_fallthru
      _
    %v21 = vld [vmem:[%s0] sm:$0xff]
    %v22 = vld [vmem:[%s0 + $0x8] sm:$0xff]
    %v23 = vld [vmem:[%s0 + $0x10] sm:$0xff]
    %v24 = vld [vmem:[%s0 + $0x18] sm:$0xff]
    %v25 = vld [vmem:[%s0 + $0x20] sm:$0xff]
    %v26 = vld [vmem:[%s0 + $0x28] sm:$0xff]
    %v27 = vld [vmem:[%s0 + $0x30] sm:$0x3]
    %v28 = vld [vmem:[%s1] sm:$0xff]
    %v29 = vld [vmem:[%s1 + $0x8] sm:$0xff]
    %v30 = vld [vmem:[%s1 + $0x10] sm:$0xff]
    %v31 = vld [vmem:[%s1 + $0x18] sm:$0xff]
    %v32 = vld [vmem:[%s1 + $0x20] sm:$0xff]
    %v33 = vld [vmem:[%s1 + $0x28] sm:$0xff]
    %v34 = vld [vmem:[%s1 + $0x30] sm:$0xff]
    %v35 = vld [vmem:[%s1 + $0x38] sm:$0xff]
    %v36 = vld [vmem:[%s1 + $0x40] sm:$0xff]
    %v37 = vld [vmem:[%s1 + $0x48] sm:$0xff]
    %v38 = vld [vmem:[%s1 + $0x50] sm:$0xff]
    %v39 = vld [vmem:[%s1 + $0x58] sm:$0xff]
    %v40 = vld [vmem:[%s1 + $0x60] sm:$0xff]
    %v41 = vld [vmem:[%s1 + $0x68] sm:$0xff]
    %v42 = vld [vmem:[%s1 + $0x70] sm:$0xff]
    %v43 = vld [vmem:[%s1 + $0x78] sm:$0xff]
    %v44 = vld [vmem:[%s1 + $0x80] sm:$0xff]
    %v45 = vld [vmem:[%s1 + $0x88] sm:$0xff]
    %v46 = vld [vmem:[%s1 + $0x90] sm:$0xff]
    %v47 = vld [vmem:[%s1 + $0x98] sm:$0xff]
    %v48 = vld [vmem:[%s1 + $0xa0] sm:$0xff]
    %v49 = vld [vmem:[%s1 + $0xa8] sm:$0xff]
    %v50 = vld [vmem:[%s1 + $0xb0] sm:$0xff]
    %v51 = vld [vmem:[%s1 + $0xb8] sm:$0xff]
    %v52 = vld [vmem:[%s1 + $0xc0] sm:$0xff]
    %v53 = vld [vmem:[%s1 + $0xc8] sm:$0xff]
    %v54 = vld [vmem:[%s1 + $0xd0] sm:$0xff]
    %v55 = vld [vmem:[%s1 + $0xd8] sm:$0xff]
    %v56 = vld [vmem:[%s1 + $0xe0] sm:$0xff]
    %v57 = vld [vmem:[%s1 + $0xe8] sm:$0xff]
    %v58 = vld [vmem:[%s1 + $0xf0] sm:$0xff]
    %v59 = vld [vmem:[%s1 + $0xf8] sm:$0xff]
    %v60 = vld [vmem:[%s1 + $0x100] sm:$0xff]
    %v61 = vld [vmem:[%s1 + $0x108] sm:$0xff]
    %v62 = vld [vmem:[%s1 + $0x110] sm:$0xff]
    %v63 = vld [vmem:[%s1 + $0x118] sm:$0xff]
    %v64 = vld [vmem:[%s1 + $0x120] sm:$0xff]
    %v65 = vld [vmem:[%s1 + $0x128] sm:$0xff]
    %v66 = vld [vmem:[%s1 + $0x130] sm:$0xff]
    %v67 = vld [vmem:[%s1 + $0x138] sm:$0xff]
    %v68 = vld [vmem:[%s1 + $0x140] sm:$0xff]
    %v69 = vld [vmem:[%s1 + $0x148] sm:$0xff]
    %v70 = vld [vmem:[%s1 + $0x150] sm:$0xff]
    %v71 = vld [vmem:[%s1 + $0x158] sm:$0xff]
    %v72 = vld [vmem:[%s1 + $0x160] sm:$0xff]
    %v73 = vld [vmem:[%s1 + $0x168] sm:$0xff]
    %v74 = vld [vmem:[%s1 + $0x170] sm:$0xff]
    %v75 = vld [vmem:[%s1 + $0x178] sm:$0xff]
    %v76 = vld [vmem:[%s1 + $0x180] sm:$0xff]
    %v77 = vld [vmem:[%s1 + $0x188] sm:$0xff]
    %v78 = vld [vmem:[%s1 + $0x190] sm:$0xff]
    %v79 = vld [vmem:[%s1 + $0x198] sm:$0xff]
    %v80 = vld [vmem:[%s1 + $0x1a0] sm:$0xff]
    %v81 = vld [vmem:[%s1 + $0x1a8] sm:$0xff]
    %v82 = vld [vmem:[%s1 + $0x1b0] sm:$0xff]
    %v83 = vld [vmem:[%s1 + $0x1b8] sm:$0xff]
    %v84 = vld [vmem:[%s1 + $0x1c0] sm:$0xff]
    %v85 = vld [vmem:[%s1 + $0x1c8] sm:$0xff]
    %v86 = vld [vmem:[%s1 + $0x1d0] sm:$0xff]
    %v87 = vld [vmem:[%s1 + $0x1d8] sm:$0xff]
    %v88 = vld [vmem:[%s1 + $0x1e0] sm:$0xff]
    %v89 = vld [vmem:[%s1 + $0x1e8] sm:$0xff]
    %v90 = vld [vmem:[%s1 + $0x1f0] sm:$0xff]
    %v91 = vld [vmem:[%s1 + $0x1f8] sm:$0xff]
    %v92 = vld [vmem:[%s1 + $0x200] sm:$0xff]
    %v93 = vld [vmem:[%s1 + $0x208] sm:$0xff]
    %v94 = vld [vmem:[%s1 + $0x210] sm:$0xff]
    %v95 = vld [vmem:[%s1 + $0x218] sm:$0xff]
    %v96 = vld [vmem:[%s1 + $0x220] sm:$0xff]
    %v97 = vld [vmem:[%s1 + $0x228] sm:$0xff]
    %v98 = vld [vmem:[%s1 + $0x230] sm:$0xff]
    %v99 = vld [vmem:[%s1 + $0x238] sm:$0xff]
    %v100 = vld [vmem:[%s1 + $0x240] sm:$0xff]
    %v101 = vld [vmem:[%s1 + $0x248] sm:$0xff]
    %v102 = vld [vmem:[%s1 + $0x250] sm:$0xff]
    %v103 = vld [vmem:[%s1 + $0x258] sm:$0xff]
    %v104 = vld [vmem:[%s1 + $0x260] sm:$0xff]
    %v105 = vld [vmem:[%s1 + $0x268] sm:$0xff]
    %v106 = vld [vmem:[%s1 + $0x270] sm:$0xff]
    %v107 = vld [vmem:[%s1 + $0x278] sm:$0xff]
    %v108 = vld [vmem:[%s1 + $0x280] sm:$0xff]
    %v109 = vld [vmem:[%s1 + $0x288] sm:$0xff]
    %v110 = vld [vmem:[%s1 + $0x290] sm:$0xff]
    %v111 = vld [vmem:[%s1 + $0x298] sm:$0xff]
    %v112 = vld [vmem:[%s1 + $0x2a0] sm:$0xff]
    %v113 = vld [vmem:[%s1 + $0x2a8] sm:$0xff]
    %v114 = vld [vmem:[%s1 + $0x2b0] sm:$0xff]
    %v115 = vld [vmem:[%s1 + $0x2b8] sm:$0xff]
    %v116 = vld [vmem:[%s1 + $0x2c0] sm:$0xff]
    %v117 = vld [vmem:[%s1 + $0x2c8] sm:$0xff]
    %v118 = vld [vmem:[%s1 + $0x2d0] sm:$0xff]
    %v119 = vld [vmem:[%s1 + $0x2d8] sm:$0xff]
    %v120 = vld [vmem:[%s1 + $0x2e0] sm:$0xff]
    %v121 = vld [vmem:[%s1 + $0x2e8] sm:$0xff]
    %v122 = vld [vmem:[%s1 + $0x2f0] sm:$0xff]
    %v123 = vld [vmem:[%s1 + $0x2f8] sm:$0xff]
    %v124 = vld [vmem:[%s1 + $0x300] sm:$0xff]
    %v125 = vld [vmem:[%s1 + $0x308] sm:$0xff]
    %v126 = vld [vmem:[%s1 + $0x310] sm:$0xff]
    %v127 = vld [vmem:[%s1 + $0x318] sm:$0xff]
    %v128 = vld [vmem:[%s1 + $0x320] sm:$0xff]
    %v129 = vld [vmem:[%s1 + $0x328] sm:$0xff]
    %v130 = vld [vmem:[%s1 + $0x330] sm:$0xff]
    %v131 = vld [vmem:[%s1 + $0x338] sm:$0xff]
    %v132 = vld [vmem:[%s1 + $0x340] sm:$0xff]
    %v133 = vld [vmem:[%s1 + $0x348] sm:$0xff]
    %v134 = vld [vmem:[%s1 + $0x350] sm:$0xff]
    %v135 = vld [vmem:[%s1 + $0x358] sm:$0xff]
    %v136 = vld [vmem:[%s1 + $0x360] sm:$0xff]
    %v137 = vld [vmem:[%s1 + $0x368] sm:$0xff]
    %v138 = vld [vmem:[%s1 + $0x370] sm:$0xff]
    %v139 = vld [vmem:[%s1 + $0x378] sm:$0xff]
    %v140 = vld [vmem:[%s1 + $0x380] sm:$0xff]
    %v141 = vld [vmem:[%s1 + $0x388] sm:$0xff]
    %v142 = vld [vmem:[%s1 + $0x390] sm:$0xff]
    %v143 = vld [vmem:[%s1 + $0x398] sm:$0xff]
    %v144 = vld [vmem:[%s1 + $0x3a0] sm:$0xff]
    %v145 = vld [vmem:[%s1 + $0x3a8] sm:$0xff]
    %v146 = vld [vmem:[%s1 + $0x3b0] sm:$0xff]
    %v147 = vld [vmem:[%s1 + $0x3b8] sm:$0xff]
    %v148 = vld [vmem:[%s1 + $0x3c0] sm:$0xff]
    %v149 = vld [vmem:[%s1 + $0x3c8] sm:$0xff]
    %v150 = vld [vmem:[%s1 + $0x3d0] sm:$0xff]
    %v151 = vld [vmem:[%s1 + $0x3d8] sm:$0xff]
    %v152 = vld [vmem:[%s1 + $0x3e0] sm:$0xff]
    %v153 = vld [vmem:[%s1 + $0x3e8] sm:$0xff]
    %v154 = vld [vmem:[%s1 + $0x3f0] sm:$0xff]
    %v155 = vld [vmem:[%s1 + $0x3f8] sm:$0xff]
    %v156 = vld [vmem:[%s1 + $0x400] sm:$0xff]
    %v157 = vld [vmem:[%s1 + $0x408] sm:$0xff]
    %v158 = vld [vmem:[%s1 + $0x410] sm:$0xff]
    %v159 = vld [vmem:[%s1 + $0x418] sm:$0xff]
    %v160 = vld [vmem:[%s1 + $0x420] sm:$0xff]
    %v161 = vld [vmem:[%s1 + $0x428] sm:$0xff]
    %v162 = vld [vmem:[%s1 + $0x430] sm:$0xff]
    %v163 = vld [vmem:[%s1 + $0x438] sm:$0xff]
    %v164 = vld [vmem:[%s1 + $0x440] sm:$0xff]
    %v165 = vld [vmem:[%s1 + $0x448] sm:$0xff]
    %v166 = vld [vmem:[%s1 + $0x450] sm:$0xff]
    %v167 = vld [vmem:[%s1 + $0x458] sm:$0xff]
    %v168 = vld [vmem:[%s1 + $0x460] sm:$0xff]
    %v169 = vld [vmem:[%s1 + $0x468] sm:$0xff]
    %v170 = vld [vmem:[%s1 + $0x470] sm:$0xff]
    %v171 = vld [vmem:[%s1 + $0x478] sm:$0xff]
    %v172 = vld [vmem:[%s1 + $0x480] sm:$0xff]
    %v173 = vld [vmem:[%s1 + $0x488] sm:$0xff]
    %v174 = vld [vmem:[%s1 + $0x490] sm:$0xff]
    %v175 = vld [vmem:[%s1 + $0x498] sm:$0xff]
    %v176 = vld [vmem:[%s1 + $0x4a0] sm:$0xff]
    %v177 = vld [vmem:[%s1 + $0x4a8] sm:$0xff]
    %v178 = vld [vmem:[%s1 + $0x4b0] sm:$0xff]
    %v179 = vld [vmem:[%s1 + $0x4b8] sm:$0xff]
    %v180 = vld [vmem:[%s1 + $0x4c0] sm:$0xff]
    %v181 = vld [vmem:[%s1 + $0x4c8] sm:$0xff]
    %v182 = vld [vmem:[%s1 + $0x4d0] sm:$0xff]
    %v183 = vld [vmem:[%s1 + $0x4d8] sm:$0xff]
    %v184 = vld [vmem:[%s1 + $0x4e0] sm:$0xff]
    %v185 = vld [vmem:[%s1 + $0x4e8] sm:$0xff]
    %v186 = vld [vmem:[%s1 + $0x4f0] sm:$0xff]
    %v187 = vld [vmem:[%s1 + $0x4f8] sm:$0xff]
    %v188 = vld [vmem:[%s1 + $0x500] sm:$0xff]
    %v189 = vld [vmem:[%s1 + $0x508] sm:$0xff]
    %v190 = vld [vmem:[%s1 + $0x510] sm:$0xff]
    %v191 = vld [vmem:[%s1 + $0x518] sm:$0xff]
    %v192 = vld [vmem:[%s1 + $0x520] sm:$0xff]
    %v193 = vld [vmem:[%s1 + $0x528] sm:$0xff]
    %v194 = vld [vmem:[%s1 + $0x530] sm:$0xff]
    %v195 = vld [vmem:[%s1 + $0x538] sm:$0xff]
    %v196 = vld [vmem:[%s1 + $0x540] sm:$0xff]
    %v197 = vld [vmem:[%s1 + $0x548] sm:$0xff]
    %v198 = vld [vmem:[%s1 + $0x550] sm:$0xff]
    %v199 = vld [vmem:[%s1 + $0x558] sm:$0xff]
    %v200 = vld [vmem:[%s1 + $0x560] sm:$0xff]
    %v201 = vld [vmem:[%s1 + $0x568] sm:$0xff]
    %v202 = vld [vmem:[%s1 + $0x570] sm:$0xff]
    %v203 = vld [vmem:[%s1 + $0x578] sm:$0xff]
    %v204 = vld [vmem:[%s1 + $0x580] sm:$0xff]
    %v205 = vld [vmem:[%s1 + $0x588] sm:$0xff]
    %v206 = vld [vmem:[%s1 + $0x590] sm:$0xff]
    %v207 = vld [vmem:[%s1 + $0x598] sm:$0xff]
    %v208 = vld [vmem:[%s1 + $0x5a0] sm:$0xff]
    %v209 = vld [vmem:[%s1 + $0x5a8] sm:$0xff]
    %v210 = vld [vmem:[%s1 + $0x5b0] sm:$0xff]
    %v211 = vld [vmem:[%s1 + $0x5b8] sm:$0xff]
    %v212 = vld [vmem:[%s1 + $0x5c0] sm:$0xff]
    %v213 = vld [vmem:[%s1 + $0x5c8] sm:$0xff]
    %v214 = vld [vmem:[%s1 + $0x5d0] sm:$0xff]
    %v215 = vld [vmem:[%s1 + $0x5d8] sm:$0xff]
    %v216 = vld [vmem:[%s1 + $0x5e0] sm:$0xff]
    %v217 = vld [vmem:[%s1 + $0x5e8] sm:$0xff]
    %v218 = vld [vmem:[%s1 + $0x5f0] sm:$0xff]
    %v219 = vld [vmem:[%s1 + $0x5f8] sm:$0xff]
    %v220 = vld [vmem:[%s1 + $0x600] sm:$0xff]
    %v221 = vld [vmem:[%s1 + $0x608] sm:$0xff]
    %v222 = vld [vmem:[%s1 + $0x610] sm:$0xff]
    %v223 = vld [vmem:[%s1 + $0x618] sm:$0xff]
    %v224 = vld [vmem:[%s1 + $0x620] sm:$0xff]
    %v225 = vld [vmem:[%s1 + $0x628] sm:$0xff]
    %v226 = vld [vmem:[%s1 + $0x630] sm:$0xff]
    %v227 = vld [vmem:[%s1 + $0x638] sm:$0xff]
    %v228 = vld [vmem:[%s1 + $0x640] sm:$0xff]
    %v229 = vld [vmem:[%s1 + $0x648] sm:$0xff]
    %v230 = vld [vmem:[%s1 + $0x650] sm:$0xff]
    %v231 = vld [vmem:[%s1 + $0x658] sm:$0xff]
    %v232 = vld [vmem:[%s1 + $0x660] sm:$0xff]
    %v233 = vld [vmem:[%s1 + $0x668] sm:$0xff]
    %v234 = vld [vmem:[%s1 + $0x670] sm:$0xff]
    %v235 = vld [vmem:[%s1 + $0x678] sm:$0xff]
    %v236 = vld [vmem:[%s1 + $0x680] sm:$0xff]
    %v237 = vld [vmem:[%s1 + $0x688] sm:$0xff]
    %v238 = vld [vmem:[%s1 + $0x690] sm:$0xff]
    %v239 = vld [vmem:[%s1 + $0x698] sm:$0xff]
    %v240 = vld [vmem:[%s1 + $0x6a0] sm:$0xff]
    %v241 = vld [vmem:[%s1 + $0x6a8] sm:$0xff]
    %v242 = vld [vmem:[%s1 + $0x6b0] sm:$0xff]
    %v243 = vld [vmem:[%s1 + $0x6b8] sm:$0xff]
    %v244 = vld [vmem:[%s1 + $0x6c0] sm:$0xff]
    %v245 = vld [vmem:[%s1 + $0x6c8] sm:$0xff]
    %v246 = vld [vmem:[%s1 + $0x6d0] sm:$0xff]
    %v247 = vld [vmem:[%s1 + $0x6d8] sm:$0xff]
    %v248 = vld [vmem:[%s1 + $0x6e0] sm:$0xff]
    %v249 = vld [vmem:[%s1 + $0x6e8] sm:$0xff]
    %v250 = vld [vmem:[%s1 + $0x6f0] sm:$0xff]
    %v251 = vld [vmem:[%s1 + $0x6f8] sm:$0xff]
    %v252 = vld [vmem:[%s1 + $0x700] sm:$0xff]
    %v253 = vld [vmem:[%s1 + $0x708] sm:$0xff]
    %v254 = vld [vmem:[%s1 + $0x710] sm:$0xff]
    %v255 = vld [vmem:[%s1 + $0x718] sm:$0xff]
    %v256 = vld [vmem:[%s1 + $0x720] sm:$0xff]
    %v257 = vld [vmem:[%s1 + $0x728] sm:$0xff]
    %v258 = vld [vmem:[%s1 + $0x730] sm:$0xff]
    %v259 = vld [vmem:[%s1 + $0x738] sm:$0xff]
    %v260 = vld [vmem:[%s1 + $0x740] sm:$0xff]
    %v261 = vld [vmem:[%s1 + $0x748] sm:$0xff]
    %v262 = vld [vmem:[%s1 + $0x750] sm:$0xff]
    %v263 = vld [vmem:[%s1 + $0x758] sm:$0xff]
    %v264 = vld [vmem:[%s1 + $0x760] sm:$0xff]
    %v265 = vld [vmem:[%s1 + $0x768] sm:$0xff]
    %v266 = vld [vmem:[%s1 + $0x770] sm:$0xff]
    %v267 = vld [vmem:[%s1 + $0x778] sm:$0xff]
    %v268 = vld [vmem:[%s1 + $0x780] sm:$0xff]
    %v269 = vld [vmem:[%s1 + $0x788] sm:$0xff]
    %v270 = vld [vmem:[%s1 + $0x790] sm:$0xff]
    %v271 = vld [vmem:[%s1 + $0x798] sm:$0xff]
    %v272 = vld [vmem:[%s1 + $0x7a0] sm:$0xff]
    %v273 = vld [vmem:[%s1 + $0x7a8] sm:$0xff]
    %v274 = vld [vmem:[%s1 + $0x7b0] sm:$0xff]
    %v275 = vld [vmem:[%s1 + $0x7b8] sm:$0xff]
    %v276 = vld [vmem:[%s1 + $0x7c0] sm:$0xff]
    %v277 = vld [vmem:[%s1 + $0x7c8] sm:$0xff]
    %v278 = vld [vmem:[%s1 + $0x7d0] sm:$0xff]
    %v279 = vld [vmem:[%s1 + $0x7d8] sm:$0xff]
    %v280 = vld [vmem:[%s1 + $0x7e0] sm:$0xff]
    %v281 = vld [vmem:[%s1 + $0x7e8] sm:$0xff]
    %v282 = vld [vmem:[%s1 + $0x7f0] sm:$0xff]
    %v283 = vld [vmem:[%s1 + $0x7f8] sm:$0xff]
    %v284 = vld [vmem:[%s1 + $0x800] sm:$0xff]
    %v285 = vld [vmem:[%s1 + $0x808] sm:$0xff]
    %v286 = vld [vmem:[%s1 + $0x810] sm:$0xff]
    %v287 = vld [vmem:[%s1 + $0x818] sm:$0xff]
    %v288 = vld [vmem:[%s1 + $0x820] sm:$0xff]
    %v289 = vld [vmem:[%s1 + $0x828] sm:$0xff]
    %v290 = vld [vmem:[%s1 + $0x830] sm:$0xff]
    %v291 = vld [vmem:[%s1 + $0x838] sm:$0xff]
    %v292 = vld [vmem:[%s1 + $0x840] sm:$0xff]
    %v293 = vld [vmem:[%s1 + $0x848] sm:$0xff]
    %v294 = vld [vmem:[%s1 + $0x850] sm:$0xff]
    %v295 = vld [vmem:[%s1 + $0x858] sm:$0xff]
    %v296 = vld [vmem:[%s1 + $0x860] sm:$0xff]
    %v297 = vld [vmem:[%s1 + $0x868] sm:$0xff]
    %v298 = vld [vmem:[%s1 + $0x870] sm:$0xff]
    %v299 = vld [vmem:[%s1 + $0x878] sm:$0xff]
    %v300 = vld [vmem:[%s1 + $0x880] sm:$0xff]
    %v301 = vld [vmem:[%s1 + $0x888] sm:$0xff]
    %v302 = vld [vmem:[%s1 + $0x890] sm:$0xff]
    %v303 = vld [vmem:[%s1 + $0x898] sm:$0xff]
    %v304 = vld [vmem:[%s1 + $0x8a0] sm:$0xff]
    %v305 = vld [vmem:[%s1 + $0x8a8] sm:$0xff]
    %v306 = vld [vmem:[%s1 + $0x8b0] sm:$0xff]
    %v307 = vld [vmem:[%s1 + $0x8b8] sm:$0xff]
    %v308 = vld [vmem:[%s1 + $0x8c0] sm:$0xff]
    %v309 = vld [vmem:[%s1 + $0x8c8] sm:$0xff]
    %v310 = vld [vmem:[%s1 + $0x8d0] sm:$0xff]
    %v311 = vld [vmem:[%s1 + $0x8d8] sm:$0xff]
    %v312 = vld [vmem:[%s1 + $0x8e0] sm:$0xff]
    %v313 = vld [vmem:[%s1 + $0x8e8] sm:$0xff]
    %v314 = vld [vmem:[%s1 + $0x8f0] sm:$0xff]
    %v315 = vld [vmem:[%s1 + $0x8f8] sm:$0xff]
    %v316 = vld [vmem:[%s1 + $0x900] sm:$0xff]
    %v317 = vld [vmem:[%s1 + $0x908] sm:$0xff]
    %v318 = vld [vmem:[%s1 + $0x910] sm:$0xff]
    %v319 = vld [vmem:[%s1 + $0x918] sm:$0xff]
    %v320 = vld [vmem:[%s1 + $0x920] sm:$0xff]
    %v321 = vld [vmem:[%s1 + $0x928] sm:$0xff]
    %v322 = vld [vmem:[%s1 + $0x930] sm:$0xff]
    %v323 = vld [vmem:[%s1 + $0x938] sm:$0xff]
    %v324 = vld [vmem:[%s1 + $0x940] sm:$0xff]
    %v325 = vld [vmem:[%s1 + $0x948] sm:$0xff]
    %v326 = vld [vmem:[%s1 + $0x950] sm:$0xff]
    %v327 = vld [vmem:[%s1 + $0x958] sm:$0xff]
    %v328 = vld [vmem:[%s1 + $0x960] sm:$0xff]
    %v329 = vld [vmem:[%s1 + $0x968] sm:$0xff]
    %v330 = vld [vmem:[%s1 + $0x970] sm:$0xff]
    %v331 = vld [vmem:[%s1 + $0x978] sm:$0xff]
    %v332 = vld [vmem:[%s1 + $0x980] sm:$0xff]
    %v333 = vld [vmem:[%s1 + $0x988] sm:$0xff]
    %v334 = vld [vmem:[%s1 + $0x990] sm:$0xff]
    %v335 = vld [vmem:[%s1 + $0x998] sm:$0xff]
    %v336 = vld [vmem:[%s1 + $0x9a0] sm:$0xff]
    %v337 = vld [vmem:[%s1 + $0x9a8] sm:$0xff]
    %v338 = vld [vmem:[%s1 + $0x9b0] sm:$0xff]
    %v339 = vld [vmem:[%s1 + $0x9b8] sm:$0xff]
    %v340 = vld [vmem:[%s1 + $0x9c0] sm:$0xff]
    %v341 = vld [vmem:[%s1 + $0x9c8] sm:$0xff]
    %v342 = vld [vmem:[%s1 + $0x9d0] sm:$0xff]
    %v343 = vld [vmem:[%s1 + $0x9d8] sm:$0xff]
    %v344 = vld [vmem:[%s1 + $0x9e0] sm:$0xff]
    %v345 = vld [vmem:[%s1 + $0x9e8] sm:$0xff]
    %v346 = vld [vmem:[%s1 + $0x9f0] sm:$0xff]
    %v347 = vld [vmem:[%s1 + $0x9f8] sm:$0xff]
    %v348 = vld [vmem:[%s1 + $0xa00] sm:$0xff]
    %v349 = vld [vmem:[%s1 + $0xa08] sm:$0xff]
    %v350 = vld [vmem:[%s1 + $0xa10] sm:$0xff]
    %v351 = vld [vmem:[%s1 + $0xa18] sm:$0xff]
    %v352 = vld [vmem:[%s1 + $0xa20] sm:$0xff]
    %v353 = vld [vmem:[%s1 + $0xa28] sm:$0xff]
    %v354 = vld [vmem:[%s1 + $0xa30] sm:$0xff]
    %v355 = vld [vmem:[%s1 + $0xa38] sm:$0xff]
    %v356 = vld [vmem:[%s1 + $0xa40] sm:$0xff]
    %v357 = vld [vmem:[%s1 + $0xa48] sm:$0xff]
    %v358 = vld [vmem:[%s1 + $0xa50] sm:$0xff]
    %v359 = vld [vmem:[%s1 + $0xa58] sm:$0xff]
    %v360 = vld [vmem:[%s1 + $0xa60] sm:$0xff]
    %v361 = vld [vmem:[%s1 + $0xa68] sm:$0xff]
    %v362 = vld [vmem:[%s1 + $0xa70] sm:$0xff]
    %v363 = vld [vmem:[%s1 + $0xa78] sm:$0xff]
    %v364 = vld [vmem:[%s1 + $0xa80] sm:$0xff]
    %v365 = vld [vmem:[%s1 + $0xa88] sm:$0xff]
    %v366 = vld [vmem:[%s1 + $0xa90] sm:$0xff]
    %v367 = vld [vmem:[%s1 + $0xa98] sm:$0xff]
    %v368 = vld [vmem:[%s1 + $0xaa0] sm:$0xff]
    %v369 = vld [vmem:[%s1 + $0xaa8] sm:$0xff]
    %v370 = vld [vmem:[%s1 + $0xab0] sm:$0xff]
    %v371 = vld [vmem:[%s1 + $0xab8] sm:$0xff]
    %v372 = vld [vmem:[%s1 + $0xac0] sm:$0xff]
    %v373 = vld [vmem:[%s1 + $0xac8] sm:$0xff]
    %v374 = vld [vmem:[%s1 + $0xad0] sm:$0xff]
    %v375 = vld [vmem:[%s1 + $0xad8] sm:$0xff]
    %v376 = vld [vmem:[%s1 + $0xae0] sm:$0xff]
    %v377 = vld [vmem:[%s1 + $0xae8] sm:$0xff]
    %v378 = vld [vmem:[%s1 + $0xaf0] sm:$0xff]
    %v379 = vld [vmem:[%s1 + $0xaf8] sm:$0xff]
    %v380 = vld [vmem:[%s1 + $0xb00] sm:$0xff]
    %v381 = vld [vmem:[%s1 + $0xb08] sm:$0xff]
    %v382 = vld [vmem:[%s1 + $0xb10] sm:$0xff]
    %v383 = vld [vmem:[%s1 + $0xb18] sm:$0xff]
    %v384 = vld [vmem:[%s1 + $0xb20] sm:$0xff]
    %v385 = vld [vmem:[%s1 + $0xb28] sm:$0xff]
    %v386 = vld [vmem:[%s1 + $0xb30] sm:$0xff]
    %v387 = vld [vmem:[%s1 + $0xb38] sm:$0xff]
    %v388 = vld [vmem:[%s1 + $0xb40] sm:$0xff]
    %v389 = vld [vmem:[%s1 + $0xb48] sm:$0xff]
    %v390 = vld [vmem:[%s1 + $0xb50] sm:$0xff]
    %v391 = vld [vmem:[%s1 + $0xb58] sm:$0xff]
    %v392 = vld [vmem:[%s1 + $0xb60] sm:$0xff]
    %v393 = vld [vmem:[%s1 + $0xb68] sm:$0xff]
    %v394 = vld [vmem:[%s1 + $0xb70] sm:$0xff]
    %v395 = vld [vmem:[%s1 + $0xb78] sm:$0xff]
    %v396 = vld [vmem:[%s1 + $0xb80] sm:$0xff]
    %v397 = vld [vmem:[%s1 + $0xb88] sm:$0xff]
    %v398 = vld [vmem:[%s1 + $0xb90] sm:$0xff]
    %v399 = vld [vmem:[%s1 + $0xb98] sm:$0xff]
    %v400 = vld [vmem:[%s1 + $0xba0] sm:$0xff]
    %v401 = vld [vmem:[%s1 + $0xba8] sm:$0xff]
    %v402 = vld [vmem:[%s1 + $0xbb0] sm:$0xff]
    %v403 = vld [vmem:[%s1 + $0xbb8] sm:$0xff]
    %v404 = vld [vmem:[%s1 + $0xbc0] sm:$0xff]
    %v405 = vld [vmem:[%s1 + $0xbc8] sm:$0xff]
    %v406 = vld [vmem:[%s1 + $0xbd0] sm:$0xff]
    %v407 = vld [vmem:[%s1 + $0xbd8] sm:$0xff]
    %v408 = vld [vmem:[%s1 + $0xbe0] sm:$0xff]
    %v409 = vld [vmem:[%s1 + $0xbe8] sm:$0xff]
    %v410 = vld [vmem:[%s1 + $0xbf0] sm:$0xff]
    %v411 = vld [vmem:[%s1 + $0xbf8] sm:$0xff]
    %v412 = vld [vmem:[%s1 + $0xc00] sm:$0xff]
    %v413 = vld [vmem:[%s1 + $0xc08] sm:$0xff]
    %v414 = vld [vmem:[%s1 + $0xc10] sm:$0xff]
    %v415 = vld [vmem:[%s1 + $0xc18] sm:$0xff]
    %v416 = vld [vmem:[%s1 + $0xc20] sm:$0xff]
    %v417 = vld [vmem:[%s1 + $0xc28] sm:$0xff]
    %v418 = vld [vmem:[%s1 + $0xc30] sm:$0xff]
    %v419 = vld [vmem:[%s1 + $0xc38] sm:$0xff]
    %v420 = vld [vmem:[%s1 + $0xc40] sm:$0xff]
    %v421 = vld [vmem:[%s1 + $0xc48] sm:$0xff]
    %v422 = vld [vmem:[%s1 + $0xc50] sm:$0xff]
    %v423 = vld [vmem:[%s1 + $0xc58] sm:$0xff]
    %v424 = vld [vmem:[%s1 + $0xc60] sm:$0xff]
    %v425 = vld [vmem:[%s1 + $0xc68] sm:$0xff]
    %v426 = vld [vmem:[%s1 + $0xc70] sm:$0xff]
    %v427 = vld [vmem:[%s1 + $0xc78] sm:$0xff]
    %v428 = vld [vmem:[%s1 + $0xc80] sm:$0xff]
    %v429 = vld [vmem:[%s1 + $0xc88] sm:$0xff]
    %v430 = vld [vmem:[%s1 + $0xc90] sm:$0xff]
    %v431 = vld [vmem:[%s1 + $0xc98] sm:$0xff]
    %v432 = vld [vmem:[%s1 + $0xca0] sm:$0xff]
    %v433 = vld [vmem:[%s1 + $0xca8] sm:$0xff]
    %v434 = vld [vmem:[%s1 + $0xcb0] sm:$0xff]
    %v435 = vld [vmem:[%s1 + $0xcb8] sm:$0xff]
    %v436 = vld [vmem:[%s1 + $0xcc0] sm:$0xff]
    %v437 = vld [vmem:[%s1 + $0xcc8] sm:$0xff]
    %v438 = vld [vmem:[%s1 + $0xcd0] sm:$0xff]
    %v439 = vld [vmem:[%s1 + $0xcd8] sm:$0xff]
    %v440 = vld [vmem:[%s1 + $0xce0] sm:$0xff]
    %v441 = vld [vmem:[%s1 + $0xce8] sm:$0xff]
    %v442 = vld [vmem:[%s1 + $0xcf0] sm:$0xff]
    %v443 = vld [vmem:[%s1 + $0xcf8] sm:$0xff]
    %v444 = vld [vmem:[%s1 + $0xd00] sm:$0xff]
    %v445 = vld [vmem:[%s1 + $0xd08] sm:$0xff]
    %v446 = vld [vmem:[%s1 + $0xd10] sm:$0xff]
    %v447 = vld [vmem:[%s1 + $0xd18] sm:$0xff]
    %v448 = vld [vmem:[%s1 + $0xd20] sm:$0xff]
    %v449 = vld [vmem:[%s1 + $0xd28] sm:$0xff]
    %v450 = vld [vmem:[%s1 + $0xd30] sm:$0xff]
    %v451 = vld [vmem:[%s1 + $0xd38] sm:$0xff]
    %v452 = vld [vmem:[%s1 + $0xd40] sm:$0xff]
    %v453 = vld [vmem:[%s1 + $0xd48] sm:$0xff]
    %v454 = vld [vmem:[%s1 + $0xd50] sm:$0xff]
    %v455 = vld [vmem:[%s1 + $0xd58] sm:$0xff]
    %v456 = vld [vmem:[%s1 + $0xd60] sm:$0xff]
    %v457 = vld [vmem:[%s1 + $0xd68] sm:$0xff]
    %v458 = vld [vmem:[%s1 + $0xd70] sm:$0xff]
    %v459 = vld [vmem:[%s1 + $0xd78] sm:$0xff]
    %v460 = vld [vmem:[%s1 + $0xd80] sm:$0xff]
    %v461 = vld [vmem:[%s1 + $0xd88] sm:$0xff]
    %v462 = vld [vmem:[%s1 + $0xd90] sm:$0xff]
    %v463 = vld [vmem:[%s1 + $0xd98] sm:$0xff]
    %v464 = vld [vmem:[%s1 + $0xda0] sm:$0xff]
    %v465 = vld [vmem:[%s1 + $0xda8] sm:$0xff]
    %v466 = vld [vmem:[%s1 + $0xdb0] sm:$0xff]
    %v467 = vld [vmem:[%s1 + $0xdb8] sm:$0xff]
    %v468 = vld [vmem:[%s1 + $0xdc0] sm:$0xff]
    %v469 = vld [vmem:[%s1 + $0xdc8] sm:$0xff]
    %v470 = vld [vmem:[%s1 + $0xdd0] sm:$0xff]
    %v471 = vld [vmem:[%s1 + $0xdd8] sm:$0xff]
    %v472 = vld [vmem:[%s1 + $0xde0] sm:$0xff]
    %v473 = vld [vmem:[%s1 + $0xde8] sm:$0xff]
    %v474 = vld [vmem:[%s1 + $0xdf0] sm:$0xff]
    %v475 = vld [vmem:[%s1 + $0xdf8] sm:$0xff]
    %v476 = vld [vmem:[%s1 + $0xe00] sm:$0xff]
    %v477 = vld [vmem:[%s1 + $0xe08] sm:$0xff]
    %v478 = vld [vmem:[%s1 + $0xe10] sm:$0xff]
    %v479 = vld [vmem:[%s1 + $0xe18] sm:$0xff]
    %v480 = vld [vmem:[%s1 + $0xe20] sm:$0xff]
    %v481 = vld [vmem:[%s1 + $0xe28] sm:$0xff]
    %v482 = vld [vmem:[%s1 + $0xe30] sm:$0xff]
    %v483 = vld [vmem:[%s1 + $0xe38] sm:$0xff]
    %v484 = vld [vmem:[%s1 + $0xe40] sm:$0xff]
    %v485 = vld [vmem:[%s1 + $0xe48] sm:$0xff]
    %v486 = vld [vmem:[%s1 + $0xe50] sm:$0xff]
    %v487 = vld [vmem:[%s1 + $0xe58] sm:$0xff]
    %v488 = vld [vmem:[%s1 + $0xe60] sm:$0xff]
    %v489 = vld [vmem:[%s1 + $0xe68] sm:$0xff]
    %v490 = vld [vmem:[%s1 + $0xe70] sm:$0xff]
    %v491 = vld [vmem:[%s1 + $0xe78] sm:$0xff]
    %v492 = vld [vmem:[%s1 + $0xe80] sm:$0xff]
    %v493 = vld [vmem:[%s1 + $0xe88] sm:$0xff]
    %v494 = vld [vmem:[%s1 + $0xe90] sm:$0xff]
    %v495 = vld [vmem:[%s1 + $0xe98] sm:$0xff]
    %v496 = vld [vmem:[%s1 + $0xea0] sm:$0xff]
    %v497 = vld [vmem:[%s1 + $0xea8] sm:$0xff]
    %v498 = vld [vmem:[%s1 + $0xeb0] sm:$0xff]
    %v499 = vld [vmem:[%s1 + $0xeb8] sm:$0xff]
    %v500 = vld [vmem:[%s1 + $0xec0] sm:$0xff]
    %v501 = vld [vmem:[%s1 + $0xec8] sm:$0xff]
    %v502 = vld [vmem:[%s1 + $0xed0] sm:$0xff]
    %v503 = vld [vmem:[%s1 + $0xed8] sm:$0xff]
    %v504 = vld [vmem:[%s1 + $0xee0] sm:$0xff]
    %v505 = vld [vmem:[%s1 + $0xee8] sm:$0xff]
    %v506 = vld [vmem:[%s1 + $0xef0] sm:$0xff]
    %v507 = vld [vmem:[%s1 + $0xef8] sm:$0xff]
    %v508 = vld [vmem:[%s1 + $0xf00] sm:$0xff]
    %v509 = vld [vmem:[%s1 + $0xf08] sm:$0xff]
    %v510 = vld [vmem:[%s1 + $0xf10] sm:$0xff]
    %v511 = vld [vmem:[%s1 + $0xf18] sm:$0xff]
    %v512 = vld [vmem:[%s1 + $0xf20] sm:$0xff]
    %v513 = vld [vmem:[%s1 + $0xf28] sm:$0xff]
    %v514 = vld [vmem:[%s1 + $0xf30] sm:$0xff]
    %v515 = vld [vmem:[%s1 + $0xf38] sm:$0xff]
    %v516 = vld [vmem:[%s1 + $0xf40] sm:$0xff]
    %v517 = vld [vmem:[%s1 + $0xf48] sm:$0xff]
    %v518 = vld [vmem:[%s1 + $0xf50] sm:$0xff]
    %v519 = vld [vmem:[%s1 + $0xf58] sm:$0xff]
    %v520 = vld [vmem:[%s1 + $0xf60] sm:$0xff]
    %v521 = vld [vmem:[%s1 + $0xf68] sm:$0xff]
    %v522 = vld [vmem:[%s1 + $0xf70] sm:$0xff]
    %v523 = vld [vmem:[%s1 + $0xf78] sm:$0xff]
    %v524 = vld [vmem:[%s1 + $0xf80] sm:$0xff]
    %v525 = vld [vmem:[%s1 + $0xf88] sm:$0xff]
    %v526 = vld [vmem:[%s1 + $0xf90] sm:$0xff]
    %v527 = vld [vmem:[%s1 + $0xf98] sm:$0xff]
    %v528 = vld [vmem:[%s1 + $0xfa0] sm:$0xff]
    %v529 = vld [vmem:[%s1 + $0xfa8] sm:$0xff]
    %v530 = vld [vmem:[%s1 + $0xfb0] sm:$0xff]
    %v531 = vld [vmem:[%s1 + $0xfb8] sm:$0xff]
    %v532 = vld [vmem:[%s1 + $0xfc0] sm:$0xff]
    %v533 = vld [vmem:[%s1 + $0xfc8] sm:$0xff]
    %v534 = vld [vmem:[%s1 + $0xfd0] sm:$0xff]
    %v535 = vld [vmem:[%s1 + $0xfd8] sm:$0xff]
    %v536 = vld [vmem:[%s1 + $0xfe0] sm:$0xff]
    %v537 = vld [vmem:[%s1 + $0xfe8] sm:$0xff]
    %v538 = vld [vmem:[%s1 + $0xff0] sm:$0xff]
    %v539 = vld [vmem:[%s1 + $0xff8] sm:$0xff]
    %v540 = vld [vmem:[%s1 + $0x1000] sm:$0xff]
    %v541 = vld [vmem:[%s1 + $0x1008] sm:$0xff]
    %v542 = vld [vmem:[%s1 + $0x1010] sm:$0xff]
    %v543 = vld [vmem:[%s1 + $0x1018] sm:$0xff]
    %v544 = vld [vmem:[%s1 + $0x1020] sm:$0xff]
    %v545 = vld [vmem:[%s1 + $0x1028] sm:$0xff]
    %v546 = vld [vmem:[%s1 + $0x1030] sm:$0xff]
    %v547 = vld [vmem:[%s1 + $0x1038] sm:$0xff]
    %v548 = vld [vmem:[%s1 + $0x1040] sm:$0xff]
    %v549 = vld [vmem:[%s1 + $0x1048] sm:$0xff]
    %v550 = vld [vmem:[%s1 + $0x1050] sm:$0xff]
    %v551 = vld [vmem:[%s1 + $0x1058] sm:$0xff]
    %v552 = vld [vmem:[%s1 + $0x1060] sm:$0xff]
    %v553 = vld [vmem:[%s1 + $0x1068] sm:$0xff]
    %v554 = vld [vmem:[%s1 + $0x1070] sm:$0xff]
    %v555 = vld [vmem:[%s1 + $0x1078] sm:$0xff]
    %v556 = vld [vmem:[%s1 + $0x1080] sm:$0xff]
    %v557 = vld [vmem:[%s1 + $0x1088] sm:$0xff]
    %v558 = vld [vmem:[%s1 + $0x1090] sm:$0xff]
    %v559 = vld [vmem:[%s1 + $0x1098] sm:$0xff]
    %v560 = vld [vmem:[%s1 + $0x10a0] sm:$0xff]
    %v561 = vld [vmem:[%s1 + $0x10a8] sm:$0xff]
    %v562 = vld [vmem:[%s1 + $0x10b0] sm:$0xff]
    %v563 = vld [vmem:[%s1 + $0x10b8] sm:$0xff]
    %v564 = vld [vmem:[%s1 + $0x10c0] sm:$0xff]
    %v565 = vld [vmem:[%s1 + $0x10c8] sm:$0xff]
    %v566 = vld [vmem:[%s1 + $0x10d0] sm:$0xff]
    %v567 = vld [vmem:[%s1 + $0x10d8] sm:$0xff]
    %v568 = vld [vmem:[%s1 + $0x10e0] sm:$0xff]
    %v569 = vld [vmem:[%s1 + $0x10e8] sm:$0xff]
    %v570 = vld [vmem:[%s1 + $0x10f0] sm:$0xff]
    %v571 = vld [vmem:[%s1 + $0x10f8] sm:$0xff]
    %v572 = vld [vmem:[%s1 + $0x1100] sm:$0xff]
    %v573 = vld [vmem:[%s1 + $0x1108] sm:$0xff]
    %v574 = vld [vmem:[%s1 + $0x1110] sm:$0xff]
    %v575 = vld [vmem:[%s1 + $0x1118] sm:$0xff]
    %v576 = vld [vmem:[%s1 + $0x1120] sm:$0xff]
    %v577 = vld [vmem:[%s1 + $0x1128] sm:$0xff]
    %v578 = vld [vmem:[%s1 + $0x1130] sm:$0xff]
    %v579 = vld [vmem:[%s1 + $0x1138] sm:$0xff]
    %v580 = vld [vmem:[%s1 + $0x1140] sm:$0xff]
    %v581 = vld [vmem:[%s1 + $0x1148] sm:$0xff]
    %v582 = vld [vmem:[%s1 + $0x1150] sm:$0xff]
    %v583 = vld [vmem:[%s1 + $0x1158] sm:$0xff]
    %v584 = vld [vmem:[%s1 + $0x1160] sm:$0xff]
    %v585 = vld [vmem:[%s1 + $0x1168] sm:$0xff]
    %v586 = vld [vmem:[%s1 + $0x1170] sm:$0xff]
    %v587 = vld [vmem:[%s1 + $0x1178] sm:$0xff]
    %v588 = vld [vmem:[%s1 + $0x1180] sm:$0xff]
    %v589 = vld [vmem:[%s1 + $0x1188] sm:$0xff]
    %v590 = vld [vmem:[%s1 + $0x1190] sm:$0xff]
    %v591 = vld [vmem:[%s1 + $0x1198] sm:$0xff]
    %v592 = vld [vmem:[%s1 + $0x11a0] sm:$0xff]
    %v593 = vld [vmem:[%s1 + $0x11a8] sm:$0xff]
    %v594 = vld [vmem:[%s1 + $0x11b0] sm:$0xff]
    %v595 = vld [vmem:[%s1 + $0x11b8] sm:$0xff]
    %v596 = vld [vmem:[%s1 + $0x11c0] sm:$0xff]
    %v597 = vld [vmem:[%s1 + $0x11c8] sm:$0xff]
    %v598 = vld [vmem:[%s1 + $0x11d0] sm:$0xff]
    %v599 = vld [vmem:[%s1 + $0x11d8] sm:$0xff]
    %v600 = vld [vmem:[%s1 + $0x11e0] sm:$0xff]
    %v601 = vld [vmem:[%s1 + $0x11e8] sm:$0xff]
    %v602 = vld [vmem:[%s1 + $0x11f0] sm:$0xff]
    %v603 = vld [vmem:[%s1 + $0x11f8] sm:$0xff]
    %v604 = vld [vmem:[%s1 + $0x1200] sm:$0xff]
    %v605 = vld [vmem:[%s1 + $0x1208] sm:$0xff]
    %v606 = vld [vmem:[%s1 + $0x1210] sm:$0xff]
    %v607 = vld [vmem:[%s1 + $0x1218] sm:$0xff]
    %v608 = vld [vmem:[%s1 + $0x1220] sm:$0xff]
    %v609 = vld [vmem:[%s1 + $0x1228] sm:$0xff]
    %v610 = vld [vmem:[%s1 + $0x1230] sm:$0xff]
    %v611 = vld [vmem:[%s1 + $0x1238] sm:$0xff]
    %v612 = vld [vmem:[%s1 + $0x1240] sm:$0xff]
    %v613 = vld [vmem:[%s1 + $0x1248] sm:$0xff]
    %v614 = vld [vmem:[%s1 + $0x1250] sm:$0xff]
    %v615 = vld [vmem:[%s1 + $0x1258] sm:$0xff]
    %v616 = vld [vmem:[%s1 + $0x1260] sm:$0xff]
    %v617 = vld [vmem:[%s1 + $0x1268] sm:$0xff]
    %v618 = vld [vmem:[%s1 + $0x1270] sm:$0xff]
    %v619 = vld [vmem:[%s1 + $0x1278] sm:$0xff]
    %v620 = vld [vmem:[%s1 + $0x1280] sm:$0xff]
    %v621 = vld [vmem:[%s1 + $0x1288] sm:$0xff]
    %v622 = vld [vmem:[%s1 + $0x1290] sm:$0xff]
    %v623 = vld [vmem:[%s1 + $0x1298] sm:$0xff]
    %v624 = vld [vmem:[%s1 + $0x12a0] sm:$0xff]
    %v625 = vld [vmem:[%s1 + $0x12a8] sm:$0xff]
    %v626 = vld [vmem:[%s1 + $0x12b0] sm:$0xff]
    %v627 = vld [vmem:[%s1 + $0x12b8] sm:$0xff]
    %v628 = vld [vmem:[%s1 + $0x12c0] sm:$0xff]
    %v629 = vld [vmem:[%s1 + $0x12c8] sm:$0xff]
    %v630 = vld [vmem:[%s1 + $0x12d0] sm:$0xff]
    %v631 = vld [vmem:[%s1 + $0x12d8] sm:$0xff]
    %v632 = vld [vmem:[%s1 + $0x12e0] sm:$0xff]
    %v633 = vld [vmem:[%s1 + $0x12e8] sm:$0xff]
    %v634 = vld [vmem:[%s1 + $0x12f0] sm:$0xff]
    %v635 = vld [vmem:[%s1 + $0x12f8] sm:$0xff]
    %v636 = vld [vmem:[%s1 + $0x1300] sm:$0xff]
    %v637 = vld [vmem:[%s1 + $0x1308] sm:$0xff]
    %v638 = vld [vmem:[%s1 + $0x1310] sm:$0xff]
    %v639 = vld [vmem:[%s1 + $0x1318] sm:$0xff]
    %v640 = vld [vmem:[%s1 + $0x1320] sm:$0xff]
    %v641 = vld [vmem:[%s1 + $0x1328] sm:$0xff]
    %v642 = vld [vmem:[%s1 + $0x1330] sm:$0xff]
    %v643 = vld [vmem:[%s1 + $0x1338] sm:$0xff]
    %v644 = vld [vmem:[%s1 + $0x1340] sm:$0xff]
    %v645 = vld [vmem:[%s1 + $0x1348] sm:$0xff]
    %v646 = vld [vmem:[%s1 + $0x1350] sm:$0xff]
    %v647 = vld [vmem:[%s1 + $0x1358] sm:$0xff]
    %v648 = vld [vmem:[%s1 + $0x1360] sm:$0xff]
    %v649 = vld [vmem:[%s1 + $0x1368] sm:$0xff]
    %v650 = vld [vmem:[%s1 + $0x1370] sm:$0xff]
    %v651 = vld [vmem:[%s1 + $0x1378] sm:$0xff]
    %v652 = vld [vmem:[%s1 + $0x1380] sm:$0xff]
    %v653 = vld [vmem:[%s1 + $0x1388] sm:$0xff]
    %v654 = vld [vmem:[%s1 + $0x1390] sm:$0xff]
    %v655 = vld [vmem:[%s1 + $0x1398] sm:$0xff]
    %v656 = vld [vmem:[%s1 + $0x13a0] sm:$0xff]
    %v657 = vld [vmem:[%s1 + $0x13a8] sm:$0xff]
    %v658 = vld [vmem:[%s1 + $0x13b0] sm:$0xff]
    %v659 = vld [vmem:[%s1 + $0x13b8] sm:$0xff]
    %v660 = vld [vmem:[%s1 + $0x13c0] sm:$0xff]
    %v661 = vld [vmem:[%s1 + $0x13c8] sm:$0xff]
    %v662 = vld [vmem:[%s1 + $0x13d0] sm:$0xff]
    %v663 = vld [vmem:[%s1 + $0x13d8] sm:$0xff]
    %v664 = vld [vmem:[%s1 + $0x13e0] sm:$0xff]
    %v665 = vld [vmem:[%s1 + $0x13e8] sm:$0xff]
    %v666 = vld [vmem:[%s1 + $0x13f0] sm:$0xff]
    %v667 = vld [vmem:[%s1 + $0x13f8] sm:$0xff]
    %v668 = vld [vmem:[%s1 + $0x1400] sm:$0xff]
    %v669 = vld [vmem:[%s1 + $0x1408] sm:$0xff]
    %v670 = vld [vmem:[%s1 + $0x1410] sm:$0xff]
    %v671 = vld [vmem:[%s1 + $0x1418] sm:$0xff]
    %v672 = vld [vmem:[%s1 + $0x1420] sm:$0xff]
    %v673 = vld [vmem:[%s1 + $0x1428] sm:$0xff]
    %v674 = vld [vmem:[%s1 + $0x1430] sm:$0xff]
    %v675 = vld [vmem:[%s1 + $0x1438] sm:$0xff]
    %v676 = vld [vmem:[%s1 + $0x1440] sm:$0xff]
    %v677 = vld [vmem:[%s1 + $0x1448] sm:$0xff]
    %v678 = vld [vmem:[%s1 + $0x1450] sm:$0xff]
    %v679 = vld [vmem:[%s1 + $0x1458] sm:$0xff]
    %v680 = vld [vmem:[%s1 + $0x1460] sm:$0xff]
    %v681 = vld [vmem:[%s1 + $0x1468] sm:$0xff]
    %v682 = vld [vmem:[%s1 + $0x1470] sm:$0xff]
    %v683 = vld [vmem:[%s1 + $0x1478] sm:$0xff]
    %v684 = vld [vmem:[%s1 + $0x1480] sm:$0xff]
    %v685 = vld [vmem:[%s1 + $0x1488] sm:$0xff]
    %v686 = vld [vmem:[%s1 + $0x1490] sm:$0xff]
    %v687 = vld [vmem:[%s1 + $0x1498] sm:$0xff]
    %v688 = vld [vmem:[%s1 + $0x14a0] sm:$0xff]
    %v689 = vld [vmem:[%s1 + $0x14a8] sm:$0xff]
    %v690 = vld [vmem:[%s1 + $0x14b0] sm:$0xff]
    %v691 = vld [vmem:[%s1 + $0x14b8] sm:$0xff]
    %v692 = vld [vmem:[%s1 + $0x14c0] sm:$0xff]
    %v693 = vld [vmem:[%s1 + $0x14c8] sm:$0xff]
    %v694 = vld [vmem:[%s1 + $0x14d0] sm:$0xff]
    %v695 = vld [vmem:[%s1 + $0x14d8] sm:$0xff]
    %v696 = vld [vmem:[%s1 + $0x14e0] sm:$0xff]
    %v697 = vld [vmem:[%s1 + $0x14e8] sm:$0xff]
    %v698 = vld [vmem:[%s1 + $0x14f0] sm:$0xff]
    %v699 = vld [vmem:[%s1 + $0x14f8] sm:$0xff]
    %v700 = vld [vmem:[%s1 + $0x1500] sm:$0xff]
    %v701 = vld [vmem:[%s1 + $0x1508] sm:$0xff]
    %v702 = vld [vmem:[%s1 + $0x1510] sm:$0xff]
    %v703 = vld [vmem:[%s1 + $0x1518] sm:$0xff]
    %v704 = vld [vmem:[%s1 + $0x1520] sm:$0xff]
    %v705 = vld [vmem:[%s1 + $0x1528] sm:$0xff]
    %v706 = vld [vmem:[%s1 + $0x1530] sm:$0xff]
    %v707 = vld [vmem:[%s1 + $0x1538] sm:$0xff]
    %v708 = vld [vmem:[%s1 + $0x1540] sm:$0xff]
    %v709 = vld [vmem:[%s1 + $0x1548] sm:$0xff]
    %v710 = vld [vmem:[%s1 + $0x1550] sm:$0xff]
    %v711 = vld [vmem:[%s1 + $0x1558] sm:$0xff]
    %v712 = vld [vmem:[%s1 + $0x1560] sm:$0xff]
    %v713 = vld [vmem:[%s1 + $0x1568] sm:$0xff]
    %v714 = vld [vmem:[%s1 + $0x1570] sm:$0xff]
    %v715 = vld [vmem:[%s1 + $0x1578] sm:$0xff]
    %v716 = vld [vmem:[%s1 + $0x1580] sm:$0xff]
    %v717 = vld [vmem:[%s1 + $0x1588] sm:$0xff]
    %v718 = vld [vmem:[%s1 + $0x1590] sm:$0xff]
    %v719 = vld [vmem:[%s1 + $0x1598] sm:$0xff]
    %v720 = vld [vmem:[%s1 + $0x15a0] sm:$0xff]
    %v721 = vld [vmem:[%s1 + $0x15a8] sm:$0xff]
    %v722 = vld [vmem:[%s1 + $0x15b0] sm:$0xff]
    %v723 = vld [vmem:[%s1 + $0x15b8] sm:$0xff]
    %v724 = vld [vmem:[%s1 + $0x15c0] sm:$0xff]
    %v725 = vld [vmem:[%s1 + $0x15c8] sm:$0xff]
    %v726 = vld [vmem:[%s1 + $0x15d0] sm:$0xff]
    %v727 = vld [vmem:[%s1 + $0x15d8] sm:$0xff]
    %v728 = vld [vmem:[%s1 + $0x15e0] sm:$0xff]
    %v729 = vld [vmem:[%s1 + $0x15e8] sm:$0xff]
    %v730 = vld [vmem:[%s1 + $0x15f0] sm:$0xff]
    %v731 = vld [vmem:[%s1 + $0x15f8] sm:$0xff]
    %v732 = vld [vmem:[%s1 + $0x1600] sm:$0xff]
    %v733 = vld [vmem:[%s1 + $0x1608] sm:$0xff]
    %v734 = vld [vmem:[%s1 + $0x1610] sm:$0xff]
    %v735 = vld [vmem:[%s1 + $0x1618] sm:$0xff]
    %v736 = vld [vmem:[%s1 + $0x1620] sm:$0xff]
    %v737 = vld [vmem:[%s1 + $0x1628] sm:$0xff]
    %v738 = vld [vmem:[%s1 + $0x1630] sm:$0xff]
    %v739 = vld [vmem:[%s1 + $0x1638] sm:$0xff]
    %v740 = vld [vmem:[%s1 + $0x1640] sm:$0xff]
    %v741 = vld [vmem:[%s1 + $0x1648] sm:$0xff]
    %v742 = vld [vmem:[%s1 + $0x1650] sm:$0xff]
    %v743 = vld [vmem:[%s1 + $0x1658] sm:$0xff]
    %v744 = vld [vmem:[%s1 + $0x1660] sm:$0xff]
    %v745 = vld [vmem:[%s1 + $0x1668] sm:$0xff]
    %v746 = vld [vmem:[%s1 + $0x1670] sm:$0xff]
    %v747 = vld [vmem:[%s1 + $0x1678] sm:$0xff]
    %v748 = vld [vmem:[%s1 + $0x1680] sm:$0xff]
    %v749 = vld [vmem:[%s1 + $0x1688] sm:$0xff]
    %v750 = vld [vmem:[%s1 + $0x1690] sm:$0xff]
    %v751 = vld [vmem:[%s1 + $0x1698] sm:$0xff]
    %v752 = vld [vmem:[%s1 + $0x16a0] sm:$0xff]
    %v753 = vld [vmem:[%s1 + $0x16a8] sm:$0xff]
    %v754 = vld [vmem:[%s1 + $0x16b0] sm:$0xff]
    %v755 = vld [vmem:[%s1 + $0x16b8] sm:$0xff]
    %v756 = vld [vmem:[%s1 + $0x16c0] sm:$0xff]
    %v757 = vld [vmem:[%s1 + $0x16c8] sm:$0xff]
    %v758 = vld [vmem:[%s1 + $0x16d0] sm:$0xff]
    %v759 = vld [vmem:[%s1 + $0x16d8] sm:$0xff]
    %v760 = vld [vmem:[%s1 + $0x16e0] sm:$0xff]
    %v761 = vld [vmem:[%s1 + $0x16e8] sm:$0xff]
    %v762 = vld [vmem:[%s1 + $0x16f0] sm:$0xff]
    %v763 = vld [vmem:[%s1 + $0x16f8] sm:$0xff]
    %v764 = vld [vmem:[%s1 + $0x1700] sm:$0xff]
    %v765 = vld [vmem:[%s1 + $0x1708] sm:$0xff]
    %v766 = vld [vmem:[%s1 + $0x1710] sm:$0xff]
    %v767 = vld [vmem:[%s1 + $0x1718] sm:$0xff]
    %v768 = vld [vmem:[%s1 + $0x1720] sm:$0xff]
    %v769 = vld [vmem:[%s1 + $0x1728] sm:$0xff]
    %v770 = vld [vmem:[%s1 + $0x1730] sm:$0xff]
    %v771 = vld [vmem:[%s1 + $0x1738] sm:$0xff]
    %v772 = vld [vmem:[%s1 + $0x1740] sm:$0xff]
    %v773 = vld [vmem:[%s1 + $0x1748] sm:$0xff]
    %v774 = vld [vmem:[%s1 + $0x1750] sm:$0xff]
    %v775 = vld [vmem:[%s1 + $0x1758] sm:$0xff]
    %v776 = vld [vmem:[%s1 + $0x1760] sm:$0xff]
    %v777 = vld [vmem:[%s1 + $0x1768] sm:$0xff]
    %v778 = vld [vmem:[%s1 + $0x1770] sm:$0xff]
    %v779 = vld [vmem:[%s1 + $0x1778] sm:$0xff]
    %v780 = vld [vmem:[%s1 + $0x1780] sm:$0xff]
    %v781 = vld [vmem:[%s1 + $0x1788] sm:$0xff]
    %v782 = vld [vmem:[%s1 + $0x1790] sm:$0xff]
    %v783 = vld [vmem:[%s1 + $0x1798] sm:$0xff]
    %v784 = vld [vmem:[%s1 + $0x17a0] sm:$0xff]
    %v785 = vld [vmem:[%s1 + $0x17a8] sm:$0xff]
    %v786 = vld [vmem:[%s1 + $0x17b0] sm:$0xff]
    %v787 = vld [vmem:[%s1 + $0x17b8] sm:$0xff]
    %v788 = vld [vmem:[%s1 + $0x17c0] sm:$0xff]
    %v789 = vld [vmem:[%s1 + $0x17c8] sm:$0xff]
    %v790 = vld [vmem:[%s1 + $0x17d0] sm:$0xff]
    %v791 = vld [vmem:[%s1 + $0x17d8] sm:$0xff]
    %v792 = vld [vmem:[%s1 + $0x17e0] sm:$0xff]
    %v793 = vld [vmem:[%s1 + $0x17e8] sm:$0xff]
    %v794 = vld [vmem:[%s1 + $0x17f0] sm:$0xff]
    %v795 = vld [vmem:[%s1 + $0x17f8] sm:$0xff]
    %v796 = vld [vmem:[%s1 + $0x1800] sm:$0xff]
    %v797 = vld [vmem:[%s1 + $0x1808] sm:$0xff]
    %v798 = vld [vmem:[%s1 + $0x1810] sm:$0xff]
    %v799 = vld [vmem:[%s1 + $0x1818] sm:$0xff]
    %v800 = vld [vmem:[%s1 + $0x1820] sm:$0xff]
    %v801 = vld [vmem:[%s1 + $0x1828] sm:$0xff]
    %v802 = vld [vmem:[%s1 + $0x1830] sm:$0xff]
    %v803 = vld [vmem:[%s1 + $0x1838] sm:$0xff]
    %v804 = vld [vmem:[%s1 + $0x1840] sm:$0xff]
    %v805 = vld [vmem:[%s1 + $0x1848] sm:$0xff]
    %v806 = vld [vmem:[%s1 + $0x1850] sm:$0xff]
    %v807 = vld [vmem:[%s1 + $0x1858] sm:$0xff]
    %v808 = vld [vmem:[%s1 + $0x1860] sm:$0xff]
    %v809 = vld [vmem:[%s1 + $0x1868] sm:$0xff]
    %v810 = vld [vmem:[%s1 + $0x1870] sm:$0xff]
    %v811 = vld [vmem:[%s1 + $0x1878] sm:$0xff]
    %v812 = vld [vmem:[%s1 + $0x1880] sm:$0xff]
    %v813 = vld [vmem:[%s1 + $0x1888] sm:$0xff]
    %v814 = vld [vmem:[%s1 + $0x1890] sm:$0xff]
    %v815 = vld [vmem:[%s1 + $0x1898] sm:$0xff]
    %v816 = vld [vmem:[%s1 + $0x18a0] sm:$0xff]
    %v817 = vld [vmem:[%s1 + $0x18a8] sm:$0xff]
    %v818 = vld [vmem:[%s1 + $0x18b0] sm:$0xff]
    %v819 = vld [vmem:[%s1 + $0x18b8] sm:$0xff]
    %v820 = vld [vmem:[%s1 + $0x18c0] sm:$0xff]
    %v821 = vld [vmem:[%s1 + $0x18c8] sm:$0xff]
    %v822 = vld [vmem:[%s1 + $0x18d0] sm:$0xff]
    %v823 = vld [vmem:[%s1 + $0x18d8] sm:$0xff]
    %v824 = vld [vmem:[%s1 + $0x18e0] sm:$0xff]
    %v825 = vld [vmem:[%s1 + $0x18e8] sm:$0xff]
    %v826 = vld [vmem:[%s1 + $0x18f0] sm:$0xff]
    %v827 = vld [vmem:[%s1 + $0x18f8] sm:$0xff]
    %v828 = vld [vmem:[%s1 + $0x1900] sm:$0xff]
    %v829 = vld [vmem:[%s1 + $0x1908] sm:$0xff]
    %v830 = vld [vmem:[%s1 + $0x1910] sm:$0xff]
    %v831 = vld [vmem:[%s1 + $0x1918] sm:$0xff]
    %v832 = vld [vmem:[%s1 + $0x1920] sm:$0xff]
    %v833 = vld [vmem:[%s1 + $0x1928] sm:$0xff]
    %v834 = vld [vmem:[%s1 + $0x1930] sm:$0xff]
    %v835 = vld [vmem:[%s1 + $0x1938] sm:$0xff]
    %v836 = vld [vmem:[%s1 + $0x1940] sm:$0xff]
    %v837 = vld [vmem:[%s1 + $0x1948] sm:$0xff]
    %v838 = vld [vmem:[%s1 + $0x1950] sm:$0xff]
    %v839 = vld [vmem:[%s1 + $0x1958] sm:$0xff]
    %v840 = vld [vmem:[%s1 + $0x1960] sm:$0xff]
    %v841 = vld [vmem:[%s1 + $0x1968] sm:$0xff]
    %v842 = vld [vmem:[%s1 + $0x1970] sm:$0xff]
    %v843 = vld [vmem:[%s1 + $0x1978] sm:$0xff]
    %v844 = vld [vmem:[%s1 + $0x1980] sm:$0xff]
    %v845 = vld [vmem:[%s1 + $0x1988] sm:$0xff]
    %v846 = vld [vmem:[%s1 + $0x1990] sm:$0xff]
    %v847 = vld [vmem:[%s1 + $0x1998] sm:$0xff]
    %v848 = vld [vmem:[%s1 + $0x19a0] sm:$0xff]
    %v849 = vld [vmem:[%s1 + $0x19a8] sm:$0xff]
    %v850 = vld [vmem:[%s1 + $0x19b0] sm:$0xff]
    %v851 = vld [vmem:[%s1 + $0x19b8] sm:$0xff]
    %v852 = vld [vmem:[%s1 + $0x19c0] sm:$0xff]
    %v853 = vld [vmem:[%s1 + $0x19c8] sm:$0xff]
    %v854 = vld [vmem:[%s1 + $0x19d0] sm:$0xff]
    %v855 = vld [vmem:[%s1 + $0x19d8] sm:$0xff]
    %v856 = vld [vmem:[%s1 + $0x19e0] sm:$0xff]
    %v857 = vld [vmem:[%s1 + $0x19e8] sm:$0xff]
    %v858 = vld [vmem:[%s1 + $0x19f0] sm:$0xff]
    %v859 = vld [vmem:[%s1 + $0x19f8] sm:$0xff]
    %v860 = vld [vmem:[%s1 + $0x1a00] sm:$0xff]
    %v861 = vld [vmem:[%s1 + $0x1a08] sm:$0xff]
    %v862 = vld [vmem:[%s1 + $0x1a10] sm:$0xff]
    %v863 = vld [vmem:[%s1 + $0x1a18] sm:$0xff]
    %v864 = vld [vmem:[%s1 + $0x1a20] sm:$0xff]
    %v865 = vld [vmem:[%s1 + $0x1a28] sm:$0xff]
    %v866 = vld [vmem:[%s1 + $0x1a30] sm:$0xff]
    %v867 = vld [vmem:[%s1 + $0x1a38] sm:$0xff]
    %v868 = vld [vmem:[%s1 + $0x1a40] sm:$0xff]
    %v869 = vld [vmem:[%s1 + $0x1a48] sm:$0xff]
    %v870 = vld [vmem:[%s1 + $0x1a50] sm:$0xff]
    %v871 = vld [vmem:[%s1 + $0x1a58] sm:$0xff]
    %v872 = vld [vmem:[%s1 + $0x1a60] sm:$0xff]
    %v873 = vld [vmem:[%s1 + $0x1a68] sm:$0xff]
    %v874 = vld [vmem:[%s1 + $0x1a70] sm:$0xff]
    %v875 = vld [vmem:[%s1 + $0x1a78] sm:$0xff]
    %v876 = vld [vmem:[%s1 + $0x1a80] sm:$0xff]
    %v877 = vld [vmem:[%s1 + $0x1a88] sm:$0xff]
    %v878 = vld [vmem:[%s1 + $0x1a90] sm:$0xff]
    %v879 = vld [vmem:[%s1 + $0x1a98] sm:$0xff]
    %v880 = vld [vmem:[%s1 + $0x1aa0] sm:$0xff]
    %v881 = vld [vmem:[%s1 + $0x1aa8] sm:$0xff]
    %v882 = vld [vmem:[%s1 + $0x1ab0] sm:$0xff]
    %v883 = vld [vmem:[%s1 + $0x1ab8] sm:$0xff]
    %v884 = vld [vmem:[%s1 + $0x1ac0] sm:$0xff]
    %v885 = vld [vmem:[%s1 + $0x1ac8] sm:$0xff]
    %v886 = vld [vmem:[%s1 + $0x1ad0] sm:$0xff]
    %v887 = vld [vmem:[%s1 + $0x1ad8] sm:$0xff]
    %v888 = vld [vmem:[%s1 + $0x1ae0] sm:$0xff]
    %v889 = vld [vmem:[%s1 + $0x1ae8] sm:$0xff]
    %v890 = vld [vmem:[%s1 + $0x1af0] sm:$0xff]
    %v891 = vld [vmem:[%s1 + $0x1af8] sm:$0xff]
    %v892 = vld [vmem:[%s1 + $0x1b00] sm:$0xff]
    %v893 = vld [vmem:[%s1 + $0x1b08] sm:$0xff]
    %v894 = vld [vmem:[%s1 + $0x1b10] sm:$0xff]
    %v895 = vld [vmem:[%s1 + $0x1b18] sm:$0xff]
    %v896 = vld [vmem:[%s1 + $0x1b20] sm:$0xff]
    %v897 = vld [vmem:[%s1 + $0x1b28] sm:$0xff]
    %v898 = vld [vmem:[%s1 + $0x1b30] sm:$0xff]
    %v899 = vld [vmem:[%s1 + $0x1b38] sm:$0xff]
    %v900 = vld [vmem:[%s1 + $0x1b40] sm:$0xff]
    %v901 = vld [vmem:[%s1 + $0x1b48] sm:$0xff]
    %v902 = vld [vmem:[%s1 + $0x1b50] sm:$0xff]
    %v903 = vld [vmem:[%s1 + $0x1b58] sm:$0xff]
    %v904 = vld [vmem:[%s1 + $0x1b60] sm:$0xff]
    %v905 = vld [vmem:[%s1 + $0x1b68] sm:$0xff]
    %v906 = vld [vmem:[%s1 + $0x1b70] sm:$0xff]
    %v907 = vld [vmem:[%s1 + $0x1b78] sm:$0xff]
    %v908 = vld [vmem:[%s1 + $0x1b80] sm:$0xff]
    %v909 = vld [vmem:[%s1 + $0x1b88] sm:$0xff]
    %v910 = vld [vmem:[%s1 + $0x1b90] sm:$0xff]
    %v911 = vld [vmem:[%s1 + $0x1b98] sm:$0xff]
    %v912 = vld [vmem:[%s1 + $0x1ba0] sm:$0xff]
    %v913 = vld [vmem:[%s1 + $0x1ba8] sm:$0xff]
    %v914 = vld [vmem:[%s1 + $0x1bb0] sm:$0xff]
    %v915 = vld [vmem:[%s1 + $0x1bb8] sm:$0xff]
    %v916 = vld [vmem:[%s1 + $0x1bc0] sm:$0xff]
    %v917 = vld [vmem:[%s1 + $0x1bc8] sm:$0xff]
    %v918 = vld [vmem:[%s1 + $0x1bd0] sm:$0xff]
    %v919 = vld [vmem:[%s1 + $0x1bd8] sm:$0xff]
    %v920 = vld [vmem:[%s1 + $0x1be0] sm:$0xff]
    %v921 = vld [vmem:[%s1 + $0x1be8] sm:$0xff]
    %v922 = vld [vmem:[%s1 + $0x1bf0] sm:$0xff]
    %v923 = vld [vmem:[%s1 + $0x1bf8] sm:$0xff]
    %v924 = vld [vmem:[%s1 + $0x1c00] sm:$0xff]
    %v925 = vld [vmem:[%s1 + $0x1c08] sm:$0xff]
    %v926 = vld [vmem:[%s1 + $0x1c10] sm:$0xff]
    %v927 = vld [vmem:[%s1 + $0x1c18] sm:$0xff]
    %v928 = vld [vmem:[%s1 + $0x1c20] sm:$0xff]
    %v929 = vld [vmem:[%s1 + $0x1c28] sm:$0xff]
    %v930 = vld [vmem:[%s1 + $0x1c30] sm:$0xff]
    %v931 = vld [vmem:[%s1 + $0x1c38] sm:$0xff]
    %v932 = vld [vmem:[%s1 + $0x1c40] sm:$0xff]
    %v933 = vld [vmem:[%s1 + $0x1c48] sm:$0xff]
    %v934 = vld [vmem:[%s1 + $0x1c50] sm:$0xff]
    %v935 = vld [vmem:[%s1 + $0x1c58] sm:$0xff]
    %v936 = vld [vmem:[%s1 + $0x1c60] sm:$0xff]
    %v937 = vld [vmem:[%s1 + $0x1c68] sm:$0xff]
    %v938 = vld [vmem:[%s1 + $0x1c70] sm:$0xff]
    %v939 = vld [vmem:[%s1 + $0x1c78] sm:$0xff]
    %v940 = vld [vmem:[%s1 + $0x1c80] sm:$0xff]
    %v941 = vld [vmem:[%s1 + $0x1c88] sm:$0xff]
    %v942 = vld [vmem:[%s1 + $0x1c90] sm:$0xff]
    %v943 = vld [vmem:[%s1 + $0x1c98] sm:$0xff]
    %v944 = vld [vmem:[%s1 + $0x1ca0] sm:$0xff]
    %v945 = vld [vmem:[%s1 + $0x1ca8] sm:$0xff]
    %v946 = vld [vmem:[%s1 + $0x1cb0] sm:$0xff]
    %v947 = vld [vmem:[%s1 + $0x1cb8] sm:$0xff]
    %v948 = vld [vmem:[%s1 + $0x1cc0] sm:$0xff]
    %v949 = vld [vmem:[%s1 + $0x1cc8] sm:$0xff]
    %v950 = vld [vmem:[%s1 + $0x1cd0] sm:$0xff]
    %v951 = vld [vmem:[%s1 + $0x1cd8] sm:$0xff]
    %v952 = vld [vmem:[%s1 + $0x1ce0] sm:$0xff]
    %v953 = vld [vmem:[%s1 + $0x1ce8] sm:$0xff]
    %v954 = vld [vmem:[%s1 + $0x1cf0] sm:$0xff]
    %v955 = vld [vmem:[%s1 + $0x1cf8] sm:$0xff]
    %v956 = vld [vmem:[%s1 + $0x1d00] sm:$0xff]
    %v957 = vld [vmem:[%s1 + $0x1d08] sm:$0xff]
    %v958 = vld [vmem:[%s1 + $0x1d10] sm:$0xff]
    %v959 = vld [vmem:[%s1 + $0x1d18] sm:$0xff]
    %v960 = vld [vmem:[%s1 + $0x1d20] sm:$0xff]
    %v961 = vld [vmem:[%s1 + $0x1d28] sm:$0xff]
    %v962 = vld [vmem:[%s1 + $0x1d30] sm:$0xff]
    %v963 = vld [vmem:[%s1 + $0x1d38] sm:$0xff]
    %v964 = vld [vmem:[%s1 + $0x1d40] sm:$0xff]
    %v965 = vld [vmem:[%s1 + $0x1d48] sm:$0xff]
    %v966 = vld [vmem:[%s1 + $0x1d50] sm:$0xff]
    %v967 = vld [vmem:[%s1 + $0x1d58] sm:$0xff]
    %v968 = vld [vmem:[%s1 + $0x1d60] sm:$0xff]
    %v969 = vld [vmem:[%s1 + $0x1d68] sm:$0xff]
    %v970 = vld [vmem:[%s1 + $0x1d70] sm:$0xff]
    %v971 = vld [vmem:[%s1 + $0x1d78] sm:$0xff]
    %v972 = vld [vmem:[%s1 + $0x1d80] sm:$0xff]
    %v973 = vld [vmem:[%s1 + $0x1d88] sm:$0xff]
    %v974 = vld [vmem:[%s1 + $0x1d90] sm:$0xff]
    %v975 = vld [vmem:[%s1 + $0x1d98] sm:$0xff]
    %v976 = vld [vmem:[%s1 + $0x1da0] sm:$0xff]
    %v977 = vld [vmem:[%s1 + $0x1da8] sm:$0xff]
    %v978 = vld [vmem:[%s1 + $0x1db0] sm:$0xff]
    %v979 = vld [vmem:[%s1 + $0x1db8] sm:$0xff]
    %v980 = vld [vmem:[%s1 + $0x1dc0] sm:$0xff]
    %v981 = vld [vmem:[%s1 + $0x1dc8] sm:$0xff]
    %v982 = vld [vmem:[%s1 + $0x1dd0] sm:$0xff]
    %v983 = vld [vmem:[%s1 + $0x1dd8] sm:$0xff]
    %v984 = vld [vmem:[%s1 + $0x1de0] sm:$0xff]
    %v985 = vld [vmem:[%s1 + $0x1de8] sm:$0xff]
    %v986 = vld [vmem:[%s1 + $0x1df0] sm:$0xff]
    %v987 = vld [vmem:[%s1 + $0x1df8] sm:$0xff]
    %v988 = vld [vmem:[%s1 + $0x1e00] sm:$0xff]
    %v989 = vld [vmem:[%s1 + $0x1e08] sm:$0xff]
    %v990 = vld [vmem:[%s1 + $0x1e10] sm:$0xff]
    %v991 = vld [vmem:[%s1 + $0x1e18] sm:$0xff]
    %v992 = vld [vmem:[%s1 + $0x1e20] sm:$0xff]
    %v993 = vld [vmem:[%s1 + $0x1e28] sm:$0xff]
    %v994 = vld [vmem:[%s1 + $0x1e30] sm:$0xff]
    %v995 = vld [vmem:[%s1 + $0x1e38] sm:$0xff]
    %v996 = vld [vmem:[%s1 + $0x1e40] sm:$0xff]
    %v997 = vld [vmem:[%s1 + $0x1e48] sm:$0xff]
    %v998 = vld [vmem:[%s1 + $0x1e50] sm:$0xff]
    %v999 = vld [vmem:[%s1 + $0x1e58] sm:$0xff]
    %v1000 = vld [vmem:[%s1 + $0x1e60] sm:$0xff]
    %v1001 = vld [vmem:[%s1 + $0x1e68] sm:$0xff]
    %v1002 = vld [vmem:[%s1 + $0x1e70] sm:$0xff]
    %v1003 = vld [vmem:[%s1 + $0x1e78] sm:$0xff]
    %v1004 = vld [vmem:[%s1 + $0x1e80] sm:$0xff]
    %v1005 = vld [vmem:[%s1 + $0x1e88] sm:$0xff]
    %v1006 = vld [vmem:[%s1 + $0x1e90] sm:$0xff]
    %v1007 = vld [vmem:[%s1 + $0x1e98] sm:$0xff]
    %v1008 = vld [vmem:[%s1 + $0x1ea0] sm:$0xff]
    %v1009 = vld [vmem:[%s1 + $0x1ea8] sm:$0xff]
    %v1010 = vld [vmem:[%s1 + $0x1eb0] sm:$0xff]
    %v1011 = vld [vmem:[%s1 + $0x1eb8] sm:$0xff]
    %v1012 = vld [vmem:[%s1 + $0x1ec0] sm:$0xff]
    %v1013 = vld [vmem:[%s1 + $0x1ec8] sm:$0xff]
    %v1014 = vld [vmem:[%s1 + $0x1ed0] sm:$0xff]
    %v1015 = vld [vmem:[%s1 + $0x1ed8] sm:$0xff]
    %v1016 = vld [vmem:[%s1 + $0x1ee0] sm:$0xff]
    %v1017 = vld [vmem:[%s1 + $0x1ee8] sm:$0xff]
    %v1018 = vld [vmem:[%s1 + $0x1ef0] sm:$0xff]
    %v1019 = vld [vmem:[%s1 + $0x1ef8] sm:$0xff]
    %v1020 = vld [vmem:[%s1 + $0x1f00] sm:$0xff]
    %v1021 = vld [vmem:[%s1 + $0x1f08] sm:$0xff]
    %v1022 = vld [vmem:[%s1 + $0x1f10] sm:$0xff]
    %v1023 = vld [vmem:[%s1 + $0x1f18] sm:$0xff]
    %v1024 = vld [vmem:[%s1 + $0x1f20] sm:$0xff]
    %v1025 = vld [vmem:[%s1 + $0x1f28] sm:$0xff]
    %v1026 = vld [vmem:[%s1 + $0x1f30] sm:$0xff]
    %v1027 = vld [vmem:[%s1 + $0x1f38] sm:$0xff]
    %v1028 = vld [vmem:[%s1 + $0x1f40] sm:$0xff]
    %v1029 = vld [vmem:[%s1 + $0x1f48] sm:$0xff]
    %v1030 = vld [vmem:[%s1 + $0x1f50] sm:$0xff]
    %v1031 = vld [vmem:[%s1 + $0x1f58] sm:$0xff]
    %v1032 = vld [vmem:[%s1 + $0x1f60] sm:$0xff]
    %v1033 = vld [vmem:[%s1 + $0x1f68] sm:$0xff]
    %v1034 = vld [vmem:[%s1 + $0x1f70] sm:$0xff]
    %v1035 = vld [vmem:[%s1 + $0x1f78] sm:$0xff]
    %v1036 = vld [vmem:[%s1 + $0x1f80] sm:$0xff]
    %v1037 = vld [vmem:[%s1 + $0x1f88] sm:$0xff]
    %v1038 = vld [vmem:[%s1 + $0x1f90] sm:$0xff]
    %v1039 = vld [vmem:[%s1 + $0x1f98] sm:$0xff]
    %v1040 = vld [vmem:[%s1 + $0x1fa0] sm:$0xff]
    %v1041 = vld [vmem:[%s1 + $0x1fa8] sm:$0xff]
    %v1042 = vld [vmem:[%s1 + $0x1fb0] sm:$0xff]
    %v1043 = vld [vmem:[%s1 + $0x1fb8] sm:$0xff]
    %v1044 = vld [vmem:[%s1 + $0x1fc0] sm:$0xff]
    %v1045 = vld [vmem:[%s1 + $0x1fc8] sm:$0xff]
    %v1046 = vld [vmem:[%s1 + $0x1fd0] sm:$0xff]
    %v1047 = vld [vmem:[%s1 + $0x1fd8] sm:$0xff]
    %v1048 = vld [vmem:[%s1 + $0x1fe0] sm:$0xff]
    %v1049 = vld [vmem:[%s1 + $0x1fe8] sm:$0xff]
    %v1050 = vld [vmem:[%s1 + $0x1ff0] sm:$0xff]
    %v1051 = vld [vmem:[%s1 + $0x1ff8] sm:$0xff]
    %v1052 = vld [vmem:[%s1 + $0x2000] sm:$0xff]
    %v1053 = vld [vmem:[%s1 + $0x2008] sm:$0xff]
    %v1054 = vld [vmem:[%s1 + $0x2010] sm:$0xff]
    %v1055 = vld [vmem:[%s1 + $0x2018] sm:$0xff]
    %v1056 = vld [vmem:[%s1 + $0x2020] sm:$0xff]
    %v1057 = vld [vmem:[%s1 + $0x2028] sm:$0xff]
    %v1058 = vld [vmem:[%s1 + $0x2030] sm:$0xff]
    %v1059 = vld [vmem:[%s1 + $0x2038] sm:$0xff]
    %v1060 = vld [vmem:[%s1 + $0x2040] sm:$0xff]
    %v1061 = vld [vmem:[%s1 + $0x2048] sm:$0xff]
    %v1062 = vld [vmem:[%s1 + $0x2050] sm:$0xff]
    %v1063 = vld [vmem:[%s1 + $0x2058] sm:$0xff]
    %v1064 = vld [vmem:[%s1 + $0x2060] sm:$0xff]
    %v1065 = vld [vmem:[%s1 + $0x2068] sm:$0xff]
    %v1066 = vld [vmem:[%s1 + $0x2070] sm:$0xff]
    %v1067 = vld [vmem:[%s1 + $0x2078] sm:$0xff]
    %v1068 = vld [vmem:[%s1 + $0x2080] sm:$0xff]
    %v1069 = vld [vmem:[%s1 + $0x2088] sm:$0xff]
    %v1070 = vld [vmem:[%s1 + $0x2090] sm:$0xff]
    %v1071 = vld [vmem:[%s1 + $0x2098] sm:$0xff]
    %v1072 = vld [vmem:[%s1 + $0x20a0] sm:$0xff]
    %v1073 = vld [vmem:[%s1 + $0x20a8] sm:$0xff]
    %v1074 = vld [vmem:[%s1 + $0x20b0] sm:$0xff]
    %v1075 = vld [vmem:[%s1 + $0x20b8] sm:$0xff]
    %v1076 = vld [vmem:[%s1 + $0x20c0] sm:$0xff]
    %v1077 = vld [vmem:[%s1 + $0x20c8] sm:$0xff]
    %v1078 = vld [vmem:[%s1 + $0x20d0] sm:$0xff]
    %v1079 = vld [vmem:[%s1 + $0x20d8] sm:$0xff]
    %v1080 = vld [vmem:[%s1 + $0x20e0] sm:$0xff]
    %v1081 = vld [vmem:[%s1 + $0x20e8] sm:$0xff]
    %v1082 = vld [vmem:[%s1 + $0x20f0] sm:$0xff]
    %v1083 = vld [vmem:[%s1 + $0x20f8] sm:$0xff]
    %v1084 = vld [vmem:[%s1 + $0x2100] sm:$0xff]
    %v1085 = vld [vmem:[%s1 + $0x2108] sm:$0xff]
    %v1086 = vld [vmem:[%s1 + $0x2110] sm:$0xff]
    %v1087 = vld [vmem:[%s1 + $0x2118] sm:$0xff]
    %v1088 = vld [vmem:[%s1 + $0x2120] sm:$0xff]
    %v1089 = vld [vmem:[%s1 + $0x2128] sm:$0xff]
    %v1090 = vld [vmem:[%s1 + $0x2130] sm:$0xff]
    %v1091 = vld [vmem:[%s1 + $0x2138] sm:$0xff]
    %v1092 = vld [vmem:[%s1 + $0x2140] sm:$0xff]
    %v1093 = vld [vmem:[%s1 + $0x2148] sm:$0xff]
    %v1094 = vld [vmem:[%s1 + $0x2150] sm:$0xff]
    %v1095 = vld [vmem:[%s1 + $0x2158] sm:$0xff]
    %v1096 = vld [vmem:[%s1 + $0x2160] sm:$0xff]
    %v1097 = vld [vmem:[%s1 + $0x2168] sm:$0xff]
    %v1098 = vld [vmem:[%s1 + $0x2170] sm:$0xff]
    %v1099 = vld [vmem:[%s1 + $0x2178] sm:$0xff]
    %v1100 = vld [vmem:[%s1 + $0x2180] sm:$0xff]
    %v1101 = vld [vmem:[%s1 + $0x2188] sm:$0xff]
    %v1102 = vld [vmem:[%s1 + $0x2190] sm:$0xff]
    %v1103 = vld [vmem:[%s1 + $0x2198] sm:$0xff]
    %v1104 = vld [vmem:[%s1 + $0x21a0] sm:$0xff]
    %v1105 = vld [vmem:[%s1 + $0x21a8] sm:$0xff]
    %v1106 = vld [vmem:[%s1 + $0x21b0] sm:$0xff]
    %v1107 = vld [vmem:[%s1 + $0x21b8] sm:$0xff]
    %v1108 = vld [vmem:[%s1 + $0x21c0] sm:$0xff]
    %v1109 = vld [vmem:[%s1 + $0x21c8] sm:$0xff]
    %v1110 = vld [vmem:[%s1 + $0x21d0] sm:$0xff]
    %v1111 = vld [vmem:[%s1 + $0x21d8] sm:$0xff]
    %v1112 = vld [vmem:[%s1 + $0x21e0] sm:$0xff]
    %v1113 = vld [vmem:[%s1 + $0x21e8] sm:$0xff]
    %v1114 = vld [vmem:[%s1 + $0x21f0] sm:$0xff]
    %v1115 = vld [vmem:[%s1 + $0x21f8] sm:$0xff]
    %v1116 = vld [vmem:[%s1 + $0x2200] sm:$0xff]
    %v1117 = vld [vmem:[%s1 + $0x2208] sm:$0xff]
    %v1118 = vld [vmem:[%s1 + $0x2210] sm:$0xff]
    %v1119 = vld [vmem:[%s1 + $0x2218] sm:$0xff]
    %v1120 = vld [vmem:[%s1 + $0x2220] sm:$0xff]
    %v1121 = vld [vmem:[%s1 + $0x2228] sm:$0xff]
    %v1122 = vld [vmem:[%s1 + $0x2230] sm:$0xff]
    %v1123 = vld [vmem:[%s1 + $0x2238] sm:$0xff]
    %v1124 = vld [vmem:[%s1 + $0x2240] sm:$0xff]
    %v1125 = vld [vmem:[%s1 + $0x2248] sm:$0xff]
    %v1126 = vld [vmem:[%s1 + $0x2250] sm:$0xff]
    %v1127 = vld [vmem:[%s1 + $0x2258] sm:$0xff]
    %v1128 = vld [vmem:[%s1 + $0x2260] sm:$0xff]
    %v1129 = vld [vmem:[%s1 + $0x2268] sm:$0xff]
    %v1130 = vld [vmem:[%s1 + $0x2270] sm:$0xff]
    %v1131 = vld [vmem:[%s1 + $0x2278] sm:$0xff]
    %v1132 = vld [vmem:[%s1 + $0x2280] sm:$0xff]
    %v1133 = vld [vmem:[%s1 + $0x2288] sm:$0xff]
    %v1134 = vld [vmem:[%s1 + $0x2290] sm:$0xff]
    %v1135 = vld [vmem:[%s1 + $0x2298] sm:$0xff]
    %v1136 = vld [vmem:[%s1 + $0x22a0] sm:$0xff]
    %v1137 = vld [vmem:[%s1 + $0x22a8] sm:$0xff]
    %v1138 = vld [vmem:[%s1 + $0x22b0] sm:$0xff]
    %v1139 = vld [vmem:[%s1 + $0x22b8] sm:$0xff]
    %v1140 = vld [vmem:[%s1 + $0x22c0] sm:$0xff]
    %v1141 = vld [vmem:[%s1 + $0x22c8] sm:$0xff]
    %v1142 = vld [vmem:[%s1 + $0x22d0] sm:$0xff]
    %v1143 = vld [vmem:[%s1 + $0x22d8] sm:$0xff]
    %v1144 = vld [vmem:[%s1 + $0x22e0] sm:$0xff]
    %v1145 = vld [vmem:[%s1 + $0x22e8] sm:$0xff]
    %v1146 = vld [vmem:[%s1 + $0x22f0] sm:$0xff]
    %v1147 = vld [vmem:[%s1 + $0x22f8] sm:$0xff]
    %v1148 = vld [vmem:[%s1 + $0x2300] sm:$0xff]
    %v1149 = vld [vmem:[%s1 + $0x2308] sm:$0xff]
    %v1150 = vld [vmem:[%s1 + $0x2310] sm:$0xff]
    %v1151 = vld [vmem:[%s1 + $0x2318] sm:$0xff]
    %v1152 = vld [vmem:[%s1 + $0x2320] sm:$0xff]
    %v1153 = vld [vmem:[%s1 + $0x2328] sm:$0xff]
    %v1154 = vld [vmem:[%s1 + $0x2330] sm:$0xff]
    %v1155 = vld [vmem:[%s1 + $0x2338] sm:$0xff]
    %v1156 = vld [vmem:[%s1 + $0x2340] sm:$0xff]
    %v1157 = vld [vmem:[%s1 + $0x2348] sm:$0xff]
    %v1158 = vld [vmem:[%s1 + $0x2350] sm:$0xff]
    %v1159 = vld [vmem:[%s1 + $0x2358] sm:$0xff]
    %v1160 = vld [vmem:[%s1 + $0x2360] sm:$0xff]
    %v1161 = vld [vmem:[%s1 + $0x2368] sm:$0xff]
    %v1162 = vld [vmem:[%s1 + $0x2370] sm:$0xff]
    %v1163 = vld [vmem:[%s1 + $0x2378] sm:$0xff]
    %v1164 = vld [vmem:[%s1 + $0x2380] sm:$0xff]
    %v1165 = vld [vmem:[%s1 + $0x2388] sm:$0xff]
    %v1166 = vld [vmem:[%s1 + $0x2390] sm:$0xff]
    %v1167 = vld [vmem:[%s1 + $0x2398] sm:$0xff]
    %v1168 = vld [vmem:[%s1 + $0x23a0] sm:$0xff]
    %v1169 = vld [vmem:[%s1 + $0x23a8] sm:$0xff]
    %v1170 = vld [vmem:[%s1 + $0x23b0] sm:$0xff]
    %v1171 = vld [vmem:[%s1 + $0x23b8] sm:$0xff]
    %v1172 = vld [vmem:[%s1 + $0x23c0] sm:$0xff]
    %v1173 = vld [vmem:[%s1 + $0x23c8] sm:$0xff]
    %v1174 = vld [vmem:[%s1 + $0x23d0] sm:$0xff]
    %v1175 = vld [vmem:[%s1 + $0x23d8] sm:$0xff]
    %v1176 = vld [vmem:[%s1 + $0x23e0] sm:$0xff]
    %v1177 = vld [vmem:[%s1 + $0x23e8] sm:$0xff]
    %v1178 = vld [vmem:[%s1 + $0x23f0] sm:$0xff]
    %v1179 = vld [vmem:[%s1 + $0x23f8] sm:$0xff]
    %v1180 = vld [vmem:[%s1 + $0x2400] sm:$0xff]
    %v1181 = vld [vmem:[%s1 + $0x2408] sm:$0xff]
    %v1182 = vld [vmem:[%s1 + $0x2410] sm:$0xff]
    %v1183 = vld [vmem:[%s1 + $0x2418] sm:$0xff]
    %v1184 = vld [vmem:[%s1 + $0x2420] sm:$0xff]
    %v1185 = vld [vmem:[%s1 + $0x2428] sm:$0xff]
    %v1186 = vld [vmem:[%s1 + $0x2430] sm:$0xff]
    %v1187 = vld [vmem:[%s1 + $0x2438] sm:$0xff]
    %v1188 = vld [vmem:[%s1 + $0x2440] sm:$0xff]
    %v1189 = vld [vmem:[%s1 + $0x2448] sm:$0xff]
    %v1190 = vld [vmem:[%s1 + $0x2450] sm:$0xff]
    %v1191 = vld [vmem:[%s1 + $0x2458] sm:$0xff]
    %v1192 = vld [vmem:[%s1 + $0x2460] sm:$0xff]
    %v1193 = vld [vmem:[%s1 + $0x2468] sm:$0xff]
    %v1194 = vld [vmem:[%s1 + $0x2470] sm:$0xff]
    %v1195 = vld [vmem:[%s1 + $0x2478] sm:$0xff]
    %v1196 = vld [vmem:[%s1 + $0x2480] sm:$0xff]
    %v1197 = vld [vmem:[%s1 + $0x2488] sm:$0xff]
    %v1198 = vld [vmem:[%s1 + $0x2490] sm:$0xff]
    %v1199 = vld [vmem:[%s1 + $0x2498] sm:$0xff]
    %v1200 = vld [vmem:[%s1 + $0x24a0] sm:$0xff]
    %v1201 = vld [vmem:[%s1 + $0x24a8] sm:$0xff]
    %v1202 = vld [vmem:[%s1 + $0x24b0] sm:$0xff]
    %v1203 = vld [vmem:[%s1 + $0x24b8] sm:$0xff]
    %v1204 = vld [vmem:[%s1 + $0x24c0] sm:$0xff]
    %v1205 = vld [vmem:[%s1 + $0x24c8] sm:$0xff]
    %v1206 = vld [vmem:[%s1 + $0x24d0] sm:$0xff]
    %v1207 = vld [vmem:[%s1 + $0x24d8] sm:$0xff]
    %v1208 = vld [vmem:[%s1 + $0x24e0] sm:$0xff]
    %v1209 = vld [vmem:[%s1 + $0x24e8] sm:$0xff]
    %v1210 = vld [vmem:[%s1 + $0x24f0] sm:$0xff]
    %v1211 = vld [vmem:[%s1 + $0x24f8] sm:$0xff]
    %v1212 = vld [vmem:[%s1 + $0x2500] sm:$0xff]
    %v1213 = vld [vmem:[%s1 + $0x2508] sm:$0xff]
    %v1214 = vld [vmem:[%s1 + $0x2510] sm:$0xff]
    %v1215 = vld [vmem:[%s1 + $0x2518] sm:$0xff]
    %v1216 = vld [vmem:[%s1 + $0x2520] sm:$0xff]
    %v1217 = vld [vmem:[%s1 + $0x2528] sm:$0xff]
    %v1218 = vld [vmem:[%s1 + $0x2530] sm:$0xff]
    %v1219 = vld [vmem:[%s1 + $0x2538] sm:$0xff]
    %v1220 = vld [vmem:[%s1 + $0x2540] sm:$0xff]
    %v1221 = vld [vmem:[%s1 + $0x2548] sm:$0xff]
    %v1222 = vld [vmem:[%s1 + $0x2550] sm:$0xff]
    %v1223 = vld [vmem:[%s1 + $0x2558] sm:$0xff]
    %v1224 = vld [vmem:[%s1 + $0x2560] sm:$0xff]
    %v1225 = vld [vmem:[%s1 + $0x2568] sm:$0xff]
    %v1226 = vld [vmem:[%s1 + $0x2570] sm:$0xff]
    %v1227 = vld [vmem:[%s1 + $0x2578] sm:$0xff]
    %v1228 = vld [vmem:[%s1 + $0x2580] sm:$0xff]
    %v1229 = vld [vmem:[%s1 + $0x2588] sm:$0xff]
    %v1230 = vld [vmem:[%s1 + $0x2590] sm:$0xff]
    %v1231 = vld [vmem:[%s1 + $0x2598] sm:$0xff]
    %v1232 = vld [vmem:[%s1 + $0x25a0] sm:$0xff]
    %v1233 = vld [vmem:[%s1 + $0x25a8] sm:$0xff]
    %v1234 = vld [vmem:[%s1 + $0x25b0] sm:$0xff]
    %v1235 = vld [vmem:[%s1 + $0x25b8] sm:$0xff]
    %v1236 = vld [vmem:[%s1 + $0x25c0] sm:$0xff]
    %v1237 = vld [vmem:[%s1 + $0x25c8] sm:$0xff]
    %v1238 = vld [vmem:[%s1 + $0x25d0] sm:$0xff]
    %v1239 = vld [vmem:[%s1 + $0x25d8] sm:$0xff]
    %v1240 = vld [vmem:[%s1 + $0x25e0] sm:$0xff]
    %v1241 = vld [vmem:[%s1 + $0x25e8] sm:$0xff]
    %v1242 = vld [vmem:[%s1 + $0x25f0] sm:$0xff]
    %v1243 = vld [vmem:[%s1 + $0x25f8] sm:$0xff]
    %v1244 = vld [vmem:[%s1 + $0x2600] sm:$0xff]
    %v1245 = vld [vmem:[%s1 + $0x2608] sm:$0xff]
    %v1246 = vld [vmem:[%s1 + $0x2610] sm:$0xff]
    %v1247 = vld [vmem:[%s1 + $0x2618] sm:$0xff]
    %v1248 = vld [vmem:[%s1 + $0x2620] sm:$0xff]
    %v1249 = vld [vmem:[%s1 + $0x2628] sm:$0xff]
    %v1250 = vld [vmem:[%s1 + $0x2630] sm:$0xff]
    %v1251 = vld [vmem:[%s1 + $0x2638] sm:$0xff]
    %v1252 = vld [vmem:[%s1 + $0x2640] sm:$0xff]
    %v1253 = vld [vmem:[%s1 + $0x2648] sm:$0xff]
    %v1254 = vld [vmem:[%s1 + $0x2650] sm:$0xff]
    %v1255 = vld [vmem:[%s1 + $0x2658] sm:$0xff]
    %v1256 = vld [vmem:[%s1 + $0x2660] sm:$0xff]
    %v1257 = vld [vmem:[%s1 + $0x2668] sm:$0xff]
    %v1258 = vld [vmem:[%s1 + $0x2670] sm:$0xff]
    %v1259 = vld [vmem:[%s1 + $0x2678] sm:$0xff]
    %v1260 = vld [vmem:[%s1 + $0x2680] sm:$0xff]
    %v1261 = vld [vmem:[%s1 + $0x2688] sm:$0xff]
    %v1262 = vld [vmem:[%s1 + $0x2690] sm:$0xff]
    %v1263 = vld [vmem:[%s1 + $0x2698] sm:$0xff]
    %v1264 = vld [vmem:[%s1 + $0x26a0] sm:$0xff]
    %v1265 = vld [vmem:[%s1 + $0x26a8] sm:$0xff]
    %v1266 = vld [vmem:[%s1 + $0x26b0] sm:$0xff]
    %v1267 = vld [vmem:[%s1 + $0x26b8] sm:$0xff]
    %v1268 = vld [vmem:[%s1 + $0x26c0] sm:$0xff]
    %v1269 = vld [vmem:[%s1 + $0x26c8] sm:$0xff]
    %v1270 = vld [vmem:[%s1 + $0x26d0] sm:$0xff]
    %v1271 = vld [vmem:[%s1 + $0x26d8] sm:$0xff]
    %v1272 = vld [vmem:[%s1 + $0x26e0] sm:$0xff]
    %v1273 = vld [vmem:[%s1 + $0x26e8] sm:$0xff]
    %v1274 = vld [vmem:[%s1 + $0x26f0] sm:$0xff]
    %v1275 = vld [vmem:[%s1 + $0x26f8] sm:$0xff]
    %v1276 = vld [vmem:[%s1 + $0x2700] sm:$0xff]
    %v1277 = vld [vmem:[%s1 + $0x2708] sm:$0xff]
    %v1278 = vld [vmem:[%s1 + $0x2710] sm:$0xff]
    %v1279 = vld [vmem:[%s1 + $0x2718] sm:$0xff]
    %v1280 = vld [vmem:[%s1 + $0x2720] sm:$0xff]
    %v1281 = vld [vmem:[%s1 + $0x2728] sm:$0xff]
    %v1282 = vld [vmem:[%s1 + $0x2730] sm:$0xff]
    %v1283 = vld [vmem:[%s1 + $0x2738] sm:$0xff]
    %v1284 = vld [vmem:[%s1 + $0x2740] sm:$0xff]
    %v1285 = vld [vmem:[%s1 + $0x2748] sm:$0xff]
    %v1286 = vld [vmem:[%s1 + $0x2750] sm:$0xff]
    %v1287 = vld [vmem:[%s1 + $0x2758] sm:$0xff]
    %v1288 = vld [vmem:[%s1 + $0x2760] sm:$0xff]
    %v1289 = vld [vmem:[%s1 + $0x2768] sm:$0xff]
    %v1290 = vld [vmem:[%s1 + $0x2770] sm:$0xff]
    %v1291 = vld [vmem:[%s1 + $0x2778] sm:$0xff]
    %v1292 = vld [vmem:[%s1 + $0x2780] sm:$0xff]
    %v1293 = vld [vmem:[%s1 + $0x2788] sm:$0xff]
    %v1294 = vld [vmem:[%s1 + $0x2790] sm:$0xff]
    %v1295 = vld [vmem:[%s1 + $0x2798] sm:$0xff]
    %v1296 = vld [vmem:[%s1 + $0x27a0] sm:$0xff]
    %v1297 = vld [vmem:[%s1 + $0x27a8] sm:$0xff]
    %v1298 = vld [vmem:[%s1 + $0x27b0] sm:$0xff]
    %v1299 = vld [vmem:[%s1 + $0x27b8] sm:$0xff]
    %v1300 = vld [vmem:[%s1 + $0x27c0] sm:$0xff]
    %v1301 = vld [vmem:[%s1 + $0x27c8] sm:$0xff]
    %v1302 = vld [vmem:[%s1 + $0x27d0] sm:$0xff]
    %v1303 = vld [vmem:[%s1 + $0x27d8] sm:$0xff]
    %v1304 = vld [vmem:[%s1 + $0x27e0] sm:$0xff]
    %v1305 = vld [vmem:[%s1 + $0x27e8] sm:$0xff]
    %v1306 = vld [vmem:[%s1 + $0x27f0] sm:$0xff]
    %v1307 = vld [vmem:[%s1 + $0x27f8] sm:$0xff]
    %v1308 = vld [vmem:[%s1 + $0x2800] sm:$0xff]
    %v1309 = vld [vmem:[%s1 + $0x2808] sm:$0xff]
    %v1310 = vld [vmem:[%s1 + $0x2810] sm:$0xff]
    %v1311 = vld [vmem:[%s1 + $0x2818] sm:$0xff]
    %v1312 = vld [vmem:[%s1 + $0x2820] sm:$0xff]
    %v1313 = vld [vmem:[%s1 + $0x2828] sm:$0xff]
    %v1314 = vld [vmem:[%s1 + $0x2830] sm:$0xff]
    %v1315 = vld [vmem:[%s1 + $0x2838] sm:$0xff]
    %v1316 = vld [vmem:[%s1 + $0x2840] sm:$0xff]
    %v1317 = vld [vmem:[%s1 + $0x2848] sm:$0xff]
    %v1318 = vld [vmem:[%s1 + $0x2850] sm:$0xff]
    %v1319 = vld [vmem:[%s1 + $0x2858] sm:$0xff]
    %v1320 = vld [vmem:[%s1 + $0x2860] sm:$0xff]
    %v1321 = vld [vmem:[%s1 + $0x2868] sm:$0xff]
    %v1322 = vld [vmem:[%s1 + $0x2870] sm:$0xff]
    %v1323 = vld [vmem:[%s1 + $0x2878] sm:$0xff]
    %v1324 = vld [vmem:[%s1 + $0x2880] sm:$0xff]
    %v1325 = vld [vmem:[%s1 + $0x2888] sm:$0xff]
    %v1326 = vld [vmem:[%s1 + $0x2890] sm:$0xff]
    %v1327 = vld [vmem:[%s1 + $0x2898] sm:$0xff]
    %v1328 = vld [vmem:[%s1 + $0x28a0] sm:$0xff]
    %v1329 = vld [vmem:[%s1 + $0x28a8] sm:$0xff]
    %v1330 = vld [vmem:[%s1 + $0x28b0] sm:$0xff]
    %v1331 = vld [vmem:[%s1 + $0x28b8] sm:$0xff]
    %v1332 = vld [vmem:[%s1 + $0x28c0] sm:$0xff]
    %v1333 = vld [vmem:[%s1 + $0x28c8] sm:$0xff]
    %v1334 = vld [vmem:[%s1 + $0x28d0] sm:$0xff]
    %v1335 = vld [vmem:[%s1 + $0x28d8] sm:$0xff]
    %v1336 = vld [vmem:[%s1 + $0x28e0] sm:$0xff]
    %v1337 = vld [vmem:[%s1 + $0x28e8] sm:$0xff]
    %v1338 = vld [vmem:[%s1 + $0x28f0] sm:$0xff]
    %v1339 = vld [vmem:[%s1 + $0x28f8] sm:$0xff]
    %v1340 = vld [vmem:[%s1 + $0x2900] sm:$0xff]
    %v1341 = vld [vmem:[%s1 + $0x2908] sm:$0xff]
    %v1342 = vld [vmem:[%s1 + $0x2910] sm:$0xff]
    %v1343 = vld [vmem:[%s1 + $0x2918] sm:$0xff]
    %v1344 = vld [vmem:[%s1 + $0x2920] sm:$0xff]
    %v1345 = vld [vmem:[%s1 + $0x2928] sm:$0xff]
    %v1346 = vld [vmem:[%s1 + $0x2930] sm:$0xff]
    %v1347 = vld [vmem:[%s1 + $0x2938] sm:$0xff]
    %v1348 = vld [vmem:[%s1 + $0x2940] sm:$0xff]
    %v1349 = vld [vmem:[%s1 + $0x2948] sm:$0xff]
    %v1350 = vld [vmem:[%s1 + $0x2950] sm:$0xff]
    %v1351 = vld [vmem:[%s1 + $0x2958] sm:$0xff]
    %v1352 = vld [vmem:[%s1 + $0x2960] sm:$0xff]
    %v1353 = vld [vmem:[%s1 + $0x2968] sm:$0xff]
    %v1354 = vld [vmem:[%s1 + $0x2970] sm:$0xff]
    %v1355 = vld [vmem:[%s1 + $0x2978] sm:$0xff]
    %v1356 = vld [vmem:[%s1 + $0x2980] sm:$0xff]
    %v1357 = vld [vmem:[%s1 + $0x2988] sm:$0xff]
    %v1358 = vld [vmem:[%s1 + $0x2990] sm:$0xff]
    %v1359 = vld [vmem:[%s1 + $0x2998] sm:$0xff]
    %v1360 = vld [vmem:[%s1 + $0x29a0] sm:$0xff]
    %v1361 = vld [vmem:[%s1 + $0x29a8] sm:$0xff]
    %v1362 = vld [vmem:[%s1 + $0x29b0] sm:$0xff]
    %v1363 = vld [vmem:[%s1 + $0x29b8] sm:$0xff]
    %v1364 = vld [vmem:[%s1 + $0x29c0] sm:$0xff]
    %v1365 = vld [vmem:[%s1 + $0x29c8] sm:$0xff]
    %v1366 = vld [vmem:[%s1 + $0x29d0] sm:$0xff]
    %v1367 = vld [vmem:[%s1 + $0x29d8] sm:$0xff]
    %v1368 = vld [vmem:[%s1 + $0x29e0] sm:$0xff]
    %v1369 = vld [vmem:[%s1 + $0x29e8] sm:$0xff]
    %v1370 = vld [vmem:[%s1 + $0x29f0] sm:$0xff]
    %v1371 = vld [vmem:[%s1 + $0x29f8] sm:$0xff]
    %v1372 = vld [vmem:[%s1 + $0x2a00] sm:$0xff]
    %v1373 = vld [vmem:[%s1 + $0x2a08] sm:$0xff]
    %v1374 = vld [vmem:[%s1 + $0x2a10] sm:$0xff]
    %v1375 = vld [vmem:[%s1 + $0x2a18] sm:$0xff]
    %v1376 = vld [vmem:[%s1 + $0x2a20] sm:$0xff]
    %v1377 = vld [vmem:[%s1 + $0x2a28] sm:$0xff]
    %v1378 = vld [vmem:[%s1 + $0x2a30] sm:$0xff]
    %v1379 = vld [vmem:[%s1 + $0x2a38] sm:$0xff]
    %v1380 = vld [vmem:[%s1 + $0x2a40] sm:$0xff]
    %v1381 = vld [vmem:[%s1 + $0x2a48] sm:$0xff]
    %v1382 = vld [vmem:[%s1 + $0x2a50] sm:$0xff]
    %v1383 = vld [vmem:[%s1 + $0x2a58] sm:$0xff]
    %v1384 = vld [vmem:[%s1 + $0x2a60] sm:$0xff]
    %v1385 = vld [vmem:[%s1 + $0x2a68] sm:$0xff]
    %v1386 = vld [vmem:[%s1 + $0x2a70] sm:$0xff]
    %v1387 = vld [vmem:[%s1 + $0x2a78] sm:$0xff]
    %v1388 = vld [vmem:[%s1 + $0x2a80] sm:$0xff]
    %v1389 = vld [vmem:[%s1 + $0x2a88] sm:$0xff]
    %v1390 = vld [vmem:[%s1 + $0x2a90] sm:$0xff]
    %v1391 = vld [vmem:[%s1 + $0x2a98] sm:$0xff]
    %v1392 = vld [vmem:[%s1 + $0x2aa0] sm:$0xff]
    %v1393 = vld [vmem:[%s1 + $0x2aa8] sm:$0xff]
    %v1394 = vld [vmem:[%s1 + $0x2ab0] sm:$0xff]
    %v1395 = vld [vmem:[%s1 + $0x2ab8] sm:$0xff]
    %v1396 = vld [vmem:[%s1 + $0x2ac0] sm:$0xff]
    %v1397 = vld [vmem:[%s1 + $0x2ac8] sm:$0xff]
    %v1398 = vld [vmem:[%s1 + $0x2ad0] sm:$0xff]
    %v1399 = vld [vmem:[%s1 + $0x2ad8] sm:$0xff]
    %v1400 = vld [vmem:[%s1 + $0x2ae0] sm:$0xff]
    %v1401 = vld [vmem:[%s1 + $0x2ae8] sm:$0xff]
    %v1402 = vld [vmem:[%s1 + $0x2af0] sm:$0xff]
    %v1403 = vld [vmem:[%s1 + $0x2af8] sm:$0xff]
    %v1404 = vld [vmem:[%s1 + $0x2b00] sm:$0xff]
    %v1405 = vld [vmem:[%s1 + $0x2b08] sm:$0xff]
    %v1406 = vld [vmem:[%s1 + $0x2b10] sm:$0xff]
    %v1407 = vld [vmem:[%s1 + $0x2b18] sm:$0xff]
    %v1408 = vld [vmem:[%s1 + $0x2b20] sm:$0xff]
    %v1409 = vld [vmem:[%s1 + $0x2b28] sm:$0xff]
    %v1410 = vld [vmem:[%s1 + $0x2b30] sm:$0xff]
    %v1411 = vld [vmem:[%s1 + $0x2b38] sm:$0xff]
    %v1412 = vld [vmem:[%s1 + $0x2b40] sm:$0xff]
    %v1413 = vld [vmem:[%s1 + $0x2b48] sm:$0xff]
    %v1414 = vld [vmem:[%s1 + $0x2b50] sm:$0xff]
    %v1415 = vld [vmem:[%s1 + $0x2b58] sm:$0xff]
    %v1416 = vld [vmem:[%s1 + $0x2b60] sm:$0xff]
    %v1417 = vld [vmem:[%s1 + $0x2b68] sm:$0xff]
    %v1418 = vld [vmem:[%s1 + $0x2b70] sm:$0xff]
    %v1419 = vld [vmem:[%s1 + $0x2b78] sm:$0xff]
    %v1420 = vld [vmem:[%s1 + $0x2b80] sm:$0xff]
    %v1421 = vld [vmem:[%s1 + $0x2b88] sm:$0xff]
    %v1422 = vld [vmem:[%s1 + $0x2b90] sm:$0xff]
    %v1423 = vld [vmem:[%s1 + $0x2b98] sm:$0xff]
    %v1424 = vld [vmem:[%s1 + $0x2ba0] sm:$0xff]
    %v1425 = vld [vmem:[%s1 + $0x2ba8] sm:$0xff]
    %v1426 = vld [vmem:[%s1 + $0x2bb0] sm:$0xff]
    %v1427 = vld [vmem:[%s1 + $0x2bb8] sm:$0xff]
    %v1428 = vld [vmem:[%s1 + $0x2bc0] sm:$0xff]
    %v1429 = vld [vmem:[%s1 + $0x2bc8] sm:$0xff]
    %v1430 = vld [vmem:[%s1 + $0x2bd0] sm:$0xff]
    %v1431 = vld [vmem:[%s1 + $0x2bd8] sm:$0xff]
    %v1432 = vld [vmem:[%s1 + $0x2be0] sm:$0xff]
    %v1433 = vld [vmem:[%s1 + $0x2be8] sm:$0xff]
    %v1434 = vld [vmem:[%s1 + $0x2bf0] sm:$0xff]
    %v1435 = vld [vmem:[%s1 + $0x2bf8] sm:$0xff]
    %v1436 = vld [vmem:[%s1 + $0x2c00] sm:$0xff]
    %v1437 = vld [vmem:[%s1 + $0x2c08] sm:$0xff]
    %v1438 = vld [vmem:[%s1 + $0x2c10] sm:$0xff]
    %v1439 = vld [vmem:[%s1 + $0x2c18] sm:$0xff]
    %v1440 = vld [vmem:[%s1 + $0x2c20] sm:$0xff]
    %v1441 = vld [vmem:[%s1 + $0x2c28] sm:$0xff]
    %v1442 = vld [vmem:[%s1 + $0x2c30] sm:$0xff]
    %v1443 = vld [vmem:[%s1 + $0x2c38] sm:$0xff]
    %v1444 = vld [vmem:[%s1 + $0x2c40] sm:$0xff]
    %v1445 = vld [vmem:[%s1 + $0x2c48] sm:$0xff]
    %v1446 = vld [vmem:[%s1 + $0x2c50] sm:$0xff]
    %v1447 = vld [vmem:[%s1 + $0x2c58] sm:$0xff]
    %v1448 = vld [vmem:[%s1 + $0x2c60] sm:$0xff]
    %v1449 = vld [vmem:[%s1 + $0x2c68] sm:$0xff]
    %v1450 = vld [vmem:[%s1 + $0x2c70] sm:$0xff]
    %v1451 = vld [vmem:[%s1 + $0x2c78] sm:$0xff]
    %v1452 = vld [vmem:[%s1 + $0x2c80] sm:$0xff]
    %v1453 = vld [vmem:[%s1 + $0x2c88] sm:$0xff]
    %v1454 = vld [vmem:[%s1 + $0x2c90] sm:$0xff]
    %v1455 = vld [vmem:[%s1 + $0x2c98] sm:$0xff]
    %v1456 = vld [vmem:[%s1 + $0x2ca0] sm:$0xff]
    %v1457 = vld [vmem:[%s1 + $0x2ca8] sm:$0xff]
    %v1458 = vld [vmem:[%s1 + $0x2cb0] sm:$0xff]
    %v1459 = vld [vmem:[%s1 + $0x2cb8] sm:$0xff]
    %v1460 = vld [vmem:[%s1 + $0x2cc0] sm:$0xff]
    %v1461 = vld [vmem:[%s1 + $0x2cc8] sm:$0xff]
    %v1462 = vld [vmem:[%s1 + $0x2cd0] sm:$0xff]
    %v1463 = vld [vmem:[%s1 + $0x2cd8] sm:$0xff]
    %v1464 = vld [vmem:[%s1 + $0x2ce0] sm:$0xff]
    %v1465 = vld [vmem:[%s1 + $0x2ce8] sm:$0xff]
    %v1466 = vld [vmem:[%s1 + $0x2cf0] sm:$0xff]
    %v1467 = vld [vmem:[%s1 + $0x2cf8] sm:$0xff]
    %v1468 = vld [vmem:[%s1 + $0x2d00] sm:$0xff]
    %v1469 = vld [vmem:[%s1 + $0x2d08] sm:$0xff]
    %v1470 = vld [vmem:[%s1 + $0x2d10] sm:$0xff]
    %v1471 = vld [vmem:[%s1 + $0x2d18] sm:$0xff]
    %v1472 = vld [vmem:[%s1 + $0x2d20] sm:$0xff]
    %v1473 = vld [vmem:[%s1 + $0x2d28] sm:$0xff]
    %v1474 = vld [vmem:[%s1 + $0x2d30] sm:$0xff]
    %v1475 = vld [vmem:[%s1 + $0x2d38] sm:$0xff]
    %v1476 = vld [vmem:[%s1 + $0x2d40] sm:$0xff]
    %v1477 = vld [vmem:[%s1 + $0x2d48] sm:$0xff]
    %v1478 = vld [vmem:[%s1 + $0x2d50] sm:$0xff]
    %v1479 = vld [vmem:[%s1 + $0x2d58] sm:$0xff]
    %v1480 = vld [vmem:[%s1 + $0x2d60] sm:$0xff]
    %v1481 = vld [vmem:[%s1 + $0x2d68] sm:$0xff]
    %v1482 = vld [vmem:[%s1 + $0x2d70] sm:$0xff]
    %v1483 = vld [vmem:[%s1 + $0x2d78] sm:$0xff]
    %v1484 = vld [vmem:[%s1 + $0x2d80] sm:$0xff]
    %v1485 = vld [vmem:[%s1 + $0x2d88] sm:$0xff]
    %v1486 = vld [vmem:[%s1 + $0x2d90] sm:$0xff]
    %v1487 = vld [vmem:[%s1 + $0x2d98] sm:$0xff]
    %v1488 = vld [vmem:[%s1 + $0x2da0] sm:$0xff]
    %v1489 = vld [vmem:[%s1 + $0x2da8] sm:$0xff]
    %v1490 = vld [vmem:[%s1 + $0x2db0] sm:$0xff]
    %v1491 = vld [vmem:[%s1 + $0x2db8] sm:$0xff]
    %v1492 = vld [vmem:[%s1 + $0x2dc0] sm:$0xff]
    %v1493 = vld [vmem:[%s1 + $0x2dc8] sm:$0xff]
    %v1494 = vld [vmem:[%s1 + $0x2dd0] sm:$0xff]
    %v1495 = vld [vmem:[%s1 + $0x2dd8] sm:$0xff]
    %v1496 = vld [vmem:[%s1 + $0x2de0] sm:$0xff]
    %v1497 = vld [vmem:[%s1 + $0x2de8] sm:$0xff]
    %v1498 = vld [vmem:[%s1 + $0x2df0] sm:$0xff]
    %v1499 = vld [vmem:[%s1 + $0x2df8] sm:$0xff]
    %v1500 = vld [vmem:[%s1 + $0x2e00] sm:$0xff]
    %v1501 = vld [vmem:[%s1 + $0x2e08] sm:$0xff]
    %v1502 = vld [vmem:[%s1 + $0x2e10] sm:$0xff]
    %v1503 = vld [vmem:[%s1 + $0x2e18] sm:$0xff]
    %v1504 = vld [vmem:[%s1 + $0x2e20] sm:$0xff]
    %v1505 = vld [vmem:[%s1 + $0x2e28] sm:$0xff]
    %v1506 = vld [vmem:[%s1 + $0x2e30] sm:$0xff]
    %v1507 = vld [vmem:[%s1 + $0x2e38] sm:$0xff]
    %v1508 = vld [vmem:[%s1 + $0x2e40] sm:$0xff]
    %v1509 = vld [vmem:[%s1 + $0x2e48] sm:$0xff]
    %v1510 = vld [vmem:[%s1 + $0x2e50] sm:$0xff]
    %v1511 = vld [vmem:[%s1 + $0x2e58] sm:$0xff]
    %v1512 = vld [vmem:[%s1 + $0x2e60] sm:$0xff]
    %v1513 = vld [vmem:[%s1 + $0x2e68] sm:$0xff]
    %v1514 = vld [vmem:[%s1 + $0x2e70] sm:$0xff]
    %v1515 = vld [vmem:[%s1 + $0x2e78] sm:$0xff]
    %v1516 = vld [vmem:[%s1 + $0x2e80] sm:$0xff]
    %v1517 = vld [vmem:[%s1 + $0x2e88] sm:$0xff]
    %v1518 = vld [vmem:[%s1 + $0x2e90] sm:$0xff]
    %v1519 = vld [vmem:[%s1 + $0x2e98] sm:$0xff]
    %v1520 = vld [vmem:[%s1 + $0x2ea0] sm:$0xff]
    %v1521 = vld [vmem:[%s1 + $0x2ea8] sm:$0xff]
    %v1522 = vld [vmem:[%s1 + $0x2eb0] sm:$0xff]
    %v1523 = vld [vmem:[%s1 + $0x2eb8] sm:$0xff]
    %v1524 = vld [vmem:[%s1 + $0x2ec0] sm:$0xff]
    %v1525 = vld [vmem:[%s1 + $0x2ec8] sm:$0xff]
    %v1526 = vld [vmem:[%s1 + $0x2ed0] sm:$0xff]
    %v1527 = vld [vmem:[%s1 + $0x2ed8] sm:$0xff]
    %v1528 = vld [vmem:[%s1 + $0x2ee0] sm:$0xff]
    %v1529 = vld [vmem:[%s1 + $0x2ee8] sm:$0xff]
    %v1530 = vld [vmem:[%s1 + $0x2ef0] sm:$0xff]
    %v1531 = vld [vmem:[%s1 + $0x2ef8] sm:$0xff]
    %v1532 = vld [vmem:[%s1 + $0x2f00] sm:$0xff]
    %v1533 = vld [vmem:[%s1 + $0x2f08] sm:$0xff]
    %v1534 = vld [vmem:[%s1 + $0x2f10] sm:$0xff]
    %v1535 = vld [vmem:[%s1 + $0x2f18] sm:$0xff]
    %v1536 = vld [vmem:[%s1 + $0x2f20] sm:$0xff]
    %v1537 = vld [vmem:[%s1 + $0x2f28] sm:$0xff]
    %v1538 = vld [vmem:[%s1 + $0x2f30] sm:$0xff]
    %v1539 = vld [vmem:[%s1 + $0x2f38] sm:$0xff]
    %v1540 = vld [vmem:[%s1 + $0x2f40] sm:$0xff]
    %v1541 = vld [vmem:[%s1 + $0x2f48] sm:$0xff]
    %v1542 = vld [vmem:[%s1 + $0x2f50] sm:$0xff]
    %v1543 = vld [vmem:[%s1 + $0x2f58] sm:$0xff]
    %v1544 = vld [vmem:[%s1 + $0x2f60] sm:$0xff]
    %v1545 = vld [vmem:[%s1 + $0x2f68] sm:$0xff]
    %v1546 = vld [vmem:[%s1 + $0x2f70] sm:$0xff]
    %v1547 = vld [vmem:[%s1 + $0x2f78] sm:$0xff]
    %v1548 = vld [vmem:[%s1 + $0x2f80] sm:$0xff]
    %v1549 = vld [vmem:[%s1 + $0x2f88] sm:$0xff]
    %v1550 = vld [vmem:[%s1 + $0x2f90] sm:$0xff]
    %v1551 = vld [vmem:[%s1 + $0x2f98] sm:$0xff]
    %v1552 = vld [vmem:[%s1 + $0x2fa0] sm:$0xff]
    %v1553 = vld [vmem:[%s1 + $0x2fa8] sm:$0xff]
    %v1554 = vld [vmem:[%s1 + $0x2fb0] sm:$0xff]
    %v1555 = vld [vmem:[%s1 + $0x2fb8] sm:$0xff]
    %v1556 = vld [vmem:[%s1 + $0x2fc0] sm:$0xff]
    %v1557 = vld [vmem:[%s1 + $0x2fc8] sm:$0xff]
    %v1558 = vld [vmem:[%s1 + $0x2fd0] sm:$0xff]
    %v1559 = vld [vmem:[%s1 + $0x2fd8] sm:$0xff]
    %v1560 = vld [vmem:[%s1 + $0x2fe0] sm:$0xff]
    %v1561 = vld [vmem:[%s1 + $0x2fe8] sm:$0xff]
    %v1562 = vld [vmem:[%s1 + $0x2ff0] sm:$0xff]
    %v1563 = vld [vmem:[%s1 + $0x2ff8] sm:$0xff]
    %v1564 = vld [vmem:[%s1 + $0x3000] sm:$0xff]
    %v1565 = vld [vmem:[%s1 + $0x3008] sm:$0xff]
    %v1566 = vld [vmem:[%s1 + $0x3010] sm:$0xff]
    %v1567 = vld [vmem:[%s1 + $0x3018] sm:$0xff]
    %v1568 = vld [vmem:[%s1 + $0x3020] sm:$0xff]
    %v1569 = vld [vmem:[%s1 + $0x3028] sm:$0xff]
    %v1570 = vld [vmem:[%s1 + $0x3030] sm:$0xff]
    %v1571 = vld [vmem:[%s1 + $0x3038] sm:$0xff]
    %v1572 = vld [vmem:[%s1 + $0x3040] sm:$0xff]
    %v1573 = vld [vmem:[%s1 + $0x3048] sm:$0xff]
    %v1574 = vld [vmem:[%s1 + $0x3050] sm:$0xff]
    %v1575 = vld [vmem:[%s1 + $0x3058] sm:$0xff]
    %v1576 = vld [vmem:[%s1 + $0x3060] sm:$0xff]
    %v1577 = vld [vmem:[%s1 + $0x3068] sm:$0xff]
    %v1578 = vld [vmem:[%s1 + $0x3070] sm:$0xff]
    %v1579 = vld [vmem:[%s1 + $0x3078] sm:$0xff]
    %v1580 = vld [vmem:[%s1 + $0x3080] sm:$0xff]
    %v1581 = vld [vmem:[%s1 + $0x3088] sm:$0xff]
    %v1582 = vld [vmem:[%s1 + $0x3090] sm:$0xff]
    %v1583 = vld [vmem:[%s1 + $0x3098] sm:$0xff]
    %v1584 = vld [vmem:[%s1 + $0x30a0] sm:$0xff]
    %v1585 = vld [vmem:[%s1 + $0x30a8] sm:$0xff]
    %v1586 = vld [vmem:[%s1 + $0x30b0] sm:$0xff]
    %v1587 = vld [vmem:[%s1 + $0x30b8] sm:$0xff]
    %v1588 = vld [vmem:[%s1 + $0x30c0] sm:$0xff]
    %v1589 = vld [vmem:[%s1 + $0x30c8] sm:$0xff]
    %v1590 = vld [vmem:[%s1 + $0x30d0] sm:$0xff]
    %v1591 = vld [vmem:[%s1 + $0x30d8] sm:$0xff]
    %v1592 = vld [vmem:[%s1 + $0x30e0] sm:$0xff]
    %v1593 = vld [vmem:[%s1 + $0x30e8] sm:$0xff]
    %v1594 = vld [vmem:[%s1 + $0x30f0] sm:$0xff]
    %v1595 = vld [vmem:[%s1 + $0x30f8] sm:$0xff]
    %v1596 = vld [vmem:[%s1 + $0x3100] sm:$0xff]
    %v1597 = vld [vmem:[%s1 + $0x3108] sm:$0xff]
    %v1598 = vld [vmem:[%s1 + $0x3110] sm:$0xff]
    %v1599 = vld [vmem:[%s1 + $0x3118] sm:$0xff]
    %v1600 = vld [vmem:[%s1 + $0x3120] sm:$0xff]
    %v1601 = vld [vmem:[%s1 + $0x3128] sm:$0xff]
    %v1602 = vld [vmem:[%s1 + $0x3130] sm:$0xff]
    %v1603 = vld [vmem:[%s1 + $0x3138] sm:$0xff]
    %v1604 = vld [vmem:[%s1 + $0x3140] sm:$0xff]
    %v1605 = vld [vmem:[%s1 + $0x3148] sm:$0xff]
    %v1606 = vld [vmem:[%s1 + $0x3150] sm:$0xff]
    %v1607 = vld [vmem:[%s1 + $0x3158] sm:$0xff]
    %v1608 = vld [vmem:[%s1 + $0x3160] sm:$0xff]
    %v1609 = vld [vmem:[%s1 + $0x3168] sm:$0xff]
    %v1610 = vld [vmem:[%s1 + $0x3170] sm:$0xff]
    %v1611 = vld [vmem:[%s1 + $0x3178] sm:$0xff]
    %v1612 = vld [vmem:[%s1 + $0x3180] sm:$0xff]
    %v1613 = vld [vmem:[%s1 + $0x3188] sm:$0xff]
    %v1614 = vld [vmem:[%s1 + $0x3190] sm:$0xff]
    %v1615 = vld [vmem:[%s1 + $0x3198] sm:$0xff]
    %v1616 = vld [vmem:[%s1 + $0x31a0] sm:$0xff]
    %v1617 = vld [vmem:[%s1 + $0x31a8] sm:$0xff]
    %v1618 = vld [vmem:[%s1 + $0x31b0] sm:$0xff]
    %v1619 = vld [vmem:[%s1 + $0x31b8] sm:$0xff]
    %v1620 = vld [vmem:[%s1 + $0x31c0] sm:$0xff]
    %v1621 = vld [vmem:[%s1 + $0x31c8] sm:$0xff]
    %v1622 = vld [vmem:[%s1 + $0x31d0] sm:$0xff]
    %v1623 = vld [vmem:[%s1 + $0x31d8] sm:$0xff]
    %v1624 = vld [vmem:[%s1 + $0x31e0] sm:$0xff]
    %v1625 = vld [vmem:[%s1 + $0x31e8] sm:$0xff]
    %v1626 = vld [vmem:[%s1 + $0x31f0] sm:$0xff]
    %v1627 = vld [vmem:[%s1 + $0x31f8] sm:$0xff]
    %v1628 = vld [vmem:[%s2] sm:$0xf]
    %v1630 = vlaneseq
    %v1631 = vshrl.u32 %v1630, 7
    %v1632 = vsub.s32 0, %v1631
    %v1633 = vrot.slane %v1628, %v1632
    %v1634 = vlaneseq
    %v1635 = vshrl.u32 %v1634, 7
    %v1636 = vsub.s32 1, %v1635
    %v1637 = vrot.slane %v1628, %v1636
    %v1638 = vlaneseq
    %v1639 = vshrl.u32 %v1638, 7
    %v1640 = vsub.s32 2, %v1639
    %v1641 = vrot.slane %v1628, %v1640
    %v1642 = vlaneseq
    %v1643 = vshrl.u32 %v1642, 7
    %v1644 = vsub.s32 3, %v1643
    %v1645 = vrot.slane %v1628, %v1644
    %v1657 = vcombine.high %v21, %v21
    %v1659 = vunpack.c.l.s4 1966171168
    %v1660 = vunpack.c.0.s8 %v1659
    %v1661 = vlaneseq
    %v1662 = vshrl.u32 %v1661, 7
    %v1663 = vsub.s32 %v1660, %v1662
    %v1664 = vrot.slane %v21, %v1663
    %v1666 = vunpack.c.l.s4 1966171168
    %v1667 = vunpack.c.0.s8 %v1666
    %v1668 = vlaneseq
    %v1669 = vshrl.u32 %v1668, 7
    %v1670 = vsub.s32 %v1667, %v1669
    %v1671 = vrot.slane %v1657, %v1670
    %v1672 = vcombine.high %v1664, %v1664
    %v1673 = vcombine.high %v1671, %v1671
    %v1675 = vunpack.c.l.s4 1966171168
    %v1676 = vunpack.c.0.s8 %v1675
    %v1677 = vlaneseq
    %v1678 = vshrl.u32 %v1677, 7
    %v1679 = vsub.s32 %v1676, %v1678
    %v1680 = vrot.slane %v1664, %v1679
    %v1682 = vunpack.c.l.s4 1966171168
    %v1683 = vunpack.c.0.s8 %v1682
    %v1684 = vlaneseq
    %v1685 = vshrl.u32 %v1684, 7
    %v1686 = vsub.s32 %v1683, %v1685
    %v1687 = vrot.slane %v1671, %v1686
    %v1689 = vunpack.c.l.s4 1966171168
    %v1690 = vunpack.c.0.s8 %v1689
    %v1691 = vlaneseq
    %v1692 = vshrl.u32 %v1691, 7
    %v1693 = vsub.s32 %v1690, %v1692
    %v1694 = vrot.slane %v1672, %v1693
    %v1696 = vunpack.c.l.s4 1966171168
    %v1697 = vunpack.c.0.s8 %v1696
    %v1698 = vlaneseq
    %v1699 = vshrl.u32 %v1698, 7
    %v1700 = vsub.s32 %v1697, %v1699
    %v1701 = vrot.slane %v1673, %v1700
    %v1702 = vcombine.high %v1680, %v1680
    %v1703 = vcombine.high %v1687, %v1687
    %v1704 = vcombine.high %v1694, %v1694
    %v1705 = vcombine.high %v1701, %v1701
    %v1706 = vcombine.high %v22, %v22
    %v1708 = vunpack.c.l.s4 1966171168
    %v1709 = vunpack.c.0.s8 %v1708
    %v1710 = vlaneseq
    %v1711 = vshrl.u32 %v1710, 7
    %v1712 = vsub.s32 %v1709, %v1711
    %v1713 = vrot.slane %v22, %v1712
    %v1715 = vunpack.c.l.s4 1966171168
    %v1716 = vunpack.c.0.s8 %v1715
    %v1717 = vlaneseq
    %v1718 = vshrl.u32 %v1717, 7
    %v1719 = vsub.s32 %v1716, %v1718
    %v1720 = vrot.slane %v1706, %v1719
    %v1721 = vcombine.high %v1713, %v1713
    %v1722 = vcombine.high %v1720, %v1720
    %v1724 = vunpack.c.l.s4 1966171168
    %v1725 = vunpack.c.0.s8 %v1724
    %v1726 = vlaneseq
    %v1727 = vshrl.u32 %v1726, 7
    %v1728 = vsub.s32 %v1725, %v1727
    %v1729 = vrot.slane %v1713, %v1728
    %v1731 = vunpack.c.l.s4 1966171168
    %v1732 = vunpack.c.0.s8 %v1731
    %v1733 = vlaneseq
    %v1734 = vshrl.u32 %v1733, 7
    %v1735 = vsub.s32 %v1732, %v1734
    %v1736 = vrot.slane %v1720, %v1735
    %v1738 = vunpack.c.l.s4 1966171168
    %v1739 = vunpack.c.0.s8 %v1738
    %v1740 = vlaneseq
    %v1741 = vshrl.u32 %v1740, 7
    %v1742 = vsub.s32 %v1739, %v1741
    %v1743 = vrot.slane %v1721, %v1742
    %v1745 = vunpack.c.l.s4 1966171168
    %v1746 = vunpack.c.0.s8 %v1745
    %v1747 = vlaneseq
    %v1748 = vshrl.u32 %v1747, 7
    %v1749 = vsub.s32 %v1746, %v1748
    %v1750 = vrot.slane %v1722, %v1749
    %v1751 = vcombine.high %v1729, %v1729
    %v1752 = vcombine.high %v1736, %v1736
    %v1753 = vcombine.high %v1743, %v1743
    %v1754 = vcombine.high %v1750, %v1750
    %v1755 = vcombine.high %v23, %v23
    %v1757 = vunpack.c.l.s4 1966171168
    %v1758 = vunpack.c.0.s8 %v1757
    %v1759 = vlaneseq
    %v1760 = vshrl.u32 %v1759, 7
    %v1761 = vsub.s32 %v1758, %v1760
    %v1762 = vrot.slane %v23, %v1761
    %v1764 = vunpack.c.l.s4 1966171168
    %v1765 = vunpack.c.0.s8 %v1764
    %v1766 = vlaneseq
    %v1767 = vshrl.u32 %v1766, 7
    %v1768 = vsub.s32 %v1765, %v1767
    %v1769 = vrot.slane %v1755, %v1768
    %v1770 = vcombine.high %v1762, %v1762
    %v1771 = vcombine.high %v1769, %v1769
    %v1773 = vunpack.c.l.s4 1966171168
    %v1774 = vunpack.c.0.s8 %v1773
    %v1775 = vlaneseq
    %v1776 = vshrl.u32 %v1775, 7
    %v1777 = vsub.s32 %v1774, %v1776
    %v1778 = vrot.slane %v1762, %v1777
    %v1780 = vunpack.c.l.s4 1966171168
    %v1781 = vunpack.c.0.s8 %v1780
    %v1782 = vlaneseq
    %v1783 = vshrl.u32 %v1782, 7
    %v1784 = vsub.s32 %v1781, %v1783
    %v1785 = vrot.slane %v1769, %v1784
    %v1787 = vunpack.c.l.s4 1966171168
    %v1788 = vunpack.c.0.s8 %v1787
    %v1789 = vlaneseq
    %v1790 = vshrl.u32 %v1789, 7
    %v1791 = vsub.s32 %v1788, %v1790
    %v1792 = vrot.slane %v1770, %v1791
    %v1794 = vunpack.c.l.s4 1966171168
    %v1795 = vunpack.c.0.s8 %v1794
    %v1796 = vlaneseq
    %v1797 = vshrl.u32 %v1796, 7
    %v1798 = vsub.s32 %v1795, %v1797
    %v1799 = vrot.slane %v1771, %v1798
    %v1800 = vcombine.high %v1778, %v1778
    %v1801 = vcombine.high %v1785, %v1785
    %v1802 = vcombine.high %v1792, %v1792
    %v1803 = vcombine.high %v1799, %v1799
    %v1804 = vcombine.high %v24, %v24
    %v1806 = vunpack.c.l.s4 1966171168
    %v1807 = vunpack.c.0.s8 %v1806
    %v1808 = vlaneseq
    %v1809 = vshrl.u32 %v1808, 7
    %v1810 = vsub.s32 %v1807, %v1809
    %v1811 = vrot.slane %v24, %v1810
    %v1813 = vunpack.c.l.s4 1966171168
    %v1814 = vunpack.c.0.s8 %v1813
    %v1815 = vlaneseq
    %v1816 = vshrl.u32 %v1815, 7
    %v1817 = vsub.s32 %v1814, %v1816
    %v1818 = vrot.slane %v1804, %v1817
    %v1819 = vcombine.high %v1811, %v1811
    %v1820 = vcombine.high %v1818, %v1818
    %v1822 = vunpack.c.l.s4 1966171168
    %v1823 = vunpack.c.0.s8 %v1822
    %v1824 = vlaneseq
    %v1825 = vshrl.u32 %v1824, 7
    %v1826 = vsub.s32 %v1823, %v1825
    %v1827 = vrot.slane %v1811, %v1826
    %v1829 = vunpack.c.l.s4 1966171168
    %v1830 = vunpack.c.0.s8 %v1829
    %v1831 = vlaneseq
    %v1832 = vshrl.u32 %v1831, 7
    %v1833 = vsub.s32 %v1830, %v1832
    %v1834 = vrot.slane %v1818, %v1833
    %v1836 = vunpack.c.l.s4 1966171168
    %v1837 = vunpack.c.0.s8 %v1836
    %v1838 = vlaneseq
    %v1839 = vshrl.u32 %v1838, 7
    %v1840 = vsub.s32 %v1837, %v1839
    %v1841 = vrot.slane %v1819, %v1840
    %v1843 = vunpack.c.l.s4 1966171168
    %v1844 = vunpack.c.0.s8 %v1843
    %v1845 = vlaneseq
    %v1846 = vshrl.u32 %v1845, 7
    %v1847 = vsub.s32 %v1844, %v1846
    %v1848 = vrot.slane %v1820, %v1847
    %v1849 = vcombine.high %v1827, %v1827
    %v1850 = vcombine.high %v1834, %v1834
    %v1851 = vcombine.high %v1841, %v1841
    %v1852 = vcombine.high %v1848, %v1848
    %v1853 = vcombine.high %v25, %v25
    %v1855 = vunpack.c.l.s4 1966171168
    %v1856 = vunpack.c.0.s8 %v1855
    %v1857 = vlaneseq
    %v1858 = vshrl.u32 %v1857, 7
    %v1859 = vsub.s32 %v1856, %v1858
    %v1860 = vrot.slane %v25, %v1859
    %v1862 = vunpack.c.l.s4 1966171168
    %v1863 = vunpack.c.0.s8 %v1862
    %v1864 = vlaneseq
    %v1865 = vshrl.u32 %v1864, 7
    %v1866 = vsub.s32 %v1863, %v1865
    %v1867 = vrot.slane %v1853, %v1866
    %v1868 = vcombine.high %v1860, %v1860
    %v1869 = vcombine.high %v1867, %v1867
    %v1871 = vunpack.c.l.s4 1966171168
    %v1872 = vunpack.c.0.s8 %v1871
    %v1873 = vlaneseq
    %v1874 = vshrl.u32 %v1873, 7
    %v1875 = vsub.s32 %v1872, %v1874
    %v1876 = vrot.slane %v1860, %v1875
    %v1878 = vunpack.c.l.s4 1966171168
    %v1879 = vunpack.c.0.s8 %v1878
    %v1880 = vlaneseq
    %v1881 = vshrl.u32 %v1880, 7
    %v1882 = vsub.s32 %v1879, %v1881
    %v1883 = vrot.slane %v1867, %v1882
    %v1885 = vunpack.c.l.s4 1966171168
    %v1886 = vunpack.c.0.s8 %v1885
    %v1887 = vlaneseq
    %v1888 = vshrl.u32 %v1887, 7
    %v1889 = vsub.s32 %v1886, %v1888
    %v1890 = vrot.slane %v1868, %v1889
    %v1892 = vunpack.c.l.s4 1966171168
    %v1893 = vunpack.c.0.s8 %v1892
    %v1894 = vlaneseq
    %v1895 = vshrl.u32 %v1894, 7
    %v1896 = vsub.s32 %v1893, %v1895
    %v1897 = vrot.slane %v1869, %v1896
    %v1898 = vcombine.high %v1876, %v1876
    %v1899 = vcombine.high %v1883, %v1883
    %v1900 = vcombine.high %v1890, %v1890
    %v1901 = vcombine.high %v1897, %v1897
    %v1902 = vcombine.high %v26, %v26
    %v1904 = vunpack.c.l.s4 1966171168
    %v1905 = vunpack.c.0.s8 %v1904
    %v1906 = vlaneseq
    %v1907 = vshrl.u32 %v1906, 7
    %v1908 = vsub.s32 %v1905, %v1907
    %v1909 = vrot.slane %v26, %v1908
    %v1911 = vunpack.c.l.s4 1966171168
    %v1912 = vunpack.c.0.s8 %v1911
    %v1913 = vlaneseq
    %v1914 = vshrl.u32 %v1913, 7
    %v1915 = vsub.s32 %v1912, %v1914
    %v1916 = vrot.slane %v1902, %v1915
    %v1917 = vcombine.high %v1909, %v1909
    %v1918 = vcombine.high %v1916, %v1916
    %v1920 = vunpack.c.l.s4 1966171168
    %v1921 = vunpack.c.0.s8 %v1920
    %v1922 = vlaneseq
    %v1923 = vshrl.u32 %v1922, 7
    %v1924 = vsub.s32 %v1921, %v1923
    %v1925 = vrot.slane %v1909, %v1924
    %v1927 = vunpack.c.l.s4 1966171168
    %v1928 = vunpack.c.0.s8 %v1927
    %v1929 = vlaneseq
    %v1930 = vshrl.u32 %v1929, 7
    %v1931 = vsub.s32 %v1928, %v1930
    %v1932 = vrot.slane %v1916, %v1931
    %v1934 = vunpack.c.l.s4 1966171168
    %v1935 = vunpack.c.0.s8 %v1934
    %v1936 = vlaneseq
    %v1937 = vshrl.u32 %v1936, 7
    %v1938 = vsub.s32 %v1935, %v1937
    %v1939 = vrot.slane %v1917, %v1938
    %v1941 = vunpack.c.l.s4 1966171168
    %v1942 = vunpack.c.0.s8 %v1941
    %v1943 = vlaneseq
    %v1944 = vshrl.u32 %v1943, 7
    %v1945 = vsub.s32 %v1942, %v1944
    %v1946 = vrot.slane %v1918, %v1945
    %v1947 = vcombine.high %v1925, %v1925
    %v1948 = vcombine.high %v1932, %v1932
    %v1949 = vcombine.high %v1939, %v1939
    %v1950 = vcombine.high %v1946, %v1946
    %v1952 = vunpack.c.l.s4 1966171168
    %v1953 = vunpack.c.0.s8 %v1952
    %v1954 = vlaneseq
    %v1955 = vshrl.u32 %v1954, 7
    %v1956 = vsub.s32 %v1953, %v1955
    %v1957 = vrot.slane %v27, %v1956
    %v1958 = vcombine.high %v1957, %v1957
    %v1960 = vunpack.c.l.s4 1966171168
    %v1961 = vunpack.c.0.s8 %v1960
    %v1962 = vlaneseq
    %v1963 = vshrl.u32 %v1962, 7
    %v1964 = vsub.s32 %v1961, %v1963
    %v1965 = vrot.slane %v1957, %v1964
    %v1967 = vunpack.c.l.s4 1966171168
    %v1968 = vunpack.c.0.s8 %v1967
    %v1969 = vlaneseq
    %v1970 = vshrl.u32 %v1969, 7
    %v1971 = vsub.s32 %v1968, %v1970
    %v1972 = vrot.slane %v1958, %v1971
    %v3623 = vunpack.c.l.b16 %v28
    %v3624 = vunpack.c.h.b16 %v28
    %v3625 = vunpack.c.l.b16 %v29
    %v3626 = vunpack.c.h.b16 %v29
    %v3627 = vunpack.c.l.b16 %v30
    %v3628 = vunpack.c.h.b16 %v30
    %v3629 = vunpack.c.l.b16 %v31
    %v3630 = vunpack.c.h.b16 %v31
    %v3631 = vunpack.c.l.b16 %v32
    %v3632 = vunpack.c.h.b16 %v32
    %v3633 = vunpack.c.l.b16 %v33
    %v3634 = vunpack.c.h.b16 %v33
    %v3635 = vunpack.c.l.b16 %v34
    %v3636 = vunpack.c.h.b16 %v34
    %v3637 = vunpack.c.l.b16 %v35
    %v3638 = vunpack.c.h.b16 %v35
    %v3639 = vunpack.c.l.b16 %v36
    %v3640 = vunpack.c.h.b16 %v36
    %v3641 = vunpack.c.l.b16 %v37
    %v3642 = vunpack.c.h.b16 %v37
    %v3643 = vunpack.c.l.b16 %v38
    %v3644 = vunpack.c.h.b16 %v38
    %v3645 = vunpack.c.l.b16 %v39
    %v3646 = vunpack.c.h.b16 %v39
    %v3647 = vunpack.c.l.b16 %v40
    %v3648 = vunpack.c.h.b16 %v40
    %v3649 = vunpack.c.l.b16 %v41
    %v3650 = vunpack.c.h.b16 %v41
    %v3651 = vunpack.c.l.b16 %v42
    %v3652 = vunpack.c.h.b16 %v42
    %v3653 = vunpack.c.l.b16 %v43
    %v3654 = vunpack.c.h.b16 %v43
    %v3655 = vunpack.c.l.b16 %v44
    %v3656 = vunpack.c.h.b16 %v44
    %v3657 = vunpack.c.l.b16 %v45
    %v3658 = vunpack.c.h.b16 %v45
    %v3659 = vunpack.c.l.b16 %v46
    %v3660 = vunpack.c.h.b16 %v46
    %v3661 = vunpack.c.l.b16 %v47
    %v3662 = vunpack.c.h.b16 %v47
    %v3663 = vunpack.c.l.b16 %v48
    %v3664 = vunpack.c.h.b16 %v48
    %v3665 = vunpack.c.l.b16 %v49
    %v3666 = vunpack.c.h.b16 %v49
    %v3667 = vunpack.c.l.b16 %v50
    %v3668 = vunpack.c.h.b16 %v50
    %v3669 = vunpack.c.l.b16 %v51
    %v3670 = vunpack.c.h.b16 %v51
    %v3671 = vunpack.c.l.b16 %v52
    %v3672 = vunpack.c.h.b16 %v52
    %v3673 = vunpack.c.l.b16 %v53
    %v3674 = vunpack.c.h.b16 %v53
    %v3675 = vunpack.c.l.b16 %v54
    %v3676 = vunpack.c.h.b16 %v54
    %v3677 = vunpack.c.l.b16 %v55
    %v3678 = vunpack.c.h.b16 %v55
    %v3679 = vunpack.c.l.b16 %v56
    %v3680 = vunpack.c.h.b16 %v56
    %v3681 = vunpack.c.l.b16 %v57
    %v3682 = vunpack.c.h.b16 %v57
    %v3683 = vunpack.c.l.b16 %v58
    %v3684 = vunpack.c.h.b16 %v58
    %v3685 = vunpack.c.l.b16 %v59
    %v3686 = vunpack.c.h.b16 %v59
    %v3687 = vunpack.c.l.b16 %v60
    %v3688 = vunpack.c.h.b16 %v60
    %v3689 = vunpack.c.l.b16 %v61
    %v3690 = vunpack.c.h.b16 %v61
    %v3691 = vunpack.c.l.b16 %v62
    %v3692 = vunpack.c.h.b16 %v62
    %v3693 = vunpack.c.l.b16 %v63
    %v3694 = vunpack.c.h.b16 %v63
    %v3695 = vunpack.c.l.b16 %v64
    %v3696 = vunpack.c.h.b16 %v64
    %v3697 = vunpack.c.l.b16 %v65
    %v3698 = vunpack.c.h.b16 %v65
    %v3699 = vunpack.c.l.b16 %v66
    %v3700 = vunpack.c.h.b16 %v66
    %v3701 = vunpack.c.l.b16 %v67
    %v3702 = vunpack.c.h.b16 %v67
    %v3703 = vunpack.c.l.b16 %v68
    %v3704 = vunpack.c.h.b16 %v68
    %v3705 = vunpack.c.l.b16 %v69
    %v3706 = vunpack.c.h.b16 %v69
    %v3707 = vunpack.c.l.b16 %v70
    %v3708 = vunpack.c.h.b16 %v70
    %v3709 = vunpack.c.l.b16 %v71
    %v3710 = vunpack.c.h.b16 %v71
    %v3711 = vunpack.c.l.b16 %v72
    %v3712 = vunpack.c.h.b16 %v72
    %v3713 = vunpack.c.l.b16 %v73
    %v3714 = vunpack.c.h.b16 %v73
    %v3715 = vunpack.c.l.b16 %v74
    %v3716 = vunpack.c.h.b16 %v74
    %v3717 = vunpack.c.l.b16 %v75
    %v3718 = vunpack.c.h.b16 %v75
    %v3719 = vunpack.c.l.b16 %v76
    %v3720 = vunpack.c.h.b16 %v76
    %v3721 = vunpack.c.l.b16 %v77
    %v3722 = vunpack.c.h.b16 %v77
    %v3723 = vunpack.c.l.b16 %v78
    %v3724 = vunpack.c.h.b16 %v78
    %v3725 = vunpack.c.l.b16 %v79
    %v3726 = vunpack.c.h.b16 %v79
    %v3727 = vunpack.c.l.b16 %v80
    %v3728 = vunpack.c.h.b16 %v80
    %v3729 = vunpack.c.l.b16 %v81
    %v3730 = vunpack.c.h.b16 %v81
    %v3731 = vunpack.c.l.b16 %v82
    %v3732 = vunpack.c.h.b16 %v82
    %v3733 = vunpack.c.l.b16 %v83
    %v3734 = vunpack.c.h.b16 %v83
    %v3735 = vunpack.c.l.b16 %v84
    %v3736 = vunpack.c.h.b16 %v84
    %v3737 = vunpack.c.l.b16 %v85
    %v3738 = vunpack.c.h.b16 %v85
    %v3739 = vunpack.c.l.b16 %v86
    %v3740 = vunpack.c.h.b16 %v86
    %v3741 = vunpack.c.l.b16 %v87
    %v3742 = vunpack.c.h.b16 %v87
    %v3743 = vunpack.c.l.b16 %v88
    %v3744 = vunpack.c.h.b16 %v88
    %v3745 = vunpack.c.l.b16 %v89
    %v3746 = vunpack.c.h.b16 %v89
    %v3747 = vunpack.c.l.b16 %v90
    %v3748 = vunpack.c.h.b16 %v90
    %v3749 = vunpack.c.l.b16 %v91
    %v3750 = vunpack.c.h.b16 %v91
    %v3751 = vunpack.c.l.b16 %v92
    %v3752 = vunpack.c.h.b16 %v92
    %v3753 = vunpack.c.l.b16 %v93
    %v3754 = vunpack.c.h.b16 %v93
    %v3755 = vunpack.c.l.b16 %v94
    %v3756 = vunpack.c.h.b16 %v94
    %v3757 = vunpack.c.l.b16 %v95
    %v3758 = vunpack.c.h.b16 %v95
    %v3759 = vunpack.c.l.b16 %v96
    %v3760 = vunpack.c.h.b16 %v96
    %v3761 = vunpack.c.l.b16 %v97
    %v3762 = vunpack.c.h.b16 %v97
    %v3763 = vunpack.c.l.b16 %v98
    %v3764 = vunpack.c.h.b16 %v98
    %v3765 = vunpack.c.l.b16 %v99
    %v3766 = vunpack.c.h.b16 %v99
    %v3767 = vunpack.c.l.b16 %v100
    %v3768 = vunpack.c.h.b16 %v100
    %v3769 = vunpack.c.l.b16 %v101
    %v3770 = vunpack.c.h.b16 %v101
    %v3771 = vunpack.c.l.b16 %v102
    %v3772 = vunpack.c.h.b16 %v102
    %v3773 = vunpack.c.l.b16 %v103
    %v3774 = vunpack.c.h.b16 %v103
    %v3775 = vunpack.c.l.b16 %v104
    %v3776 = vunpack.c.h.b16 %v104
    %v3777 = vunpack.c.l.b16 %v105
    %v3778 = vunpack.c.h.b16 %v105
    %v3779 = vunpack.c.l.b16 %v106
    %v3780 = vunpack.c.h.b16 %v106
    %v3781 = vunpack.c.l.b16 %v107
    %v3782 = vunpack.c.h.b16 %v107
    %v3783 = vunpack.c.l.b16 %v108
    %v3784 = vunpack.c.h.b16 %v108
    %v3785 = vunpack.c.l.b16 %v109
    %v3786 = vunpack.c.h.b16 %v109
    %v3787 = vunpack.c.l.b16 %v110
    %v3788 = vunpack.c.h.b16 %v110
    %v3789 = vunpack.c.l.b16 %v111
    %v3790 = vunpack.c.h.b16 %v111
    %v3791 = vunpack.c.l.b16 %v112
    %v3792 = vunpack.c.h.b16 %v112
    %v3793 = vunpack.c.l.b16 %v113
    %v3794 = vunpack.c.h.b16 %v113
    %v3795 = vunpack.c.l.b16 %v114
    %v3796 = vunpack.c.h.b16 %v114
    %v3797 = vunpack.c.l.b16 %v115
    %v3798 = vunpack.c.h.b16 %v115
    %v3799 = vunpack.c.l.b16 %v116
    %v3800 = vunpack.c.h.b16 %v116
    %v3801 = vunpack.c.l.b16 %v117
    %v3802 = vunpack.c.h.b16 %v117
    %v3803 = vunpack.c.l.b16 %v118
    %v3804 = vunpack.c.h.b16 %v118
    %v3805 = vunpack.c.l.b16 %v119
    %v3806 = vunpack.c.h.b16 %v119
    %v3807 = vunpack.c.l.b16 %v120
    %v3808 = vunpack.c.h.b16 %v120
    %v3809 = vunpack.c.l.b16 %v121
    %v3810 = vunpack.c.h.b16 %v121
    %v3811 = vunpack.c.l.b16 %v122
    %v3812 = vunpack.c.h.b16 %v122
    %v3813 = vunpack.c.l.b16 %v123
    %v3814 = vunpack.c.h.b16 %v123
    %v3815 = vunpack.c.l.b16 %v124
    %v3816 = vunpack.c.h.b16 %v124
    %v3817 = vunpack.c.l.b16 %v125
    %v3818 = vunpack.c.h.b16 %v125
    %v3819 = vunpack.c.l.b16 %v126
    %v3820 = vunpack.c.h.b16 %v126
    %v3821 = vunpack.c.l.b16 %v127
    %v3822 = vunpack.c.h.b16 %v127
    %v3823 = vunpack.c.l.b16 %v128
    %v3824 = vunpack.c.h.b16 %v128
    %v3825 = vunpack.c.l.b16 %v129
    %v3826 = vunpack.c.h.b16 %v129
    %v3827 = vunpack.c.l.b16 %v130
    %v3828 = vunpack.c.h.b16 %v130
    %v3829 = vunpack.c.l.b16 %v131
    %v3830 = vunpack.c.h.b16 %v131
    %v3831 = vunpack.c.l.b16 %v132
    %v3832 = vunpack.c.h.b16 %v132
    %v3833 = vunpack.c.l.b16 %v133
    %v3834 = vunpack.c.h.b16 %v133
    %v3835 = vunpack.c.l.b16 %v134
    %v3836 = vunpack.c.h.b16 %v134
    %v3837 = vunpack.c.l.b16 %v135
    %v3838 = vunpack.c.h.b16 %v135
    %v3839 = vunpack.c.l.b16 %v136
    %v3840 = vunpack.c.h.b16 %v136
    %v3841 = vunpack.c.l.b16 %v137
    %v3842 = vunpack.c.h.b16 %v137
    %v3843 = vunpack.c.l.b16 %v138
    %v3844 = vunpack.c.h.b16 %v138
    %v3845 = vunpack.c.l.b16 %v139
    %v3846 = vunpack.c.h.b16 %v139
    %v3847 = vunpack.c.l.b16 %v140
    %v3848 = vunpack.c.h.b16 %v140
    %v3849 = vunpack.c.l.b16 %v141
    %v3850 = vunpack.c.h.b16 %v141
    %v3851 = vunpack.c.l.b16 %v142
    %v3852 = vunpack.c.h.b16 %v142
    %v3853 = vunpack.c.l.b16 %v143
    %v3854 = vunpack.c.h.b16 %v143
    %v3855 = vunpack.c.l.b16 %v144
    %v3856 = vunpack.c.h.b16 %v144
    %v3857 = vunpack.c.l.b16 %v145
    %v3858 = vunpack.c.h.b16 %v145
    %v3859 = vunpack.c.l.b16 %v146
    %v3860 = vunpack.c.h.b16 %v146
    %v3861 = vunpack.c.l.b16 %v147
    %v3862 = vunpack.c.h.b16 %v147
    %v3863 = vunpack.c.l.b16 %v148
    %v3864 = vunpack.c.h.b16 %v148
    %v3865 = vunpack.c.l.b16 %v149
    %v3866 = vunpack.c.h.b16 %v149
    %v3867 = vunpack.c.l.b16 %v150
    %v3868 = vunpack.c.h.b16 %v150
    %v3869 = vunpack.c.l.b16 %v151
    %v3870 = vunpack.c.h.b16 %v151
    %v3871 = vunpack.c.l.b16 %v152
    %v3872 = vunpack.c.h.b16 %v152
    %v3873 = vunpack.c.l.b16 %v153
    %v3874 = vunpack.c.h.b16 %v153
    %v3875 = vunpack.c.l.b16 %v154
    %v3876 = vunpack.c.h.b16 %v154
    %v3877 = vunpack.c.l.b16 %v155
    %v3878 = vunpack.c.h.b16 %v155
    %v3879 = vunpack.c.l.b16 %v156
    %v3880 = vunpack.c.h.b16 %v156
    %v3881 = vunpack.c.l.b16 %v157
    %v3882 = vunpack.c.h.b16 %v157
    %v3883 = vunpack.c.l.b16 %v158
    %v3884 = vunpack.c.h.b16 %v158
    %v3885 = vunpack.c.l.b16 %v159
    %v3886 = vunpack.c.h.b16 %v159
    %v3887 = vunpack.c.l.b16 %v160
    %v3888 = vunpack.c.h.b16 %v160
    %v3889 = vunpack.c.l.b16 %v161
    %v3890 = vunpack.c.h.b16 %v161
    %v3891 = vunpack.c.l.b16 %v162
    %v3892 = vunpack.c.h.b16 %v162
    %v3893 = vunpack.c.l.b16 %v163
    %v3894 = vunpack.c.h.b16 %v163
    %v3895 = vunpack.c.l.b16 %v164
    %v3896 = vunpack.c.h.b16 %v164
    %v3897 = vunpack.c.l.b16 %v165
    %v3898 = vunpack.c.h.b16 %v165
    %v3899 = vunpack.c.l.b16 %v166
    %v3900 = vunpack.c.h.b16 %v166
    %v3901 = vunpack.c.l.b16 %v167
    %v3902 = vunpack.c.h.b16 %v167
    %v3903 = vunpack.c.l.b16 %v168
    %v3904 = vunpack.c.h.b16 %v168
    %v3905 = vunpack.c.l.b16 %v169
    %v3906 = vunpack.c.h.b16 %v169
    %v3907 = vunpack.c.l.b16 %v170
    %v3908 = vunpack.c.h.b16 %v170
    %v3909 = vunpack.c.l.b16 %v171
    %v3910 = vunpack.c.h.b16 %v171
    %v3911 = vunpack.c.l.b16 %v172
    %v3912 = vunpack.c.h.b16 %v172
    %v3913 = vunpack.c.l.b16 %v173
    %v3914 = vunpack.c.h.b16 %v173
    %v3915 = vunpack.c.l.b16 %v174
    %v3916 = vunpack.c.h.b16 %v174
    %v3917 = vunpack.c.l.b16 %v175
    %v3918 = vunpack.c.h.b16 %v175
    %v3919 = vunpack.c.l.b16 %v176
    %v3920 = vunpack.c.h.b16 %v176
    %v3921 = vunpack.c.l.b16 %v177
    %v3922 = vunpack.c.h.b16 %v177
    %v3923 = vunpack.c.l.b16 %v178
    %v3924 = vunpack.c.h.b16 %v178
    %v3925 = vunpack.c.l.b16 %v179
    %v3926 = vunpack.c.h.b16 %v179
    %v3927 = vunpack.c.l.b16 %v180
    %v3928 = vunpack.c.h.b16 %v180
    %v3929 = vunpack.c.l.b16 %v181
    %v3930 = vunpack.c.h.b16 %v181
    %v3931 = vunpack.c.l.b16 %v182
    %v3932 = vunpack.c.h.b16 %v182
    %v3933 = vunpack.c.l.b16 %v183
    %v3934 = vunpack.c.h.b16 %v183
    %v3935 = vunpack.c.l.b16 %v184
    %v3936 = vunpack.c.h.b16 %v184
    %v3937 = vunpack.c.l.b16 %v185
    %v3938 = vunpack.c.h.b16 %v185
    %v3939 = vunpack.c.l.b16 %v186
    %v3940 = vunpack.c.h.b16 %v186
    %v3941 = vunpack.c.l.b16 %v187
    %v3942 = vunpack.c.h.b16 %v187
    %v3943 = vunpack.c.l.b16 %v188
    %v3944 = vunpack.c.h.b16 %v188
    %v3945 = vunpack.c.l.b16 %v189
    %v3946 = vunpack.c.h.b16 %v189
    %v3947 = vunpack.c.l.b16 %v190
    %v3948 = vunpack.c.h.b16 %v190
    %v3949 = vunpack.c.l.b16 %v191
    %v3950 = vunpack.c.h.b16 %v191
    %v3951 = vunpack.c.l.b16 %v192
    %v3952 = vunpack.c.h.b16 %v192
    %v3953 = vunpack.c.l.b16 %v193
    %v3954 = vunpack.c.h.b16 %v193
    %v3955 = vunpack.c.l.b16 %v194
    %v3956 = vunpack.c.h.b16 %v194
    %v3957 = vunpack.c.l.b16 %v195
    %v3958 = vunpack.c.h.b16 %v195
    %v3959 = vunpack.c.l.b16 %v196
    %v3960 = vunpack.c.h.b16 %v196
    %v3961 = vunpack.c.l.b16 %v197
    %v3962 = vunpack.c.h.b16 %v197
    %v3963 = vunpack.c.l.b16 %v198
    %v3964 = vunpack.c.h.b16 %v198
    %v3965 = vunpack.c.l.b16 %v199
    %v3966 = vunpack.c.h.b16 %v199
    %v3967 = vunpack.c.l.b16 %v200
    %v3968 = vunpack.c.h.b16 %v200
    %v3969 = vunpack.c.l.b16 %v201
    %v3970 = vunpack.c.h.b16 %v201
    %v3971 = vunpack.c.l.b16 %v202
    %v3972 = vunpack.c.h.b16 %v202
    %v3973 = vunpack.c.l.b16 %v203
    %v3974 = vunpack.c.h.b16 %v203
    %v3975 = vunpack.c.l.b16 %v204
    %v3976 = vunpack.c.h.b16 %v204
    %v3977 = vunpack.c.l.b16 %v205
    %v3978 = vunpack.c.h.b16 %v205
    %v3979 = vunpack.c.l.b16 %v206
    %v3980 = vunpack.c.h.b16 %v206
    %v3981 = vunpack.c.l.b16 %v207
    %v3982 = vunpack.c.h.b16 %v207
    %v3983 = vunpack.c.l.b16 %v208
    %v3984 = vunpack.c.h.b16 %v208
    %v3985 = vunpack.c.l.b16 %v209
    %v3986 = vunpack.c.h.b16 %v209
    %v3987 = vunpack.c.l.b16 %v210
    %v3988 = vunpack.c.h.b16 %v210
    %v3989 = vunpack.c.l.b16 %v211
    %v3990 = vunpack.c.h.b16 %v211
    %v3991 = vunpack.c.l.b16 %v212
    %v3992 = vunpack.c.h.b16 %v212
    %v3993 = vunpack.c.l.b16 %v213
    %v3994 = vunpack.c.h.b16 %v213
    %v3995 = vunpack.c.l.b16 %v214
    %v3996 = vunpack.c.h.b16 %v214
    %v3997 = vunpack.c.l.b16 %v215
    %v3998 = vunpack.c.h.b16 %v215
    %v3999 = vunpack.c.l.b16 %v216
    %v4000 = vunpack.c.h.b16 %v216
    %v4001 = vunpack.c.l.b16 %v217
    %v4002 = vunpack.c.h.b16 %v217
    %v4003 = vunpack.c.l.b16 %v218
    %v4004 = vunpack.c.h.b16 %v218
    %v4005 = vunpack.c.l.b16 %v219
    %v4006 = vunpack.c.h.b16 %v219
    %v4007 = vunpack.c.l.b16 %v220
    %v4008 = vunpack.c.h.b16 %v220
    %v4009 = vunpack.c.l.b16 %v221
    %v4010 = vunpack.c.h.b16 %v221
    %v4011 = vunpack.c.l.b16 %v222
    %v4012 = vunpack.c.h.b16 %v222
    %v4013 = vunpack.c.l.b16 %v223
    %v4014 = vunpack.c.h.b16 %v223
    %v4015 = vunpack.c.l.b16 %v224
    %v4016 = vunpack.c.h.b16 %v224
    %v4017 = vunpack.c.l.b16 %v225
    %v4018 = vunpack.c.h.b16 %v225
    %v4019 = vunpack.c.l.b16 %v226
    %v4020 = vunpack.c.h.b16 %v226
    %v4021 = vunpack.c.l.b16 %v227
    %v4022 = vunpack.c.h.b16 %v227
    %v4023 = vunpack.c.l.b16 %v228
    %v4024 = vunpack.c.h.b16 %v228
    %v4025 = vunpack.c.l.b16 %v229
    %v4026 = vunpack.c.h.b16 %v229
    %v4027 = vunpack.c.l.b16 %v230
    %v4028 = vunpack.c.h.b16 %v230
    %v4029 = vunpack.c.l.b16 %v231
    %v4030 = vunpack.c.h.b16 %v231
    %v4031 = vunpack.c.l.b16 %v232
    %v4032 = vunpack.c.h.b16 %v232
    %v4033 = vunpack.c.l.b16 %v233
    %v4034 = vunpack.c.h.b16 %v233
    %v4035 = vunpack.c.l.b16 %v234
    %v4036 = vunpack.c.h.b16 %v234
    %v4037 = vunpack.c.l.b16 %v235
    %v4038 = vunpack.c.h.b16 %v235
    %v4039 = vunpack.c.l.b16 %v236
    %v4040 = vunpack.c.h.b16 %v236
    %v4041 = vunpack.c.l.b16 %v237
    %v4042 = vunpack.c.h.b16 %v237
    %v4043 = vunpack.c.l.b16 %v238
    %v4044 = vunpack.c.h.b16 %v238
    %v4045 = vunpack.c.l.b16 %v239
    %v4046 = vunpack.c.h.b16 %v239
    %v4047 = vunpack.c.l.b16 %v240
    %v4048 = vunpack.c.h.b16 %v240
    %v4049 = vunpack.c.l.b16 %v241
    %v4050 = vunpack.c.h.b16 %v241
    %v4051 = vunpack.c.l.b16 %v242
    %v4052 = vunpack.c.h.b16 %v242
    %v4053 = vunpack.c.l.b16 %v243
    %v4054 = vunpack.c.h.b16 %v243
    %v4055 = vunpack.c.l.b16 %v244
    %v4056 = vunpack.c.h.b16 %v244
    %v4057 = vunpack.c.l.b16 %v245
    %v4058 = vunpack.c.h.b16 %v245
    %v4059 = vunpack.c.l.b16 %v246
    %v4060 = vunpack.c.h.b16 %v246
    %v4061 = vunpack.c.l.b16 %v247
    %v4062 = vunpack.c.h.b16 %v247
    %v4063 = vunpack.c.l.b16 %v248
    %v4064 = vunpack.c.h.b16 %v248
    %v4065 = vunpack.c.l.b16 %v249
    %v4066 = vunpack.c.h.b16 %v249
    %v4067 = vunpack.c.l.b16 %v250
    %v4068 = vunpack.c.h.b16 %v250
    %v4069 = vunpack.c.l.b16 %v251
    %v4070 = vunpack.c.h.b16 %v251
    %v4071 = vunpack.c.l.b16 %v252
    %v4072 = vunpack.c.h.b16 %v252
    %v4073 = vunpack.c.l.b16 %v253
    %v4074 = vunpack.c.h.b16 %v253
    %v4075 = vunpack.c.l.b16 %v254
    %v4076 = vunpack.c.h.b16 %v254
    %v4077 = vunpack.c.l.b16 %v255
    %v4078 = vunpack.c.h.b16 %v255
    %v4079 = vunpack.c.l.b16 %v256
    %v4080 = vunpack.c.h.b16 %v256
    %v4081 = vunpack.c.l.b16 %v257
    %v4082 = vunpack.c.h.b16 %v257
    %v4083 = vunpack.c.l.b16 %v258
    %v4084 = vunpack.c.h.b16 %v258
    %v4085 = vunpack.c.l.b16 %v259
    %v4086 = vunpack.c.h.b16 %v259
    %v4087 = vunpack.c.l.b16 %v260
    %v4088 = vunpack.c.h.b16 %v260
    %v4089 = vunpack.c.l.b16 %v261
    %v4090 = vunpack.c.h.b16 %v261
    %v4091 = vunpack.c.l.b16 %v262
    %v4092 = vunpack.c.h.b16 %v262
    %v4093 = vunpack.c.l.b16 %v263
    %v4094 = vunpack.c.h.b16 %v263
    %v4095 = vunpack.c.l.b16 %v264
    %v4096 = vunpack.c.h.b16 %v264
    %v4097 = vunpack.c.l.b16 %v265
    %v4098 = vunpack.c.h.b16 %v265
    %v4099 = vunpack.c.l.b16 %v266
    %v4100 = vunpack.c.h.b16 %v266
    %v4101 = vunpack.c.l.b16 %v267
    %v4102 = vunpack.c.h.b16 %v267
    %v4103 = vunpack.c.l.b16 %v268
    %v4104 = vunpack.c.h.b16 %v268
    %v4105 = vunpack.c.l.b16 %v269
    %v4106 = vunpack.c.h.b16 %v269
    %v4107 = vunpack.c.l.b16 %v270
    %v4108 = vunpack.c.h.b16 %v270
    %v4109 = vunpack.c.l.b16 %v271
    %v4110 = vunpack.c.h.b16 %v271
    %v4111 = vunpack.c.l.b16 %v272
    %v4112 = vunpack.c.h.b16 %v272
    %v4113 = vunpack.c.l.b16 %v273
    %v4114 = vunpack.c.h.b16 %v273
    %v4115 = vunpack.c.l.b16 %v274
    %v4116 = vunpack.c.h.b16 %v274
    %v4117 = vunpack.c.l.b16 %v275
    %v4118 = vunpack.c.h.b16 %v275
    %v4119 = vunpack.c.l.b16 %v276
    %v4120 = vunpack.c.h.b16 %v276
    %v4121 = vunpack.c.l.b16 %v277
    %v4122 = vunpack.c.h.b16 %v277
    %v4123 = vunpack.c.l.b16 %v278
    %v4124 = vunpack.c.h.b16 %v278
    %v4125 = vunpack.c.l.b16 %v279
    %v4126 = vunpack.c.h.b16 %v279
    %v4127 = vunpack.c.l.b16 %v280
    %v4128 = vunpack.c.h.b16 %v280
    %v4129 = vunpack.c.l.b16 %v281
    %v4130 = vunpack.c.h.b16 %v281
    %v4131 = vunpack.c.l.b16 %v282
    %v4132 = vunpack.c.h.b16 %v282
    %v4133 = vunpack.c.l.b16 %v283
    %v4134 = vunpack.c.h.b16 %v283
    %v4135 = vunpack.c.l.b16 %v284
    %v4136 = vunpack.c.h.b16 %v284
    %v4137 = vunpack.c.l.b16 %v285
    %v4138 = vunpack.c.h.b16 %v285
    %v4139 = vunpack.c.l.b16 %v286
    %v4140 = vunpack.c.h.b16 %v286
    %v4141 = vunpack.c.l.b16 %v287
    %v4142 = vunpack.c.h.b16 %v287
    %v4143 = vunpack.c.l.b16 %v288
    %v4144 = vunpack.c.h.b16 %v288
    %v4145 = vunpack.c.l.b16 %v289
    %v4146 = vunpack.c.h.b16 %v289
    %v4147 = vunpack.c.l.b16 %v290
    %v4148 = vunpack.c.h.b16 %v290
    %v4149 = vunpack.c.l.b16 %v291
    %v4150 = vunpack.c.h.b16 %v291
    %v4151 = vunpack.c.l.b16 %v292
    %v4152 = vunpack.c.h.b16 %v292
    %v4153 = vunpack.c.l.b16 %v293
    %v4154 = vunpack.c.h.b16 %v293
    %v4155 = vunpack.c.l.b16 %v294
    %v4156 = vunpack.c.h.b16 %v294
    %v4157 = vunpack.c.l.b16 %v295
    %v4158 = vunpack.c.h.b16 %v295
    %v4159 = vunpack.c.l.b16 %v296
    %v4160 = vunpack.c.h.b16 %v296
    %v4161 = vunpack.c.l.b16 %v297
    %v4162 = vunpack.c.h.b16 %v297
    %v4163 = vunpack.c.l.b16 %v298
    %v4164 = vunpack.c.h.b16 %v298
    %v4165 = vunpack.c.l.b16 %v299
    %v4166 = vunpack.c.h.b16 %v299
    %v4167 = vunpack.c.l.b16 %v300
    %v4168 = vunpack.c.h.b16 %v300
    %v4169 = vunpack.c.l.b16 %v301
    %v4170 = vunpack.c.h.b16 %v301
    %v4171 = vunpack.c.l.b16 %v302
    %v4172 = vunpack.c.h.b16 %v302
    %v4173 = vunpack.c.l.b16 %v303
    %v4174 = vunpack.c.h.b16 %v303
    %v4175 = vunpack.c.l.b16 %v304
    %v4176 = vunpack.c.h.b16 %v304
    %v4177 = vunpack.c.l.b16 %v305
    %v4178 = vunpack.c.h.b16 %v305
    %v4179 = vunpack.c.l.b16 %v306
    %v4180 = vunpack.c.h.b16 %v306
    %v4181 = vunpack.c.l.b16 %v307
    %v4182 = vunpack.c.h.b16 %v307
    %v4183 = vunpack.c.l.b16 %v308
    %v4184 = vunpack.c.h.b16 %v308
    %v4185 = vunpack.c.l.b16 %v309
    %v4186 = vunpack.c.h.b16 %v309
    %v4187 = vunpack.c.l.b16 %v310
    %v4188 = vunpack.c.h.b16 %v310
    %v4189 = vunpack.c.l.b16 %v311
    %v4190 = vunpack.c.h.b16 %v311
    %v4191 = vunpack.c.l.b16 %v312
    %v4192 = vunpack.c.h.b16 %v312
    %v4193 = vunpack.c.l.b16 %v313
    %v4194 = vunpack.c.h.b16 %v313
    %v4195 = vunpack.c.l.b16 %v314
    %v4196 = vunpack.c.h.b16 %v314
    %v4197 = vunpack.c.l.b16 %v315
    %v4198 = vunpack.c.h.b16 %v315
    %v4199 = vunpack.c.l.b16 %v316
    %v4200 = vunpack.c.h.b16 %v316
    %v4201 = vunpack.c.l.b16 %v317
    %v4202 = vunpack.c.h.b16 %v317
    %v4203 = vunpack.c.l.b16 %v318
    %v4204 = vunpack.c.h.b16 %v318
    %v4205 = vunpack.c.l.b16 %v319
    %v4206 = vunpack.c.h.b16 %v319
    %v4207 = vunpack.c.l.b16 %v320
    %v4208 = vunpack.c.h.b16 %v320
    %v4209 = vunpack.c.l.b16 %v321
    %v4210 = vunpack.c.h.b16 %v321
    %v4211 = vunpack.c.l.b16 %v322
    %v4212 = vunpack.c.h.b16 %v322
    %v4213 = vunpack.c.l.b16 %v323
    %v4214 = vunpack.c.h.b16 %v323
    %v4215 = vunpack.c.l.b16 %v324
    %v4216 = vunpack.c.h.b16 %v324
    %v4217 = vunpack.c.l.b16 %v325
    %v4218 = vunpack.c.h.b16 %v325
    %v4219 = vunpack.c.l.b16 %v326
    %v4220 = vunpack.c.h.b16 %v326
    %v4221 = vunpack.c.l.b16 %v327
    %v4222 = vunpack.c.h.b16 %v327
    %v4223 = vunpack.c.l.b16 %v328
    %v4224 = vunpack.c.h.b16 %v328
    %v4225 = vunpack.c.l.b16 %v329
    %v4226 = vunpack.c.h.b16 %v329
    %v4227 = vunpack.c.l.b16 %v330
    %v4228 = vunpack.c.h.b16 %v330
    %v4229 = vunpack.c.l.b16 %v331
    %v4230 = vunpack.c.h.b16 %v331
    %v4231 = vunpack.c.l.b16 %v332
    %v4232 = vunpack.c.h.b16 %v332
    %v4233 = vunpack.c.l.b16 %v333
    %v4234 = vunpack.c.h.b16 %v333
    %v4235 = vunpack.c.l.b16 %v334
    %v4236 = vunpack.c.h.b16 %v334
    %v4237 = vunpack.c.l.b16 %v335
    %v4238 = vunpack.c.h.b16 %v335
    %v4239 = vunpack.c.l.b16 %v336
    %v4240 = vunpack.c.h.b16 %v336
    %v4241 = vunpack.c.l.b16 %v337
    %v4242 = vunpack.c.h.b16 %v337
    %v4243 = vunpack.c.l.b16 %v338
    %v4244 = vunpack.c.h.b16 %v338
    %v4245 = vunpack.c.l.b16 %v339
    %v4246 = vunpack.c.h.b16 %v339
    %v4247 = vunpack.c.l.b16 %v340
    %v4248 = vunpack.c.h.b16 %v340
    %v4249 = vunpack.c.l.b16 %v341
    %v4250 = vunpack.c.h.b16 %v341
    %v4251 = vunpack.c.l.b16 %v342
    %v4252 = vunpack.c.h.b16 %v342
    %v4253 = vunpack.c.l.b16 %v343
    %v4254 = vunpack.c.h.b16 %v343
    %v4255 = vunpack.c.l.b16 %v344
    %v4256 = vunpack.c.h.b16 %v344
    %v4257 = vunpack.c.l.b16 %v345
    %v4258 = vunpack.c.h.b16 %v345
    %v4259 = vunpack.c.l.b16 %v346
    %v4260 = vunpack.c.h.b16 %v346
    %v4261 = vunpack.c.l.b16 %v347
    %v4262 = vunpack.c.h.b16 %v347
    %v4263 = vunpack.c.l.b16 %v348
    %v4264 = vunpack.c.h.b16 %v348
    %v4265 = vunpack.c.l.b16 %v349
    %v4266 = vunpack.c.h.b16 %v349
    %v4267 = vunpack.c.l.b16 %v350
    %v4268 = vunpack.c.h.b16 %v350
    %v4269 = vunpack.c.l.b16 %v351
    %v4270 = vunpack.c.h.b16 %v351
    %v4271 = vunpack.c.l.b16 %v352
    %v4272 = vunpack.c.h.b16 %v352
    %v4273 = vunpack.c.l.b16 %v353
    %v4274 = vunpack.c.h.b16 %v353
    %v4275 = vunpack.c.l.b16 %v354
    %v4276 = vunpack.c.h.b16 %v354
    %v4277 = vunpack.c.l.b16 %v355
    %v4278 = vunpack.c.h.b16 %v355
    %v4279 = vunpack.c.l.b16 %v356
    %v4280 = vunpack.c.h.b16 %v356
    %v4281 = vunpack.c.l.b16 %v357
    %v4282 = vunpack.c.h.b16 %v357
    %v4283 = vunpack.c.l.b16 %v358
    %v4284 = vunpack.c.h.b16 %v358
    %v4285 = vunpack.c.l.b16 %v359
    %v4286 = vunpack.c.h.b16 %v359
    %v4287 = vunpack.c.l.b16 %v360
    %v4288 = vunpack.c.h.b16 %v360
    %v4289 = vunpack.c.l.b16 %v361
    %v4290 = vunpack.c.h.b16 %v361
    %v4291 = vunpack.c.l.b16 %v362
    %v4292 = vunpack.c.h.b16 %v362
    %v4293 = vunpack.c.l.b16 %v363
    %v4294 = vunpack.c.h.b16 %v363
    %v4295 = vunpack.c.l.b16 %v364
    %v4296 = vunpack.c.h.b16 %v364
    %v4297 = vunpack.c.l.b16 %v365
    %v4298 = vunpack.c.h.b16 %v365
    %v4299 = vunpack.c.l.b16 %v366
    %v4300 = vunpack.c.h.b16 %v366
    %v4301 = vunpack.c.l.b16 %v367
    %v4302 = vunpack.c.h.b16 %v367
    %v4303 = vunpack.c.l.b16 %v368
    %v4304 = vunpack.c.h.b16 %v368
    %v4305 = vunpack.c.l.b16 %v369
    %v4306 = vunpack.c.h.b16 %v369
    %v4307 = vunpack.c.l.b16 %v370
    %v4308 = vunpack.c.h.b16 %v370
    %v4309 = vunpack.c.l.b16 %v371
    %v4310 = vunpack.c.h.b16 %v371
    %v4311 = vunpack.c.l.b16 %v372
    %v4312 = vunpack.c.h.b16 %v372
    %v4313 = vunpack.c.l.b16 %v373
    %v4314 = vunpack.c.h.b16 %v373
    %v4315 = vunpack.c.l.b16 %v374
    %v4316 = vunpack.c.h.b16 %v374
    %v4317 = vunpack.c.l.b16 %v375
    %v4318 = vunpack.c.h.b16 %v375
    %v4319 = vunpack.c.l.b16 %v376
    %v4320 = vunpack.c.h.b16 %v376
    %v4321 = vunpack.c.l.b16 %v377
    %v4322 = vunpack.c.h.b16 %v377
    %v4323 = vunpack.c.l.b16 %v378
    %v4324 = vunpack.c.h.b16 %v378
    %v4325 = vunpack.c.l.b16 %v379
    %v4326 = vunpack.c.h.b16 %v379
    %v4327 = vunpack.c.l.b16 %v380
    %v4328 = vunpack.c.h.b16 %v380
    %v4329 = vunpack.c.l.b16 %v381
    %v4330 = vunpack.c.h.b16 %v381
    %v4331 = vunpack.c.l.b16 %v382
    %v4332 = vunpack.c.h.b16 %v382
    %v4333 = vunpack.c.l.b16 %v383
    %v4334 = vunpack.c.h.b16 %v383
    %v4335 = vunpack.c.l.b16 %v384
    %v4336 = vunpack.c.h.b16 %v384
    %v4337 = vunpack.c.l.b16 %v385
    %v4338 = vunpack.c.h.b16 %v385
    %v4339 = vunpack.c.l.b16 %v386
    %v4340 = vunpack.c.h.b16 %v386
    %v4341 = vunpack.c.l.b16 %v387
    %v4342 = vunpack.c.h.b16 %v387
    %v4343 = vunpack.c.l.b16 %v388
    %v4344 = vunpack.c.h.b16 %v388
    %v4345 = vunpack.c.l.b16 %v389
    %v4346 = vunpack.c.h.b16 %v389
    %v4347 = vunpack.c.l.b16 %v390
    %v4348 = vunpack.c.h.b16 %v390
    %v4349 = vunpack.c.l.b16 %v391
    %v4350 = vunpack.c.h.b16 %v391
    %v4351 = vunpack.c.l.b16 %v392
    %v4352 = vunpack.c.h.b16 %v392
    %v4353 = vunpack.c.l.b16 %v393
    %v4354 = vunpack.c.h.b16 %v393
    %v4355 = vunpack.c.l.b16 %v394
    %v4356 = vunpack.c.h.b16 %v394
    %v4357 = vunpack.c.l.b16 %v395
    %v4358 = vunpack.c.h.b16 %v395
    %v4359 = vunpack.c.l.b16 %v396
    %v4360 = vunpack.c.h.b16 %v396
    %v4361 = vunpack.c.l.b16 %v397
    %v4362 = vunpack.c.h.b16 %v397
    %v4363 = vunpack.c.l.b16 %v398
    %v4364 = vunpack.c.h.b16 %v398
    %v4365 = vunpack.c.l.b16 %v399
    %v4366 = vunpack.c.h.b16 %v399
    %v4367 = vunpack.c.l.b16 %v400
    %v4368 = vunpack.c.h.b16 %v400
    %v4369 = vunpack.c.l.b16 %v401
    %v4370 = vunpack.c.h.b16 %v401
    %v4371 = vunpack.c.l.b16 %v402
    %v4372 = vunpack.c.h.b16 %v402
    %v4373 = vunpack.c.l.b16 %v403
    %v4374 = vunpack.c.h.b16 %v403
    %v4375 = vunpack.c.l.b16 %v404
    %v4376 = vunpack.c.h.b16 %v404
    %v4377 = vunpack.c.l.b16 %v405
    %v4378 = vunpack.c.h.b16 %v405
    %v4379 = vunpack.c.l.b16 %v406
    %v4380 = vunpack.c.h.b16 %v406
    %v4381 = vunpack.c.l.b16 %v407
    %v4382 = vunpack.c.h.b16 %v407
    %v4383 = vunpack.c.l.b16 %v408
    %v4384 = vunpack.c.h.b16 %v408
    %v4385 = vunpack.c.l.b16 %v409
    %v4386 = vunpack.c.h.b16 %v409
    %v4387 = vunpack.c.l.b16 %v410
    %v4388 = vunpack.c.h.b16 %v410
    %v4389 = vunpack.c.l.b16 %v411
    %v4390 = vunpack.c.h.b16 %v411
    %v4391 = vunpack.c.l.b16 %v412
    %v4392 = vunpack.c.h.b16 %v412
    %v4393 = vunpack.c.l.b16 %v413
    %v4394 = vunpack.c.h.b16 %v413
    %v4395 = vunpack.c.l.b16 %v414
    %v4396 = vunpack.c.h.b16 %v414
    %v4397 = vunpack.c.l.b16 %v415
    %v4398 = vunpack.c.h.b16 %v415
    %v4399 = vunpack.c.l.b16 %v416
    %v4400 = vunpack.c.h.b16 %v416
    %v4401 = vunpack.c.l.b16 %v417
    %v4402 = vunpack.c.h.b16 %v417
    %v4403 = vunpack.c.l.b16 %v418
    %v4404 = vunpack.c.h.b16 %v418
    %v4405 = vunpack.c.l.b16 %v419
    %v4406 = vunpack.c.h.b16 %v419
    %v4407 = vunpack.c.l.b16 %v420
    %v4408 = vunpack.c.h.b16 %v420
    %v4409 = vunpack.c.l.b16 %v421
    %v4410 = vunpack.c.h.b16 %v421
    %v4411 = vunpack.c.l.b16 %v422
    %v4412 = vunpack.c.h.b16 %v422
    %v4413 = vunpack.c.l.b16 %v423
    %v4414 = vunpack.c.h.b16 %v423
    %v4415 = vunpack.c.l.b16 %v424
    %v4416 = vunpack.c.h.b16 %v424
    %v4417 = vunpack.c.l.b16 %v425
    %v4418 = vunpack.c.h.b16 %v425
    %v4419 = vunpack.c.l.b16 %v426
    %v4420 = vunpack.c.h.b16 %v426
    %v4421 = vunpack.c.l.b16 %v427
    %v4422 = vunpack.c.h.b16 %v427
    %v4423 = vunpack.c.l.b16 %v428
    %v4424 = vunpack.c.h.b16 %v428
    %v4425 = vunpack.c.l.b16 %v429
    %v4426 = vunpack.c.h.b16 %v429
    %v4427 = vunpack.c.l.b16 %v430
    %v4428 = vunpack.c.h.b16 %v430
    %v4429 = vunpack.c.l.b16 %v431
    %v4430 = vunpack.c.h.b16 %v431
    %v4431 = vunpack.c.l.b16 %v432
    %v4432 = vunpack.c.h.b16 %v432
    %v4433 = vunpack.c.l.b16 %v433
    %v4434 = vunpack.c.h.b16 %v433
    %v4435 = vunpack.c.l.b16 %v434
    %v4436 = vunpack.c.h.b16 %v434
    %v4437 = vunpack.c.l.b16 %v435
    %v4438 = vunpack.c.h.b16 %v435
    %v4439 = vunpack.c.l.b16 %v436
    %v4440 = vunpack.c.h.b16 %v436
    %v4441 = vunpack.c.l.b16 %v437
    %v4442 = vunpack.c.h.b16 %v437
    %v4443 = vunpack.c.l.b16 %v438
    %v4444 = vunpack.c.h.b16 %v438
    %v4445 = vunpack.c.l.b16 %v439
    %v4446 = vunpack.c.h.b16 %v439
    %v4447 = vunpack.c.l.b16 %v440
    %v4448 = vunpack.c.h.b16 %v440
    %v4449 = vunpack.c.l.b16 %v441
    %v4450 = vunpack.c.h.b16 %v441
    %v4451 = vunpack.c.l.b16 %v442
    %v4452 = vunpack.c.h.b16 %v442
    %v4453 = vunpack.c.l.b16 %v443
    %v4454 = vunpack.c.h.b16 %v443
    %v4455 = vunpack.c.l.b16 %v444
    %v4456 = vunpack.c.h.b16 %v444
    %v4457 = vunpack.c.l.b16 %v445
    %v4458 = vunpack.c.h.b16 %v445
    %v4459 = vunpack.c.l.b16 %v446
    %v4460 = vunpack.c.h.b16 %v446
    %v4461 = vunpack.c.l.b16 %v447
    %v4462 = vunpack.c.h.b16 %v447
    %v4463 = vunpack.c.l.b16 %v448
    %v4464 = vunpack.c.h.b16 %v448
    %v4465 = vunpack.c.l.b16 %v449
    %v4466 = vunpack.c.h.b16 %v449
    %v4467 = vunpack.c.l.b16 %v450
    %v4468 = vunpack.c.h.b16 %v450
    %v4469 = vunpack.c.l.b16 %v451
    %v4470 = vunpack.c.h.b16 %v451
    %v4471 = vunpack.c.l.b16 %v452
    %v4472 = vunpack.c.h.b16 %v452
    %v4473 = vunpack.c.l.b16 %v453
    %v4474 = vunpack.c.h.b16 %v453
    %v4475 = vunpack.c.l.b16 %v454
    %v4476 = vunpack.c.h.b16 %v454
    %v4477 = vunpack.c.l.b16 %v455
    %v4478 = vunpack.c.h.b16 %v455
    %v4479 = vunpack.c.l.b16 %v456
    %v4480 = vunpack.c.h.b16 %v456
    %v4481 = vunpack.c.l.b16 %v457
    %v4482 = vunpack.c.h.b16 %v457
    %v4483 = vunpack.c.l.b16 %v458
    %v4484 = vunpack.c.h.b16 %v458
    %v4485 = vunpack.c.l.b16 %v459
    %v4486 = vunpack.c.h.b16 %v459
    %v4487 = vunpack.c.l.b16 %v460
    %v4488 = vunpack.c.h.b16 %v460
    %v4489 = vunpack.c.l.b16 %v461
    %v4490 = vunpack.c.h.b16 %v461
    %v4491 = vunpack.c.l.b16 %v462
    %v4492 = vunpack.c.h.b16 %v462
    %v4493 = vunpack.c.l.b16 %v463
    %v4494 = vunpack.c.h.b16 %v463
    %v4495 = vunpack.c.l.b16 %v464
    %v4496 = vunpack.c.h.b16 %v464
    %v4497 = vunpack.c.l.b16 %v465
    %v4498 = vunpack.c.h.b16 %v465
    %v4499 = vunpack.c.l.b16 %v466
    %v4500 = vunpack.c.h.b16 %v466
    %v4501 = vunpack.c.l.b16 %v467
    %v4502 = vunpack.c.h.b16 %v467
    %v4503 = vunpack.c.l.b16 %v468
    %v4504 = vunpack.c.h.b16 %v468
    %v4505 = vunpack.c.l.b16 %v469
    %v4506 = vunpack.c.h.b16 %v469
    %v4507 = vunpack.c.l.b16 %v470
    %v4508 = vunpack.c.h.b16 %v470
    %v4509 = vunpack.c.l.b16 %v471
    %v4510 = vunpack.c.h.b16 %v471
    %v4511 = vunpack.c.l.b16 %v472
    %v4512 = vunpack.c.h.b16 %v472
    %v4513 = vunpack.c.l.b16 %v473
    %v4514 = vunpack.c.h.b16 %v473
    %v4515 = vunpack.c.l.b16 %v474
    %v4516 = vunpack.c.h.b16 %v474
    %v4517 = vunpack.c.l.b16 %v475
    %v4518 = vunpack.c.h.b16 %v475
    %v4519 = vunpack.c.l.b16 %v476
    %v4520 = vunpack.c.h.b16 %v476
    %v4521 = vunpack.c.l.b16 %v477
    %v4522 = vunpack.c.h.b16 %v477
    %v4523 = vunpack.c.l.b16 %v478
    %v4524 = vunpack.c.h.b16 %v478
    %v4525 = vunpack.c.l.b16 %v479
    %v4526 = vunpack.c.h.b16 %v479
    %v4527 = vunpack.c.l.b16 %v480
    %v4528 = vunpack.c.h.b16 %v480
    %v4529 = vunpack.c.l.b16 %v481
    %v4530 = vunpack.c.h.b16 %v481
    %v4531 = vunpack.c.l.b16 %v482
    %v4532 = vunpack.c.h.b16 %v482
    %v4533 = vunpack.c.l.b16 %v483
    %v4534 = vunpack.c.h.b16 %v483
    %v4535 = vunpack.c.l.b16 %v484
    %v4536 = vunpack.c.h.b16 %v484
    %v4537 = vunpack.c.l.b16 %v485
    %v4538 = vunpack.c.h.b16 %v485
    %v4539 = vunpack.c.l.b16 %v486
    %v4540 = vunpack.c.h.b16 %v486
    %v4541 = vunpack.c.l.b16 %v487
    %v4542 = vunpack.c.h.b16 %v487
    %v4543 = vunpack.c.l.b16 %v488
    %v4544 = vunpack.c.h.b16 %v488
    %v4545 = vunpack.c.l.b16 %v489
    %v4546 = vunpack.c.h.b16 %v489
    %v4547 = vunpack.c.l.b16 %v490
    %v4548 = vunpack.c.h.b16 %v490
    %v4549 = vunpack.c.l.b16 %v491
    %v4550 = vunpack.c.h.b16 %v491
    %v4551 = vunpack.c.l.b16 %v492
    %v4552 = vunpack.c.h.b16 %v492
    %v4553 = vunpack.c.l.b16 %v493
    %v4554 = vunpack.c.h.b16 %v493
    %v4555 = vunpack.c.l.b16 %v494
    %v4556 = vunpack.c.h.b16 %v494
    %v4557 = vunpack.c.l.b16 %v495
    %v4558 = vunpack.c.h.b16 %v495
    %v4559 = vunpack.c.l.b16 %v496
    %v4560 = vunpack.c.h.b16 %v496
    %v4561 = vunpack.c.l.b16 %v497
    %v4562 = vunpack.c.h.b16 %v497
    %v4563 = vunpack.c.l.b16 %v498
    %v4564 = vunpack.c.h.b16 %v498
    %v4565 = vunpack.c.l.b16 %v499
    %v4566 = vunpack.c.h.b16 %v499
    %v4567 = vunpack.c.l.b16 %v500
    %v4568 = vunpack.c.h.b16 %v500
    %v4569 = vunpack.c.l.b16 %v501
    %v4570 = vunpack.c.h.b16 %v501
    %v4571 = vunpack.c.l.b16 %v502
    %v4572 = vunpack.c.h.b16 %v502
    %v4573 = vunpack.c.l.b16 %v503
    %v4574 = vunpack.c.h.b16 %v503
    %v4575 = vunpack.c.l.b16 %v504
    %v4576 = vunpack.c.h.b16 %v504
    %v4577 = vunpack.c.l.b16 %v505
    %v4578 = vunpack.c.h.b16 %v505
    %v4579 = vunpack.c.l.b16 %v506
    %v4580 = vunpack.c.h.b16 %v506
    %v4581 = vunpack.c.l.b16 %v507
    %v4582 = vunpack.c.h.b16 %v507
    %v4583 = vunpack.c.l.b16 %v508
    %v4584 = vunpack.c.h.b16 %v508
    %v4585 = vunpack.c.l.b16 %v509
    %v4586 = vunpack.c.h.b16 %v509
    %v4587 = vunpack.c.l.b16 %v510
    %v4588 = vunpack.c.h.b16 %v510
    %v4589 = vunpack.c.l.b16 %v511
    %v4590 = vunpack.c.h.b16 %v511
    %v4591 = vunpack.c.l.b16 %v512
    %v4592 = vunpack.c.h.b16 %v512
    %v4593 = vunpack.c.l.b16 %v513
    %v4594 = vunpack.c.h.b16 %v513
    %v4595 = vunpack.c.l.b16 %v514
    %v4596 = vunpack.c.h.b16 %v514
    %v4597 = vunpack.c.l.b16 %v515
    %v4598 = vunpack.c.h.b16 %v515
    %v4599 = vunpack.c.l.b16 %v516
    %v4600 = vunpack.c.h.b16 %v516
    %v4601 = vunpack.c.l.b16 %v517
    %v4602 = vunpack.c.h.b16 %v517
    %v4603 = vunpack.c.l.b16 %v518
    %v4604 = vunpack.c.h.b16 %v518
    %v4605 = vunpack.c.l.b16 %v519
    %v4606 = vunpack.c.h.b16 %v519
    %v4607 = vunpack.c.l.b16 %v520
    %v4608 = vunpack.c.h.b16 %v520
    %v4609 = vunpack.c.l.b16 %v521
    %v4610 = vunpack.c.h.b16 %v521
    %v4611 = vunpack.c.l.b16 %v522
    %v4612 = vunpack.c.h.b16 %v522
    %v4613 = vunpack.c.l.b16 %v523
    %v4614 = vunpack.c.h.b16 %v523
    %v4615 = vunpack.c.l.b16 %v524
    %v4616 = vunpack.c.h.b16 %v524
    %v4617 = vunpack.c.l.b16 %v525
    %v4618 = vunpack.c.h.b16 %v525
    %v4619 = vunpack.c.l.b16 %v526
    %v4620 = vunpack.c.h.b16 %v526
    %v4621 = vunpack.c.l.b16 %v527
    %v4622 = vunpack.c.h.b16 %v527
    %v4623 = vunpack.c.l.b16 %v528
    %v4624 = vunpack.c.h.b16 %v528
    %v4625 = vunpack.c.l.b16 %v529
    %v4626 = vunpack.c.h.b16 %v529
    %v4627 = vunpack.c.l.b16 %v530
    %v4628 = vunpack.c.h.b16 %v530
    %v4629 = vunpack.c.l.b16 %v531
    %v4630 = vunpack.c.h.b16 %v531
    %v4631 = vunpack.c.l.b16 %v532
    %v4632 = vunpack.c.h.b16 %v532
    %v4633 = vunpack.c.l.b16 %v533
    %v4634 = vunpack.c.h.b16 %v533
    %v4635 = vunpack.c.l.b16 %v534
    %v4636 = vunpack.c.h.b16 %v534
    %v4637 = vunpack.c.l.b16 %v535
    %v4638 = vunpack.c.h.b16 %v535
    %v4639 = vunpack.c.l.b16 %v536
    %v4640 = vunpack.c.h.b16 %v536
    %v4641 = vunpack.c.l.b16 %v537
    %v4642 = vunpack.c.h.b16 %v537
    %v4643 = vunpack.c.l.b16 %v538
    %v4644 = vunpack.c.h.b16 %v538
    %v4645 = vunpack.c.l.b16 %v539
    %v4646 = vunpack.c.h.b16 %v539
    %v4647 = vunpack.c.l.b16 %v540
    %v4648 = vunpack.c.h.b16 %v540
    %v4649 = vunpack.c.l.b16 %v541
    %v4650 = vunpack.c.h.b16 %v541
    %v4651 = vunpack.c.l.b16 %v542
    %v4652 = vunpack.c.h.b16 %v542
    %v4653 = vunpack.c.l.b16 %v543
    %v4654 = vunpack.c.h.b16 %v543
    %v4655 = vunpack.c.l.b16 %v544
    %v4656 = vunpack.c.h.b16 %v544
    %v4657 = vunpack.c.l.b16 %v545
    %v4658 = vunpack.c.h.b16 %v545
    %v4659 = vunpack.c.l.b16 %v546
    %v4660 = vunpack.c.h.b16 %v546
    %v4661 = vunpack.c.l.b16 %v547
    %v4662 = vunpack.c.h.b16 %v547
    %v4663 = vunpack.c.l.b16 %v548
    %v4664 = vunpack.c.h.b16 %v548
    %v4665 = vunpack.c.l.b16 %v549
    %v4666 = vunpack.c.h.b16 %v549
    %v4667 = vunpack.c.l.b16 %v550
    %v4668 = vunpack.c.h.b16 %v550
    %v4669 = vunpack.c.l.b16 %v551
    %v4670 = vunpack.c.h.b16 %v551
    %v4671 = vunpack.c.l.b16 %v552
    %v4672 = vunpack.c.h.b16 %v552
    %v4673 = vunpack.c.l.b16 %v553
    %v4674 = vunpack.c.h.b16 %v553
    %v4675 = vunpack.c.l.b16 %v554
    %v4676 = vunpack.c.h.b16 %v554
    %v4677 = vunpack.c.l.b16 %v555
    %v4678 = vunpack.c.h.b16 %v555
    %v4679 = vunpack.c.l.b16 %v556
    %v4680 = vunpack.c.h.b16 %v556
    %v4681 = vunpack.c.l.b16 %v557
    %v4682 = vunpack.c.h.b16 %v557
    %v4683 = vunpack.c.l.b16 %v558
    %v4684 = vunpack.c.h.b16 %v558
    %v4685 = vunpack.c.l.b16 %v559
    %v4686 = vunpack.c.h.b16 %v559
    %v4687 = vunpack.c.l.b16 %v560
    %v4688 = vunpack.c.h.b16 %v560
    %v4689 = vunpack.c.l.b16 %v561
    %v4690 = vunpack.c.h.b16 %v561
    %v4691 = vunpack.c.l.b16 %v562
    %v4692 = vunpack.c.h.b16 %v562
    %v4693 = vunpack.c.l.b16 %v563
    %v4694 = vunpack.c.h.b16 %v563
    %v4695 = vunpack.c.l.b16 %v564
    %v4696 = vunpack.c.h.b16 %v564
    %v4697 = vunpack.c.l.b16 %v565
    %v4698 = vunpack.c.h.b16 %v565
    %v4699 = vunpack.c.l.b16 %v566
    %v4700 = vunpack.c.h.b16 %v566
    %v4701 = vunpack.c.l.b16 %v567
    %v4702 = vunpack.c.h.b16 %v567
    %v4703 = vunpack.c.l.b16 %v568
    %v4704 = vunpack.c.h.b16 %v568
    %v4705 = vunpack.c.l.b16 %v569
    %v4706 = vunpack.c.h.b16 %v569
    %v4707 = vunpack.c.l.b16 %v570
    %v4708 = vunpack.c.h.b16 %v570
    %v4709 = vunpack.c.l.b16 %v571
    %v4710 = vunpack.c.h.b16 %v571
    %v4711 = vunpack.c.l.b16 %v572
    %v4712 = vunpack.c.h.b16 %v572
    %v4713 = vunpack.c.l.b16 %v573
    %v4714 = vunpack.c.h.b16 %v573
    %v4715 = vunpack.c.l.b16 %v574
    %v4716 = vunpack.c.h.b16 %v574
    %v4717 = vunpack.c.l.b16 %v575
    %v4718 = vunpack.c.h.b16 %v575
    %v4719 = vunpack.c.l.b16 %v576
    %v4720 = vunpack.c.h.b16 %v576
    %v4721 = vunpack.c.l.b16 %v577
    %v4722 = vunpack.c.h.b16 %v577
    %v4723 = vunpack.c.l.b16 %v578
    %v4724 = vunpack.c.h.b16 %v578
    %v4725 = vunpack.c.l.b16 %v579
    %v4726 = vunpack.c.h.b16 %v579
    %v4727 = vunpack.c.l.b16 %v580
    %v4728 = vunpack.c.h.b16 %v580
    %v4729 = vunpack.c.l.b16 %v581
    %v4730 = vunpack.c.h.b16 %v581
    %v4731 = vunpack.c.l.b16 %v582
    %v4732 = vunpack.c.h.b16 %v582
    %v4733 = vunpack.c.l.b16 %v583
    %v4734 = vunpack.c.h.b16 %v583
    %v4735 = vunpack.c.l.b16 %v584
    %v4736 = vunpack.c.h.b16 %v584
    %v4737 = vunpack.c.l.b16 %v585
    %v4738 = vunpack.c.h.b16 %v585
    %v4739 = vunpack.c.l.b16 %v586
    %v4740 = vunpack.c.h.b16 %v586
    %v4741 = vunpack.c.l.b16 %v587
    %v4742 = vunpack.c.h.b16 %v587
    %v4743 = vunpack.c.l.b16 %v588
    %v4744 = vunpack.c.h.b16 %v588
    %v4745 = vunpack.c.l.b16 %v589
    %v4746 = vunpack.c.h.b16 %v589
    %v4747 = vunpack.c.l.b16 %v590
    %v4748 = vunpack.c.h.b16 %v590
    %v4749 = vunpack.c.l.b16 %v591
    %v4750 = vunpack.c.h.b16 %v591
    %v4751 = vunpack.c.l.b16 %v592
    %v4752 = vunpack.c.h.b16 %v592
    %v4753 = vunpack.c.l.b16 %v593
    %v4754 = vunpack.c.h.b16 %v593
    %v4755 = vunpack.c.l.b16 %v594
    %v4756 = vunpack.c.h.b16 %v594
    %v4757 = vunpack.c.l.b16 %v595
    %v4758 = vunpack.c.h.b16 %v595
    %v4759 = vunpack.c.l.b16 %v596
    %v4760 = vunpack.c.h.b16 %v596
    %v4761 = vunpack.c.l.b16 %v597
    %v4762 = vunpack.c.h.b16 %v597
    %v4763 = vunpack.c.l.b16 %v598
    %v4764 = vunpack.c.h.b16 %v598
    %v4765 = vunpack.c.l.b16 %v599
    %v4766 = vunpack.c.h.b16 %v599
    %v4767 = vunpack.c.l.b16 %v600
    %v4768 = vunpack.c.h.b16 %v600
    %v4769 = vunpack.c.l.b16 %v601
    %v4770 = vunpack.c.h.b16 %v601
    %v4771 = vunpack.c.l.b16 %v602
    %v4772 = vunpack.c.h.b16 %v602
    %v4773 = vunpack.c.l.b16 %v603
    %v4774 = vunpack.c.h.b16 %v603
    %v4775 = vunpack.c.l.b16 %v604
    %v4776 = vunpack.c.h.b16 %v604
    %v4777 = vunpack.c.l.b16 %v605
    %v4778 = vunpack.c.h.b16 %v605
    %v4779 = vunpack.c.l.b16 %v606
    %v4780 = vunpack.c.h.b16 %v606
    %v4781 = vunpack.c.l.b16 %v607
    %v4782 = vunpack.c.h.b16 %v607
    %v4783 = vunpack.c.l.b16 %v608
    %v4784 = vunpack.c.h.b16 %v608
    %v4785 = vunpack.c.l.b16 %v609
    %v4786 = vunpack.c.h.b16 %v609
    %v4787 = vunpack.c.l.b16 %v610
    %v4788 = vunpack.c.h.b16 %v610
    %v4789 = vunpack.c.l.b16 %v611
    %v4790 = vunpack.c.h.b16 %v611
    %v4791 = vunpack.c.l.b16 %v612
    %v4792 = vunpack.c.h.b16 %v612
    %v4793 = vunpack.c.l.b16 %v613
    %v4794 = vunpack.c.h.b16 %v613
    %v4795 = vunpack.c.l.b16 %v614
    %v4796 = vunpack.c.h.b16 %v614
    %v4797 = vunpack.c.l.b16 %v615
    %v4798 = vunpack.c.h.b16 %v615
    %v4799 = vunpack.c.l.b16 %v616
    %v4800 = vunpack.c.h.b16 %v616
    %v4801 = vunpack.c.l.b16 %v617
    %v4802 = vunpack.c.h.b16 %v617
    %v4803 = vunpack.c.l.b16 %v618
    %v4804 = vunpack.c.h.b16 %v618
    %v4805 = vunpack.c.l.b16 %v619
    %v4806 = vunpack.c.h.b16 %v619
    %v4807 = vunpack.c.l.b16 %v620
    %v4808 = vunpack.c.h.b16 %v620
    %v4809 = vunpack.c.l.b16 %v621
    %v4810 = vunpack.c.h.b16 %v621
    %v4811 = vunpack.c.l.b16 %v622
    %v4812 = vunpack.c.h.b16 %v622
    %v4813 = vunpack.c.l.b16 %v623
    %v4814 = vunpack.c.h.b16 %v623
    %v4815 = vunpack.c.l.b16 %v624
    %v4816 = vunpack.c.h.b16 %v624
    %v4817 = vunpack.c.l.b16 %v625
    %v4818 = vunpack.c.h.b16 %v625
    %v4819 = vunpack.c.l.b16 %v626
    %v4820 = vunpack.c.h.b16 %v626
    %v4821 = vunpack.c.l.b16 %v627
    %v4822 = vunpack.c.h.b16 %v627
    %v4823 = vunpack.c.l.b16 %v628
    %v4824 = vunpack.c.h.b16 %v628
    %v4825 = vunpack.c.l.b16 %v629
    %v4826 = vunpack.c.h.b16 %v629
    %v4827 = vunpack.c.l.b16 %v630
    %v4828 = vunpack.c.h.b16 %v630
    %v4829 = vunpack.c.l.b16 %v631
    %v4830 = vunpack.c.h.b16 %v631
    %v4831 = vunpack.c.l.b16 %v632
    %v4832 = vunpack.c.h.b16 %v632
    %v4833 = vunpack.c.l.b16 %v633
    %v4834 = vunpack.c.h.b16 %v633
    %v4835 = vunpack.c.l.b16 %v634
    %v4836 = vunpack.c.h.b16 %v634
    %v4837 = vunpack.c.l.b16 %v635
    %v4838 = vunpack.c.h.b16 %v635
    %v4839 = vunpack.c.l.b16 %v636
    %v4840 = vunpack.c.h.b16 %v636
    %v4841 = vunpack.c.l.b16 %v637
    %v4842 = vunpack.c.h.b16 %v637
    %v4843 = vunpack.c.l.b16 %v638
    %v4844 = vunpack.c.h.b16 %v638
    %v4845 = vunpack.c.l.b16 %v639
    %v4846 = vunpack.c.h.b16 %v639
    %v4847 = vunpack.c.l.b16 %v640
    %v4848 = vunpack.c.h.b16 %v640
    %v4849 = vunpack.c.l.b16 %v641
    %v4850 = vunpack.c.h.b16 %v641
    %v4851 = vunpack.c.l.b16 %v642
    %v4852 = vunpack.c.h.b16 %v642
    %v4853 = vunpack.c.l.b16 %v643
    %v4854 = vunpack.c.h.b16 %v643
    %v4855 = vunpack.c.l.b16 %v644
    %v4856 = vunpack.c.h.b16 %v644
    %v4857 = vunpack.c.l.b16 %v645
    %v4858 = vunpack.c.h.b16 %v645
    %v4859 = vunpack.c.l.b16 %v646
    %v4860 = vunpack.c.h.b16 %v646
    %v4861 = vunpack.c.l.b16 %v647
    %v4862 = vunpack.c.h.b16 %v647
    %v4863 = vunpack.c.l.b16 %v648
    %v4864 = vunpack.c.h.b16 %v648
    %v4865 = vunpack.c.l.b16 %v649
    %v4866 = vunpack.c.h.b16 %v649
    %v4867 = vunpack.c.l.b16 %v650
    %v4868 = vunpack.c.h.b16 %v650
    %v4869 = vunpack.c.l.b16 %v651
    %v4870 = vunpack.c.h.b16 %v651
    %v4871 = vunpack.c.l.b16 %v652
    %v4872 = vunpack.c.h.b16 %v652
    %v4873 = vunpack.c.l.b16 %v653
    %v4874 = vunpack.c.h.b16 %v653
    %v4875 = vunpack.c.l.b16 %v654
    %v4876 = vunpack.c.h.b16 %v654
    %v4877 = vunpack.c.l.b16 %v655
    %v4878 = vunpack.c.h.b16 %v655
    %v4879 = vunpack.c.l.b16 %v656
    %v4880 = vunpack.c.h.b16 %v656
    %v4881 = vunpack.c.l.b16 %v657
    %v4882 = vunpack.c.h.b16 %v657
    %v4883 = vunpack.c.l.b16 %v658
    %v4884 = vunpack.c.h.b16 %v658
    %v4885 = vunpack.c.l.b16 %v659
    %v4886 = vunpack.c.h.b16 %v659
    %v4887 = vunpack.c.l.b16 %v660
    %v4888 = vunpack.c.h.b16 %v660
    %v4889 = vunpack.c.l.b16 %v661
    %v4890 = vunpack.c.h.b16 %v661
    %v4891 = vunpack.c.l.b16 %v662
    %v4892 = vunpack.c.h.b16 %v662
    %v4893 = vunpack.c.l.b16 %v663
    %v4894 = vunpack.c.h.b16 %v663
    %v4895 = vunpack.c.l.b16 %v664
    %v4896 = vunpack.c.h.b16 %v664
    %v4897 = vunpack.c.l.b16 %v665
    %v4898 = vunpack.c.h.b16 %v665
    %v4899 = vunpack.c.l.b16 %v666
    %v4900 = vunpack.c.h.b16 %v666
    %v4901 = vunpack.c.l.b16 %v667
    %v4902 = vunpack.c.h.b16 %v667
    %v4903 = vunpack.c.l.b16 %v668
    %v4904 = vunpack.c.h.b16 %v668
    %v4905 = vunpack.c.l.b16 %v669
    %v4906 = vunpack.c.h.b16 %v669
    %v4907 = vunpack.c.l.b16 %v670
    %v4908 = vunpack.c.h.b16 %v670
    %v4909 = vunpack.c.l.b16 %v671
    %v4910 = vunpack.c.h.b16 %v671
    %v4911 = vunpack.c.l.b16 %v672
    %v4912 = vunpack.c.h.b16 %v672
    %v4913 = vunpack.c.l.b16 %v673
    %v4914 = vunpack.c.h.b16 %v673
    %v4915 = vunpack.c.l.b16 %v674
    %v4916 = vunpack.c.h.b16 %v674
    %v4917 = vunpack.c.l.b16 %v675
    %v4918 = vunpack.c.h.b16 %v675
    %v4919 = vunpack.c.l.b16 %v676
    %v4920 = vunpack.c.h.b16 %v676
    %v4921 = vunpack.c.l.b16 %v677
    %v4922 = vunpack.c.h.b16 %v677
    %v4923 = vunpack.c.l.b16 %v678
    %v4924 = vunpack.c.h.b16 %v678
    %v4925 = vunpack.c.l.b16 %v679
    %v4926 = vunpack.c.h.b16 %v679
    %v4927 = vunpack.c.l.b16 %v680
    %v4928 = vunpack.c.h.b16 %v680
    %v4929 = vunpack.c.l.b16 %v681
    %v4930 = vunpack.c.h.b16 %v681
    %v4931 = vunpack.c.l.b16 %v682
    %v4932 = vunpack.c.h.b16 %v682
    %v4933 = vunpack.c.l.b16 %v683
    %v4934 = vunpack.c.h.b16 %v683
    %v4935 = vunpack.c.l.b16 %v684
    %v4936 = vunpack.c.h.b16 %v684
    %v4937 = vunpack.c.l.b16 %v685
    %v4938 = vunpack.c.h.b16 %v685
    %v4939 = vunpack.c.l.b16 %v686
    %v4940 = vunpack.c.h.b16 %v686
    %v4941 = vunpack.c.l.b16 %v687
    %v4942 = vunpack.c.h.b16 %v687
    %v4943 = vunpack.c.l.b16 %v688
    %v4944 = vunpack.c.h.b16 %v688
    %v4945 = vunpack.c.l.b16 %v689
    %v4946 = vunpack.c.h.b16 %v689
    %v4947 = vunpack.c.l.b16 %v690
    %v4948 = vunpack.c.h.b16 %v690
    %v4949 = vunpack.c.l.b16 %v691
    %v4950 = vunpack.c.h.b16 %v691
    %v4951 = vunpack.c.l.b16 %v692
    %v4952 = vunpack.c.h.b16 %v692
    %v4953 = vunpack.c.l.b16 %v693
    %v4954 = vunpack.c.h.b16 %v693
    %v4955 = vunpack.c.l.b16 %v694
    %v4956 = vunpack.c.h.b16 %v694
    %v4957 = vunpack.c.l.b16 %v695
    %v4958 = vunpack.c.h.b16 %v695
    %v4959 = vunpack.c.l.b16 %v696
    %v4960 = vunpack.c.h.b16 %v696
    %v4961 = vunpack.c.l.b16 %v697
    %v4962 = vunpack.c.h.b16 %v697
    %v4963 = vunpack.c.l.b16 %v698
    %v4964 = vunpack.c.h.b16 %v698
    %v4965 = vunpack.c.l.b16 %v699
    %v4966 = vunpack.c.h.b16 %v699
    %v4967 = vunpack.c.l.b16 %v700
    %v4968 = vunpack.c.h.b16 %v700
    %v4969 = vunpack.c.l.b16 %v701
    %v4970 = vunpack.c.h.b16 %v701
    %v4971 = vunpack.c.l.b16 %v702
    %v4972 = vunpack.c.h.b16 %v702
    %v4973 = vunpack.c.l.b16 %v703
    %v4974 = vunpack.c.h.b16 %v703
    %v4975 = vunpack.c.l.b16 %v704
    %v4976 = vunpack.c.h.b16 %v704
    %v4977 = vunpack.c.l.b16 %v705
    %v4978 = vunpack.c.h.b16 %v705
    %v4979 = vunpack.c.l.b16 %v706
    %v4980 = vunpack.c.h.b16 %v706
    %v4981 = vunpack.c.l.b16 %v707
    %v4982 = vunpack.c.h.b16 %v707
    %v4983 = vunpack.c.l.b16 %v708
    %v4984 = vunpack.c.h.b16 %v708
    %v4985 = vunpack.c.l.b16 %v709
    %v4986 = vunpack.c.h.b16 %v709
    %v4987 = vunpack.c.l.b16 %v710
    %v4988 = vunpack.c.h.b16 %v710
    %v4989 = vunpack.c.l.b16 %v711
    %v4990 = vunpack.c.h.b16 %v711
    %v4991 = vunpack.c.l.b16 %v712
    %v4992 = vunpack.c.h.b16 %v712
    %v4993 = vunpack.c.l.b16 %v713
    %v4994 = vunpack.c.h.b16 %v713
    %v4995 = vunpack.c.l.b16 %v714
    %v4996 = vunpack.c.h.b16 %v714
    %v4997 = vunpack.c.l.b16 %v715
    %v4998 = vunpack.c.h.b16 %v715
    %v4999 = vunpack.c.l.b16 %v716
    %v5000 = vunpack.c.h.b16 %v716
    %v5001 = vunpack.c.l.b16 %v717
    %v5002 = vunpack.c.h.b16 %v717
    %v5003 = vunpack.c.l.b16 %v718
    %v5004 = vunpack.c.h.b16 %v718
    %v5005 = vunpack.c.l.b16 %v719
    %v5006 = vunpack.c.h.b16 %v719
    %v5007 = vunpack.c.l.b16 %v720
    %v5008 = vunpack.c.h.b16 %v720
    %v5009 = vunpack.c.l.b16 %v721
    %v5010 = vunpack.c.h.b16 %v721
    %v5011 = vunpack.c.l.b16 %v722
    %v5012 = vunpack.c.h.b16 %v722
    %v5013 = vunpack.c.l.b16 %v723
    %v5014 = vunpack.c.h.b16 %v723
    %v5015 = vunpack.c.l.b16 %v724
    %v5016 = vunpack.c.h.b16 %v724
    %v5017 = vunpack.c.l.b16 %v725
    %v5018 = vunpack.c.h.b16 %v725
    %v5019 = vunpack.c.l.b16 %v726
    %v5020 = vunpack.c.h.b16 %v726
    %v5021 = vunpack.c.l.b16 %v727
    %v5022 = vunpack.c.h.b16 %v727
    %v5023 = vunpack.c.l.b16 %v728
    %v5024 = vunpack.c.h.b16 %v728
    %v5025 = vunpack.c.l.b16 %v729
    %v5026 = vunpack.c.h.b16 %v729
    %v5027 = vunpack.c.l.b16 %v730
    %v5028 = vunpack.c.h.b16 %v730
    %v5029 = vunpack.c.l.b16 %v731
    %v5030 = vunpack.c.h.b16 %v731
    %v5031 = vunpack.c.l.b16 %v732
    %v5032 = vunpack.c.h.b16 %v732
    %v5033 = vunpack.c.l.b16 %v733
    %v5034 = vunpack.c.h.b16 %v733
    %v5035 = vunpack.c.l.b16 %v734
    %v5036 = vunpack.c.h.b16 %v734
    %v5037 = vunpack.c.l.b16 %v735
    %v5038 = vunpack.c.h.b16 %v735
    %v5039 = vunpack.c.l.b16 %v736
    %v5040 = vunpack.c.h.b16 %v736
    %v5041 = vunpack.c.l.b16 %v737
    %v5042 = vunpack.c.h.b16 %v737
    %v5043 = vunpack.c.l.b16 %v738
    %v5044 = vunpack.c.h.b16 %v738
    %v5045 = vunpack.c.l.b16 %v739
    %v5046 = vunpack.c.h.b16 %v739
    %v5047 = vunpack.c.l.b16 %v740
    %v5048 = vunpack.c.h.b16 %v740
    %v5049 = vunpack.c.l.b16 %v741
    %v5050 = vunpack.c.h.b16 %v741
    %v5051 = vunpack.c.l.b16 %v742
    %v5052 = vunpack.c.h.b16 %v742
    %v5053 = vunpack.c.l.b16 %v743
    %v5054 = vunpack.c.h.b16 %v743
    %v5055 = vunpack.c.l.b16 %v744
    %v5056 = vunpack.c.h.b16 %v744
    %v5057 = vunpack.c.l.b16 %v745
    %v5058 = vunpack.c.h.b16 %v745
    %v5059 = vunpack.c.l.b16 %v746
    %v5060 = vunpack.c.h.b16 %v746
    %v5061 = vunpack.c.l.b16 %v747
    %v5062 = vunpack.c.h.b16 %v747
    %v5063 = vunpack.c.l.b16 %v748
    %v5064 = vunpack.c.h.b16 %v748
    %v5065 = vunpack.c.l.b16 %v749
    %v5066 = vunpack.c.h.b16 %v749
    %v5067 = vunpack.c.l.b16 %v750
    %v5068 = vunpack.c.h.b16 %v750
    %v5069 = vunpack.c.l.b16 %v751
    %v5070 = vunpack.c.h.b16 %v751
    %v5071 = vunpack.c.l.b16 %v752
    %v5072 = vunpack.c.h.b16 %v752
    %v5073 = vunpack.c.l.b16 %v753
    %v5074 = vunpack.c.h.b16 %v753
    %v5075 = vunpack.c.l.b16 %v754
    %v5076 = vunpack.c.h.b16 %v754
    %v5077 = vunpack.c.l.b16 %v755
    %v5078 = vunpack.c.h.b16 %v755
    %v5079 = vunpack.c.l.b16 %v756
    %v5080 = vunpack.c.h.b16 %v756
    %v5081 = vunpack.c.l.b16 %v757
    %v5082 = vunpack.c.h.b16 %v757
    %v5083 = vunpack.c.l.b16 %v758
    %v5084 = vunpack.c.h.b16 %v758
    %v5085 = vunpack.c.l.b16 %v759
    %v5086 = vunpack.c.h.b16 %v759
    %v5087 = vunpack.c.l.b16 %v760
    %v5088 = vunpack.c.h.b16 %v760
    %v5089 = vunpack.c.l.b16 %v761
    %v5090 = vunpack.c.h.b16 %v761
    %v5091 = vunpack.c.l.b16 %v762
    %v5092 = vunpack.c.h.b16 %v762
    %v5093 = vunpack.c.l.b16 %v763
    %v5094 = vunpack.c.h.b16 %v763
    %v5095 = vunpack.c.l.b16 %v764
    %v5096 = vunpack.c.h.b16 %v764
    %v5097 = vunpack.c.l.b16 %v765
    %v5098 = vunpack.c.h.b16 %v765
    %v5099 = vunpack.c.l.b16 %v766
    %v5100 = vunpack.c.h.b16 %v766
    %v5101 = vunpack.c.l.b16 %v767
    %v5102 = vunpack.c.h.b16 %v767
    %v5103 = vunpack.c.l.b16 %v768
    %v5104 = vunpack.c.h.b16 %v768
    %v5105 = vunpack.c.l.b16 %v769
    %v5106 = vunpack.c.h.b16 %v769
    %v5107 = vunpack.c.l.b16 %v770
    %v5108 = vunpack.c.h.b16 %v770
    %v5109 = vunpack.c.l.b16 %v771
    %v5110 = vunpack.c.h.b16 %v771
    %v5111 = vunpack.c.l.b16 %v772
    %v5112 = vunpack.c.h.b16 %v772
    %v5113 = vunpack.c.l.b16 %v773
    %v5114 = vunpack.c.h.b16 %v773
    %v5115 = vunpack.c.l.b16 %v774
    %v5116 = vunpack.c.h.b16 %v774
    %v5117 = vunpack.c.l.b16 %v775
    %v5118 = vunpack.c.h.b16 %v775
    %v5119 = vunpack.c.l.b16 %v776
    %v5120 = vunpack.c.h.b16 %v776
    %v5121 = vunpack.c.l.b16 %v777
    %v5122 = vunpack.c.h.b16 %v777
    %v5123 = vunpack.c.l.b16 %v778
    %v5124 = vunpack.c.h.b16 %v778
    %v5125 = vunpack.c.l.b16 %v779
    %v5126 = vunpack.c.h.b16 %v779
    %v5127 = vunpack.c.l.b16 %v780
    %v5128 = vunpack.c.h.b16 %v780
    %v5129 = vunpack.c.l.b16 %v781
    %v5130 = vunpack.c.h.b16 %v781
    %v5131 = vunpack.c.l.b16 %v782
    %v5132 = vunpack.c.h.b16 %v782
    %v5133 = vunpack.c.l.b16 %v783
    %v5134 = vunpack.c.h.b16 %v783
    %v5135 = vunpack.c.l.b16 %v784
    %v5136 = vunpack.c.h.b16 %v784
    %v5137 = vunpack.c.l.b16 %v785
    %v5138 = vunpack.c.h.b16 %v785
    %v5139 = vunpack.c.l.b16 %v786
    %v5140 = vunpack.c.h.b16 %v786
    %v5141 = vunpack.c.l.b16 %v787
    %v5142 = vunpack.c.h.b16 %v787
    %v5143 = vunpack.c.l.b16 %v788
    %v5144 = vunpack.c.h.b16 %v788
    %v5145 = vunpack.c.l.b16 %v789
    %v5146 = vunpack.c.h.b16 %v789
    %v5147 = vunpack.c.l.b16 %v790
    %v5148 = vunpack.c.h.b16 %v790
    %v5149 = vunpack.c.l.b16 %v791
    %v5150 = vunpack.c.h.b16 %v791
    %v5151 = vunpack.c.l.b16 %v792
    %v5152 = vunpack.c.h.b16 %v792
    %v5153 = vunpack.c.l.b16 %v793
    %v5154 = vunpack.c.h.b16 %v793
    %v5155 = vunpack.c.l.b16 %v794
    %v5156 = vunpack.c.h.b16 %v794
    %v5157 = vunpack.c.l.b16 %v795
    %v5158 = vunpack.c.h.b16 %v795
    %v5159 = vunpack.c.l.b16 %v796
    %v5160 = vunpack.c.h.b16 %v796
    %v5161 = vunpack.c.l.b16 %v797
    %v5162 = vunpack.c.h.b16 %v797
    %v5163 = vunpack.c.l.b16 %v798
    %v5164 = vunpack.c.h.b16 %v798
    %v5165 = vunpack.c.l.b16 %v799
    %v5166 = vunpack.c.h.b16 %v799
    %v5167 = vunpack.c.l.b16 %v800
    %v5168 = vunpack.c.h.b16 %v800
    %v5169 = vunpack.c.l.b16 %v801
    %v5170 = vunpack.c.h.b16 %v801
    %v5171 = vunpack.c.l.b16 %v802
    %v5172 = vunpack.c.h.b16 %v802
    %v5173 = vunpack.c.l.b16 %v803
    %v5174 = vunpack.c.h.b16 %v803
    %v5175 = vunpack.c.l.b16 %v804
    %v5176 = vunpack.c.h.b16 %v804
    %v5177 = vunpack.c.l.b16 %v805
    %v5178 = vunpack.c.h.b16 %v805
    %v5179 = vunpack.c.l.b16 %v806
    %v5180 = vunpack.c.h.b16 %v806
    %v5181 = vunpack.c.l.b16 %v807
    %v5182 = vunpack.c.h.b16 %v807
    %v5183 = vunpack.c.l.b16 %v808
    %v5184 = vunpack.c.h.b16 %v808
    %v5185 = vunpack.c.l.b16 %v809
    %v5186 = vunpack.c.h.b16 %v809
    %v5187 = vunpack.c.l.b16 %v810
    %v5188 = vunpack.c.h.b16 %v810
    %v5189 = vunpack.c.l.b16 %v811
    %v5190 = vunpack.c.h.b16 %v811
    %v5191 = vunpack.c.l.b16 %v812
    %v5192 = vunpack.c.h.b16 %v812
    %v5193 = vunpack.c.l.b16 %v813
    %v5194 = vunpack.c.h.b16 %v813
    %v5195 = vunpack.c.l.b16 %v814
    %v5196 = vunpack.c.h.b16 %v814
    %v5197 = vunpack.c.l.b16 %v815
    %v5198 = vunpack.c.h.b16 %v815
    %v5199 = vunpack.c.l.b16 %v816
    %v5200 = vunpack.c.h.b16 %v816
    %v5201 = vunpack.c.l.b16 %v817
    %v5202 = vunpack.c.h.b16 %v817
    %v5203 = vunpack.c.l.b16 %v818
    %v5204 = vunpack.c.h.b16 %v818
    %v5205 = vunpack.c.l.b16 %v819
    %v5206 = vunpack.c.h.b16 %v819
    %v5207 = vunpack.c.l.b16 %v820
    %v5208 = vunpack.c.h.b16 %v820
    %v5209 = vunpack.c.l.b16 %v821
    %v5210 = vunpack.c.h.b16 %v821
    %v5211 = vunpack.c.l.b16 %v822
    %v5212 = vunpack.c.h.b16 %v822
    %v5213 = vunpack.c.l.b16 %v823
    %v5214 = vunpack.c.h.b16 %v823
    %v5215 = vunpack.c.l.b16 %v824
    %v5216 = vunpack.c.h.b16 %v824
    %v5217 = vunpack.c.l.b16 %v825
    %v5218 = vunpack.c.h.b16 %v825
    %v5219 = vunpack.c.l.b16 %v826
    %v5220 = vunpack.c.h.b16 %v826
    %v5221 = vunpack.c.l.b16 %v827
    %v5222 = vunpack.c.h.b16 %v827
    %v5223 = vunpack.c.l.b16 %v828
    %v5224 = vunpack.c.h.b16 %v828
    %v5225 = vunpack.c.l.b16 %v829
    %v5226 = vunpack.c.h.b16 %v829
    %v5227 = vunpack.c.l.b16 %v830
    %v5228 = vunpack.c.h.b16 %v830
    %v5229 = vunpack.c.l.b16 %v831
    %v5230 = vunpack.c.h.b16 %v831
    %v5231 = vunpack.c.l.b16 %v832
    %v5232 = vunpack.c.h.b16 %v832
    %v5233 = vunpack.c.l.b16 %v833
    %v5234 = vunpack.c.h.b16 %v833
    %v5235 = vunpack.c.l.b16 %v834
    %v5236 = vunpack.c.h.b16 %v834
    %v5237 = vunpack.c.l.b16 %v835
    %v5238 = vunpack.c.h.b16 %v835
    %v5239 = vunpack.c.l.b16 %v836
    %v5240 = vunpack.c.h.b16 %v836
    %v5241 = vunpack.c.l.b16 %v837
    %v5242 = vunpack.c.h.b16 %v837
    %v5243 = vunpack.c.l.b16 %v838
    %v5244 = vunpack.c.h.b16 %v838
    %v5245 = vunpack.c.l.b16 %v839
    %v5246 = vunpack.c.h.b16 %v839
    %v5247 = vunpack.c.l.b16 %v840
    %v5248 = vunpack.c.h.b16 %v840
    %v5249 = vunpack.c.l.b16 %v841
    %v5250 = vunpack.c.h.b16 %v841
    %v5251 = vunpack.c.l.b16 %v842
    %v5252 = vunpack.c.h.b16 %v842
    %v5253 = vunpack.c.l.b16 %v843
    %v5254 = vunpack.c.h.b16 %v843
    %v5255 = vunpack.c.l.b16 %v844
    %v5256 = vunpack.c.h.b16 %v844
    %v5257 = vunpack.c.l.b16 %v845
    %v5258 = vunpack.c.h.b16 %v845
    %v5259 = vunpack.c.l.b16 %v846
    %v5260 = vunpack.c.h.b16 %v846
    %v5261 = vunpack.c.l.b16 %v847
    %v5262 = vunpack.c.h.b16 %v847
    %v5263 = vunpack.c.l.b16 %v848
    %v5264 = vunpack.c.h.b16 %v848
    %v5265 = vunpack.c.l.b16 %v849
    %v5266 = vunpack.c.h.b16 %v849
    %v5267 = vunpack.c.l.b16 %v850
    %v5268 = vunpack.c.h.b16 %v850
    %v5269 = vunpack.c.l.b16 %v851
    %v5270 = vunpack.c.h.b16 %v851
    %v5271 = vunpack.c.l.b16 %v852
    %v5272 = vunpack.c.h.b16 %v852
    %v5273 = vunpack.c.l.b16 %v853
    %v5274 = vunpack.c.h.b16 %v853
    %v5275 = vunpack.c.l.b16 %v854
    %v5276 = vunpack.c.h.b16 %v854
    %v5277 = vunpack.c.l.b16 %v855
    %v5278 = vunpack.c.h.b16 %v855
    %v5279 = vunpack.c.l.b16 %v856
    %v5280 = vunpack.c.h.b16 %v856
    %v5281 = vunpack.c.l.b16 %v857
    %v5282 = vunpack.c.h.b16 %v857
    %v5283 = vunpack.c.l.b16 %v858
    %v5284 = vunpack.c.h.b16 %v858
    %v5285 = vunpack.c.l.b16 %v859
    %v5286 = vunpack.c.h.b16 %v859
    %v5287 = vunpack.c.l.b16 %v860
    %v5288 = vunpack.c.h.b16 %v860
    %v5289 = vunpack.c.l.b16 %v861
    %v5290 = vunpack.c.h.b16 %v861
    %v5291 = vunpack.c.l.b16 %v862
    %v5292 = vunpack.c.h.b16 %v862
    %v5293 = vunpack.c.l.b16 %v863
    %v5294 = vunpack.c.h.b16 %v863
    %v5295 = vunpack.c.l.b16 %v864
    %v5296 = vunpack.c.h.b16 %v864
    %v5297 = vunpack.c.l.b16 %v865
    %v5298 = vunpack.c.h.b16 %v865
    %v5299 = vunpack.c.l.b16 %v866
    %v5300 = vunpack.c.h.b16 %v866
    %v5301 = vunpack.c.l.b16 %v867
    %v5302 = vunpack.c.h.b16 %v867
    %v5303 = vunpack.c.l.b16 %v868
    %v5304 = vunpack.c.h.b16 %v868
    %v5305 = vunpack.c.l.b16 %v869
    %v5306 = vunpack.c.h.b16 %v869
    %v5307 = vunpack.c.l.b16 %v870
    %v5308 = vunpack.c.h.b16 %v870
    %v5309 = vunpack.c.l.b16 %v871
    %v5310 = vunpack.c.h.b16 %v871
    %v5311 = vunpack.c.l.b16 %v872
    %v5312 = vunpack.c.h.b16 %v872
    %v5313 = vunpack.c.l.b16 %v873
    %v5314 = vunpack.c.h.b16 %v873
    %v5315 = vunpack.c.l.b16 %v874
    %v5316 = vunpack.c.h.b16 %v874
    %v5317 = vunpack.c.l.b16 %v875
    %v5318 = vunpack.c.h.b16 %v875
    %v5319 = vunpack.c.l.b16 %v876
    %v5320 = vunpack.c.h.b16 %v876
    %v5321 = vunpack.c.l.b16 %v877
    %v5322 = vunpack.c.h.b16 %v877
    %v5323 = vunpack.c.l.b16 %v878
    %v5324 = vunpack.c.h.b16 %v878
    %v5325 = vunpack.c.l.b16 %v879
    %v5326 = vunpack.c.h.b16 %v879
    %v5327 = vunpack.c.l.b16 %v880
    %v5328 = vunpack.c.h.b16 %v880
    %v5329 = vunpack.c.l.b16 %v881
    %v5330 = vunpack.c.h.b16 %v881
    %v5331 = vunpack.c.l.b16 %v882
    %v5332 = vunpack.c.h.b16 %v882
    %v5333 = vunpack.c.l.b16 %v883
    %v5334 = vunpack.c.h.b16 %v883
    %v5335 = vunpack.c.l.b16 %v884
    %v5336 = vunpack.c.h.b16 %v884
    %v5337 = vunpack.c.l.b16 %v885
    %v5338 = vunpack.c.h.b16 %v885
    %v5339 = vunpack.c.l.b16 %v886
    %v5340 = vunpack.c.h.b16 %v886
    %v5341 = vunpack.c.l.b16 %v887
    %v5342 = vunpack.c.h.b16 %v887
    %v5343 = vunpack.c.l.b16 %v888
    %v5344 = vunpack.c.h.b16 %v888
    %v5345 = vunpack.c.l.b16 %v889
    %v5346 = vunpack.c.h.b16 %v889
    %v5347 = vunpack.c.l.b16 %v890
    %v5348 = vunpack.c.h.b16 %v890
    %v5349 = vunpack.c.l.b16 %v891
    %v5350 = vunpack.c.h.b16 %v891
    %v5351 = vunpack.c.l.b16 %v892
    %v5352 = vunpack.c.h.b16 %v892
    %v5353 = vunpack.c.l.b16 %v893
    %v5354 = vunpack.c.h.b16 %v893
    %v5355 = vunpack.c.l.b16 %v894
    %v5356 = vunpack.c.h.b16 %v894
    %v5357 = vunpack.c.l.b16 %v895
    %v5358 = vunpack.c.h.b16 %v895
    %v5359 = vunpack.c.l.b16 %v896
    %v5360 = vunpack.c.h.b16 %v896
    %v5361 = vunpack.c.l.b16 %v897
    %v5362 = vunpack.c.h.b16 %v897
    %v5363 = vunpack.c.l.b16 %v898
    %v5364 = vunpack.c.h.b16 %v898
    %v5365 = vunpack.c.l.b16 %v899
    %v5366 = vunpack.c.h.b16 %v899
    %v5367 = vunpack.c.l.b16 %v900
    %v5368 = vunpack.c.h.b16 %v900
    %v5369 = vunpack.c.l.b16 %v901
    %v5370 = vunpack.c.h.b16 %v901
    %v5371 = vunpack.c.l.b16 %v902
    %v5372 = vunpack.c.h.b16 %v902
    %v5373 = vunpack.c.l.b16 %v903
    %v5374 = vunpack.c.h.b16 %v903
    %v5375 = vunpack.c.l.b16 %v904
    %v5376 = vunpack.c.h.b16 %v904
    %v5377 = vunpack.c.l.b16 %v905
    %v5378 = vunpack.c.h.b16 %v905
    %v5379 = vunpack.c.l.b16 %v906
    %v5380 = vunpack.c.h.b16 %v906
    %v5381 = vunpack.c.l.b16 %v907
    %v5382 = vunpack.c.h.b16 %v907
    %v5383 = vunpack.c.l.b16 %v908
    %v5384 = vunpack.c.h.b16 %v908
    %v5385 = vunpack.c.l.b16 %v909
    %v5386 = vunpack.c.h.b16 %v909
    %v5387 = vunpack.c.l.b16 %v910
    %v5388 = vunpack.c.h.b16 %v910
    %v5389 = vunpack.c.l.b16 %v911
    %v5390 = vunpack.c.h.b16 %v911
    %v5391 = vunpack.c.l.b16 %v912
    %v5392 = vunpack.c.h.b16 %v912
    %v5393 = vunpack.c.l.b16 %v913
    %v5394 = vunpack.c.h.b16 %v913
    %v5395 = vunpack.c.l.b16 %v914
    %v5396 = vunpack.c.h.b16 %v914
    %v5397 = vunpack.c.l.b16 %v915
    %v5398 = vunpack.c.h.b16 %v915
    %v5399 = vunpack.c.l.b16 %v916
    %v5400 = vunpack.c.h.b16 %v916
    %v5401 = vunpack.c.l.b16 %v917
    %v5402 = vunpack.c.h.b16 %v917
    %v5403 = vunpack.c.l.b16 %v918
    %v5404 = vunpack.c.h.b16 %v918
    %v5405 = vunpack.c.l.b16 %v919
    %v5406 = vunpack.c.h.b16 %v919
    %v5407 = vunpack.c.l.b16 %v920
    %v5408 = vunpack.c.h.b16 %v920
    %v5409 = vunpack.c.l.b16 %v921
    %v5410 = vunpack.c.h.b16 %v921
    %v5411 = vunpack.c.l.b16 %v922
    %v5412 = vunpack.c.h.b16 %v922
    %v5413 = vunpack.c.l.b16 %v923
    %v5414 = vunpack.c.h.b16 %v923
    %v5415 = vunpack.c.l.b16 %v924
    %v5416 = vunpack.c.h.b16 %v924
    %v5417 = vunpack.c.l.b16 %v925
    %v5418 = vunpack.c.h.b16 %v925
    %v5419 = vunpack.c.l.b16 %v926
    %v5420 = vunpack.c.h.b16 %v926
    %v5421 = vunpack.c.l.b16 %v927
    %v5422 = vunpack.c.h.b16 %v927
    %v5423 = vunpack.c.l.b16 %v928
    %v5424 = vunpack.c.h.b16 %v928
    %v5425 = vunpack.c.l.b16 %v929
    %v5426 = vunpack.c.h.b16 %v929
    %v5427 = vunpack.c.l.b16 %v930
    %v5428 = vunpack.c.h.b16 %v930
    %v5429 = vunpack.c.l.b16 %v931
    %v5430 = vunpack.c.h.b16 %v931
    %v5431 = vunpack.c.l.b16 %v932
    %v5432 = vunpack.c.h.b16 %v932
    %v5433 = vunpack.c.l.b16 %v933
    %v5434 = vunpack.c.h.b16 %v933
    %v5435 = vunpack.c.l.b16 %v934
    %v5436 = vunpack.c.h.b16 %v934
    %v5437 = vunpack.c.l.b16 %v935
    %v5438 = vunpack.c.h.b16 %v935
    %v5439 = vunpack.c.l.b16 %v936
    %v5440 = vunpack.c.h.b16 %v936
    %v5441 = vunpack.c.l.b16 %v937
    %v5442 = vunpack.c.h.b16 %v937
    %v5443 = vunpack.c.l.b16 %v938
    %v5444 = vunpack.c.h.b16 %v938
    %v5445 = vunpack.c.l.b16 %v939
    %v5446 = vunpack.c.h.b16 %v939
    %v5447 = vunpack.c.l.b16 %v940
    %v5448 = vunpack.c.h.b16 %v940
    %v5449 = vunpack.c.l.b16 %v941
    %v5450 = vunpack.c.h.b16 %v941
    %v5451 = vunpack.c.l.b16 %v942
    %v5452 = vunpack.c.h.b16 %v942
    %v5453 = vunpack.c.l.b16 %v943
    %v5454 = vunpack.c.h.b16 %v943
    %v5455 = vunpack.c.l.b16 %v944
    %v5456 = vunpack.c.h.b16 %v944
    %v5457 = vunpack.c.l.b16 %v945
    %v5458 = vunpack.c.h.b16 %v945
    %v5459 = vunpack.c.l.b16 %v946
    %v5460 = vunpack.c.h.b16 %v946
    %v5461 = vunpack.c.l.b16 %v947
    %v5462 = vunpack.c.h.b16 %v947
    %v5463 = vunpack.c.l.b16 %v948
    %v5464 = vunpack.c.h.b16 %v948
    %v5465 = vunpack.c.l.b16 %v949
    %v5466 = vunpack.c.h.b16 %v949
    %v5467 = vunpack.c.l.b16 %v950
    %v5468 = vunpack.c.h.b16 %v950
    %v5469 = vunpack.c.l.b16 %v951
    %v5470 = vunpack.c.h.b16 %v951
    %v5471 = vunpack.c.l.b16 %v952
    %v5472 = vunpack.c.h.b16 %v952
    %v5473 = vunpack.c.l.b16 %v953
    %v5474 = vunpack.c.h.b16 %v953
    %v5475 = vunpack.c.l.b16 %v954
    %v5476 = vunpack.c.h.b16 %v954
    %v5477 = vunpack.c.l.b16 %v955
    %v5478 = vunpack.c.h.b16 %v955
    %v5479 = vunpack.c.l.b16 %v956
    %v5480 = vunpack.c.h.b16 %v956
    %v5481 = vunpack.c.l.b16 %v957
    %v5482 = vunpack.c.h.b16 %v957
    %v5483 = vunpack.c.l.b16 %v958
    %v5484 = vunpack.c.h.b16 %v958
    %v5485 = vunpack.c.l.b16 %v959
    %v5486 = vunpack.c.h.b16 %v959
    %v5487 = vunpack.c.l.b16 %v960
    %v5488 = vunpack.c.h.b16 %v960
    %v5489 = vunpack.c.l.b16 %v961
    %v5490 = vunpack.c.h.b16 %v961
    %v5491 = vunpack.c.l.b16 %v962
    %v5492 = vunpack.c.h.b16 %v962
    %v5493 = vunpack.c.l.b16 %v963
    %v5494 = vunpack.c.h.b16 %v963
    %v5495 = vunpack.c.l.b16 %v964
    %v5496 = vunpack.c.h.b16 %v964
    %v5497 = vunpack.c.l.b16 %v965
    %v5498 = vunpack.c.h.b16 %v965
    %v5499 = vunpack.c.l.b16 %v966
    %v5500 = vunpack.c.h.b16 %v966
    %v5501 = vunpack.c.l.b16 %v967
    %v5502 = vunpack.c.h.b16 %v967
    %v5503 = vunpack.c.l.b16 %v968
    %v5504 = vunpack.c.h.b16 %v968
    %v5505 = vunpack.c.l.b16 %v969
    %v5506 = vunpack.c.h.b16 %v969
    %v5507 = vunpack.c.l.b16 %v970
    %v5508 = vunpack.c.h.b16 %v970
    %v5509 = vunpack.c.l.b16 %v971
    %v5510 = vunpack.c.h.b16 %v971
    %v5511 = vunpack.c.l.b16 %v972
    %v5512 = vunpack.c.h.b16 %v972
    %v5513 = vunpack.c.l.b16 %v973
    %v5514 = vunpack.c.h.b16 %v973
    %v5515 = vunpack.c.l.b16 %v974
    %v5516 = vunpack.c.h.b16 %v974
    %v5517 = vunpack.c.l.b16 %v975
    %v5518 = vunpack.c.h.b16 %v975
    %v5519 = vunpack.c.l.b16 %v976
    %v5520 = vunpack.c.h.b16 %v976
    %v5521 = vunpack.c.l.b16 %v977
    %v5522 = vunpack.c.h.b16 %v977
    %v5523 = vunpack.c.l.b16 %v978
    %v5524 = vunpack.c.h.b16 %v978
    %v5525 = vunpack.c.l.b16 %v979
    %v5526 = vunpack.c.h.b16 %v979
    %v5527 = vunpack.c.l.b16 %v980
    %v5528 = vunpack.c.h.b16 %v980
    %v5529 = vunpack.c.l.b16 %v981
    %v5530 = vunpack.c.h.b16 %v981
    %v5531 = vunpack.c.l.b16 %v982
    %v5532 = vunpack.c.h.b16 %v982
    %v5533 = vunpack.c.l.b16 %v983
    %v5534 = vunpack.c.h.b16 %v983
    %v5535 = vunpack.c.l.b16 %v984
    %v5536 = vunpack.c.h.b16 %v984
    %v5537 = vunpack.c.l.b16 %v985
    %v5538 = vunpack.c.h.b16 %v985
    %v5539 = vunpack.c.l.b16 %v986
    %v5540 = vunpack.c.h.b16 %v986
    %v5541 = vunpack.c.l.b16 %v987
    %v5542 = vunpack.c.h.b16 %v987
    %v5543 = vunpack.c.l.b16 %v988
    %v5544 = vunpack.c.h.b16 %v988
    %v5545 = vunpack.c.l.b16 %v989
    %v5546 = vunpack.c.h.b16 %v989
    %v5547 = vunpack.c.l.b16 %v990
    %v5548 = vunpack.c.h.b16 %v990
    %v5549 = vunpack.c.l.b16 %v991
    %v5550 = vunpack.c.h.b16 %v991
    %v5551 = vunpack.c.l.b16 %v992
    %v5552 = vunpack.c.h.b16 %v992
    %v5553 = vunpack.c.l.b16 %v993
    %v5554 = vunpack.c.h.b16 %v993
    %v5555 = vunpack.c.l.b16 %v994
    %v5556 = vunpack.c.h.b16 %v994
    %v5557 = vunpack.c.l.b16 %v995
    %v5558 = vunpack.c.h.b16 %v995
    %v5559 = vunpack.c.l.b16 %v996
    %v5560 = vunpack.c.h.b16 %v996
    %v5561 = vunpack.c.l.b16 %v997
    %v5562 = vunpack.c.h.b16 %v997
    %v5563 = vunpack.c.l.b16 %v998
    %v5564 = vunpack.c.h.b16 %v998
    %v5565 = vunpack.c.l.b16 %v999
    %v5566 = vunpack.c.h.b16 %v999
    %v5567 = vunpack.c.l.b16 %v1000
    %v5568 = vunpack.c.h.b16 %v1000
    %v5569 = vunpack.c.l.b16 %v1001
    %v5570 = vunpack.c.h.b16 %v1001
    %v5571 = vunpack.c.l.b16 %v1002
    %v5572 = vunpack.c.h.b16 %v1002
    %v5573 = vunpack.c.l.b16 %v1003
    %v5574 = vunpack.c.h.b16 %v1003
    %v5575 = vunpack.c.l.b16 %v1004
    %v5576 = vunpack.c.h.b16 %v1004
    %v5577 = vunpack.c.l.b16 %v1005
    %v5578 = vunpack.c.h.b16 %v1005
    %v5579 = vunpack.c.l.b16 %v1006
    %v5580 = vunpack.c.h.b16 %v1006
    %v5581 = vunpack.c.l.b16 %v1007
    %v5582 = vunpack.c.h.b16 %v1007
    %v5583 = vunpack.c.l.b16 %v1008
    %v5584 = vunpack.c.h.b16 %v1008
    %v5585 = vunpack.c.l.b16 %v1009
    %v5586 = vunpack.c.h.b16 %v1009
    %v5587 = vunpack.c.l.b16 %v1010
    %v5588 = vunpack.c.h.b16 %v1010
    %v5589 = vunpack.c.l.b16 %v1011
    %v5590 = vunpack.c.h.b16 %v1011
    %v5591 = vunpack.c.l.b16 %v1012
    %v5592 = vunpack.c.h.b16 %v1012
    %v5593 = vunpack.c.l.b16 %v1013
    %v5594 = vunpack.c.h.b16 %v1013
    %v5595 = vunpack.c.l.b16 %v1014
    %v5596 = vunpack.c.h.b16 %v1014
    %v5597 = vunpack.c.l.b16 %v1015
    %v5598 = vunpack.c.h.b16 %v1015
    %v5599 = vunpack.c.l.b16 %v1016
    %v5600 = vunpack.c.h.b16 %v1016
    %v5601 = vunpack.c.l.b16 %v1017
    %v5602 = vunpack.c.h.b16 %v1017
    %v5603 = vunpack.c.l.b16 %v1018
    %v5604 = vunpack.c.h.b16 %v1018
    %v5605 = vunpack.c.l.b16 %v1019
    %v5606 = vunpack.c.h.b16 %v1019
    %v5607 = vunpack.c.l.b16 %v1020
    %v5608 = vunpack.c.h.b16 %v1020
    %v5609 = vunpack.c.l.b16 %v1021
    %v5610 = vunpack.c.h.b16 %v1021
    %v5611 = vunpack.c.l.b16 %v1022
    %v5612 = vunpack.c.h.b16 %v1022
    %v5613 = vunpack.c.l.b16 %v1023
    %v5614 = vunpack.c.h.b16 %v1023
    %v5615 = vunpack.c.l.b16 %v1024
    %v5616 = vunpack.c.h.b16 %v1024
    %v5617 = vunpack.c.l.b16 %v1025
    %v5618 = vunpack.c.h.b16 %v1025
    %v5619 = vunpack.c.l.b16 %v1026
    %v5620 = vunpack.c.h.b16 %v1026
    %v5621 = vunpack.c.l.b16 %v1027
    %v5622 = vunpack.c.h.b16 %v1027
    %v5623 = vunpack.c.l.b16 %v1028
    %v5624 = vunpack.c.h.b16 %v1028
    %v5625 = vunpack.c.l.b16 %v1029
    %v5626 = vunpack.c.h.b16 %v1029
    %v5627 = vunpack.c.l.b16 %v1030
    %v5628 = vunpack.c.h.b16 %v1030
    %v5629 = vunpack.c.l.b16 %v1031
    %v5630 = vunpack.c.h.b16 %v1031
    %v5631 = vunpack.c.l.b16 %v1032
    %v5632 = vunpack.c.h.b16 %v1032
    %v5633 = vunpack.c.l.b16 %v1033
    %v5634 = vunpack.c.h.b16 %v1033
    %v5635 = vunpack.c.l.b16 %v1034
    %v5636 = vunpack.c.h.b16 %v1034
    %v5637 = vunpack.c.l.b16 %v1035
    %v5638 = vunpack.c.h.b16 %v1035
    %v5639 = vunpack.c.l.b16 %v1036
    %v5640 = vunpack.c.h.b16 %v1036
    %v5641 = vunpack.c.l.b16 %v1037
    %v5642 = vunpack.c.h.b16 %v1037
    %v5643 = vunpack.c.l.b16 %v1038
    %v5644 = vunpack.c.h.b16 %v1038
    %v5645 = vunpack.c.l.b16 %v1039
    %v5646 = vunpack.c.h.b16 %v1039
    %v5647 = vunpack.c.l.b16 %v1040
    %v5648 = vunpack.c.h.b16 %v1040
    %v5649 = vunpack.c.l.b16 %v1041
    %v5650 = vunpack.c.h.b16 %v1041
    %v5651 = vunpack.c.l.b16 %v1042
    %v5652 = vunpack.c.h.b16 %v1042
    %v5653 = vunpack.c.l.b16 %v1043
    %v5654 = vunpack.c.h.b16 %v1043
    %v5655 = vunpack.c.l.b16 %v1044
    %v5656 = vunpack.c.h.b16 %v1044
    %v5657 = vunpack.c.l.b16 %v1045
    %v5658 = vunpack.c.h.b16 %v1045
    %v5659 = vunpack.c.l.b16 %v1046
    %v5660 = vunpack.c.h.b16 %v1046
    %v5661 = vunpack.c.l.b16 %v1047
    %v5662 = vunpack.c.h.b16 %v1047
    %v5663 = vunpack.c.l.b16 %v1048
    %v5664 = vunpack.c.h.b16 %v1048
    %v5665 = vunpack.c.l.b16 %v1049
    %v5666 = vunpack.c.h.b16 %v1049
    %v5667 = vunpack.c.l.b16 %v1050
    %v5668 = vunpack.c.h.b16 %v1050
    %v5669 = vunpack.c.l.b16 %v1051
    %v5670 = vunpack.c.h.b16 %v1051
    %v5671 = vunpack.c.l.b16 %v1052
    %v5672 = vunpack.c.h.b16 %v1052
    %v5673 = vunpack.c.l.b16 %v1053
    %v5674 = vunpack.c.h.b16 %v1053
    %v5675 = vunpack.c.l.b16 %v1054
    %v5676 = vunpack.c.h.b16 %v1054
    %v5677 = vunpack.c.l.b16 %v1055
    %v5678 = vunpack.c.h.b16 %v1055
    %v5679 = vunpack.c.l.b16 %v1056
    %v5680 = vunpack.c.h.b16 %v1056
    %v5681 = vunpack.c.l.b16 %v1057
    %v5682 = vunpack.c.h.b16 %v1057
    %v5683 = vunpack.c.l.b16 %v1058
    %v5684 = vunpack.c.h.b16 %v1058
    %v5685 = vunpack.c.l.b16 %v1059
    %v5686 = vunpack.c.h.b16 %v1059
    %v5687 = vunpack.c.l.b16 %v1060
    %v5688 = vunpack.c.h.b16 %v1060
    %v5689 = vunpack.c.l.b16 %v1061
    %v5690 = vunpack.c.h.b16 %v1061
    %v5691 = vunpack.c.l.b16 %v1062
    %v5692 = vunpack.c.h.b16 %v1062
    %v5693 = vunpack.c.l.b16 %v1063
    %v5694 = vunpack.c.h.b16 %v1063
    %v5695 = vunpack.c.l.b16 %v1064
    %v5696 = vunpack.c.h.b16 %v1064
    %v5697 = vunpack.c.l.b16 %v1065
    %v5698 = vunpack.c.h.b16 %v1065
    %v5699 = vunpack.c.l.b16 %v1066
    %v5700 = vunpack.c.h.b16 %v1066
    %v5701 = vunpack.c.l.b16 %v1067
    %v5702 = vunpack.c.h.b16 %v1067
    %v5703 = vunpack.c.l.b16 %v1068
    %v5704 = vunpack.c.h.b16 %v1068
    %v5705 = vunpack.c.l.b16 %v1069
    %v5706 = vunpack.c.h.b16 %v1069
    %v5707 = vunpack.c.l.b16 %v1070
    %v5708 = vunpack.c.h.b16 %v1070
    %v5709 = vunpack.c.l.b16 %v1071
    %v5710 = vunpack.c.h.b16 %v1071
    %v5711 = vunpack.c.l.b16 %v1072
    %v5712 = vunpack.c.h.b16 %v1072
    %v5713 = vunpack.c.l.b16 %v1073
    %v5714 = vunpack.c.h.b16 %v1073
    %v5715 = vunpack.c.l.b16 %v1074
    %v5716 = vunpack.c.h.b16 %v1074
    %v5717 = vunpack.c.l.b16 %v1075
    %v5718 = vunpack.c.h.b16 %v1075
    %v5719 = vunpack.c.l.b16 %v1076
    %v5720 = vunpack.c.h.b16 %v1076
    %v5721 = vunpack.c.l.b16 %v1077
    %v5722 = vunpack.c.h.b16 %v1077
    %v5723 = vunpack.c.l.b16 %v1078
    %v5724 = vunpack.c.h.b16 %v1078
    %v5725 = vunpack.c.l.b16 %v1079
    %v5726 = vunpack.c.h.b16 %v1079
    %v5727 = vunpack.c.l.b16 %v1080
    %v5728 = vunpack.c.h.b16 %v1080
    %v5729 = vunpack.c.l.b16 %v1081
    %v5730 = vunpack.c.h.b16 %v1081
    %v5731 = vunpack.c.l.b16 %v1082
    %v5732 = vunpack.c.h.b16 %v1082
    %v5733 = vunpack.c.l.b16 %v1083
    %v5734 = vunpack.c.h.b16 %v1083
    %v5735 = vunpack.c.l.b16 %v1084
    %v5736 = vunpack.c.h.b16 %v1084
    %v5737 = vunpack.c.l.b16 %v1085
    %v5738 = vunpack.c.h.b16 %v1085
    %v5739 = vunpack.c.l.b16 %v1086
    %v5740 = vunpack.c.h.b16 %v1086
    %v5741 = vunpack.c.l.b16 %v1087
    %v5742 = vunpack.c.h.b16 %v1087
    %v5743 = vunpack.c.l.b16 %v1088
    %v5744 = vunpack.c.h.b16 %v1088
    %v5745 = vunpack.c.l.b16 %v1089
    %v5746 = vunpack.c.h.b16 %v1089
    %v5747 = vunpack.c.l.b16 %v1090
    %v5748 = vunpack.c.h.b16 %v1090
    %v5749 = vunpack.c.l.b16 %v1091
    %v5750 = vunpack.c.h.b16 %v1091
    %v5751 = vunpack.c.l.b16 %v1092
    %v5752 = vunpack.c.h.b16 %v1092
    %v5753 = vunpack.c.l.b16 %v1093
    %v5754 = vunpack.c.h.b16 %v1093
    %v5755 = vunpack.c.l.b16 %v1094
    %v5756 = vunpack.c.h.b16 %v1094
    %v5757 = vunpack.c.l.b16 %v1095
    %v5758 = vunpack.c.h.b16 %v1095
    %v5759 = vunpack.c.l.b16 %v1096
    %v5760 = vunpack.c.h.b16 %v1096
    %v5761 = vunpack.c.l.b16 %v1097
    %v5762 = vunpack.c.h.b16 %v1097
    %v5763 = vunpack.c.l.b16 %v1098
    %v5764 = vunpack.c.h.b16 %v1098
    %v5765 = vunpack.c.l.b16 %v1099
    %v5766 = vunpack.c.h.b16 %v1099
    %v5767 = vunpack.c.l.b16 %v1100
    %v5768 = vunpack.c.h.b16 %v1100
    %v5769 = vunpack.c.l.b16 %v1101
    %v5770 = vunpack.c.h.b16 %v1101
    %v5771 = vunpack.c.l.b16 %v1102
    %v5772 = vunpack.c.h.b16 %v1102
    %v5773 = vunpack.c.l.b16 %v1103
    %v5774 = vunpack.c.h.b16 %v1103
    %v5775 = vunpack.c.l.b16 %v1104
    %v5776 = vunpack.c.h.b16 %v1104
    %v5777 = vunpack.c.l.b16 %v1105
    %v5778 = vunpack.c.h.b16 %v1105
    %v5779 = vunpack.c.l.b16 %v1106
    %v5780 = vunpack.c.h.b16 %v1106
    %v5781 = vunpack.c.l.b16 %v1107
    %v5782 = vunpack.c.h.b16 %v1107
    %v5783 = vunpack.c.l.b16 %v1108
    %v5784 = vunpack.c.h.b16 %v1108
    %v5785 = vunpack.c.l.b16 %v1109
    %v5786 = vunpack.c.h.b16 %v1109
    %v5787 = vunpack.c.l.b16 %v1110
    %v5788 = vunpack.c.h.b16 %v1110
    %v5789 = vunpack.c.l.b16 %v1111
    %v5790 = vunpack.c.h.b16 %v1111
    %v5791 = vunpack.c.l.b16 %v1112
    %v5792 = vunpack.c.h.b16 %v1112
    %v5793 = vunpack.c.l.b16 %v1113
    %v5794 = vunpack.c.h.b16 %v1113
    %v5795 = vunpack.c.l.b16 %v1114
    %v5796 = vunpack.c.h.b16 %v1114
    %v5797 = vunpack.c.l.b16 %v1115
    %v5798 = vunpack.c.h.b16 %v1115
    %v5799 = vunpack.c.l.b16 %v1116
    %v5800 = vunpack.c.h.b16 %v1116
    %v5801 = vunpack.c.l.b16 %v1117
    %v5802 = vunpack.c.h.b16 %v1117
    %v5803 = vunpack.c.l.b16 %v1118
    %v5804 = vunpack.c.h.b16 %v1118
    %v5805 = vunpack.c.l.b16 %v1119
    %v5806 = vunpack.c.h.b16 %v1119
    %v5807 = vunpack.c.l.b16 %v1120
    %v5808 = vunpack.c.h.b16 %v1120
    %v5809 = vunpack.c.l.b16 %v1121
    %v5810 = vunpack.c.h.b16 %v1121
    %v5811 = vunpack.c.l.b16 %v1122
    %v5812 = vunpack.c.h.b16 %v1122
    %v5813 = vunpack.c.l.b16 %v1123
    %v5814 = vunpack.c.h.b16 %v1123
    %v5815 = vunpack.c.l.b16 %v1124
    %v5816 = vunpack.c.h.b16 %v1124
    %v5817 = vunpack.c.l.b16 %v1125
    %v5818 = vunpack.c.h.b16 %v1125
    %v5819 = vunpack.c.l.b16 %v1126
    %v5820 = vunpack.c.h.b16 %v1126
    %v5821 = vunpack.c.l.b16 %v1127
    %v5822 = vunpack.c.h.b16 %v1127
    %v5823 = vunpack.c.l.b16 %v1128
    %v5824 = vunpack.c.h.b16 %v1128
    %v5825 = vunpack.c.l.b16 %v1129
    %v5826 = vunpack.c.h.b16 %v1129
    %v5827 = vunpack.c.l.b16 %v1130
    %v5828 = vunpack.c.h.b16 %v1130
    %v5829 = vunpack.c.l.b16 %v1131
    %v5830 = vunpack.c.h.b16 %v1131
    %v5831 = vunpack.c.l.b16 %v1132
    %v5832 = vunpack.c.h.b16 %v1132
    %v5833 = vunpack.c.l.b16 %v1133
    %v5834 = vunpack.c.h.b16 %v1133
    %v5835 = vunpack.c.l.b16 %v1134
    %v5836 = vunpack.c.h.b16 %v1134
    %v5837 = vunpack.c.l.b16 %v1135
    %v5838 = vunpack.c.h.b16 %v1135
    %v5839 = vunpack.c.l.b16 %v1136
    %v5840 = vunpack.c.h.b16 %v1136
    %v5841 = vunpack.c.l.b16 %v1137
    %v5842 = vunpack.c.h.b16 %v1137
    %v5843 = vunpack.c.l.b16 %v1138
    %v5844 = vunpack.c.h.b16 %v1138
    %v5845 = vunpack.c.l.b16 %v1139
    %v5846 = vunpack.c.h.b16 %v1139
    %v5847 = vunpack.c.l.b16 %v1140
    %v5848 = vunpack.c.h.b16 %v1140
    %v5849 = vunpack.c.l.b16 %v1141
    %v5850 = vunpack.c.h.b16 %v1141
    %v5851 = vunpack.c.l.b16 %v1142
    %v5852 = vunpack.c.h.b16 %v1142
    %v5853 = vunpack.c.l.b16 %v1143
    %v5854 = vunpack.c.h.b16 %v1143
    %v5855 = vunpack.c.l.b16 %v1144
    %v5856 = vunpack.c.h.b16 %v1144
    %v5857 = vunpack.c.l.b16 %v1145
    %v5858 = vunpack.c.h.b16 %v1145
    %v5859 = vunpack.c.l.b16 %v1146
    %v5860 = vunpack.c.h.b16 %v1146
    %v5861 = vunpack.c.l.b16 %v1147
    %v5862 = vunpack.c.h.b16 %v1147
    %v5863 = vunpack.c.l.b16 %v1148
    %v5864 = vunpack.c.h.b16 %v1148
    %v5865 = vunpack.c.l.b16 %v1149
    %v5866 = vunpack.c.h.b16 %v1149
    %v5867 = vunpack.c.l.b16 %v1150
    %v5868 = vunpack.c.h.b16 %v1150
    %v5869 = vunpack.c.l.b16 %v1151
    %v5870 = vunpack.c.h.b16 %v1151
    %v5871 = vunpack.c.l.b16 %v1152
    %v5872 = vunpack.c.h.b16 %v1152
    %v5873 = vunpack.c.l.b16 %v1153
    %v5874 = vunpack.c.h.b16 %v1153
    %v5875 = vunpack.c.l.b16 %v1154
    %v5876 = vunpack.c.h.b16 %v1154
    %v5877 = vunpack.c.l.b16 %v1155
    %v5878 = vunpack.c.h.b16 %v1155
    %v5879 = vunpack.c.l.b16 %v1156
    %v5880 = vunpack.c.h.b16 %v1156
    %v5881 = vunpack.c.l.b16 %v1157
    %v5882 = vunpack.c.h.b16 %v1157
    %v5883 = vunpack.c.l.b16 %v1158
    %v5884 = vunpack.c.h.b16 %v1158
    %v5885 = vunpack.c.l.b16 %v1159
    %v5886 = vunpack.c.h.b16 %v1159
    %v5887 = vunpack.c.l.b16 %v1160
    %v5888 = vunpack.c.h.b16 %v1160
    %v5889 = vunpack.c.l.b16 %v1161
    %v5890 = vunpack.c.h.b16 %v1161
    %v5891 = vunpack.c.l.b16 %v1162
    %v5892 = vunpack.c.h.b16 %v1162
    %v5893 = vunpack.c.l.b16 %v1163
    %v5894 = vunpack.c.h.b16 %v1163
    %v5895 = vunpack.c.l.b16 %v1164
    %v5896 = vunpack.c.h.b16 %v1164
    %v5897 = vunpack.c.l.b16 %v1165
    %v5898 = vunpack.c.h.b16 %v1165
    %v5899 = vunpack.c.l.b16 %v1166
    %v5900 = vunpack.c.h.b16 %v1166
    %v5901 = vunpack.c.l.b16 %v1167
    %v5902 = vunpack.c.h.b16 %v1167
    %v5903 = vunpack.c.l.b16 %v1168
    %v5904 = vunpack.c.h.b16 %v1168
    %v5905 = vunpack.c.l.b16 %v1169
    %v5906 = vunpack.c.h.b16 %v1169
    %v5907 = vunpack.c.l.b16 %v1170
    %v5908 = vunpack.c.h.b16 %v1170
    %v5909 = vunpack.c.l.b16 %v1171
    %v5910 = vunpack.c.h.b16 %v1171
    %v5911 = vunpack.c.l.b16 %v1172
    %v5912 = vunpack.c.h.b16 %v1172
    %v5913 = vunpack.c.l.b16 %v1173
    %v5914 = vunpack.c.h.b16 %v1173
    %v5915 = vunpack.c.l.b16 %v1174
    %v5916 = vunpack.c.h.b16 %v1174
    %v5917 = vunpack.c.l.b16 %v1175
    %v5918 = vunpack.c.h.b16 %v1175
    %v5919 = vunpack.c.l.b16 %v1176
    %v5920 = vunpack.c.h.b16 %v1176
    %v5921 = vunpack.c.l.b16 %v1177
    %v5922 = vunpack.c.h.b16 %v1177
    %v5923 = vunpack.c.l.b16 %v1178
    %v5924 = vunpack.c.h.b16 %v1178
    %v5925 = vunpack.c.l.b16 %v1179
    %v5926 = vunpack.c.h.b16 %v1179
    %v5927 = vunpack.c.l.b16 %v1180
    %v5928 = vunpack.c.h.b16 %v1180
    %v5929 = vunpack.c.l.b16 %v1181
    %v5930 = vunpack.c.h.b16 %v1181
    %v5931 = vunpack.c.l.b16 %v1182
    %v5932 = vunpack.c.h.b16 %v1182
    %v5933 = vunpack.c.l.b16 %v1183
    %v5934 = vunpack.c.h.b16 %v1183
    %v5935 = vunpack.c.l.b16 %v1184
    %v5936 = vunpack.c.h.b16 %v1184
    %v5937 = vunpack.c.l.b16 %v1185
    %v5938 = vunpack.c.h.b16 %v1185
    %v5939 = vunpack.c.l.b16 %v1186
    %v5940 = vunpack.c.h.b16 %v1186
    %v5941 = vunpack.c.l.b16 %v1187
    %v5942 = vunpack.c.h.b16 %v1187
    %v5943 = vunpack.c.l.b16 %v1188
    %v5944 = vunpack.c.h.b16 %v1188
    %v5945 = vunpack.c.l.b16 %v1189
    %v5946 = vunpack.c.h.b16 %v1189
    %v5947 = vunpack.c.l.b16 %v1190
    %v5948 = vunpack.c.h.b16 %v1190
    %v5949 = vunpack.c.l.b16 %v1191
    %v5950 = vunpack.c.h.b16 %v1191
    %v5951 = vunpack.c.l.b16 %v1192
    %v5952 = vunpack.c.h.b16 %v1192
    %v5953 = vunpack.c.l.b16 %v1193
    %v5954 = vunpack.c.h.b16 %v1193
    %v5955 = vunpack.c.l.b16 %v1194
    %v5956 = vunpack.c.h.b16 %v1194
    %v5957 = vunpack.c.l.b16 %v1195
    %v5958 = vunpack.c.h.b16 %v1195
    %v5959 = vunpack.c.l.b16 %v1196
    %v5960 = vunpack.c.h.b16 %v1196
    %v5961 = vunpack.c.l.b16 %v1197
    %v5962 = vunpack.c.h.b16 %v1197
    %v5963 = vunpack.c.l.b16 %v1198
    %v5964 = vunpack.c.h.b16 %v1198
    %v5965 = vunpack.c.l.b16 %v1199
    %v5966 = vunpack.c.h.b16 %v1199
    %v5967 = vunpack.c.l.b16 %v1200
    %v5968 = vunpack.c.h.b16 %v1200
    %v5969 = vunpack.c.l.b16 %v1201
    %v5970 = vunpack.c.h.b16 %v1201
    %v5971 = vunpack.c.l.b16 %v1202
    %v5972 = vunpack.c.h.b16 %v1202
    %v5973 = vunpack.c.l.b16 %v1203
    %v5974 = vunpack.c.h.b16 %v1203
    %v5975 = vunpack.c.l.b16 %v1204
    %v5976 = vunpack.c.h.b16 %v1204
    %v5977 = vunpack.c.l.b16 %v1205
    %v5978 = vunpack.c.h.b16 %v1205
    %v5979 = vunpack.c.l.b16 %v1206
    %v5980 = vunpack.c.h.b16 %v1206
    %v5981 = vunpack.c.l.b16 %v1207
    %v5982 = vunpack.c.h.b16 %v1207
    %v5983 = vunpack.c.l.b16 %v1208
    %v5984 = vunpack.c.h.b16 %v1208
    %v5985 = vunpack.c.l.b16 %v1209
    %v5986 = vunpack.c.h.b16 %v1209
    %v5987 = vunpack.c.l.b16 %v1210
    %v5988 = vunpack.c.h.b16 %v1210
    %v5989 = vunpack.c.l.b16 %v1211
    %v5990 = vunpack.c.h.b16 %v1211
    %v5991 = vunpack.c.l.b16 %v1212
    %v5992 = vunpack.c.h.b16 %v1212
    %v5993 = vunpack.c.l.b16 %v1213
    %v5994 = vunpack.c.h.b16 %v1213
    %v5995 = vunpack.c.l.b16 %v1214
    %v5996 = vunpack.c.h.b16 %v1214
    %v5997 = vunpack.c.l.b16 %v1215
    %v5998 = vunpack.c.h.b16 %v1215
    %v5999 = vunpack.c.l.b16 %v1216
    %v6000 = vunpack.c.h.b16 %v1216
    %v6001 = vunpack.c.l.b16 %v1217
    %v6002 = vunpack.c.h.b16 %v1217
    %v6003 = vunpack.c.l.b16 %v1218
    %v6004 = vunpack.c.h.b16 %v1218
    %v6005 = vunpack.c.l.b16 %v1219
    %v6006 = vunpack.c.h.b16 %v1219
    %v6007 = vunpack.c.l.b16 %v1220
    %v6008 = vunpack.c.h.b16 %v1220
    %v6009 = vunpack.c.l.b16 %v1221
    %v6010 = vunpack.c.h.b16 %v1221
    %v6011 = vunpack.c.l.b16 %v1222
    %v6012 = vunpack.c.h.b16 %v1222
    %v6013 = vunpack.c.l.b16 %v1223
    %v6014 = vunpack.c.h.b16 %v1223
    %v6015 = vunpack.c.l.b16 %v1224
    %v6016 = vunpack.c.h.b16 %v1224
    %v6017 = vunpack.c.l.b16 %v1225
    %v6018 = vunpack.c.h.b16 %v1225
    %v6019 = vunpack.c.l.b16 %v1226
    %v6020 = vunpack.c.h.b16 %v1226
    %v6021 = vunpack.c.l.b16 %v1227
    %v6022 = vunpack.c.h.b16 %v1227
    %v6023 = vunpack.c.l.b16 %v1228
    %v6024 = vunpack.c.h.b16 %v1228
    %v6025 = vunpack.c.l.b16 %v1229
    %v6026 = vunpack.c.h.b16 %v1229
    %v6027 = vunpack.c.l.b16 %v1230
    %v6028 = vunpack.c.h.b16 %v1230
    %v6029 = vunpack.c.l.b16 %v1231
    %v6030 = vunpack.c.h.b16 %v1231
    %v6031 = vunpack.c.l.b16 %v1232
    %v6032 = vunpack.c.h.b16 %v1232
    %v6033 = vunpack.c.l.b16 %v1233
    %v6034 = vunpack.c.h.b16 %v1233
    %v6035 = vunpack.c.l.b16 %v1234
    %v6036 = vunpack.c.h.b16 %v1234
    %v6037 = vunpack.c.l.b16 %v1235
    %v6038 = vunpack.c.h.b16 %v1235
    %v6039 = vunpack.c.l.b16 %v1236
    %v6040 = vunpack.c.h.b16 %v1236
    %v6041 = vunpack.c.l.b16 %v1237
    %v6042 = vunpack.c.h.b16 %v1237
    %v6043 = vunpack.c.l.b16 %v1238
    %v6044 = vunpack.c.h.b16 %v1238
    %v6045 = vunpack.c.l.b16 %v1239
    %v6046 = vunpack.c.h.b16 %v1239
    %v6047 = vunpack.c.l.b16 %v1240
    %v6048 = vunpack.c.h.b16 %v1240
    %v6049 = vunpack.c.l.b16 %v1241
    %v6050 = vunpack.c.h.b16 %v1241
    %v6051 = vunpack.c.l.b16 %v1242
    %v6052 = vunpack.c.h.b16 %v1242
    %v6053 = vunpack.c.l.b16 %v1243
    %v6054 = vunpack.c.h.b16 %v1243
    %v6055 = vunpack.c.l.b16 %v1244
    %v6056 = vunpack.c.h.b16 %v1244
    %v6057 = vunpack.c.l.b16 %v1245
    %v6058 = vunpack.c.h.b16 %v1245
    %v6059 = vunpack.c.l.b16 %v1246
    %v6060 = vunpack.c.h.b16 %v1246
    %v6061 = vunpack.c.l.b16 %v1247
    %v6062 = vunpack.c.h.b16 %v1247
    %v6063 = vunpack.c.l.b16 %v1248
    %v6064 = vunpack.c.h.b16 %v1248
    %v6065 = vunpack.c.l.b16 %v1249
    %v6066 = vunpack.c.h.b16 %v1249
    %v6067 = vunpack.c.l.b16 %v1250
    %v6068 = vunpack.c.h.b16 %v1250
    %v6069 = vunpack.c.l.b16 %v1251
    %v6070 = vunpack.c.h.b16 %v1251
    %v6071 = vunpack.c.l.b16 %v1252
    %v6072 = vunpack.c.h.b16 %v1252
    %v6073 = vunpack.c.l.b16 %v1253
    %v6074 = vunpack.c.h.b16 %v1253
    %v6075 = vunpack.c.l.b16 %v1254
    %v6076 = vunpack.c.h.b16 %v1254
    %v6077 = vunpack.c.l.b16 %v1255
    %v6078 = vunpack.c.h.b16 %v1255
    %v6079 = vunpack.c.l.b16 %v1256
    %v6080 = vunpack.c.h.b16 %v1256
    %v6081 = vunpack.c.l.b16 %v1257
    %v6082 = vunpack.c.h.b16 %v1257
    %v6083 = vunpack.c.l.b16 %v1258
    %v6084 = vunpack.c.h.b16 %v1258
    %v6085 = vunpack.c.l.b16 %v1259
    %v6086 = vunpack.c.h.b16 %v1259
    %v6087 = vunpack.c.l.b16 %v1260
    %v6088 = vunpack.c.h.b16 %v1260
    %v6089 = vunpack.c.l.b16 %v1261
    %v6090 = vunpack.c.h.b16 %v1261
    %v6091 = vunpack.c.l.b16 %v1262
    %v6092 = vunpack.c.h.b16 %v1262
    %v6093 = vunpack.c.l.b16 %v1263
    %v6094 = vunpack.c.h.b16 %v1263
    %v6095 = vunpack.c.l.b16 %v1264
    %v6096 = vunpack.c.h.b16 %v1264
    %v6097 = vunpack.c.l.b16 %v1265
    %v6098 = vunpack.c.h.b16 %v1265
    %v6099 = vunpack.c.l.b16 %v1266
    %v6100 = vunpack.c.h.b16 %v1266
    %v6101 = vunpack.c.l.b16 %v1267
    %v6102 = vunpack.c.h.b16 %v1267
    %v6103 = vunpack.c.l.b16 %v1268
    %v6104 = vunpack.c.h.b16 %v1268
    %v6105 = vunpack.c.l.b16 %v1269
    %v6106 = vunpack.c.h.b16 %v1269
    %v6107 = vunpack.c.l.b16 %v1270
    %v6108 = vunpack.c.h.b16 %v1270
    %v6109 = vunpack.c.l.b16 %v1271
    %v6110 = vunpack.c.h.b16 %v1271
    %v6111 = vunpack.c.l.b16 %v1272
    %v6112 = vunpack.c.h.b16 %v1272
    %v6113 = vunpack.c.l.b16 %v1273
    %v6114 = vunpack.c.h.b16 %v1273
    %v6115 = vunpack.c.l.b16 %v1274
    %v6116 = vunpack.c.h.b16 %v1274
    %v6117 = vunpack.c.l.b16 %v1275
    %v6118 = vunpack.c.h.b16 %v1275
    %v6119 = vunpack.c.l.b16 %v1276
    %v6120 = vunpack.c.h.b16 %v1276
    %v6121 = vunpack.c.l.b16 %v1277
    %v6122 = vunpack.c.h.b16 %v1277
    %v6123 = vunpack.c.l.b16 %v1278
    %v6124 = vunpack.c.h.b16 %v1278
    %v6125 = vunpack.c.l.b16 %v1279
    %v6126 = vunpack.c.h.b16 %v1279
    %v6127 = vunpack.c.l.b16 %v1280
    %v6128 = vunpack.c.h.b16 %v1280
    %v6129 = vunpack.c.l.b16 %v1281
    %v6130 = vunpack.c.h.b16 %v1281
    %v6131 = vunpack.c.l.b16 %v1282
    %v6132 = vunpack.c.h.b16 %v1282
    %v6133 = vunpack.c.l.b16 %v1283
    %v6134 = vunpack.c.h.b16 %v1283
    %v6135 = vunpack.c.l.b16 %v1284
    %v6136 = vunpack.c.h.b16 %v1284
    %v6137 = vunpack.c.l.b16 %v1285
    %v6138 = vunpack.c.h.b16 %v1285
    %v6139 = vunpack.c.l.b16 %v1286
    %v6140 = vunpack.c.h.b16 %v1286
    %v6141 = vunpack.c.l.b16 %v1287
    %v6142 = vunpack.c.h.b16 %v1287
    %v6143 = vunpack.c.l.b16 %v1288
    %v6144 = vunpack.c.h.b16 %v1288
    %v6145 = vunpack.c.l.b16 %v1289
    %v6146 = vunpack.c.h.b16 %v1289
    %v6147 = vunpack.c.l.b16 %v1290
    %v6148 = vunpack.c.h.b16 %v1290
    %v6149 = vunpack.c.l.b16 %v1291
    %v6150 = vunpack.c.h.b16 %v1291
    %v6151 = vunpack.c.l.b16 %v1292
    %v6152 = vunpack.c.h.b16 %v1292
    %v6153 = vunpack.c.l.b16 %v1293
    %v6154 = vunpack.c.h.b16 %v1293
    %v6155 = vunpack.c.l.b16 %v1294
    %v6156 = vunpack.c.h.b16 %v1294
    %v6157 = vunpack.c.l.b16 %v1295
    %v6158 = vunpack.c.h.b16 %v1295
    %v6159 = vunpack.c.l.b16 %v1296
    %v6160 = vunpack.c.h.b16 %v1296
    %v6161 = vunpack.c.l.b16 %v1297
    %v6162 = vunpack.c.h.b16 %v1297
    %v6163 = vunpack.c.l.b16 %v1298
    %v6164 = vunpack.c.h.b16 %v1298
    %v6165 = vunpack.c.l.b16 %v1299
    %v6166 = vunpack.c.h.b16 %v1299
    %v6167 = vunpack.c.l.b16 %v1300
    %v6168 = vunpack.c.h.b16 %v1300
    %v6169 = vunpack.c.l.b16 %v1301
    %v6170 = vunpack.c.h.b16 %v1301
    %v6171 = vunpack.c.l.b16 %v1302
    %v6172 = vunpack.c.h.b16 %v1302
    %v6173 = vunpack.c.l.b16 %v1303
    %v6174 = vunpack.c.h.b16 %v1303
    %v6175 = vunpack.c.l.b16 %v1304
    %v6176 = vunpack.c.h.b16 %v1304
    %v6177 = vunpack.c.l.b16 %v1305
    %v6178 = vunpack.c.h.b16 %v1305
    %v6179 = vunpack.c.l.b16 %v1306
    %v6180 = vunpack.c.h.b16 %v1306
    %v6181 = vunpack.c.l.b16 %v1307
    %v6182 = vunpack.c.h.b16 %v1307
    %v6183 = vunpack.c.l.b16 %v1308
    %v6184 = vunpack.c.h.b16 %v1308
    %v6185 = vunpack.c.l.b16 %v1309
    %v6186 = vunpack.c.h.b16 %v1309
    %v6187 = vunpack.c.l.b16 %v1310
    %v6188 = vunpack.c.h.b16 %v1310
    %v6189 = vunpack.c.l.b16 %v1311
    %v6190 = vunpack.c.h.b16 %v1311
    %v6191 = vunpack.c.l.b16 %v1312
    %v6192 = vunpack.c.h.b16 %v1312
    %v6193 = vunpack.c.l.b16 %v1313
    %v6194 = vunpack.c.h.b16 %v1313
    %v6195 = vunpack.c.l.b16 %v1314
    %v6196 = vunpack.c.h.b16 %v1314
    %v6197 = vunpack.c.l.b16 %v1315
    %v6198 = vunpack.c.h.b16 %v1315
    %v6199 = vunpack.c.l.b16 %v1316
    %v6200 = vunpack.c.h.b16 %v1316
    %v6201 = vunpack.c.l.b16 %v1317
    %v6202 = vunpack.c.h.b16 %v1317
    %v6203 = vunpack.c.l.b16 %v1318
    %v6204 = vunpack.c.h.b16 %v1318
    %v6205 = vunpack.c.l.b16 %v1319
    %v6206 = vunpack.c.h.b16 %v1319
    %v6207 = vunpack.c.l.b16 %v1320
    %v6208 = vunpack.c.h.b16 %v1320
    %v6209 = vunpack.c.l.b16 %v1321
    %v6210 = vunpack.c.h.b16 %v1321
    %v6211 = vunpack.c.l.b16 %v1322
    %v6212 = vunpack.c.h.b16 %v1322
    %v6213 = vunpack.c.l.b16 %v1323
    %v6214 = vunpack.c.h.b16 %v1323
    %v6215 = vunpack.c.l.b16 %v1324
    %v6216 = vunpack.c.h.b16 %v1324
    %v6217 = vunpack.c.l.b16 %v1325
    %v6218 = vunpack.c.h.b16 %v1325
    %v6219 = vunpack.c.l.b16 %v1326
    %v6220 = vunpack.c.h.b16 %v1326
    %v6221 = vunpack.c.l.b16 %v1327
    %v6222 = vunpack.c.h.b16 %v1327
    %v6223 = vunpack.c.l.b16 %v1328
    %v6224 = vunpack.c.h.b16 %v1328
    %v6225 = vunpack.c.l.b16 %v1329
    %v6226 = vunpack.c.h.b16 %v1329
    %v6227 = vunpack.c.l.b16 %v1330
    %v6228 = vunpack.c.h.b16 %v1330
    %v6229 = vunpack.c.l.b16 %v1331
    %v6230 = vunpack.c.h.b16 %v1331
    %v6231 = vunpack.c.l.b16 %v1332
    %v6232 = vunpack.c.h.b16 %v1332
    %v6233 = vunpack.c.l.b16 %v1333
    %v6234 = vunpack.c.h.b16 %v1333
    %v6235 = vunpack.c.l.b16 %v1334
    %v6236 = vunpack.c.h.b16 %v1334
    %v6237 = vunpack.c.l.b16 %v1335
    %v6238 = vunpack.c.h.b16 %v1335
    %v6239 = vunpack.c.l.b16 %v1336
    %v6240 = vunpack.c.h.b16 %v1336
    %v6241 = vunpack.c.l.b16 %v1337
    %v6242 = vunpack.c.h.b16 %v1337
    %v6243 = vunpack.c.l.b16 %v1338
    %v6244 = vunpack.c.h.b16 %v1338
    %v6245 = vunpack.c.l.b16 %v1339
    %v6246 = vunpack.c.h.b16 %v1339
    %v6247 = vunpack.c.l.b16 %v1340
    %v6248 = vunpack.c.h.b16 %v1340
    %v6249 = vunpack.c.l.b16 %v1341
    %v6250 = vunpack.c.h.b16 %v1341
    %v6251 = vunpack.c.l.b16 %v1342
    %v6252 = vunpack.c.h.b16 %v1342
    %v6253 = vunpack.c.l.b16 %v1343
    %v6254 = vunpack.c.h.b16 %v1343
    %v6255 = vunpack.c.l.b16 %v1344
    %v6256 = vunpack.c.h.b16 %v1344
    %v6257 = vunpack.c.l.b16 %v1345
    %v6258 = vunpack.c.h.b16 %v1345
    %v6259 = vunpack.c.l.b16 %v1346
    %v6260 = vunpack.c.h.b16 %v1346
    %v6261 = vunpack.c.l.b16 %v1347
    %v6262 = vunpack.c.h.b16 %v1347
    %v6263 = vunpack.c.l.b16 %v1348
    %v6264 = vunpack.c.h.b16 %v1348
    %v6265 = vunpack.c.l.b16 %v1349
    %v6266 = vunpack.c.h.b16 %v1349
    %v6267 = vunpack.c.l.b16 %v1350
    %v6268 = vunpack.c.h.b16 %v1350
    %v6269 = vunpack.c.l.b16 %v1351
    %v6270 = vunpack.c.h.b16 %v1351
    %v6271 = vunpack.c.l.b16 %v1352
    %v6272 = vunpack.c.h.b16 %v1352
    %v6273 = vunpack.c.l.b16 %v1353
    %v6274 = vunpack.c.h.b16 %v1353
    %v6275 = vunpack.c.l.b16 %v1354
    %v6276 = vunpack.c.h.b16 %v1354
    %v6277 = vunpack.c.l.b16 %v1355
    %v6278 = vunpack.c.h.b16 %v1355
    %v6279 = vunpack.c.l.b16 %v1356
    %v6280 = vunpack.c.h.b16 %v1356
    %v6281 = vunpack.c.l.b16 %v1357
    %v6282 = vunpack.c.h.b16 %v1357
    %v6283 = vunpack.c.l.b16 %v1358
    %v6284 = vunpack.c.h.b16 %v1358
    %v6285 = vunpack.c.l.b16 %v1359
    %v6286 = vunpack.c.h.b16 %v1359
    %v6287 = vunpack.c.l.b16 %v1360
    %v6288 = vunpack.c.h.b16 %v1360
    %v6289 = vunpack.c.l.b16 %v1361
    %v6290 = vunpack.c.h.b16 %v1361
    %v6291 = vunpack.c.l.b16 %v1362
    %v6292 = vunpack.c.h.b16 %v1362
    %v6293 = vunpack.c.l.b16 %v1363
    %v6294 = vunpack.c.h.b16 %v1363
    %v6295 = vunpack.c.l.b16 %v1364
    %v6296 = vunpack.c.h.b16 %v1364
    %v6297 = vunpack.c.l.b16 %v1365
    %v6298 = vunpack.c.h.b16 %v1365
    %v6299 = vunpack.c.l.b16 %v1366
    %v6300 = vunpack.c.h.b16 %v1366
    %v6301 = vunpack.c.l.b16 %v1367
    %v6302 = vunpack.c.h.b16 %v1367
    %v6303 = vunpack.c.l.b16 %v1368
    %v6304 = vunpack.c.h.b16 %v1368
    %v6305 = vunpack.c.l.b16 %v1369
    %v6306 = vunpack.c.h.b16 %v1369
    %v6307 = vunpack.c.l.b16 %v1370
    %v6308 = vunpack.c.h.b16 %v1370
    %v6309 = vunpack.c.l.b16 %v1371
    %v6310 = vunpack.c.h.b16 %v1371
    %v6311 = vunpack.c.l.b16 %v1372
    %v6312 = vunpack.c.h.b16 %v1372
    %v6313 = vunpack.c.l.b16 %v1373
    %v6314 = vunpack.c.h.b16 %v1373
    %v6315 = vunpack.c.l.b16 %v1374
    %v6316 = vunpack.c.h.b16 %v1374
    %v6317 = vunpack.c.l.b16 %v1375
    %v6318 = vunpack.c.h.b16 %v1375
    %v6319 = vunpack.c.l.b16 %v1376
    %v6320 = vunpack.c.h.b16 %v1376
    %v6321 = vunpack.c.l.b16 %v1377
    %v6322 = vunpack.c.h.b16 %v1377
    %v6323 = vunpack.c.l.b16 %v1378
    %v6324 = vunpack.c.h.b16 %v1378
    %v6325 = vunpack.c.l.b16 %v1379
    %v6326 = vunpack.c.h.b16 %v1379
    %v6327 = vunpack.c.l.b16 %v1380
    %v6328 = vunpack.c.h.b16 %v1380
    %v6329 = vunpack.c.l.b16 %v1381
    %v6330 = vunpack.c.h.b16 %v1381
    %v6331 = vunpack.c.l.b16 %v1382
    %v6332 = vunpack.c.h.b16 %v1382
    %v6333 = vunpack.c.l.b16 %v1383
    %v6334 = vunpack.c.h.b16 %v1383
    %v6335 = vunpack.c.l.b16 %v1384
    %v6336 = vunpack.c.h.b16 %v1384
    %v6337 = vunpack.c.l.b16 %v1385
    %v6338 = vunpack.c.h.b16 %v1385
    %v6339 = vunpack.c.l.b16 %v1386
    %v6340 = vunpack.c.h.b16 %v1386
    %v6341 = vunpack.c.l.b16 %v1387
    %v6342 = vunpack.c.h.b16 %v1387
    %v6343 = vunpack.c.l.b16 %v1388
    %v6344 = vunpack.c.h.b16 %v1388
    %v6345 = vunpack.c.l.b16 %v1389
    %v6346 = vunpack.c.h.b16 %v1389
    %v6347 = vunpack.c.l.b16 %v1390
    %v6348 = vunpack.c.h.b16 %v1390
    %v6349 = vunpack.c.l.b16 %v1391
    %v6350 = vunpack.c.h.b16 %v1391
    %v6351 = vunpack.c.l.b16 %v1392
    %v6352 = vunpack.c.h.b16 %v1392
    %v6353 = vunpack.c.l.b16 %v1393
    %v6354 = vunpack.c.h.b16 %v1393
    %v6355 = vunpack.c.l.b16 %v1394
    %v6356 = vunpack.c.h.b16 %v1394
    %v6357 = vunpack.c.l.b16 %v1395
    %v6358 = vunpack.c.h.b16 %v1395
    %v6359 = vunpack.c.l.b16 %v1396
    %v6360 = vunpack.c.h.b16 %v1396
    %v6361 = vunpack.c.l.b16 %v1397
    %v6362 = vunpack.c.h.b16 %v1397
    %v6363 = vunpack.c.l.b16 %v1398
    %v6364 = vunpack.c.h.b16 %v1398
    %v6365 = vunpack.c.l.b16 %v1399
    %v6366 = vunpack.c.h.b16 %v1399
    %v6367 = vunpack.c.l.b16 %v1400
    %v6368 = vunpack.c.h.b16 %v1400
    %v6369 = vunpack.c.l.b16 %v1401
    %v6370 = vunpack.c.h.b16 %v1401
    %v6371 = vunpack.c.l.b16 %v1402
    %v6372 = vunpack.c.h.b16 %v1402
    %v6373 = vunpack.c.l.b16 %v1403
    %v6374 = vunpack.c.h.b16 %v1403
    %v6375 = vunpack.c.l.b16 %v1404
    %v6376 = vunpack.c.h.b16 %v1404
    %v6377 = vunpack.c.l.b16 %v1405
    %v6378 = vunpack.c.h.b16 %v1405
    %v6379 = vunpack.c.l.b16 %v1406
    %v6380 = vunpack.c.h.b16 %v1406
    %v6381 = vunpack.c.l.b16 %v1407
    %v6382 = vunpack.c.h.b16 %v1407
    %v6383 = vunpack.c.l.b16 %v1408
    %v6384 = vunpack.c.h.b16 %v1408
    %v6385 = vunpack.c.l.b16 %v1409
    %v6386 = vunpack.c.h.b16 %v1409
    %v6387 = vunpack.c.l.b16 %v1410
    %v6388 = vunpack.c.h.b16 %v1410
    %v6389 = vunpack.c.l.b16 %v1411
    %v6390 = vunpack.c.h.b16 %v1411
    %v6391 = vunpack.c.l.b16 %v1412
    %v6392 = vunpack.c.h.b16 %v1412
    %v6393 = vunpack.c.l.b16 %v1413
    %v6394 = vunpack.c.h.b16 %v1413
    %v6395 = vunpack.c.l.b16 %v1414
    %v6396 = vunpack.c.h.b16 %v1414
    %v6397 = vunpack.c.l.b16 %v1415
    %v6398 = vunpack.c.h.b16 %v1415
    %v6399 = vunpack.c.l.b16 %v1416
    %v6400 = vunpack.c.h.b16 %v1416
    %v6401 = vunpack.c.l.b16 %v1417
    %v6402 = vunpack.c.h.b16 %v1417
    %v6403 = vunpack.c.l.b16 %v1418
    %v6404 = vunpack.c.h.b16 %v1418
    %v6405 = vunpack.c.l.b16 %v1419
    %v6406 = vunpack.c.h.b16 %v1419
    %v6407 = vunpack.c.l.b16 %v1420
    %v6408 = vunpack.c.h.b16 %v1420
    %v6409 = vunpack.c.l.b16 %v1421
    %v6410 = vunpack.c.h.b16 %v1421
    %v6411 = vunpack.c.l.b16 %v1422
    %v6412 = vunpack.c.h.b16 %v1422
    %v6413 = vunpack.c.l.b16 %v1423
    %v6414 = vunpack.c.h.b16 %v1423
    %v6415 = vunpack.c.l.b16 %v1424
    %v6416 = vunpack.c.h.b16 %v1424
    %v6417 = vunpack.c.l.b16 %v1425
    %v6418 = vunpack.c.h.b16 %v1425
    %v6419 = vunpack.c.l.b16 %v1426
    %v6420 = vunpack.c.h.b16 %v1426
    %v6421 = vunpack.c.l.b16 %v1427
    %v6422 = vunpack.c.h.b16 %v1427
    %v6423 = vunpack.c.l.b16 %v1428
    %v6424 = vunpack.c.h.b16 %v1428
    %v6425 = vunpack.c.l.b16 %v1429
    %v6426 = vunpack.c.h.b16 %v1429
    %v6427 = vunpack.c.l.b16 %v1430
    %v6428 = vunpack.c.h.b16 %v1430
    %v6429 = vunpack.c.l.b16 %v1431
    %v6430 = vunpack.c.h.b16 %v1431
    %v6431 = vunpack.c.l.b16 %v1432
    %v6432 = vunpack.c.h.b16 %v1432
    %v6433 = vunpack.c.l.b16 %v1433
    %v6434 = vunpack.c.h.b16 %v1433
    %v6435 = vunpack.c.l.b16 %v1434
    %v6436 = vunpack.c.h.b16 %v1434
    %v6437 = vunpack.c.l.b16 %v1435
    %v6438 = vunpack.c.h.b16 %v1435
    %v6439 = vunpack.c.l.b16 %v1436
    %v6440 = vunpack.c.h.b16 %v1436
    %v6441 = vunpack.c.l.b16 %v1437
    %v6442 = vunpack.c.h.b16 %v1437
    %v6443 = vunpack.c.l.b16 %v1438
    %v6444 = vunpack.c.h.b16 %v1438
    %v6445 = vunpack.c.l.b16 %v1439
    %v6446 = vunpack.c.h.b16 %v1439
    %v6447 = vunpack.c.l.b16 %v1440
    %v6448 = vunpack.c.h.b16 %v1440
    %v6449 = vunpack.c.l.b16 %v1441
    %v6450 = vunpack.c.h.b16 %v1441
    %v6451 = vunpack.c.l.b16 %v1442
    %v6452 = vunpack.c.h.b16 %v1442
    %v6453 = vunpack.c.l.b16 %v1443
    %v6454 = vunpack.c.h.b16 %v1443
    %v6455 = vunpack.c.l.b16 %v1444
    %v6456 = vunpack.c.h.b16 %v1444
    %v6457 = vunpack.c.l.b16 %v1445
    %v6458 = vunpack.c.h.b16 %v1445
    %v6459 = vunpack.c.l.b16 %v1446
    %v6460 = vunpack.c.h.b16 %v1446
    %v6461 = vunpack.c.l.b16 %v1447
    %v6462 = vunpack.c.h.b16 %v1447
    %v6463 = vunpack.c.l.b16 %v1448
    %v6464 = vunpack.c.h.b16 %v1448
    %v6465 = vunpack.c.l.b16 %v1449
    %v6466 = vunpack.c.h.b16 %v1449
    %v6467 = vunpack.c.l.b16 %v1450
    %v6468 = vunpack.c.h.b16 %v1450
    %v6469 = vunpack.c.l.b16 %v1451
    %v6470 = vunpack.c.h.b16 %v1451
    %v6471 = vunpack.c.l.b16 %v1452
    %v6472 = vunpack.c.h.b16 %v1452
    %v6473 = vunpack.c.l.b16 %v1453
    %v6474 = vunpack.c.h.b16 %v1453
    %v6475 = vunpack.c.l.b16 %v1454
    %v6476 = vunpack.c.h.b16 %v1454
    %v6477 = vunpack.c.l.b16 %v1455
    %v6478 = vunpack.c.h.b16 %v1455
    %v6479 = vunpack.c.l.b16 %v1456
    %v6480 = vunpack.c.h.b16 %v1456
    %v6481 = vunpack.c.l.b16 %v1457
    %v6482 = vunpack.c.h.b16 %v1457
    %v6483 = vunpack.c.l.b16 %v1458
    %v6484 = vunpack.c.h.b16 %v1458
    %v6485 = vunpack.c.l.b16 %v1459
    %v6486 = vunpack.c.h.b16 %v1459
    %v6487 = vunpack.c.l.b16 %v1460
    %v6488 = vunpack.c.h.b16 %v1460
    %v6489 = vunpack.c.l.b16 %v1461
    %v6490 = vunpack.c.h.b16 %v1461
    %v6491 = vunpack.c.l.b16 %v1462
    %v6492 = vunpack.c.h.b16 %v1462
    %v6493 = vunpack.c.l.b16 %v1463
    %v6494 = vunpack.c.h.b16 %v1463
    %v6495 = vunpack.c.l.b16 %v1464
    %v6496 = vunpack.c.h.b16 %v1464
    %v6497 = vunpack.c.l.b16 %v1465
    %v6498 = vunpack.c.h.b16 %v1465
    %v6499 = vunpack.c.l.b16 %v1466
    %v6500 = vunpack.c.h.b16 %v1466
    %v6501 = vunpack.c.l.b16 %v1467
    %v6502 = vunpack.c.h.b16 %v1467
    %v6503 = vunpack.c.l.b16 %v1468
    %v6504 = vunpack.c.h.b16 %v1468
    %v6505 = vunpack.c.l.b16 %v1469
    %v6506 = vunpack.c.h.b16 %v1469
    %v6507 = vunpack.c.l.b16 %v1470
    %v6508 = vunpack.c.h.b16 %v1470
    %v6509 = vunpack.c.l.b16 %v1471
    %v6510 = vunpack.c.h.b16 %v1471
    %v6511 = vunpack.c.l.b16 %v1472
    %v6512 = vunpack.c.h.b16 %v1472
    %v6513 = vunpack.c.l.b16 %v1473
    %v6514 = vunpack.c.h.b16 %v1473
    %v6515 = vunpack.c.l.b16 %v1474
    %v6516 = vunpack.c.h.b16 %v1474
    %v6517 = vunpack.c.l.b16 %v1475
    %v6518 = vunpack.c.h.b16 %v1475
    %v6519 = vunpack.c.l.b16 %v1476
    %v6520 = vunpack.c.h.b16 %v1476
    %v6521 = vunpack.c.l.b16 %v1477
    %v6522 = vunpack.c.h.b16 %v1477
    %v6523 = vunpack.c.l.b16 %v1478
    %v6524 = vunpack.c.h.b16 %v1478
    %v6525 = vunpack.c.l.b16 %v1479
    %v6526 = vunpack.c.h.b16 %v1479
    %v6527 = vunpack.c.l.b16 %v1480
    %v6528 = vunpack.c.h.b16 %v1480
    %v6529 = vunpack.c.l.b16 %v1481
    %v6530 = vunpack.c.h.b16 %v1481
    %v6531 = vunpack.c.l.b16 %v1482
    %v6532 = vunpack.c.h.b16 %v1482
    %v6533 = vunpack.c.l.b16 %v1483
    %v6534 = vunpack.c.h.b16 %v1483
    %v6535 = vunpack.c.l.b16 %v1484
    %v6536 = vunpack.c.h.b16 %v1484
    %v6537 = vunpack.c.l.b16 %v1485
    %v6538 = vunpack.c.h.b16 %v1485
    %v6539 = vunpack.c.l.b16 %v1486
    %v6540 = vunpack.c.h.b16 %v1486
    %v6541 = vunpack.c.l.b16 %v1487
    %v6542 = vunpack.c.h.b16 %v1487
    %v6543 = vunpack.c.l.b16 %v1488
    %v6544 = vunpack.c.h.b16 %v1488
    %v6545 = vunpack.c.l.b16 %v1489
    %v6546 = vunpack.c.h.b16 %v1489
    %v6547 = vunpack.c.l.b16 %v1490
    %v6548 = vunpack.c.h.b16 %v1490
    %v6549 = vunpack.c.l.b16 %v1491
    %v6550 = vunpack.c.h.b16 %v1491
    %v6551 = vunpack.c.l.b16 %v1492
    %v6552 = vunpack.c.h.b16 %v1492
    %v6553 = vunpack.c.l.b16 %v1493
    %v6554 = vunpack.c.h.b16 %v1493
    %v6555 = vunpack.c.l.b16 %v1494
    %v6556 = vunpack.c.h.b16 %v1494
    %v6557 = vunpack.c.l.b16 %v1495
    %v6558 = vunpack.c.h.b16 %v1495
    %v6559 = vunpack.c.l.b16 %v1496
    %v6560 = vunpack.c.h.b16 %v1496
    %v6561 = vunpack.c.l.b16 %v1497
    %v6562 = vunpack.c.h.b16 %v1497
    %v6563 = vunpack.c.l.b16 %v1498
    %v6564 = vunpack.c.h.b16 %v1498
    %v6565 = vunpack.c.l.b16 %v1499
    %v6566 = vunpack.c.h.b16 %v1499
    %v6567 = vunpack.c.l.b16 %v1500
    %v6568 = vunpack.c.h.b16 %v1500
    %v6569 = vunpack.c.l.b16 %v1501
    %v6570 = vunpack.c.h.b16 %v1501
    %v6571 = vunpack.c.l.b16 %v1502
    %v6572 = vunpack.c.h.b16 %v1502
    %v6573 = vunpack.c.l.b16 %v1503
    %v6574 = vunpack.c.h.b16 %v1503
    %v6575 = vunpack.c.l.b16 %v1504
    %v6576 = vunpack.c.h.b16 %v1504
    %v6577 = vunpack.c.l.b16 %v1505
    %v6578 = vunpack.c.h.b16 %v1505
    %v6579 = vunpack.c.l.b16 %v1506
    %v6580 = vunpack.c.h.b16 %v1506
    %v6581 = vunpack.c.l.b16 %v1507
    %v6582 = vunpack.c.h.b16 %v1507
    %v6583 = vunpack.c.l.b16 %v1508
    %v6584 = vunpack.c.h.b16 %v1508
    %v6585 = vunpack.c.l.b16 %v1509
    %v6586 = vunpack.c.h.b16 %v1509
    %v6587 = vunpack.c.l.b16 %v1510
    %v6588 = vunpack.c.h.b16 %v1510
    %v6589 = vunpack.c.l.b16 %v1511
    %v6590 = vunpack.c.h.b16 %v1511
    %v6591 = vunpack.c.l.b16 %v1512
    %v6592 = vunpack.c.h.b16 %v1512
    %v6593 = vunpack.c.l.b16 %v1513
    %v6594 = vunpack.c.h.b16 %v1513
    %v6595 = vunpack.c.l.b16 %v1514
    %v6596 = vunpack.c.h.b16 %v1514
    %v6597 = vunpack.c.l.b16 %v1515
    %v6598 = vunpack.c.h.b16 %v1515
    %v6599 = vunpack.c.l.b16 %v1516
    %v6600 = vunpack.c.h.b16 %v1516
    %v6601 = vunpack.c.l.b16 %v1517
    %v6602 = vunpack.c.h.b16 %v1517
    %v6603 = vunpack.c.l.b16 %v1518
    %v6604 = vunpack.c.h.b16 %v1518
    %v6605 = vunpack.c.l.b16 %v1519
    %v6606 = vunpack.c.h.b16 %v1519
    %v6607 = vunpack.c.l.b16 %v1520
    %v6608 = vunpack.c.h.b16 %v1520
    %v6609 = vunpack.c.l.b16 %v1521
    %v6610 = vunpack.c.h.b16 %v1521
    %v6611 = vunpack.c.l.b16 %v1522
    %v6612 = vunpack.c.h.b16 %v1522
    %v6613 = vunpack.c.l.b16 %v1523
    %v6614 = vunpack.c.h.b16 %v1523
    %v6615 = vunpack.c.l.b16 %v1524
    %v6616 = vunpack.c.h.b16 %v1524
    %v6617 = vunpack.c.l.b16 %v1525
    %v6618 = vunpack.c.h.b16 %v1525
    %v6619 = vunpack.c.l.b16 %v1526
    %v6620 = vunpack.c.h.b16 %v1526
    %v6621 = vunpack.c.l.b16 %v1527
    %v6622 = vunpack.c.h.b16 %v1527
    %v6623 = vunpack.c.l.b16 %v1528
    %v6624 = vunpack.c.h.b16 %v1528
    %v6625 = vunpack.c.l.b16 %v1529
    %v6626 = vunpack.c.h.b16 %v1529
    %v6627 = vunpack.c.l.b16 %v1530
    %v6628 = vunpack.c.h.b16 %v1530
    %v6629 = vunpack.c.l.b16 %v1531
    %v6630 = vunpack.c.h.b16 %v1531
    %v6631 = vunpack.c.l.b16 %v1532
    %v6632 = vunpack.c.h.b16 %v1532
    %v6633 = vunpack.c.l.b16 %v1533
    %v6634 = vunpack.c.h.b16 %v1533
    %v6635 = vunpack.c.l.b16 %v1534
    %v6636 = vunpack.c.h.b16 %v1534
    %v6637 = vunpack.c.l.b16 %v1535
    %v6638 = vunpack.c.h.b16 %v1535
    %v6639 = vunpack.c.l.b16 %v1536
    %v6640 = vunpack.c.h.b16 %v1536
    %v6641 = vunpack.c.l.b16 %v1537
    %v6642 = vunpack.c.h.b16 %v1537
    %v6643 = vunpack.c.l.b16 %v1538
    %v6644 = vunpack.c.h.b16 %v1538
    %v6645 = vunpack.c.l.b16 %v1539
    %v6646 = vunpack.c.h.b16 %v1539
    %v6647 = vunpack.c.l.b16 %v1540
    %v6648 = vunpack.c.h.b16 %v1540
    %v6649 = vunpack.c.l.b16 %v1541
    %v6650 = vunpack.c.h.b16 %v1541
    %v6651 = vunpack.c.l.b16 %v1542
    %v6652 = vunpack.c.h.b16 %v1542
    %v6653 = vunpack.c.l.b16 %v1543
    %v6654 = vunpack.c.h.b16 %v1543
    %v6655 = vunpack.c.l.b16 %v1544
    %v6656 = vunpack.c.h.b16 %v1544
    %v6657 = vunpack.c.l.b16 %v1545
    %v6658 = vunpack.c.h.b16 %v1545
    %v6659 = vunpack.c.l.b16 %v1546
    %v6660 = vunpack.c.h.b16 %v1546
    %v6661 = vunpack.c.l.b16 %v1547
    %v6662 = vunpack.c.h.b16 %v1547
    %v6663 = vunpack.c.l.b16 %v1548
    %v6664 = vunpack.c.h.b16 %v1548
    %v6665 = vunpack.c.l.b16 %v1549
    %v6666 = vunpack.c.h.b16 %v1549
    %v6667 = vunpack.c.l.b16 %v1550
    %v6668 = vunpack.c.h.b16 %v1550
    %v6669 = vunpack.c.l.b16 %v1551
    %v6670 = vunpack.c.h.b16 %v1551
    %v6671 = vunpack.c.l.b16 %v1552
    %v6672 = vunpack.c.h.b16 %v1552
    %v6673 = vunpack.c.l.b16 %v1553
    %v6674 = vunpack.c.h.b16 %v1553
    %v6675 = vunpack.c.l.b16 %v1554
    %v6676 = vunpack.c.h.b16 %v1554
    %v6677 = vunpack.c.l.b16 %v1555
    %v6678 = vunpack.c.h.b16 %v1555
    %v6679 = vunpack.c.l.b16 %v1556
    %v6680 = vunpack.c.h.b16 %v1556
    %v6681 = vunpack.c.l.b16 %v1557
    %v6682 = vunpack.c.h.b16 %v1557
    %v6683 = vunpack.c.l.b16 %v1558
    %v6684 = vunpack.c.h.b16 %v1558
    %v6685 = vunpack.c.l.b16 %v1559
    %v6686 = vunpack.c.h.b16 %v1559
    %v6687 = vunpack.c.l.b16 %v1560
    %v6688 = vunpack.c.h.b16 %v1560
    %v6689 = vunpack.c.l.b16 %v1561
    %v6690 = vunpack.c.h.b16 %v1561
    %v6691 = vunpack.c.l.b16 %v1562
    %v6692 = vunpack.c.h.b16 %v1562
    %v6693 = vunpack.c.l.b16 %v1563
    %v6694 = vunpack.c.h.b16 %v1563
    %v6695 = vunpack.c.l.b16 %v1564
    %v6696 = vunpack.c.h.b16 %v1564
    %v6697 = vunpack.c.l.b16 %v1565
    %v6698 = vunpack.c.h.b16 %v1565
    %v6699 = vunpack.c.l.b16 %v1566
    %v6700 = vunpack.c.h.b16 %v1566
    %v6701 = vunpack.c.l.b16 %v1567
    %v6702 = vunpack.c.h.b16 %v1567
    %v6703 = vunpack.c.l.b16 %v1568
    %v6704 = vunpack.c.h.b16 %v1568
    %v6705 = vunpack.c.l.b16 %v1569
    %v6706 = vunpack.c.h.b16 %v1569
    %v6707 = vunpack.c.l.b16 %v1570
    %v6708 = vunpack.c.h.b16 %v1570
    %v6709 = vunpack.c.l.b16 %v1571
    %v6710 = vunpack.c.h.b16 %v1571
    %v6711 = vunpack.c.l.b16 %v1572
    %v6712 = vunpack.c.h.b16 %v1572
    %v6713 = vunpack.c.l.b16 %v1573
    %v6714 = vunpack.c.h.b16 %v1573
    %v6715 = vunpack.c.l.b16 %v1574
    %v6716 = vunpack.c.h.b16 %v1574
    %v6717 = vunpack.c.l.b16 %v1575
    %v6718 = vunpack.c.h.b16 %v1575
    %v6719 = vunpack.c.l.b16 %v1576
    %v6720 = vunpack.c.h.b16 %v1576
    %v6721 = vunpack.c.l.b16 %v1577
    %v6722 = vunpack.c.h.b16 %v1577
    %v6723 = vunpack.c.l.b16 %v1578
    %v6724 = vunpack.c.h.b16 %v1578
    %v6725 = vunpack.c.l.b16 %v1579
    %v6726 = vunpack.c.h.b16 %v1579
    %v6727 = vunpack.c.l.b16 %v1580
    %v6728 = vunpack.c.h.b16 %v1580
    %v6729 = vunpack.c.l.b16 %v1581
    %v6730 = vunpack.c.h.b16 %v1581
    %v6731 = vunpack.c.l.b16 %v1582
    %v6732 = vunpack.c.h.b16 %v1582
    %v6733 = vunpack.c.l.b16 %v1583
    %v6734 = vunpack.c.h.b16 %v1583
    %v6735 = vunpack.c.l.b16 %v1584
    %v6736 = vunpack.c.h.b16 %v1584
    %v6737 = vunpack.c.l.b16 %v1585
    %v6738 = vunpack.c.h.b16 %v1585
    %v6739 = vunpack.c.l.b16 %v1586
    %v6740 = vunpack.c.h.b16 %v1586
    %v6741 = vunpack.c.l.b16 %v1587
    %v6742 = vunpack.c.h.b16 %v1587
    %v6743 = vunpack.c.l.b16 %v1588
    %v6744 = vunpack.c.h.b16 %v1588
    %v6745 = vunpack.c.l.b16 %v1589
    %v6746 = vunpack.c.h.b16 %v1589
    %v6747 = vunpack.c.l.b16 %v1590
    %v6748 = vunpack.c.h.b16 %v1590
    %v6749 = vunpack.c.l.b16 %v1591
    %v6750 = vunpack.c.h.b16 %v1591
    %v6751 = vunpack.c.l.b16 %v1592
    %v6752 = vunpack.c.h.b16 %v1592
    %v6753 = vunpack.c.l.b16 %v1593
    %v6754 = vunpack.c.h.b16 %v1593
    %v6755 = vunpack.c.l.b16 %v1594
    %v6756 = vunpack.c.h.b16 %v1594
    %v6757 = vunpack.c.l.b16 %v1595
    %v6758 = vunpack.c.h.b16 %v1595
    %v6759 = vunpack.c.l.b16 %v1596
    %v6760 = vunpack.c.h.b16 %v1596
    %v6761 = vunpack.c.l.b16 %v1597
    %v6762 = vunpack.c.h.b16 %v1597
    %v6763 = vunpack.c.l.b16 %v1598
    %v6764 = vunpack.c.h.b16 %v1598
    %v6765 = vunpack.c.l.b16 %v1599
    %v6766 = vunpack.c.h.b16 %v1599
    %v6767 = vunpack.c.l.b16 %v1600
    %v6768 = vunpack.c.h.b16 %v1600
    %v6769 = vunpack.c.l.b16 %v1601
    %v6770 = vunpack.c.h.b16 %v1601
    %v6771 = vunpack.c.l.b16 %v1602
    %v6772 = vunpack.c.h.b16 %v1602
    %v6773 = vunpack.c.l.b16 %v1603
    %v6774 = vunpack.c.h.b16 %v1603
    %v6775 = vunpack.c.l.b16 %v1604
    %v6776 = vunpack.c.h.b16 %v1604
    %v6777 = vunpack.c.l.b16 %v1605
    %v6778 = vunpack.c.h.b16 %v1605
    %v6779 = vunpack.c.l.b16 %v1606
    %v6780 = vunpack.c.h.b16 %v1606
    %v6781 = vunpack.c.l.b16 %v1607
    %v6782 = vunpack.c.h.b16 %v1607
    %v6783 = vunpack.c.l.b16 %v1608
    %v6784 = vunpack.c.h.b16 %v1608
    %v6785 = vunpack.c.l.b16 %v1609
    %v6786 = vunpack.c.h.b16 %v1609
    %v6787 = vunpack.c.l.b16 %v1610
    %v6788 = vunpack.c.h.b16 %v1610
    %v6789 = vunpack.c.l.b16 %v1611
    %v6790 = vunpack.c.h.b16 %v1611
    %v6791 = vunpack.c.l.b16 %v1612
    %v6792 = vunpack.c.h.b16 %v1612
    %v6793 = vunpack.c.l.b16 %v1613
    %v6794 = vunpack.c.h.b16 %v1613
    %v6795 = vunpack.c.l.b16 %v1614
    %v6796 = vunpack.c.h.b16 %v1614
    %v6797 = vunpack.c.l.b16 %v1615
    %v6798 = vunpack.c.h.b16 %v1615
    %v6799 = vunpack.c.l.b16 %v1616
    %v6800 = vunpack.c.h.b16 %v1616
    %v6801 = vunpack.c.l.b16 %v1617
    %v6802 = vunpack.c.h.b16 %v1617
    %v6803 = vunpack.c.l.b16 %v1618
    %v6804 = vunpack.c.h.b16 %v1618
    %v6805 = vunpack.c.l.b16 %v1619
    %v6806 = vunpack.c.h.b16 %v1619
    %v6807 = vunpack.c.l.b16 %v1620
    %v6808 = vunpack.c.h.b16 %v1620
    %v6809 = vunpack.c.l.b16 %v1621
    %v6810 = vunpack.c.h.b16 %v1621
    %v6811 = vunpack.c.l.b16 %v1622
    %v6812 = vunpack.c.h.b16 %v1622
    %v6813 = vunpack.c.l.b16 %v1623
    %v6814 = vunpack.c.h.b16 %v1623
    %v6815 = vunpack.c.l.b16 %v1624
    %v6816 = vunpack.c.h.b16 %v1624
    %v6817 = vunpack.c.l.b16 %v1625
    %v6818 = vunpack.c.h.b16 %v1625
    %v6819 = vunpack.c.l.b16 %v1626
    %v6820 = vunpack.c.h.b16 %v1626
    %v6821 = vunpack.c.l.b16 %v1627
    %v6822 = vunpack.c.h.b16 %v1627
    %v6823 = vpack.c.b16 %v3627, %v3623
    %v6824 = vpack.c.b16 %v3628, %v3624
    %v6825 = vpack.c.b16 %v3629, %v3625
    %v6826 = vpack.c.b16 %v3630, %v3626
    %v6827 = vpack.c.b16 %v3635, %v3631
    %v6828 = vpack.c.b16 %v3636, %v3632
    %v6829 = vpack.c.b16 %v3637, %v3633
    %v6830 = vpack.c.b16 %v3638, %v3634
    %v6831 = vpack.c.b16 %v3643, %v3639
    %v6832 = vpack.c.b16 %v3644, %v3640
    %v6833 = vpack.c.b16 %v3645, %v3641
    %v6834 = vpack.c.b16 %v3646, %v3642
    %v6835 = vpack.c.b16 %v3651, %v3647
    %v6836 = vpack.c.b16 %v3652, %v3648
    %v6837 = vpack.c.b16 %v3653, %v3649
    %v6838 = vpack.c.b16 %v3654, %v3650
    %v6839 = vpack.c.b16 %v3659, %v3655
    %v6840 = vpack.c.b16 %v3660, %v3656
    %v6841 = vpack.c.b16 %v3661, %v3657
    %v6842 = vpack.c.b16 %v3662, %v3658
    %v6843 = vpack.c.b16 %v3667, %v3663
    %v6844 = vpack.c.b16 %v3668, %v3664
    %v6845 = vpack.c.b16 %v3669, %v3665
    %v6846 = vpack.c.b16 %v3670, %v3666
    %v6847 = vpack.c.b16 %v3675, %v3671
    %v6848 = vpack.c.b16 %v3676, %v3672
    %v6849 = vpack.c.b16 %v3677, %v3673
    %v6850 = vpack.c.b16 %v3678, %v3674
    %v6851 = vpack.c.b16 %v3683, %v3679
    %v6852 = vpack.c.b16 %v3684, %v3680
    %v6853 = vpack.c.b16 %v3685, %v3681
    %v6854 = vpack.c.b16 %v3686, %v3682
    %v6855 = vpack.c.b16 %v3691, %v3687
    %v6856 = vpack.c.b16 %v3692, %v3688
    %v6857 = vpack.c.b16 %v3693, %v3689
    %v6858 = vpack.c.b16 %v3694, %v3690
    %v6859 = vpack.c.b16 %v3699, %v3695
    %v6860 = vpack.c.b16 %v3700, %v3696
    %v6861 = vpack.c.b16 %v3701, %v3697
    %v6862 = vpack.c.b16 %v3702, %v3698
    %v6863 = vpack.c.b16 %v3707, %v3703
    %v6864 = vpack.c.b16 %v3708, %v3704
    %v6865 = vpack.c.b16 %v3709, %v3705
    %v6866 = vpack.c.b16 %v3710, %v3706
    %v6867 = vpack.c.b16 %v3715, %v3711
    %v6868 = vpack.c.b16 %v3716, %v3712
    %v6869 = vpack.c.b16 %v3717, %v3713
    %v6870 = vpack.c.b16 %v3718, %v3714
    %v6871 = vpack.c.b16 %v3723, %v3719
    %v6872 = vpack.c.b16 %v3724, %v3720
    %v6873 = vpack.c.b16 %v3725, %v3721
    %v6874 = vpack.c.b16 %v3726, %v3722
    %v6875 = vpack.c.b16 %v3731, %v3727
    %v6876 = vpack.c.b16 %v3732, %v3728
    %v6877 = vpack.c.b16 %v3733, %v3729
    %v6878 = vpack.c.b16 %v3734, %v3730
    %v6879 = vpack.c.b16 %v3739, %v3735
    %v6880 = vpack.c.b16 %v3740, %v3736
    %v6881 = vpack.c.b16 %v3741, %v3737
    %v6882 = vpack.c.b16 %v3742, %v3738
    %v6883 = vpack.c.b16 %v3747, %v3743
    %v6884 = vpack.c.b16 %v3748, %v3744
    %v6885 = vpack.c.b16 %v3749, %v3745
    %v6886 = vpack.c.b16 %v3750, %v3746
    %v6887 = vpack.c.b16 %v3755, %v3751
    %v6888 = vpack.c.b16 %v3756, %v3752
    %v6889 = vpack.c.b16 %v3757, %v3753
    %v6890 = vpack.c.b16 %v3758, %v3754
    %v6891 = vpack.c.b16 %v3763, %v3759
    %v6892 = vpack.c.b16 %v3764, %v3760
    %v6893 = vpack.c.b16 %v3765, %v3761
    %v6894 = vpack.c.b16 %v3766, %v3762
    %v6895 = vpack.c.b16 %v3771, %v3767
    %v6896 = vpack.c.b16 %v3772, %v3768
    %v6897 = vpack.c.b16 %v3773, %v3769
    %v6898 = vpack.c.b16 %v3774, %v3770
    %v6899 = vpack.c.b16 %v3779, %v3775
    %v6900 = vpack.c.b16 %v3780, %v3776
    %v6901 = vpack.c.b16 %v3781, %v3777
    %v6902 = vpack.c.b16 %v3782, %v3778
    %v6903 = vpack.c.b16 %v3787, %v3783
    %v6904 = vpack.c.b16 %v3788, %v3784
    %v6905 = vpack.c.b16 %v3789, %v3785
    %v6906 = vpack.c.b16 %v3790, %v3786
    %v6907 = vpack.c.b16 %v3795, %v3791
    %v6908 = vpack.c.b16 %v3796, %v3792
    %v6909 = vpack.c.b16 %v3797, %v3793
    %v6910 = vpack.c.b16 %v3798, %v3794
    %v6911 = vpack.c.b16 %v3803, %v3799
    %v6912 = vpack.c.b16 %v3804, %v3800
    %v6913 = vpack.c.b16 %v3805, %v3801
    %v6914 = vpack.c.b16 %v3806, %v3802
    %v6915 = vpack.c.b16 %v3811, %v3807
    %v6916 = vpack.c.b16 %v3812, %v3808
    %v6917 = vpack.c.b16 %v3813, %v3809
    %v6918 = vpack.c.b16 %v3814, %v3810
    %v6919 = vpack.c.b16 %v3819, %v3815
    %v6920 = vpack.c.b16 %v3820, %v3816
    %v6921 = vpack.c.b16 %v3821, %v3817
    %v6922 = vpack.c.b16 %v3822, %v3818
    %v6923 = vpack.c.b16 %v3827, %v3823
    %v6924 = vpack.c.b16 %v3828, %v3824
    %v6925 = vpack.c.b16 %v3829, %v3825
    %v6926 = vpack.c.b16 %v3830, %v3826
    %v6927 = vpack.c.b16 %v3835, %v3831
    %v6928 = vpack.c.b16 %v3836, %v3832
    %v6929 = vpack.c.b16 %v3837, %v3833
    %v6930 = vpack.c.b16 %v3838, %v3834
    %v6931 = vpack.c.b16 %v3843, %v3839
    %v6932 = vpack.c.b16 %v3844, %v3840
    %v6933 = vpack.c.b16 %v3845, %v3841
    %v6934 = vpack.c.b16 %v3846, %v3842
    %v6935 = vpack.c.b16 %v3851, %v3847
    %v6936 = vpack.c.b16 %v3852, %v3848
    %v6937 = vpack.c.b16 %v3853, %v3849
    %v6938 = vpack.c.b16 %v3854, %v3850
    %v6939 = vpack.c.b16 %v3859, %v3855
    %v6940 = vpack.c.b16 %v3860, %v3856
    %v6941 = vpack.c.b16 %v3861, %v3857
    %v6942 = vpack.c.b16 %v3862, %v3858
    %v6943 = vpack.c.b16 %v3867, %v3863
    %v6944 = vpack.c.b16 %v3868, %v3864
    %v6945 = vpack.c.b16 %v3869, %v3865
    %v6946 = vpack.c.b16 %v3870, %v3866
    %v6947 = vpack.c.b16 %v3875, %v3871
    %v6948 = vpack.c.b16 %v3876, %v3872
    %v6949 = vpack.c.b16 %v3877, %v3873
    %v6950 = vpack.c.b16 %v3878, %v3874
    %v6951 = vpack.c.b16 %v3883, %v3879
    %v6952 = vpack.c.b16 %v3884, %v3880
    %v6953 = vpack.c.b16 %v3885, %v3881
    %v6954 = vpack.c.b16 %v3886, %v3882
    %v6955 = vpack.c.b16 %v3891, %v3887
    %v6956 = vpack.c.b16 %v3892, %v3888
    %v6957 = vpack.c.b16 %v3893, %v3889
    %v6958 = vpack.c.b16 %v3894, %v3890
    %v6959 = vpack.c.b16 %v3899, %v3895
    %v6960 = vpack.c.b16 %v3900, %v3896
    %v6961 = vpack.c.b16 %v3901, %v3897
    %v6962 = vpack.c.b16 %v3902, %v3898
    %v6963 = vpack.c.b16 %v3907, %v3903
    %v6964 = vpack.c.b16 %v3908, %v3904
    %v6965 = vpack.c.b16 %v3909, %v3905
    %v6966 = vpack.c.b16 %v3910, %v3906
    %v6967 = vpack.c.b16 %v3915, %v3911
    %v6968 = vpack.c.b16 %v3916, %v3912
    %v6969 = vpack.c.b16 %v3917, %v3913
    %v6970 = vpack.c.b16 %v3918, %v3914
    %v6971 = vpack.c.b16 %v3923, %v3919
    %v6972 = vpack.c.b16 %v3924, %v3920
    %v6973 = vpack.c.b16 %v3925, %v3921
    %v6974 = vpack.c.b16 %v3926, %v3922
    %v6975 = vpack.c.b16 %v3931, %v3927
    %v6976 = vpack.c.b16 %v3932, %v3928
    %v6977 = vpack.c.b16 %v3933, %v3929
    %v6978 = vpack.c.b16 %v3934, %v3930
    %v6979 = vpack.c.b16 %v3939, %v3935
    %v6980 = vpack.c.b16 %v3940, %v3936
    %v6981 = vpack.c.b16 %v3941, %v3937
    %v6982 = vpack.c.b16 %v3942, %v3938
    %v6983 = vpack.c.b16 %v3947, %v3943
    %v6984 = vpack.c.b16 %v3948, %v3944
    %v6985 = vpack.c.b16 %v3949, %v3945
    %v6986 = vpack.c.b16 %v3950, %v3946
    %v6987 = vpack.c.b16 %v3955, %v3951
    %v6988 = vpack.c.b16 %v3956, %v3952
    %v6989 = vpack.c.b16 %v3957, %v3953
    %v6990 = vpack.c.b16 %v3958, %v3954
    %v6991 = vpack.c.b16 %v3963, %v3959
    %v6992 = vpack.c.b16 %v3964, %v3960
    %v6993 = vpack.c.b16 %v3965, %v3961
    %v6994 = vpack.c.b16 %v3966, %v3962
    %v6995 = vpack.c.b16 %v3971, %v3967
    %v6996 = vpack.c.b16 %v3972, %v3968
    %v6997 = vpack.c.b16 %v3973, %v3969
    %v6998 = vpack.c.b16 %v3974, %v3970
    %v6999 = vpack.c.b16 %v3979, %v3975
    %v7000 = vpack.c.b16 %v3980, %v3976
    %v7001 = vpack.c.b16 %v3981, %v3977
    %v7002 = vpack.c.b16 %v3982, %v3978
    %v7003 = vpack.c.b16 %v3987, %v3983
    %v7004 = vpack.c.b16 %v3988, %v3984
    %v7005 = vpack.c.b16 %v3989, %v3985
    %v7006 = vpack.c.b16 %v3990, %v3986
    %v7007 = vpack.c.b16 %v3995, %v3991
    %v7008 = vpack.c.b16 %v3996, %v3992
    %v7009 = vpack.c.b16 %v3997, %v3993
    %v7010 = vpack.c.b16 %v3998, %v3994
    %v7011 = vpack.c.b16 %v4003, %v3999
    %v7012 = vpack.c.b16 %v4004, %v4000
    %v7013 = vpack.c.b16 %v4005, %v4001
    %v7014 = vpack.c.b16 %v4006, %v4002
    %v7015 = vpack.c.b16 %v4011, %v4007
    %v7016 = vpack.c.b16 %v4012, %v4008
    %v7017 = vpack.c.b16 %v4013, %v4009
    %v7018 = vpack.c.b16 %v4014, %v4010
    %v7019 = vpack.c.b16 %v4019, %v4015
    %v7020 = vpack.c.b16 %v4020, %v4016
    %v7021 = vpack.c.b16 %v4021, %v4017
    %v7022 = vpack.c.b16 %v4022, %v4018
    %v7023 = vpack.c.b16 %v4027, %v4023
    %v7024 = vpack.c.b16 %v4028, %v4024
    %v7025 = vpack.c.b16 %v4029, %v4025
    %v7026 = vpack.c.b16 %v4030, %v4026
    %v7027 = vpack.c.b16 %v4035, %v4031
    %v7028 = vpack.c.b16 %v4036, %v4032
    %v7029 = vpack.c.b16 %v4037, %v4033
    %v7030 = vpack.c.b16 %v4038, %v4034
    %v7031 = vpack.c.b16 %v4043, %v4039
    %v7032 = vpack.c.b16 %v4044, %v4040
    %v7033 = vpack.c.b16 %v4045, %v4041
    %v7034 = vpack.c.b16 %v4046, %v4042
    %v7035 = vpack.c.b16 %v4051, %v4047
    %v7036 = vpack.c.b16 %v4052, %v4048
    %v7037 = vpack.c.b16 %v4053, %v4049
    %v7038 = vpack.c.b16 %v4054, %v4050
    %v7039 = vpack.c.b16 %v4059, %v4055
    %v7040 = vpack.c.b16 %v4060, %v4056
    %v7041 = vpack.c.b16 %v4061, %v4057
    %v7042 = vpack.c.b16 %v4062, %v4058
    %v7043 = vpack.c.b16 %v4067, %v4063
    %v7044 = vpack.c.b16 %v4068, %v4064
    %v7045 = vpack.c.b16 %v4069, %v4065
    %v7046 = vpack.c.b16 %v4070, %v4066
    %v7047 = vpack.c.b16 %v4075, %v4071
    %v7048 = vpack.c.b16 %v4076, %v4072
    %v7049 = vpack.c.b16 %v4077, %v4073
    %v7050 = vpack.c.b16 %v4078, %v4074
    %v7051 = vpack.c.b16 %v4083, %v4079
    %v7052 = vpack.c.b16 %v4084, %v4080
    %v7053 = vpack.c.b16 %v4085, %v4081
    %v7054 = vpack.c.b16 %v4086, %v4082
    %v7055 = vpack.c.b16 %v4091, %v4087
    %v7056 = vpack.c.b16 %v4092, %v4088
    %v7057 = vpack.c.b16 %v4093, %v4089
    %v7058 = vpack.c.b16 %v4094, %v4090
    %v7059 = vpack.c.b16 %v4099, %v4095
    %v7060 = vpack.c.b16 %v4100, %v4096
    %v7061 = vpack.c.b16 %v4101, %v4097
    %v7062 = vpack.c.b16 %v4102, %v4098
    %v7063 = vpack.c.b16 %v4107, %v4103
    %v7064 = vpack.c.b16 %v4108, %v4104
    %v7065 = vpack.c.b16 %v4109, %v4105
    %v7066 = vpack.c.b16 %v4110, %v4106
    %v7067 = vpack.c.b16 %v4115, %v4111
    %v7068 = vpack.c.b16 %v4116, %v4112
    %v7069 = vpack.c.b16 %v4117, %v4113
    %v7070 = vpack.c.b16 %v4118, %v4114
    %v7071 = vpack.c.b16 %v4123, %v4119
    %v7072 = vpack.c.b16 %v4124, %v4120
    %v7073 = vpack.c.b16 %v4125, %v4121
    %v7074 = vpack.c.b16 %v4126, %v4122
    %v7075 = vpack.c.b16 %v4131, %v4127
    %v7076 = vpack.c.b16 %v4132, %v4128
    %v7077 = vpack.c.b16 %v4133, %v4129
    %v7078 = vpack.c.b16 %v4134, %v4130
    %v7079 = vpack.c.b16 %v4139, %v4135
    %v7080 = vpack.c.b16 %v4140, %v4136
    %v7081 = vpack.c.b16 %v4141, %v4137
    %v7082 = vpack.c.b16 %v4142, %v4138
    %v7083 = vpack.c.b16 %v4147, %v4143
    %v7084 = vpack.c.b16 %v4148, %v4144
    %v7085 = vpack.c.b16 %v4149, %v4145
    %v7086 = vpack.c.b16 %v4150, %v4146
    %v7087 = vpack.c.b16 %v4155, %v4151
    %v7088 = vpack.c.b16 %v4156, %v4152
    %v7089 = vpack.c.b16 %v4157, %v4153
    %v7090 = vpack.c.b16 %v4158, %v4154
    %v7091 = vpack.c.b16 %v4163, %v4159
    %v7092 = vpack.c.b16 %v4164, %v4160
    %v7093 = vpack.c.b16 %v4165, %v4161
    %v7094 = vpack.c.b16 %v4166, %v4162
    %v7095 = vpack.c.b16 %v4171, %v4167
    %v7096 = vpack.c.b16 %v4172, %v4168
    %v7097 = vpack.c.b16 %v4173, %v4169
    %v7098 = vpack.c.b16 %v4174, %v4170
    %v7099 = vpack.c.b16 %v4179, %v4175
    %v7100 = vpack.c.b16 %v4180, %v4176
    %v7101 = vpack.c.b16 %v4181, %v4177
    %v7102 = vpack.c.b16 %v4182, %v4178
    %v7103 = vpack.c.b16 %v4187, %v4183
    %v7104 = vpack.c.b16 %v4188, %v4184
    %v7105 = vpack.c.b16 %v4189, %v4185
    %v7106 = vpack.c.b16 %v4190, %v4186
    %v7107 = vpack.c.b16 %v4195, %v4191
    %v7108 = vpack.c.b16 %v4196, %v4192
    %v7109 = vpack.c.b16 %v4197, %v4193
    %v7110 = vpack.c.b16 %v4198, %v4194
    %v7111 = vpack.c.b16 %v4203, %v4199
    %v7112 = vpack.c.b16 %v4204, %v4200
    %v7113 = vpack.c.b16 %v4205, %v4201
    %v7114 = vpack.c.b16 %v4206, %v4202
    %v7115 = vpack.c.b16 %v4211, %v4207
    %v7116 = vpack.c.b16 %v4212, %v4208
    %v7117 = vpack.c.b16 %v4213, %v4209
    %v7118 = vpack.c.b16 %v4214, %v4210
    %v7119 = vpack.c.b16 %v4219, %v4215
    %v7120 = vpack.c.b16 %v4220, %v4216
    %v7121 = vpack.c.b16 %v4221, %v4217
    %v7122 = vpack.c.b16 %v4222, %v4218
    %v7123 = vpack.c.b16 %v4227, %v4223
    %v7124 = vpack.c.b16 %v4228, %v4224
    %v7125 = vpack.c.b16 %v4229, %v4225
    %v7126 = vpack.c.b16 %v4230, %v4226
    %v7127 = vpack.c.b16 %v4235, %v4231
    %v7128 = vpack.c.b16 %v4236, %v4232
    %v7129 = vpack.c.b16 %v4237, %v4233
    %v7130 = vpack.c.b16 %v4238, %v4234
    %v7131 = vpack.c.b16 %v4243, %v4239
    %v7132 = vpack.c.b16 %v4244, %v4240
    %v7133 = vpack.c.b16 %v4245, %v4241
    %v7134 = vpack.c.b16 %v4246, %v4242
    %v7135 = vpack.c.b16 %v4251, %v4247
    %v7136 = vpack.c.b16 %v4252, %v4248
    %v7137 = vpack.c.b16 %v4253, %v4249
    %v7138 = vpack.c.b16 %v4254, %v4250
    %v7139 = vpack.c.b16 %v4259, %v4255
    %v7140 = vpack.c.b16 %v4260, %v4256
    %v7141 = vpack.c.b16 %v4261, %v4257
    %v7142 = vpack.c.b16 %v4262, %v4258
    %v7143 = vpack.c.b16 %v4267, %v4263
    %v7144 = vpack.c.b16 %v4268, %v4264
    %v7145 = vpack.c.b16 %v4269, %v4265
    %v7146 = vpack.c.b16 %v4270, %v4266
    %v7147 = vpack.c.b16 %v4275, %v4271
    %v7148 = vpack.c.b16 %v4276, %v4272
    %v7149 = vpack.c.b16 %v4277, %v4273
    %v7150 = vpack.c.b16 %v4278, %v4274
    %v7151 = vpack.c.b16 %v4283, %v4279
    %v7152 = vpack.c.b16 %v4284, %v4280
    %v7153 = vpack.c.b16 %v4285, %v4281
    %v7154 = vpack.c.b16 %v4286, %v4282
    %v7155 = vpack.c.b16 %v4291, %v4287
    %v7156 = vpack.c.b16 %v4292, %v4288
    %v7157 = vpack.c.b16 %v4293, %v4289
    %v7158 = vpack.c.b16 %v4294, %v4290
    %v7159 = vpack.c.b16 %v4299, %v4295
    %v7160 = vpack.c.b16 %v4300, %v4296
    %v7161 = vpack.c.b16 %v4301, %v4297
    %v7162 = vpack.c.b16 %v4302, %v4298
    %v7163 = vpack.c.b16 %v4307, %v4303
    %v7164 = vpack.c.b16 %v4308, %v4304
    %v7165 = vpack.c.b16 %v4309, %v4305
    %v7166 = vpack.c.b16 %v4310, %v4306
    %v7167 = vpack.c.b16 %v4315, %v4311
    %v7168 = vpack.c.b16 %v4316, %v4312
    %v7169 = vpack.c.b16 %v4317, %v4313
    %v7170 = vpack.c.b16 %v4318, %v4314
    %v7171 = vpack.c.b16 %v4323, %v4319
    %v7172 = vpack.c.b16 %v4324, %v4320
    %v7173 = vpack.c.b16 %v4325, %v4321
    %v7174 = vpack.c.b16 %v4326, %v4322
    %v7175 = vpack.c.b16 %v4331, %v4327
    %v7176 = vpack.c.b16 %v4332, %v4328
    %v7177 = vpack.c.b16 %v4333, %v4329
    %v7178 = vpack.c.b16 %v4334, %v4330
    %v7179 = vpack.c.b16 %v4339, %v4335
    %v7180 = vpack.c.b16 %v4340, %v4336
    %v7181 = vpack.c.b16 %v4341, %v4337
    %v7182 = vpack.c.b16 %v4342, %v4338
    %v7183 = vpack.c.b16 %v4347, %v4343
    %v7184 = vpack.c.b16 %v4348, %v4344
    %v7185 = vpack.c.b16 %v4349, %v4345
    %v7186 = vpack.c.b16 %v4350, %v4346
    %v7187 = vpack.c.b16 %v4355, %v4351
    %v7188 = vpack.c.b16 %v4356, %v4352
    %v7189 = vpack.c.b16 %v4357, %v4353
    %v7190 = vpack.c.b16 %v4358, %v4354
    %v7191 = vpack.c.b16 %v4363, %v4359
    %v7192 = vpack.c.b16 %v4364, %v4360
    %v7193 = vpack.c.b16 %v4365, %v4361
    %v7194 = vpack.c.b16 %v4366, %v4362
    %v7195 = vpack.c.b16 %v4371, %v4367
    %v7196 = vpack.c.b16 %v4372, %v4368
    %v7197 = vpack.c.b16 %v4373, %v4369
    %v7198 = vpack.c.b16 %v4374, %v4370
    %v7199 = vpack.c.b16 %v4379, %v4375
    %v7200 = vpack.c.b16 %v4380, %v4376
    %v7201 = vpack.c.b16 %v4381, %v4377
    %v7202 = vpack.c.b16 %v4382, %v4378
    %v7203 = vpack.c.b16 %v4387, %v4383
    %v7204 = vpack.c.b16 %v4388, %v4384
    %v7205 = vpack.c.b16 %v4389, %v4385
    %v7206 = vpack.c.b16 %v4390, %v4386
    %v7207 = vpack.c.b16 %v4395, %v4391
    %v7208 = vpack.c.b16 %v4396, %v4392
    %v7209 = vpack.c.b16 %v4397, %v4393
    %v7210 = vpack.c.b16 %v4398, %v4394
    %v7211 = vpack.c.b16 %v4403, %v4399
    %v7212 = vpack.c.b16 %v4404, %v4400
    %v7213 = vpack.c.b16 %v4405, %v4401
    %v7214 = vpack.c.b16 %v4406, %v4402
    %v7215 = vpack.c.b16 %v4411, %v4407
    %v7216 = vpack.c.b16 %v4412, %v4408
    %v7217 = vpack.c.b16 %v4413, %v4409
    %v7218 = vpack.c.b16 %v4414, %v4410
    %v7219 = vpack.c.b16 %v4419, %v4415
    %v7220 = vpack.c.b16 %v4420, %v4416
    %v7221 = vpack.c.b16 %v4421, %v4417
    %v7222 = vpack.c.b16 %v4422, %v4418
    %v7223 = vpack.c.b16 %v4427, %v4423
    %v7224 = vpack.c.b16 %v4428, %v4424
    %v7225 = vpack.c.b16 %v4429, %v4425
    %v7226 = vpack.c.b16 %v4430, %v4426
    %v7227 = vpack.c.b16 %v4435, %v4431
    %v7228 = vpack.c.b16 %v4436, %v4432
    %v7229 = vpack.c.b16 %v4437, %v4433
    %v7230 = vpack.c.b16 %v4438, %v4434
    %v7231 = vpack.c.b16 %v4443, %v4439
    %v7232 = vpack.c.b16 %v4444, %v4440
    %v7233 = vpack.c.b16 %v4445, %v4441
    %v7234 = vpack.c.b16 %v4446, %v4442
    %v7235 = vpack.c.b16 %v4451, %v4447
    %v7236 = vpack.c.b16 %v4452, %v4448
    %v7237 = vpack.c.b16 %v4453, %v4449
    %v7238 = vpack.c.b16 %v4454, %v4450
    %v7239 = vpack.c.b16 %v4459, %v4455
    %v7240 = vpack.c.b16 %v4460, %v4456
    %v7241 = vpack.c.b16 %v4461, %v4457
    %v7242 = vpack.c.b16 %v4462, %v4458
    %v7243 = vpack.c.b16 %v4467, %v4463
    %v7244 = vpack.c.b16 %v4468, %v4464
    %v7245 = vpack.c.b16 %v4469, %v4465
    %v7246 = vpack.c.b16 %v4470, %v4466
    %v7247 = vpack.c.b16 %v4475, %v4471
    %v7248 = vpack.c.b16 %v4476, %v4472
    %v7249 = vpack.c.b16 %v4477, %v4473
    %v7250 = vpack.c.b16 %v4478, %v4474
    %v7251 = vpack.c.b16 %v4483, %v4479
    %v7252 = vpack.c.b16 %v4484, %v4480
    %v7253 = vpack.c.b16 %v4485, %v4481
    %v7254 = vpack.c.b16 %v4486, %v4482
    %v7255 = vpack.c.b16 %v4491, %v4487
    %v7256 = vpack.c.b16 %v4492, %v4488
    %v7257 = vpack.c.b16 %v4493, %v4489
    %v7258 = vpack.c.b16 %v4494, %v4490
    %v7259 = vpack.c.b16 %v4499, %v4495
    %v7260 = vpack.c.b16 %v4500, %v4496
    %v7261 = vpack.c.b16 %v4501, %v4497
    %v7262 = vpack.c.b16 %v4502, %v4498
    %v7263 = vpack.c.b16 %v4507, %v4503
    %v7264 = vpack.c.b16 %v4508, %v4504
    %v7265 = vpack.c.b16 %v4509, %v4505
    %v7266 = vpack.c.b16 %v4510, %v4506
    %v7267 = vpack.c.b16 %v4515, %v4511
    %v7268 = vpack.c.b16 %v4516, %v4512
    %v7269 = vpack.c.b16 %v4517, %v4513
    %v7270 = vpack.c.b16 %v4518, %v4514
    %v7271 = vpack.c.b16 %v4523, %v4519
    %v7272 = vpack.c.b16 %v4524, %v4520
    %v7273 = vpack.c.b16 %v4525, %v4521
    %v7274 = vpack.c.b16 %v4526, %v4522
    %v7275 = vpack.c.b16 %v4531, %v4527
    %v7276 = vpack.c.b16 %v4532, %v4528
    %v7277 = vpack.c.b16 %v4533, %v4529
    %v7278 = vpack.c.b16 %v4534, %v4530
    %v7279 = vpack.c.b16 %v4539, %v4535
    %v7280 = vpack.c.b16 %v4540, %v4536
    %v7281 = vpack.c.b16 %v4541, %v4537
    %v7282 = vpack.c.b16 %v4542, %v4538
    %v7283 = vpack.c.b16 %v4547, %v4543
    %v7284 = vpack.c.b16 %v4548, %v4544
    %v7285 = vpack.c.b16 %v4549, %v4545
    %v7286 = vpack.c.b16 %v4550, %v4546
    %v7287 = vpack.c.b16 %v4555, %v4551
    %v7288 = vpack.c.b16 %v4556, %v4552
    %v7289 = vpack.c.b16 %v4557, %v4553
    %v7290 = vpack.c.b16 %v4558, %v4554
    %v7291 = vpack.c.b16 %v4563, %v4559
    %v7292 = vpack.c.b16 %v4564, %v4560
    %v7293 = vpack.c.b16 %v4565, %v4561
    %v7294 = vpack.c.b16 %v4566, %v4562
    %v7295 = vpack.c.b16 %v4571, %v4567
    %v7296 = vpack.c.b16 %v4572, %v4568
    %v7297 = vpack.c.b16 %v4573, %v4569
    %v7298 = vpack.c.b16 %v4574, %v4570
    %v7299 = vpack.c.b16 %v4579, %v4575
    %v7300 = vpack.c.b16 %v4580, %v4576
    %v7301 = vpack.c.b16 %v4581, %v4577
    %v7302 = vpack.c.b16 %v4582, %v4578
    %v7303 = vpack.c.b16 %v4587, %v4583
    %v7304 = vpack.c.b16 %v4588, %v4584
    %v7305 = vpack.c.b16 %v4589, %v4585
    %v7306 = vpack.c.b16 %v4590, %v4586
    %v7307 = vpack.c.b16 %v4595, %v4591
    %v7308 = vpack.c.b16 %v4596, %v4592
    %v7309 = vpack.c.b16 %v4597, %v4593
    %v7310 = vpack.c.b16 %v4598, %v4594
    %v7311 = vpack.c.b16 %v4603, %v4599
    %v7312 = vpack.c.b16 %v4604, %v4600
    %v7313 = vpack.c.b16 %v4605, %v4601
    %v7314 = vpack.c.b16 %v4606, %v4602
    %v7315 = vpack.c.b16 %v4611, %v4607
    %v7316 = vpack.c.b16 %v4612, %v4608
    %v7317 = vpack.c.b16 %v4613, %v4609
    %v7318 = vpack.c.b16 %v4614, %v4610
    %v7319 = vpack.c.b16 %v4619, %v4615
    %v7320 = vpack.c.b16 %v4620, %v4616
    %v7321 = vpack.c.b16 %v4621, %v4617
    %v7322 = vpack.c.b16 %v4622, %v4618
    %v7323 = vpack.c.b16 %v4627, %v4623
    %v7324 = vpack.c.b16 %v4628, %v4624
    %v7325 = vpack.c.b16 %v4629, %v4625
    %v7326 = vpack.c.b16 %v4630, %v4626
    %v7327 = vpack.c.b16 %v4635, %v4631
    %v7328 = vpack.c.b16 %v4636, %v4632
    %v7329 = vpack.c.b16 %v4637, %v4633
    %v7330 = vpack.c.b16 %v4638, %v4634
    %v7331 = vpack.c.b16 %v4643, %v4639
    %v7332 = vpack.c.b16 %v4644, %v4640
    %v7333 = vpack.c.b16 %v4645, %v4641
    %v7334 = vpack.c.b16 %v4646, %v4642
    %v7335 = vpack.c.b16 %v4651, %v4647
    %v7336 = vpack.c.b16 %v4652, %v4648
    %v7337 = vpack.c.b16 %v4653, %v4649
    %v7338 = vpack.c.b16 %v4654, %v4650
    %v7339 = vpack.c.b16 %v4659, %v4655
    %v7340 = vpack.c.b16 %v4660, %v4656
    %v7341 = vpack.c.b16 %v4661, %v4657
    %v7342 = vpack.c.b16 %v4662, %v4658
    %v7343 = vpack.c.b16 %v4667, %v4663
    %v7344 = vpack.c.b16 %v4668, %v4664
    %v7345 = vpack.c.b16 %v4669, %v4665
    %v7346 = vpack.c.b16 %v4670, %v4666
    %v7347 = vpack.c.b16 %v4675, %v4671
    %v7348 = vpack.c.b16 %v4676, %v4672
    %v7349 = vpack.c.b16 %v4677, %v4673
    %v7350 = vpack.c.b16 %v4678, %v4674
    %v7351 = vpack.c.b16 %v4683, %v4679
    %v7352 = vpack.c.b16 %v4684, %v4680
    %v7353 = vpack.c.b16 %v4685, %v4681
    %v7354 = vpack.c.b16 %v4686, %v4682
    %v7355 = vpack.c.b16 %v4691, %v4687
    %v7356 = vpack.c.b16 %v4692, %v4688
    %v7357 = vpack.c.b16 %v4693, %v4689
    %v7358 = vpack.c.b16 %v4694, %v4690
    %v7359 = vpack.c.b16 %v4699, %v4695
    %v7360 = vpack.c.b16 %v4700, %v4696
    %v7361 = vpack.c.b16 %v4701, %v4697
    %v7362 = vpack.c.b16 %v4702, %v4698
    %v7363 = vpack.c.b16 %v4707, %v4703
    %v7364 = vpack.c.b16 %v4708, %v4704
    %v7365 = vpack.c.b16 %v4709, %v4705
    %v7366 = vpack.c.b16 %v4710, %v4706
    %v7367 = vpack.c.b16 %v4715, %v4711
    %v7368 = vpack.c.b16 %v4716, %v4712
    %v7369 = vpack.c.b16 %v4717, %v4713
    %v7370 = vpack.c.b16 %v4718, %v4714
    %v7371 = vpack.c.b16 %v4723, %v4719
    %v7372 = vpack.c.b16 %v4724, %v4720
    %v7373 = vpack.c.b16 %v4725, %v4721
    %v7374 = vpack.c.b16 %v4726, %v4722
    %v7375 = vpack.c.b16 %v4731, %v4727
    %v7376 = vpack.c.b16 %v4732, %v4728
    %v7377 = vpack.c.b16 %v4733, %v4729
    %v7378 = vpack.c.b16 %v4734, %v4730
    %v7379 = vpack.c.b16 %v4739, %v4735
    %v7380 = vpack.c.b16 %v4740, %v4736
    %v7381 = vpack.c.b16 %v4741, %v4737
    %v7382 = vpack.c.b16 %v4742, %v4738
    %v7383 = vpack.c.b16 %v4747, %v4743
    %v7384 = vpack.c.b16 %v4748, %v4744
    %v7385 = vpack.c.b16 %v4749, %v4745
    %v7386 = vpack.c.b16 %v4750, %v4746
    %v7387 = vpack.c.b16 %v4755, %v4751
    %v7388 = vpack.c.b16 %v4756, %v4752
    %v7389 = vpack.c.b16 %v4757, %v4753
    %v7390 = vpack.c.b16 %v4758, %v4754
    %v7391 = vpack.c.b16 %v4763, %v4759
    %v7392 = vpack.c.b16 %v4764, %v4760
    %v7393 = vpack.c.b16 %v4765, %v4761
    %v7394 = vpack.c.b16 %v4766, %v4762
    %v7395 = vpack.c.b16 %v4771, %v4767
    %v7396 = vpack.c.b16 %v4772, %v4768
    %v7397 = vpack.c.b16 %v4773, %v4769
    %v7398 = vpack.c.b16 %v4774, %v4770
    %v7399 = vpack.c.b16 %v4779, %v4775
    %v7400 = vpack.c.b16 %v4780, %v4776
    %v7401 = vpack.c.b16 %v4781, %v4777
    %v7402 = vpack.c.b16 %v4782, %v4778
    %v7403 = vpack.c.b16 %v4787, %v4783
    %v7404 = vpack.c.b16 %v4788, %v4784
    %v7405 = vpack.c.b16 %v4789, %v4785
    %v7406 = vpack.c.b16 %v4790, %v4786
    %v7407 = vpack.c.b16 %v4795, %v4791
    %v7408 = vpack.c.b16 %v4796, %v4792
    %v7409 = vpack.c.b16 %v4797, %v4793
    %v7410 = vpack.c.b16 %v4798, %v4794
    %v7411 = vpack.c.b16 %v4803, %v4799
    %v7412 = vpack.c.b16 %v4804, %v4800
    %v7413 = vpack.c.b16 %v4805, %v4801
    %v7414 = vpack.c.b16 %v4806, %v4802
    %v7415 = vpack.c.b16 %v4811, %v4807
    %v7416 = vpack.c.b16 %v4812, %v4808
    %v7417 = vpack.c.b16 %v4813, %v4809
    %v7418 = vpack.c.b16 %v4814, %v4810
    %v7419 = vpack.c.b16 %v4819, %v4815
    %v7420 = vpack.c.b16 %v4820, %v4816
    %v7421 = vpack.c.b16 %v4821, %v4817
    %v7422 = vpack.c.b16 %v4822, %v4818
    %v7423 = vpack.c.b16 %v4827, %v4823
    %v7424 = vpack.c.b16 %v4828, %v4824
    %v7425 = vpack.c.b16 %v4829, %v4825
    %v7426 = vpack.c.b16 %v4830, %v4826
    %v7427 = vpack.c.b16 %v4835, %v4831
    %v7428 = vpack.c.b16 %v4836, %v4832
    %v7429 = vpack.c.b16 %v4837, %v4833
    %v7430 = vpack.c.b16 %v4838, %v4834
    %v7431 = vpack.c.b16 %v4843, %v4839
    %v7432 = vpack.c.b16 %v4844, %v4840
    %v7433 = vpack.c.b16 %v4845, %v4841
    %v7434 = vpack.c.b16 %v4846, %v4842
    %v7435 = vpack.c.b16 %v4851, %v4847
    %v7436 = vpack.c.b16 %v4852, %v4848
    %v7437 = vpack.c.b16 %v4853, %v4849
    %v7438 = vpack.c.b16 %v4854, %v4850
    %v7439 = vpack.c.b16 %v4859, %v4855
    %v7440 = vpack.c.b16 %v4860, %v4856
    %v7441 = vpack.c.b16 %v4861, %v4857
    %v7442 = vpack.c.b16 %v4862, %v4858
    %v7443 = vpack.c.b16 %v4867, %v4863
    %v7444 = vpack.c.b16 %v4868, %v4864
    %v7445 = vpack.c.b16 %v4869, %v4865
    %v7446 = vpack.c.b16 %v4870, %v4866
    %v7447 = vpack.c.b16 %v4875, %v4871
    %v7448 = vpack.c.b16 %v4876, %v4872
    %v7449 = vpack.c.b16 %v4877, %v4873
    %v7450 = vpack.c.b16 %v4878, %v4874
    %v7451 = vpack.c.b16 %v4883, %v4879
    %v7452 = vpack.c.b16 %v4884, %v4880
    %v7453 = vpack.c.b16 %v4885, %v4881
    %v7454 = vpack.c.b16 %v4886, %v4882
    %v7455 = vpack.c.b16 %v4891, %v4887
    %v7456 = vpack.c.b16 %v4892, %v4888
    %v7457 = vpack.c.b16 %v4893, %v4889
    %v7458 = vpack.c.b16 %v4894, %v4890
    %v7459 = vpack.c.b16 %v4899, %v4895
    %v7460 = vpack.c.b16 %v4900, %v4896
    %v7461 = vpack.c.b16 %v4901, %v4897
    %v7462 = vpack.c.b16 %v4902, %v4898
    %v7463 = vpack.c.b16 %v4907, %v4903
    %v7464 = vpack.c.b16 %v4908, %v4904
    %v7465 = vpack.c.b16 %v4909, %v4905
    %v7466 = vpack.c.b16 %v4910, %v4906
    %v7467 = vpack.c.b16 %v4915, %v4911
    %v7468 = vpack.c.b16 %v4916, %v4912
    %v7469 = vpack.c.b16 %v4917, %v4913
    %v7470 = vpack.c.b16 %v4918, %v4914
    %v7471 = vpack.c.b16 %v4923, %v4919
    %v7472 = vpack.c.b16 %v4924, %v4920
    %v7473 = vpack.c.b16 %v4925, %v4921
    %v7474 = vpack.c.b16 %v4926, %v4922
    %v7475 = vpack.c.b16 %v4931, %v4927
    %v7476 = vpack.c.b16 %v4932, %v4928
    %v7477 = vpack.c.b16 %v4933, %v4929
    %v7478 = vpack.c.b16 %v4934, %v4930
    %v7479 = vpack.c.b16 %v4939, %v4935
    %v7480 = vpack.c.b16 %v4940, %v4936
    %v7481 = vpack.c.b16 %v4941, %v4937
    %v7482 = vpack.c.b16 %v4942, %v4938
    %v7483 = vpack.c.b16 %v4947, %v4943
    %v7484 = vpack.c.b16 %v4948, %v4944
    %v7485 = vpack.c.b16 %v4949, %v4945
    %v7486 = vpack.c.b16 %v4950, %v4946
    %v7487 = vpack.c.b16 %v4955, %v4951
    %v7488 = vpack.c.b16 %v4956, %v4952
    %v7489 = vpack.c.b16 %v4957, %v4953
    %v7490 = vpack.c.b16 %v4958, %v4954
    %v7491 = vpack.c.b16 %v4963, %v4959
    %v7492 = vpack.c.b16 %v4964, %v4960
    %v7493 = vpack.c.b16 %v4965, %v4961
    %v7494 = vpack.c.b16 %v4966, %v4962
    %v7495 = vpack.c.b16 %v4971, %v4967
    %v7496 = vpack.c.b16 %v4972, %v4968
    %v7497 = vpack.c.b16 %v4973, %v4969
    %v7498 = vpack.c.b16 %v4974, %v4970
    %v7499 = vpack.c.b16 %v4979, %v4975
    %v7500 = vpack.c.b16 %v4980, %v4976
    %v7501 = vpack.c.b16 %v4981, %v4977
    %v7502 = vpack.c.b16 %v4982, %v4978
    %v7503 = vpack.c.b16 %v4987, %v4983
    %v7504 = vpack.c.b16 %v4988, %v4984
    %v7505 = vpack.c.b16 %v4989, %v4985
    %v7506 = vpack.c.b16 %v4990, %v4986
    %v7507 = vpack.c.b16 %v4995, %v4991
    %v7508 = vpack.c.b16 %v4996, %v4992
    %v7509 = vpack.c.b16 %v4997, %v4993
    %v7510 = vpack.c.b16 %v4998, %v4994
    %v7511 = vpack.c.b16 %v5003, %v4999
    %v7512 = vpack.c.b16 %v5004, %v5000
    %v7513 = vpack.c.b16 %v5005, %v5001
    %v7514 = vpack.c.b16 %v5006, %v5002
    %v7515 = vpack.c.b16 %v5011, %v5007
    %v7516 = vpack.c.b16 %v5012, %v5008
    %v7517 = vpack.c.b16 %v5013, %v5009
    %v7518 = vpack.c.b16 %v5014, %v5010
    %v7519 = vpack.c.b16 %v5019, %v5015
    %v7520 = vpack.c.b16 %v5020, %v5016
    %v7521 = vpack.c.b16 %v5021, %v5017
    %v7522 = vpack.c.b16 %v5022, %v5018
    %v7523 = vpack.c.b16 %v5027, %v5023
    %v7524 = vpack.c.b16 %v5028, %v5024
    %v7525 = vpack.c.b16 %v5029, %v5025
    %v7526 = vpack.c.b16 %v5030, %v5026
    %v7527 = vpack.c.b16 %v5035, %v5031
    %v7528 = vpack.c.b16 %v5036, %v5032
    %v7529 = vpack.c.b16 %v5037, %v5033
    %v7530 = vpack.c.b16 %v5038, %v5034
    %v7531 = vpack.c.b16 %v5043, %v5039
    %v7532 = vpack.c.b16 %v5044, %v5040
    %v7533 = vpack.c.b16 %v5045, %v5041
    %v7534 = vpack.c.b16 %v5046, %v5042
    %v7535 = vpack.c.b16 %v5051, %v5047
    %v7536 = vpack.c.b16 %v5052, %v5048
    %v7537 = vpack.c.b16 %v5053, %v5049
    %v7538 = vpack.c.b16 %v5054, %v5050
    %v7539 = vpack.c.b16 %v5059, %v5055
    %v7540 = vpack.c.b16 %v5060, %v5056
    %v7541 = vpack.c.b16 %v5061, %v5057
    %v7542 = vpack.c.b16 %v5062, %v5058
    %v7543 = vpack.c.b16 %v5067, %v5063
    %v7544 = vpack.c.b16 %v5068, %v5064
    %v7545 = vpack.c.b16 %v5069, %v5065
    %v7546 = vpack.c.b16 %v5070, %v5066
    %v7547 = vpack.c.b16 %v5075, %v5071
    %v7548 = vpack.c.b16 %v5076, %v5072
    %v7549 = vpack.c.b16 %v5077, %v5073
    %v7550 = vpack.c.b16 %v5078, %v5074
    %v7551 = vpack.c.b16 %v5083, %v5079
    %v7552 = vpack.c.b16 %v5084, %v5080
    %v7553 = vpack.c.b16 %v5085, %v5081
    %v7554 = vpack.c.b16 %v5086, %v5082
    %v7555 = vpack.c.b16 %v5091, %v5087
    %v7556 = vpack.c.b16 %v5092, %v5088
    %v7557 = vpack.c.b16 %v5093, %v5089
    %v7558 = vpack.c.b16 %v5094, %v5090
    %v7559 = vpack.c.b16 %v5099, %v5095
    %v7560 = vpack.c.b16 %v5100, %v5096
    %v7561 = vpack.c.b16 %v5101, %v5097
    %v7562 = vpack.c.b16 %v5102, %v5098
    %v7563 = vpack.c.b16 %v5107, %v5103
    %v7564 = vpack.c.b16 %v5108, %v5104
    %v7565 = vpack.c.b16 %v5109, %v5105
    %v7566 = vpack.c.b16 %v5110, %v5106
    %v7567 = vpack.c.b16 %v5115, %v5111
    %v7568 = vpack.c.b16 %v5116, %v5112
    %v7569 = vpack.c.b16 %v5117, %v5113
    %v7570 = vpack.c.b16 %v5118, %v5114
    %v7571 = vpack.c.b16 %v5123, %v5119
    %v7572 = vpack.c.b16 %v5124, %v5120
    %v7573 = vpack.c.b16 %v5125, %v5121
    %v7574 = vpack.c.b16 %v5126, %v5122
    %v7575 = vpack.c.b16 %v5131, %v5127
    %v7576 = vpack.c.b16 %v5132, %v5128
    %v7577 = vpack.c.b16 %v5133, %v5129
    %v7578 = vpack.c.b16 %v5134, %v5130
    %v7579 = vpack.c.b16 %v5139, %v5135
    %v7580 = vpack.c.b16 %v5140, %v5136
    %v7581 = vpack.c.b16 %v5141, %v5137
    %v7582 = vpack.c.b16 %v5142, %v5138
    %v7583 = vpack.c.b16 %v5147, %v5143
    %v7584 = vpack.c.b16 %v5148, %v5144
    %v7585 = vpack.c.b16 %v5149, %v5145
    %v7586 = vpack.c.b16 %v5150, %v5146
    %v7587 = vpack.c.b16 %v5155, %v5151
    %v7588 = vpack.c.b16 %v5156, %v5152
    %v7589 = vpack.c.b16 %v5157, %v5153
    %v7590 = vpack.c.b16 %v5158, %v5154
    %v7591 = vpack.c.b16 %v5163, %v5159
    %v7592 = vpack.c.b16 %v5164, %v5160
    %v7593 = vpack.c.b16 %v5165, %v5161
    %v7594 = vpack.c.b16 %v5166, %v5162
    %v7595 = vpack.c.b16 %v5171, %v5167
    %v7596 = vpack.c.b16 %v5172, %v5168
    %v7597 = vpack.c.b16 %v5173, %v5169
    %v7598 = vpack.c.b16 %v5174, %v5170
    %v7599 = vpack.c.b16 %v5179, %v5175
    %v7600 = vpack.c.b16 %v5180, %v5176
    %v7601 = vpack.c.b16 %v5181, %v5177
    %v7602 = vpack.c.b16 %v5182, %v5178
    %v7603 = vpack.c.b16 %v5187, %v5183
    %v7604 = vpack.c.b16 %v5188, %v5184
    %v7605 = vpack.c.b16 %v5189, %v5185
    %v7606 = vpack.c.b16 %v5190, %v5186
    %v7607 = vpack.c.b16 %v5195, %v5191
    %v7608 = vpack.c.b16 %v5196, %v5192
    %v7609 = vpack.c.b16 %v5197, %v5193
    %v7610 = vpack.c.b16 %v5198, %v5194
    %v7611 = vpack.c.b16 %v5203, %v5199
    %v7612 = vpack.c.b16 %v5204, %v5200
    %v7613 = vpack.c.b16 %v5205, %v5201
    %v7614 = vpack.c.b16 %v5206, %v5202
    %v7615 = vpack.c.b16 %v5211, %v5207
    %v7616 = vpack.c.b16 %v5212, %v5208
    %v7617 = vpack.c.b16 %v5213, %v5209
    %v7618 = vpack.c.b16 %v5214, %v5210
    %v7619 = vpack.c.b16 %v5219, %v5215
    %v7620 = vpack.c.b16 %v5220, %v5216
    %v7621 = vpack.c.b16 %v5221, %v5217
    %v7622 = vpack.c.b16 %v5222, %v5218
    %v7623 = vpack.c.b16 %v5227, %v5223
    %v7624 = vpack.c.b16 %v5228, %v5224
    %v7625 = vpack.c.b16 %v5229, %v5225
    %v7626 = vpack.c.b16 %v5230, %v5226
    %v7627 = vpack.c.b16 %v5235, %v5231
    %v7628 = vpack.c.b16 %v5236, %v5232
    %v7629 = vpack.c.b16 %v5237, %v5233
    %v7630 = vpack.c.b16 %v5238, %v5234
    %v7631 = vpack.c.b16 %v5243, %v5239
    %v7632 = vpack.c.b16 %v5244, %v5240
    %v7633 = vpack.c.b16 %v5245, %v5241
    %v7634 = vpack.c.b16 %v5246, %v5242
    %v7635 = vpack.c.b16 %v5251, %v5247
    %v7636 = vpack.c.b16 %v5252, %v5248
    %v7637 = vpack.c.b16 %v5253, %v5249
    %v7638 = vpack.c.b16 %v5254, %v5250
    %v7639 = vpack.c.b16 %v5259, %v5255
    %v7640 = vpack.c.b16 %v5260, %v5256
    %v7641 = vpack.c.b16 %v5261, %v5257
    %v7642 = vpack.c.b16 %v5262, %v5258
    %v7643 = vpack.c.b16 %v5267, %v5263
    %v7644 = vpack.c.b16 %v5268, %v5264
    %v7645 = vpack.c.b16 %v5269, %v5265
    %v7646 = vpack.c.b16 %v5270, %v5266
    %v7647 = vpack.c.b16 %v5275, %v5271
    %v7648 = vpack.c.b16 %v5276, %v5272
    %v7649 = vpack.c.b16 %v5277, %v5273
    %v7650 = vpack.c.b16 %v5278, %v5274
    %v7651 = vpack.c.b16 %v5283, %v5279
    %v7652 = vpack.c.b16 %v5284, %v5280
    %v7653 = vpack.c.b16 %v5285, %v5281
    %v7654 = vpack.c.b16 %v5286, %v5282
    %v7655 = vpack.c.b16 %v5291, %v5287
    %v7656 = vpack.c.b16 %v5292, %v5288
    %v7657 = vpack.c.b16 %v5293, %v5289
    %v7658 = vpack.c.b16 %v5294, %v5290
    %v7659 = vpack.c.b16 %v5299, %v5295
    %v7660 = vpack.c.b16 %v5300, %v5296
    %v7661 = vpack.c.b16 %v5301, %v5297
    %v7662 = vpack.c.b16 %v5302, %v5298
    %v7663 = vpack.c.b16 %v5307, %v5303
    %v7664 = vpack.c.b16 %v5308, %v5304
    %v7665 = vpack.c.b16 %v5309, %v5305
    %v7666 = vpack.c.b16 %v5310, %v5306
    %v7667 = vpack.c.b16 %v5315, %v5311
    %v7668 = vpack.c.b16 %v5316, %v5312
    %v7669 = vpack.c.b16 %v5317, %v5313
    %v7670 = vpack.c.b16 %v5318, %v5314
    %v7671 = vpack.c.b16 %v5323, %v5319
    %v7672 = vpack.c.b16 %v5324, %v5320
    %v7673 = vpack.c.b16 %v5325, %v5321
    %v7674 = vpack.c.b16 %v5326, %v5322
    %v7675 = vpack.c.b16 %v5331, %v5327
    %v7676 = vpack.c.b16 %v5332, %v5328
    %v7677 = vpack.c.b16 %v5333, %v5329
    %v7678 = vpack.c.b16 %v5334, %v5330
    %v7679 = vpack.c.b16 %v5339, %v5335
    %v7680 = vpack.c.b16 %v5340, %v5336
    %v7681 = vpack.c.b16 %v5341, %v5337
    %v7682 = vpack.c.b16 %v5342, %v5338
    %v7683 = vpack.c.b16 %v5347, %v5343
    %v7684 = vpack.c.b16 %v5348, %v5344
    %v7685 = vpack.c.b16 %v5349, %v5345
    %v7686 = vpack.c.b16 %v5350, %v5346
    %v7687 = vpack.c.b16 %v5355, %v5351
    %v7688 = vpack.c.b16 %v5356, %v5352
    %v7689 = vpack.c.b16 %v5357, %v5353
    %v7690 = vpack.c.b16 %v5358, %v5354
    %v7691 = vpack.c.b16 %v5363, %v5359
    %v7692 = vpack.c.b16 %v5364, %v5360
    %v7693 = vpack.c.b16 %v5365, %v5361
    %v7694 = vpack.c.b16 %v5366, %v5362
    %v7695 = vpack.c.b16 %v5371, %v5367
    %v7696 = vpack.c.b16 %v5372, %v5368
    %v7697 = vpack.c.b16 %v5373, %v5369
    %v7698 = vpack.c.b16 %v5374, %v5370
    %v7699 = vpack.c.b16 %v5379, %v5375
    %v7700 = vpack.c.b16 %v5380, %v5376
    %v7701 = vpack.c.b16 %v5381, %v5377
    %v7702 = vpack.c.b16 %v5382, %v5378
    %v7703 = vpack.c.b16 %v5387, %v5383
    %v7704 = vpack.c.b16 %v5388, %v5384
    %v7705 = vpack.c.b16 %v5389, %v5385
    %v7706 = vpack.c.b16 %v5390, %v5386
    %v7707 = vpack.c.b16 %v5395, %v5391
    %v7708 = vpack.c.b16 %v5396, %v5392
    %v7709 = vpack.c.b16 %v5397, %v5393
    %v7710 = vpack.c.b16 %v5398, %v5394
    %v7711 = vpack.c.b16 %v5403, %v5399
    %v7712 = vpack.c.b16 %v5404, %v5400
    %v7713 = vpack.c.b16 %v5405, %v5401
    %v7714 = vpack.c.b16 %v5406, %v5402
    %v7715 = vpack.c.b16 %v5411, %v5407
    %v7716 = vpack.c.b16 %v5412, %v5408
    %v7717 = vpack.c.b16 %v5413, %v5409
    %v7718 = vpack.c.b16 %v5414, %v5410
    %v7719 = vpack.c.b16 %v5419, %v5415
    %v7720 = vpack.c.b16 %v5420, %v5416
    %v7721 = vpack.c.b16 %v5421, %v5417
    %v7722 = vpack.c.b16 %v5422, %v5418
    %v7723 = vpack.c.b16 %v5427, %v5423
    %v7724 = vpack.c.b16 %v5428, %v5424
    %v7725 = vpack.c.b16 %v5429, %v5425
    %v7726 = vpack.c.b16 %v5430, %v5426
    %v7727 = vpack.c.b16 %v5435, %v5431
    %v7728 = vpack.c.b16 %v5436, %v5432
    %v7729 = vpack.c.b16 %v5437, %v5433
    %v7730 = vpack.c.b16 %v5438, %v5434
    %v7731 = vpack.c.b16 %v5443, %v5439
    %v7732 = vpack.c.b16 %v5444, %v5440
    %v7733 = vpack.c.b16 %v5445, %v5441
    %v7734 = vpack.c.b16 %v5446, %v5442
    %v7735 = vpack.c.b16 %v5451, %v5447
    %v7736 = vpack.c.b16 %v5452, %v5448
    %v7737 = vpack.c.b16 %v5453, %v5449
    %v7738 = vpack.c.b16 %v5454, %v5450
    %v7739 = vpack.c.b16 %v5459, %v5455
    %v7740 = vpack.c.b16 %v5460, %v5456
    %v7741 = vpack.c.b16 %v5461, %v5457
    %v7742 = vpack.c.b16 %v5462, %v5458
    %v7743 = vpack.c.b16 %v5467, %v5463
    %v7744 = vpack.c.b16 %v5468, %v5464
    %v7745 = vpack.c.b16 %v5469, %v5465
    %v7746 = vpack.c.b16 %v5470, %v5466
    %v7747 = vpack.c.b16 %v5475, %v5471
    %v7748 = vpack.c.b16 %v5476, %v5472
    %v7749 = vpack.c.b16 %v5477, %v5473
    %v7750 = vpack.c.b16 %v5478, %v5474
    %v7751 = vpack.c.b16 %v5483, %v5479
    %v7752 = vpack.c.b16 %v5484, %v5480
    %v7753 = vpack.c.b16 %v5485, %v5481
    %v7754 = vpack.c.b16 %v5486, %v5482
    %v7755 = vpack.c.b16 %v5491, %v5487
    %v7756 = vpack.c.b16 %v5492, %v5488
    %v7757 = vpack.c.b16 %v5493, %v5489
    %v7758 = vpack.c.b16 %v5494, %v5490
    %v7759 = vpack.c.b16 %v5499, %v5495
    %v7760 = vpack.c.b16 %v5500, %v5496
    %v7761 = vpack.c.b16 %v5501, %v5497
    %v7762 = vpack.c.b16 %v5502, %v5498
    %v7763 = vpack.c.b16 %v5507, %v5503
    %v7764 = vpack.c.b16 %v5508, %v5504
    %v7765 = vpack.c.b16 %v5509, %v5505
    %v7766 = vpack.c.b16 %v5510, %v5506
    %v7767 = vpack.c.b16 %v5515, %v5511
    %v7768 = vpack.c.b16 %v5516, %v5512
    %v7769 = vpack.c.b16 %v5517, %v5513
    %v7770 = vpack.c.b16 %v5518, %v5514
    %v7771 = vpack.c.b16 %v5523, %v5519
    %v7772 = vpack.c.b16 %v5524, %v5520
    %v7773 = vpack.c.b16 %v5525, %v5521
    %v7774 = vpack.c.b16 %v5526, %v5522
    %v7775 = vpack.c.b16 %v5531, %v5527
    %v7776 = vpack.c.b16 %v5532, %v5528
    %v7777 = vpack.c.b16 %v5533, %v5529
    %v7778 = vpack.c.b16 %v5534, %v5530
    %v7779 = vpack.c.b16 %v5539, %v5535
    %v7780 = vpack.c.b16 %v5540, %v5536
    %v7781 = vpack.c.b16 %v5541, %v5537
    %v7782 = vpack.c.b16 %v5542, %v5538
    %v7783 = vpack.c.b16 %v5547, %v5543
    %v7784 = vpack.c.b16 %v5548, %v5544
    %v7785 = vpack.c.b16 %v5549, %v5545
    %v7786 = vpack.c.b16 %v5550, %v5546
    %v7787 = vpack.c.b16 %v5555, %v5551
    %v7788 = vpack.c.b16 %v5556, %v5552
    %v7789 = vpack.c.b16 %v5557, %v5553
    %v7790 = vpack.c.b16 %v5558, %v5554
    %v7791 = vpack.c.b16 %v5563, %v5559
    %v7792 = vpack.c.b16 %v5564, %v5560
    %v7793 = vpack.c.b16 %v5565, %v5561
    %v7794 = vpack.c.b16 %v5566, %v5562
    %v7795 = vpack.c.b16 %v5571, %v5567
    %v7796 = vpack.c.b16 %v5572, %v5568
    %v7797 = vpack.c.b16 %v5573, %v5569
    %v7798 = vpack.c.b16 %v5574, %v5570
    %v7799 = vpack.c.b16 %v5579, %v5575
    %v7800 = vpack.c.b16 %v5580, %v5576
    %v7801 = vpack.c.b16 %v5581, %v5577
    %v7802 = vpack.c.b16 %v5582, %v5578
    %v7803 = vpack.c.b16 %v5587, %v5583
    %v7804 = vpack.c.b16 %v5588, %v5584
    %v7805 = vpack.c.b16 %v5589, %v5585
    %v7806 = vpack.c.b16 %v5590, %v5586
    %v7807 = vpack.c.b16 %v5595, %v5591
    %v7808 = vpack.c.b16 %v5596, %v5592
    %v7809 = vpack.c.b16 %v5597, %v5593
    %v7810 = vpack.c.b16 %v5598, %v5594
    %v7811 = vpack.c.b16 %v5603, %v5599
    %v7812 = vpack.c.b16 %v5604, %v5600
    %v7813 = vpack.c.b16 %v5605, %v5601
    %v7814 = vpack.c.b16 %v5606, %v5602
    %v7815 = vpack.c.b16 %v5611, %v5607
    %v7816 = vpack.c.b16 %v5612, %v5608
    %v7817 = vpack.c.b16 %v5613, %v5609
    %v7818 = vpack.c.b16 %v5614, %v5610
    %v7819 = vpack.c.b16 %v5619, %v5615
    %v7820 = vpack.c.b16 %v5620, %v5616
    %v7821 = vpack.c.b16 %v5621, %v5617
    %v7822 = vpack.c.b16 %v5622, %v5618
    %v7823 = vpack.c.b16 %v5627, %v5623
    %v7824 = vpack.c.b16 %v5628, %v5624
    %v7825 = vpack.c.b16 %v5629, %v5625
    %v7826 = vpack.c.b16 %v5630, %v5626
    %v7827 = vpack.c.b16 %v5635, %v5631
    %v7828 = vpack.c.b16 %v5636, %v5632
    %v7829 = vpack.c.b16 %v5637, %v5633
    %v7830 = vpack.c.b16 %v5638, %v5634
    %v7831 = vpack.c.b16 %v5643, %v5639
    %v7832 = vpack.c.b16 %v5644, %v5640
    %v7833 = vpack.c.b16 %v5645, %v5641
    %v7834 = vpack.c.b16 %v5646, %v5642
    %v7835 = vpack.c.b16 %v5651, %v5647
    %v7836 = vpack.c.b16 %v5652, %v5648
    %v7837 = vpack.c.b16 %v5653, %v5649
    %v7838 = vpack.c.b16 %v5654, %v5650
    %v7839 = vpack.c.b16 %v5659, %v5655
    %v7840 = vpack.c.b16 %v5660, %v5656
    %v7841 = vpack.c.b16 %v5661, %v5657
    %v7842 = vpack.c.b16 %v5662, %v5658
    %v7843 = vpack.c.b16 %v5667, %v5663
    %v7844 = vpack.c.b16 %v5668, %v5664
    %v7845 = vpack.c.b16 %v5669, %v5665
    %v7846 = vpack.c.b16 %v5670, %v5666
    %v7847 = vpack.c.b16 %v5675, %v5671
    %v7848 = vpack.c.b16 %v5676, %v5672
    %v7849 = vpack.c.b16 %v5677, %v5673
    %v7850 = vpack.c.b16 %v5678, %v5674
    %v7851 = vpack.c.b16 %v5683, %v5679
    %v7852 = vpack.c.b16 %v5684, %v5680
    %v7853 = vpack.c.b16 %v5685, %v5681
    %v7854 = vpack.c.b16 %v5686, %v5682
    %v7855 = vpack.c.b16 %v5691, %v5687
    %v7856 = vpack.c.b16 %v5692, %v5688
    %v7857 = vpack.c.b16 %v5693, %v5689
    %v7858 = vpack.c.b16 %v5694, %v5690
    %v7859 = vpack.c.b16 %v5699, %v5695
    %v7860 = vpack.c.b16 %v5700, %v5696
    %v7861 = vpack.c.b16 %v5701, %v5697
    %v7862 = vpack.c.b16 %v5702, %v5698
    %v7863 = vpack.c.b16 %v5707, %v5703
    %v7864 = vpack.c.b16 %v5708, %v5704
    %v7865 = vpack.c.b16 %v5709, %v5705
    %v7866 = vpack.c.b16 %v5710, %v5706
    %v7867 = vpack.c.b16 %v5715, %v5711
    %v7868 = vpack.c.b16 %v5716, %v5712
    %v7869 = vpack.c.b16 %v5717, %v5713
    %v7870 = vpack.c.b16 %v5718, %v5714
    %v7871 = vpack.c.b16 %v5723, %v5719
    %v7872 = vpack.c.b16 %v5724, %v5720
    %v7873 = vpack.c.b16 %v5725, %v5721
    %v7874 = vpack.c.b16 %v5726, %v5722
    %v7875 = vpack.c.b16 %v5731, %v5727
    %v7876 = vpack.c.b16 %v5732, %v5728
    %v7877 = vpack.c.b16 %v5733, %v5729
    %v7878 = vpack.c.b16 %v5734, %v5730
    %v7879 = vpack.c.b16 %v5739, %v5735
    %v7880 = vpack.c.b16 %v5740, %v5736
    %v7881 = vpack.c.b16 %v5741, %v5737
    %v7882 = vpack.c.b16 %v5742, %v5738
    %v7883 = vpack.c.b16 %v5747, %v5743
    %v7884 = vpack.c.b16 %v5748, %v5744
    %v7885 = vpack.c.b16 %v5749, %v5745
    %v7886 = vpack.c.b16 %v5750, %v5746
    %v7887 = vpack.c.b16 %v5755, %v5751
    %v7888 = vpack.c.b16 %v5756, %v5752
    %v7889 = vpack.c.b16 %v5757, %v5753
    %v7890 = vpack.c.b16 %v5758, %v5754
    %v7891 = vpack.c.b16 %v5763, %v5759
    %v7892 = vpack.c.b16 %v5764, %v5760
    %v7893 = vpack.c.b16 %v5765, %v5761
    %v7894 = vpack.c.b16 %v5766, %v5762
    %v7895 = vpack.c.b16 %v5771, %v5767
    %v7896 = vpack.c.b16 %v5772, %v5768
    %v7897 = vpack.c.b16 %v5773, %v5769
    %v7898 = vpack.c.b16 %v5774, %v5770
    %v7899 = vpack.c.b16 %v5779, %v5775
    %v7900 = vpack.c.b16 %v5780, %v5776
    %v7901 = vpack.c.b16 %v5781, %v5777
    %v7902 = vpack.c.b16 %v5782, %v5778
    %v7903 = vpack.c.b16 %v5787, %v5783
    %v7904 = vpack.c.b16 %v5788, %v5784
    %v7905 = vpack.c.b16 %v5789, %v5785
    %v7906 = vpack.c.b16 %v5790, %v5786
    %v7907 = vpack.c.b16 %v5795, %v5791
    %v7908 = vpack.c.b16 %v5796, %v5792
    %v7909 = vpack.c.b16 %v5797, %v5793
    %v7910 = vpack.c.b16 %v5798, %v5794
    %v7911 = vpack.c.b16 %v5803, %v5799
    %v7912 = vpack.c.b16 %v5804, %v5800
    %v7913 = vpack.c.b16 %v5805, %v5801
    %v7914 = vpack.c.b16 %v5806, %v5802
    %v7915 = vpack.c.b16 %v5811, %v5807
    %v7916 = vpack.c.b16 %v5812, %v5808
    %v7917 = vpack.c.b16 %v5813, %v5809
    %v7918 = vpack.c.b16 %v5814, %v5810
    %v7919 = vpack.c.b16 %v5819, %v5815
    %v7920 = vpack.c.b16 %v5820, %v5816
    %v7921 = vpack.c.b16 %v5821, %v5817
    %v7922 = vpack.c.b16 %v5822, %v5818
    %v7923 = vpack.c.b16 %v5827, %v5823
    %v7924 = vpack.c.b16 %v5828, %v5824
    %v7925 = vpack.c.b16 %v5829, %v5825
    %v7926 = vpack.c.b16 %v5830, %v5826
    %v7927 = vpack.c.b16 %v5835, %v5831
    %v7928 = vpack.c.b16 %v5836, %v5832
    %v7929 = vpack.c.b16 %v5837, %v5833
    %v7930 = vpack.c.b16 %v5838, %v5834
    %v7931 = vpack.c.b16 %v5843, %v5839
    %v7932 = vpack.c.b16 %v5844, %v5840
    %v7933 = vpack.c.b16 %v5845, %v5841
    %v7934 = vpack.c.b16 %v5846, %v5842
    %v7935 = vpack.c.b16 %v5851, %v5847
    %v7936 = vpack.c.b16 %v5852, %v5848
    %v7937 = vpack.c.b16 %v5853, %v5849
    %v7938 = vpack.c.b16 %v5854, %v5850
    %v7939 = vpack.c.b16 %v5859, %v5855
    %v7940 = vpack.c.b16 %v5860, %v5856
    %v7941 = vpack.c.b16 %v5861, %v5857
    %v7942 = vpack.c.b16 %v5862, %v5858
    %v7943 = vpack.c.b16 %v5867, %v5863
    %v7944 = vpack.c.b16 %v5868, %v5864
    %v7945 = vpack.c.b16 %v5869, %v5865
    %v7946 = vpack.c.b16 %v5870, %v5866
    %v7947 = vpack.c.b16 %v5875, %v5871
    %v7948 = vpack.c.b16 %v5876, %v5872
    %v7949 = vpack.c.b16 %v5877, %v5873
    %v7950 = vpack.c.b16 %v5878, %v5874
    %v7951 = vpack.c.b16 %v5883, %v5879
    %v7952 = vpack.c.b16 %v5884, %v5880
    %v7953 = vpack.c.b16 %v5885, %v5881
    %v7954 = vpack.c.b16 %v5886, %v5882
    %v7955 = vpack.c.b16 %v5891, %v5887
    %v7956 = vpack.c.b16 %v5892, %v5888
    %v7957 = vpack.c.b16 %v5893, %v5889
    %v7958 = vpack.c.b16 %v5894, %v5890
    %v7959 = vpack.c.b16 %v5899, %v5895
    %v7960 = vpack.c.b16 %v5900, %v5896
    %v7961 = vpack.c.b16 %v5901, %v5897
    %v7962 = vpack.c.b16 %v5902, %v5898
    %v7963 = vpack.c.b16 %v5907, %v5903
    %v7964 = vpack.c.b16 %v5908, %v5904
    %v7965 = vpack.c.b16 %v5909, %v5905
    %v7966 = vpack.c.b16 %v5910, %v5906
    %v7967 = vpack.c.b16 %v5915, %v5911
    %v7968 = vpack.c.b16 %v5916, %v5912
    %v7969 = vpack.c.b16 %v5917, %v5913
    %v7970 = vpack.c.b16 %v5918, %v5914
    %v7971 = vpack.c.b16 %v5923, %v5919
    %v7972 = vpack.c.b16 %v5924, %v5920
    %v7973 = vpack.c.b16 %v5925, %v5921
    %v7974 = vpack.c.b16 %v5926, %v5922
    %v7975 = vpack.c.b16 %v5931, %v5927
    %v7976 = vpack.c.b16 %v5932, %v5928
    %v7977 = vpack.c.b16 %v5933, %v5929
    %v7978 = vpack.c.b16 %v5934, %v5930
    %v7979 = vpack.c.b16 %v5939, %v5935
    %v7980 = vpack.c.b16 %v5940, %v5936
    %v7981 = vpack.c.b16 %v5941, %v5937
    %v7982 = vpack.c.b16 %v5942, %v5938
    %v7983 = vpack.c.b16 %v5947, %v5943
    %v7984 = vpack.c.b16 %v5948, %v5944
    %v7985 = vpack.c.b16 %v5949, %v5945
    %v7986 = vpack.c.b16 %v5950, %v5946
    %v7987 = vpack.c.b16 %v5955, %v5951
    %v7988 = vpack.c.b16 %v5956, %v5952
    %v7989 = vpack.c.b16 %v5957, %v5953
    %v7990 = vpack.c.b16 %v5958, %v5954
    %v7991 = vpack.c.b16 %v5963, %v5959
    %v7992 = vpack.c.b16 %v5964, %v5960
    %v7993 = vpack.c.b16 %v5965, %v5961
    %v7994 = vpack.c.b16 %v5966, %v5962
    %v7995 = vpack.c.b16 %v5971, %v5967
    %v7996 = vpack.c.b16 %v5972, %v5968
    %v7997 = vpack.c.b16 %v5973, %v5969
    %v7998 = vpack.c.b16 %v5974, %v5970
    %v7999 = vpack.c.b16 %v5979, %v5975
    %v8000 = vpack.c.b16 %v5980, %v5976
    %v8001 = vpack.c.b16 %v5981, %v5977
    %v8002 = vpack.c.b16 %v5982, %v5978
    %v8003 = vpack.c.b16 %v5987, %v5983
    %v8004 = vpack.c.b16 %v5988, %v5984
    %v8005 = vpack.c.b16 %v5989, %v5985
    %v8006 = vpack.c.b16 %v5990, %v5986
    %v8007 = vpack.c.b16 %v5995, %v5991
    %v8008 = vpack.c.b16 %v5996, %v5992
    %v8009 = vpack.c.b16 %v5997, %v5993
    %v8010 = vpack.c.b16 %v5998, %v5994
    %v8011 = vpack.c.b16 %v6003, %v5999
    %v8012 = vpack.c.b16 %v6004, %v6000
    %v8013 = vpack.c.b16 %v6005, %v6001
    %v8014 = vpack.c.b16 %v6006, %v6002
    %v8015 = vpack.c.b16 %v6011, %v6007
    %v8016 = vpack.c.b16 %v6012, %v6008
    %v8017 = vpack.c.b16 %v6013, %v6009
    %v8018 = vpack.c.b16 %v6014, %v6010
    %v8019 = vpack.c.b16 %v6019, %v6015
    %v8020 = vpack.c.b16 %v6020, %v6016
    %v8021 = vpack.c.b16 %v6021, %v6017
    %v8022 = vpack.c.b16 %v6022, %v6018
    %v8023 = vpack.c.b16 %v6027, %v6023
    %v8024 = vpack.c.b16 %v6028, %v6024
    %v8025 = vpack.c.b16 %v6029, %v6025
    %v8026 = vpack.c.b16 %v6030, %v6026
    %v8027 = vpack.c.b16 %v6035, %v6031
    %v8028 = vpack.c.b16 %v6036, %v6032
    %v8029 = vpack.c.b16 %v6037, %v6033
    %v8030 = vpack.c.b16 %v6038, %v6034
    %v8031 = vpack.c.b16 %v6043, %v6039
    %v8032 = vpack.c.b16 %v6044, %v6040
    %v8033 = vpack.c.b16 %v6045, %v6041
    %v8034 = vpack.c.b16 %v6046, %v6042
    %v8035 = vpack.c.b16 %v6051, %v6047
    %v8036 = vpack.c.b16 %v6052, %v6048
    %v8037 = vpack.c.b16 %v6053, %v6049
    %v8038 = vpack.c.b16 %v6054, %v6050
    %v8039 = vpack.c.b16 %v6059, %v6055
    %v8040 = vpack.c.b16 %v6060, %v6056
    %v8041 = vpack.c.b16 %v6061, %v6057
    %v8042 = vpack.c.b16 %v6062, %v6058
    %v8043 = vpack.c.b16 %v6067, %v6063
    %v8044 = vpack.c.b16 %v6068, %v6064
    %v8045 = vpack.c.b16 %v6069, %v6065
    %v8046 = vpack.c.b16 %v6070, %v6066
    %v8047 = vpack.c.b16 %v6075, %v6071
    %v8048 = vpack.c.b16 %v6076, %v6072
    %v8049 = vpack.c.b16 %v6077, %v6073
    %v8050 = vpack.c.b16 %v6078, %v6074
    %v8051 = vpack.c.b16 %v6083, %v6079
    %v8052 = vpack.c.b16 %v6084, %v6080
    %v8053 = vpack.c.b16 %v6085, %v6081
    %v8054 = vpack.c.b16 %v6086, %v6082
    %v8055 = vpack.c.b16 %v6091, %v6087
    %v8056 = vpack.c.b16 %v6092, %v6088
    %v8057 = vpack.c.b16 %v6093, %v6089
    %v8058 = vpack.c.b16 %v6094, %v6090
    %v8059 = vpack.c.b16 %v6099, %v6095
    %v8060 = vpack.c.b16 %v6100, %v6096
    %v8061 = vpack.c.b16 %v6101, %v6097
    %v8062 = vpack.c.b16 %v6102, %v6098
    %v8063 = vpack.c.b16 %v6107, %v6103
    %v8064 = vpack.c.b16 %v6108, %v6104
    %v8065 = vpack.c.b16 %v6109, %v6105
    %v8066 = vpack.c.b16 %v6110, %v6106
    %v8067 = vpack.c.b16 %v6115, %v6111
    %v8068 = vpack.c.b16 %v6116, %v6112
    %v8069 = vpack.c.b16 %v6117, %v6113
    %v8070 = vpack.c.b16 %v6118, %v6114
    %v8071 = vpack.c.b16 %v6123, %v6119
    %v8072 = vpack.c.b16 %v6124, %v6120
    %v8073 = vpack.c.b16 %v6125, %v6121
    %v8074 = vpack.c.b16 %v6126, %v6122
    %v8075 = vpack.c.b16 %v6131, %v6127
    %v8076 = vpack.c.b16 %v6132, %v6128
    %v8077 = vpack.c.b16 %v6133, %v6129
    %v8078 = vpack.c.b16 %v6134, %v6130
    %v8079 = vpack.c.b16 %v6139, %v6135
    %v8080 = vpack.c.b16 %v6140, %v6136
    %v8081 = vpack.c.b16 %v6141, %v6137
    %v8082 = vpack.c.b16 %v6142, %v6138
    %v8083 = vpack.c.b16 %v6147, %v6143
    %v8084 = vpack.c.b16 %v6148, %v6144
    %v8085 = vpack.c.b16 %v6149, %v6145
    %v8086 = vpack.c.b16 %v6150, %v6146
    %v8087 = vpack.c.b16 %v6155, %v6151
    %v8088 = vpack.c.b16 %v6156, %v6152
    %v8089 = vpack.c.b16 %v6157, %v6153
    %v8090 = vpack.c.b16 %v6158, %v6154
    %v8091 = vpack.c.b16 %v6163, %v6159
    %v8092 = vpack.c.b16 %v6164, %v6160
    %v8093 = vpack.c.b16 %v6165, %v6161
    %v8094 = vpack.c.b16 %v6166, %v6162
    %v8095 = vpack.c.b16 %v6171, %v6167
    %v8096 = vpack.c.b16 %v6172, %v6168
    %v8097 = vpack.c.b16 %v6173, %v6169
    %v8098 = vpack.c.b16 %v6174, %v6170
    %v8099 = vpack.c.b16 %v6179, %v6175
    %v8100 = vpack.c.b16 %v6180, %v6176
    %v8101 = vpack.c.b16 %v6181, %v6177
    %v8102 = vpack.c.b16 %v6182, %v6178
    %v8103 = vpack.c.b16 %v6187, %v6183
    %v8104 = vpack.c.b16 %v6188, %v6184
    %v8105 = vpack.c.b16 %v6189, %v6185
    %v8106 = vpack.c.b16 %v6190, %v6186
    %v8107 = vpack.c.b16 %v6195, %v6191
    %v8108 = vpack.c.b16 %v6196, %v6192
    %v8109 = vpack.c.b16 %v6197, %v6193
    %v8110 = vpack.c.b16 %v6198, %v6194
    %v8111 = vpack.c.b16 %v6203, %v6199
    %v8112 = vpack.c.b16 %v6204, %v6200
    %v8113 = vpack.c.b16 %v6205, %v6201
    %v8114 = vpack.c.b16 %v6206, %v6202
    %v8115 = vpack.c.b16 %v6211, %v6207
    %v8116 = vpack.c.b16 %v6212, %v6208
    %v8117 = vpack.c.b16 %v6213, %v6209
    %v8118 = vpack.c.b16 %v6214, %v6210
    %v8119 = vpack.c.b16 %v6219, %v6215
    %v8120 = vpack.c.b16 %v6220, %v6216
    %v8121 = vpack.c.b16 %v6221, %v6217
    %v8122 = vpack.c.b16 %v6222, %v6218
    %v8123 = vpack.c.b16 %v6227, %v6223
    %v8124 = vpack.c.b16 %v6228, %v6224
    %v8125 = vpack.c.b16 %v6229, %v6225
    %v8126 = vpack.c.b16 %v6230, %v6226
    %v8127 = vpack.c.b16 %v6235, %v6231
    %v8128 = vpack.c.b16 %v6236, %v6232
    %v8129 = vpack.c.b16 %v6237, %v6233
    %v8130 = vpack.c.b16 %v6238, %v6234
    %v8131 = vpack.c.b16 %v6243, %v6239
    %v8132 = vpack.c.b16 %v6244, %v6240
    %v8133 = vpack.c.b16 %v6245, %v6241
    %v8134 = vpack.c.b16 %v6246, %v6242
    %v8135 = vpack.c.b16 %v6251, %v6247
    %v8136 = vpack.c.b16 %v6252, %v6248
    %v8137 = vpack.c.b16 %v6253, %v6249
    %v8138 = vpack.c.b16 %v6254, %v6250
    %v8139 = vpack.c.b16 %v6259, %v6255
    %v8140 = vpack.c.b16 %v6260, %v6256
    %v8141 = vpack.c.b16 %v6261, %v6257
    %v8142 = vpack.c.b16 %v6262, %v6258
    %v8143 = vpack.c.b16 %v6267, %v6263
    %v8144 = vpack.c.b16 %v6268, %v6264
    %v8145 = vpack.c.b16 %v6269, %v6265
    %v8146 = vpack.c.b16 %v6270, %v6266
    %v8147 = vpack.c.b16 %v6275, %v6271
    %v8148 = vpack.c.b16 %v6276, %v6272
    %v8149 = vpack.c.b16 %v6277, %v6273
    %v8150 = vpack.c.b16 %v6278, %v6274
    %v8151 = vpack.c.b16 %v6283, %v6279
    %v8152 = vpack.c.b16 %v6284, %v6280
    %v8153 = vpack.c.b16 %v6285, %v6281
    %v8154 = vpack.c.b16 %v6286, %v6282
    %v8155 = vpack.c.b16 %v6291, %v6287
    %v8156 = vpack.c.b16 %v6292, %v6288
    %v8157 = vpack.c.b16 %v6293, %v6289
    %v8158 = vpack.c.b16 %v6294, %v6290
    %v8159 = vpack.c.b16 %v6299, %v6295
    %v8160 = vpack.c.b16 %v6300, %v6296
    %v8161 = vpack.c.b16 %v6301, %v6297
    %v8162 = vpack.c.b16 %v6302, %v6298
    %v8163 = vpack.c.b16 %v6307, %v6303
    %v8164 = vpack.c.b16 %v6308, %v6304
    %v8165 = vpack.c.b16 %v6309, %v6305
    %v8166 = vpack.c.b16 %v6310, %v6306
    %v8167 = vpack.c.b16 %v6315, %v6311
    %v8168 = vpack.c.b16 %v6316, %v6312
    %v8169 = vpack.c.b16 %v6317, %v6313
    %v8170 = vpack.c.b16 %v6318, %v6314
    %v8171 = vpack.c.b16 %v6323, %v6319
    %v8172 = vpack.c.b16 %v6324, %v6320
    %v8173 = vpack.c.b16 %v6325, %v6321
    %v8174 = vpack.c.b16 %v6326, %v6322
    %v8175 = vpack.c.b16 %v6331, %v6327
    %v8176 = vpack.c.b16 %v6332, %v6328
    %v8177 = vpack.c.b16 %v6333, %v6329
    %v8178 = vpack.c.b16 %v6334, %v6330
    %v8179 = vpack.c.b16 %v6339, %v6335
    %v8180 = vpack.c.b16 %v6340, %v6336
    %v8181 = vpack.c.b16 %v6341, %v6337
    %v8182 = vpack.c.b16 %v6342, %v6338
    %v8183 = vpack.c.b16 %v6347, %v6343
    %v8184 = vpack.c.b16 %v6348, %v6344
    %v8185 = vpack.c.b16 %v6349, %v6345
    %v8186 = vpack.c.b16 %v6350, %v6346
    %v8187 = vpack.c.b16 %v6355, %v6351
    %v8188 = vpack.c.b16 %v6356, %v6352
    %v8189 = vpack.c.b16 %v6357, %v6353
    %v8190 = vpack.c.b16 %v6358, %v6354
    %v8191 = vpack.c.b16 %v6363, %v6359
    %v8192 = vpack.c.b16 %v6364, %v6360
    %v8193 = vpack.c.b16 %v6365, %v6361
    %v8194 = vpack.c.b16 %v6366, %v6362
    %v8195 = vpack.c.b16 %v6371, %v6367
    %v8196 = vpack.c.b16 %v6372, %v6368
    %v8197 = vpack.c.b16 %v6373, %v6369
    %v8198 = vpack.c.b16 %v6374, %v6370
    %v8199 = vpack.c.b16 %v6379, %v6375
    %v8200 = vpack.c.b16 %v6380, %v6376
    %v8201 = vpack.c.b16 %v6381, %v6377
    %v8202 = vpack.c.b16 %v6382, %v6378
    %v8203 = vpack.c.b16 %v6387, %v6383
    %v8204 = vpack.c.b16 %v6388, %v6384
    %v8205 = vpack.c.b16 %v6389, %v6385
    %v8206 = vpack.c.b16 %v6390, %v6386
    %v8207 = vpack.c.b16 %v6395, %v6391
    %v8208 = vpack.c.b16 %v6396, %v6392
    %v8209 = vpack.c.b16 %v6397, %v6393
    %v8210 = vpack.c.b16 %v6398, %v6394
    %v8211 = vpack.c.b16 %v6403, %v6399
    %v8212 = vpack.c.b16 %v6404, %v6400
    %v8213 = vpack.c.b16 %v6405, %v6401
    %v8214 = vpack.c.b16 %v6406, %v6402
    %v8215 = vpack.c.b16 %v6411, %v6407
    %v8216 = vpack.c.b16 %v6412, %v6408
    %v8217 = vpack.c.b16 %v6413, %v6409
    %v8218 = vpack.c.b16 %v6414, %v6410
    %v8219 = vpack.c.b16 %v6419, %v6415
    %v8220 = vpack.c.b16 %v6420, %v6416
    %v8221 = vpack.c.b16 %v6421, %v6417
    %v8222 = vpack.c.b16 %v6422, %v6418
    %v8223 = vpack.c.b16 %v6427, %v6423
    %v8224 = vpack.c.b16 %v6428, %v6424
    %v8225 = vpack.c.b16 %v6429, %v6425
    %v8226 = vpack.c.b16 %v6430, %v6426
    %v8227 = vpack.c.b16 %v6435, %v6431
    %v8228 = vpack.c.b16 %v6436, %v6432
    %v8229 = vpack.c.b16 %v6437, %v6433
    %v8230 = vpack.c.b16 %v6438, %v6434
    %v8231 = vpack.c.b16 %v6443, %v6439
    %v8232 = vpack.c.b16 %v6444, %v6440
    %v8233 = vpack.c.b16 %v6445, %v6441
    %v8234 = vpack.c.b16 %v6446, %v6442
    %v8235 = vpack.c.b16 %v6451, %v6447
    %v8236 = vpack.c.b16 %v6452, %v6448
    %v8237 = vpack.c.b16 %v6453, %v6449
    %v8238 = vpack.c.b16 %v6454, %v6450
    %v8239 = vpack.c.b16 %v6459, %v6455
    %v8240 = vpack.c.b16 %v6460, %v6456
    %v8241 = vpack.c.b16 %v6461, %v6457
    %v8242 = vpack.c.b16 %v6462, %v6458
    %v8243 = vpack.c.b16 %v6467, %v6463
    %v8244 = vpack.c.b16 %v6468, %v6464
    %v8245 = vpack.c.b16 %v6469, %v6465
    %v8246 = vpack.c.b16 %v6470, %v6466
    %v8247 = vpack.c.b16 %v6475, %v6471
    %v8248 = vpack.c.b16 %v6476, %v6472
    %v8249 = vpack.c.b16 %v6477, %v6473
    %v8250 = vpack.c.b16 %v6478, %v6474
    %v8251 = vpack.c.b16 %v6483, %v6479
    %v8252 = vpack.c.b16 %v6484, %v6480
    %v8253 = vpack.c.b16 %v6485, %v6481
    %v8254 = vpack.c.b16 %v6486, %v6482
    %v8255 = vpack.c.b16 %v6491, %v6487
    %v8256 = vpack.c.b16 %v6492, %v6488
    %v8257 = vpack.c.b16 %v6493, %v6489
    %v8258 = vpack.c.b16 %v6494, %v6490
    %v8259 = vpack.c.b16 %v6499, %v6495
    %v8260 = vpack.c.b16 %v6500, %v6496
    %v8261 = vpack.c.b16 %v6501, %v6497
    %v8262 = vpack.c.b16 %v6502, %v6498
    %v8263 = vpack.c.b16 %v6507, %v6503
    %v8264 = vpack.c.b16 %v6508, %v6504
    %v8265 = vpack.c.b16 %v6509, %v6505
    %v8266 = vpack.c.b16 %v6510, %v6506
    %v8267 = vpack.c.b16 %v6515, %v6511
    %v8268 = vpack.c.b16 %v6516, %v6512
    %v8269 = vpack.c.b16 %v6517, %v6513
    %v8270 = vpack.c.b16 %v6518, %v6514
    %v8271 = vpack.c.b16 %v6523, %v6519
    %v8272 = vpack.c.b16 %v6524, %v6520
    %v8273 = vpack.c.b16 %v6525, %v6521
    %v8274 = vpack.c.b16 %v6526, %v6522
    %v8275 = vpack.c.b16 %v6531, %v6527
    %v8276 = vpack.c.b16 %v6532, %v6528
    %v8277 = vpack.c.b16 %v6533, %v6529
    %v8278 = vpack.c.b16 %v6534, %v6530
    %v8279 = vpack.c.b16 %v6539, %v6535
    %v8280 = vpack.c.b16 %v6540, %v6536
    %v8281 = vpack.c.b16 %v6541, %v6537
    %v8282 = vpack.c.b16 %v6542, %v6538
    %v8283 = vpack.c.b16 %v6547, %v6543
    %v8284 = vpack.c.b16 %v6548, %v6544
    %v8285 = vpack.c.b16 %v6549, %v6545
    %v8286 = vpack.c.b16 %v6550, %v6546
    %v8287 = vpack.c.b16 %v6555, %v6551
    %v8288 = vpack.c.b16 %v6556, %v6552
    %v8289 = vpack.c.b16 %v6557, %v6553
    %v8290 = vpack.c.b16 %v6558, %v6554
    %v8291 = vpack.c.b16 %v6563, %v6559
    %v8292 = vpack.c.b16 %v6564, %v6560
    %v8293 = vpack.c.b16 %v6565, %v6561
    %v8294 = vpack.c.b16 %v6566, %v6562
    %v8295 = vpack.c.b16 %v6571, %v6567
    %v8296 = vpack.c.b16 %v6572, %v6568
    %v8297 = vpack.c.b16 %v6573, %v6569
    %v8298 = vpack.c.b16 %v6574, %v6570
    %v8299 = vpack.c.b16 %v6579, %v6575
    %v8300 = vpack.c.b16 %v6580, %v6576
    %v8301 = vpack.c.b16 %v6581, %v6577
    %v8302 = vpack.c.b16 %v6582, %v6578
    %v8303 = vpack.c.b16 %v6587, %v6583
    %v8304 = vpack.c.b16 %v6588, %v6584
    %v8305 = vpack.c.b16 %v6589, %v6585
    %v8306 = vpack.c.b16 %v6590, %v6586
    %v8307 = vpack.c.b16 %v6595, %v6591
    %v8308 = vpack.c.b16 %v6596, %v6592
    %v8309 = vpack.c.b16 %v6597, %v6593
    %v8310 = vpack.c.b16 %v6598, %v6594
    %v8311 = vpack.c.b16 %v6603, %v6599
    %v8312 = vpack.c.b16 %v6604, %v6600
    %v8313 = vpack.c.b16 %v6605, %v6601
    %v8314 = vpack.c.b16 %v6606, %v6602
    %v8315 = vpack.c.b16 %v6611, %v6607
    %v8316 = vpack.c.b16 %v6612, %v6608
    %v8317 = vpack.c.b16 %v6613, %v6609
    %v8318 = vpack.c.b16 %v6614, %v6610
    %v8319 = vpack.c.b16 %v6619, %v6615
    %v8320 = vpack.c.b16 %v6620, %v6616
    %v8321 = vpack.c.b16 %v6621, %v6617
    %v8322 = vpack.c.b16 %v6622, %v6618
    %v8323 = vpack.c.b16 %v6627, %v6623
    %v8324 = vpack.c.b16 %v6628, %v6624
    %v8325 = vpack.c.b16 %v6629, %v6625
    %v8326 = vpack.c.b16 %v6630, %v6626
    %v8327 = vpack.c.b16 %v6635, %v6631
    %v8328 = vpack.c.b16 %v6636, %v6632
    %v8329 = vpack.c.b16 %v6637, %v6633
    %v8330 = vpack.c.b16 %v6638, %v6634
    %v8331 = vpack.c.b16 %v6643, %v6639
    %v8332 = vpack.c.b16 %v6644, %v6640
    %v8333 = vpack.c.b16 %v6645, %v6641
    %v8334 = vpack.c.b16 %v6646, %v6642
    %v8335 = vpack.c.b16 %v6651, %v6647
    %v8336 = vpack.c.b16 %v6652, %v6648
    %v8337 = vpack.c.b16 %v6653, %v6649
    %v8338 = vpack.c.b16 %v6654, %v6650
    %v8339 = vpack.c.b16 %v6659, %v6655
    %v8340 = vpack.c.b16 %v6660, %v6656
    %v8341 = vpack.c.b16 %v6661, %v6657
    %v8342 = vpack.c.b16 %v6662, %v6658
    %v8343 = vpack.c.b16 %v6667, %v6663
    %v8344 = vpack.c.b16 %v6668, %v6664
    %v8345 = vpack.c.b16 %v6669, %v6665
    %v8346 = vpack.c.b16 %v6670, %v6666
    %v8347 = vpack.c.b16 %v6675, %v6671
    %v8348 = vpack.c.b16 %v6676, %v6672
    %v8349 = vpack.c.b16 %v6677, %v6673
    %v8350 = vpack.c.b16 %v6678, %v6674
    %v8351 = vpack.c.b16 %v6683, %v6679
    %v8352 = vpack.c.b16 %v6684, %v6680
    %v8353 = vpack.c.b16 %v6685, %v6681
    %v8354 = vpack.c.b16 %v6686, %v6682
    %v8355 = vpack.c.b16 %v6691, %v6687
    %v8356 = vpack.c.b16 %v6692, %v6688
    %v8357 = vpack.c.b16 %v6693, %v6689
    %v8358 = vpack.c.b16 %v6694, %v6690
    %v8359 = vpack.c.b16 %v6699, %v6695
    %v8360 = vpack.c.b16 %v6700, %v6696
    %v8361 = vpack.c.b16 %v6701, %v6697
    %v8362 = vpack.c.b16 %v6702, %v6698
    %v8363 = vpack.c.b16 %v6707, %v6703
    %v8364 = vpack.c.b16 %v6708, %v6704
    %v8365 = vpack.c.b16 %v6709, %v6705
    %v8366 = vpack.c.b16 %v6710, %v6706
    %v8367 = vpack.c.b16 %v6715, %v6711
    %v8368 = vpack.c.b16 %v6716, %v6712
    %v8369 = vpack.c.b16 %v6717, %v6713
    %v8370 = vpack.c.b16 %v6718, %v6714
    %v8371 = vpack.c.b16 %v6723, %v6719
    %v8372 = vpack.c.b16 %v6724, %v6720
    %v8373 = vpack.c.b16 %v6725, %v6721
    %v8374 = vpack.c.b16 %v6726, %v6722
    %v8375 = vpack.c.b16 %v6731, %v6727
    %v8376 = vpack.c.b16 %v6732, %v6728
    %v8377 = vpack.c.b16 %v6733, %v6729
    %v8378 = vpack.c.b16 %v6734, %v6730
    %v8379 = vpack.c.b16 %v6739, %v6735
    %v8380 = vpack.c.b16 %v6740, %v6736
    %v8381 = vpack.c.b16 %v6741, %v6737
    %v8382 = vpack.c.b16 %v6742, %v6738
    %v8383 = vpack.c.b16 %v6747, %v6743
    %v8384 = vpack.c.b16 %v6748, %v6744
    %v8385 = vpack.c.b16 %v6749, %v6745
    %v8386 = vpack.c.b16 %v6750, %v6746
    %v8387 = vpack.c.b16 %v6755, %v6751
    %v8388 = vpack.c.b16 %v6756, %v6752
    %v8389 = vpack.c.b16 %v6757, %v6753
    %v8390 = vpack.c.b16 %v6758, %v6754
    %v8391 = vpack.c.b16 %v6763, %v6759
    %v8392 = vpack.c.b16 %v6764, %v6760
    %v8393 = vpack.c.b16 %v6765, %v6761
    %v8394 = vpack.c.b16 %v6766, %v6762
    %v8395 = vpack.c.b16 %v6771, %v6767
    %v8396 = vpack.c.b16 %v6772, %v6768
    %v8397 = vpack.c.b16 %v6773, %v6769
    %v8398 = vpack.c.b16 %v6774, %v6770
    %v8399 = vpack.c.b16 %v6779, %v6775
    %v8400 = vpack.c.b16 %v6780, %v6776
    %v8401 = vpack.c.b16 %v6781, %v6777
    %v8402 = vpack.c.b16 %v6782, %v6778
    %v8403 = vpack.c.b16 %v6787, %v6783
    %v8404 = vpack.c.b16 %v6788, %v6784
    %v8405 = vpack.c.b16 %v6789, %v6785
    %v8406 = vpack.c.b16 %v6790, %v6786
    %v8407 = vpack.c.b16 %v6795, %v6791
    %v8408 = vpack.c.b16 %v6796, %v6792
    %v8409 = vpack.c.b16 %v6797, %v6793
    %v8410 = vpack.c.b16 %v6798, %v6794
    %v8411 = vpack.c.b16 %v6803, %v6799
    %v8412 = vpack.c.b16 %v6804, %v6800
    %v8413 = vpack.c.b16 %v6805, %v6801
    %v8414 = vpack.c.b16 %v6806, %v6802
    %v8415 = vpack.c.b16 %v6811, %v6807
    %v8416 = vpack.c.b16 %v6812, %v6808
    %v8417 = vpack.c.b16 %v6813, %v6809
    %v8418 = vpack.c.b16 %v6814, %v6810
    %v8419 = vpack.c.b16 %v6819, %v6815
    %v8420 = vpack.c.b16 %v6820, %v6816
    %v8421 = vpack.c.b16 %v6821, %v6817
    %v8422 = vpack.c.b16 %v6822, %v6818
    %10023 = vmatprep.subr.bf16.mxu0 %v6824
    %10024 = vmatpush1.bf16.msra.mxu0 %v6823
    %10025 = vmatprep.subr.bf16.mxu0 %v6828
    %10026 = vmatpush1.bf16.msra.mxu0 %v6827
    %10027 = vmatprep.subr.bf16.mxu0 %v6832
    %10028 = vmatpush1.bf16.msra.mxu0 %v6831
    %10029 = vmatprep.subr.bf16.mxu0 %v6836
    %10030 = vmatpush1.bf16.msra.mxu0 %v6835
    %10031 = vmatprep.subr.bf16.mxu0 %v6840
    %10032 = vmatpush1.bf16.msra.mxu0 %v6839
    %10033 = vmatprep.subr.bf16.mxu0 %v6844
    %10034 = vmatpush1.bf16.msra.mxu0 %v6843
    %10035 = vmatprep.subr.bf16.mxu0 %v6848
    %10036 = vmatpush1.bf16.msra.mxu0 %v6847
    %10037 = vmatprep.subr.bf16.mxu0 %v6852
    %10038 = vmatpush1.bf16.msra.mxu0 %v6851
    %10039 = vmatprep.subr.bf16.mxu0 %v6856
    %10040 = vmatpush1.bf16.msra.mxu0 %v6855
    %10041 = vmatprep.subr.bf16.mxu0 %v6860
    %10042 = vmatpush1.bf16.msra.mxu0 %v6859
    %10043 = vmatprep.subr.bf16.mxu0 %v6864
    %10044 = vmatpush1.bf16.msra.mxu0 %v6863
    %10045 = vmatprep.subr.bf16.mxu0 %v6868
    %10046 = vmatpush1.bf16.msra.mxu0 %v6867
    %10047 = vmatprep.subr.bf16.mxu0 %v6872
    %10048 = vmatpush1.bf16.msra.mxu0 %v6871
    %10049 = vmatprep.subr.bf16.mxu0 %v6876
    %10050 = vmatpush1.bf16.msra.mxu0 %v6875
    %10051 = vmatprep.subr.bf16.mxu0 %v6880
    %10052 = vmatpush1.bf16.msra.mxu0 %v6879
    %10053 = vmatprep.subr.bf16.mxu0 %v6884
    %10054 = vmatpush1.bf16.msra.mxu0 %v6883
    %10055 = vmatprep.mubr.bf16.mxu0 %v1694
    %10056 = vmatmul.mubr.bf16.gmra.mrb[0].mxu0 %v1680
    %v10057 = vpop.f32.mrb[0].mxu0
    %v10058 = vadd.f32 %v1633, %v10057
    %v10059 = vpop.f32.mrb[0].mxu0
    %v10060 = vadd.f32 %v1637, %v10059
    %v10061 = vpop.f32.mrb[0].mxu0
    %v10062 = vpop.f32.mrb[0].mxu0
    %10063 = vdwg.mxu0
    %10064 = vmatprep.subr.bf16.mxu0 %v6888
    %10065 = vmatpush1.bf16.msra.mxu0 %v6887
    %10066 = vmatprep.subr.bf16.mxu0 %v6892
    %10067 = vmatpush1.bf16.msra.mxu0 %v6891
    %10068 = vmatprep.subr.bf16.mxu0 %v6896
    %10069 = vmatpush1.bf16.msra.mxu0 %v6895
    %10070 = vmatprep.subr.bf16.mxu0 %v6900
    %10071 = vmatpush1.bf16.msra.mxu0 %v6899
    %10072 = vmatprep.subr.bf16.mxu0 %v6904
    %10073 = vmatpush1.bf16.msra.mxu0 %v6903
    %10074 = vmatprep.subr.bf16.mxu0 %v6908
    %10075 = vmatpush1.bf16.msra.mxu0 %v6907
    %10076 = vmatprep.subr.bf16.mxu0 %v6912
    %10077 = vmatpush1.bf16.msra.mxu0 %v6911
    %10078 = vmatprep.subr.bf16.mxu0 %v6916
    %10079 = vmatpush1.bf16.msra.mxu0 %v6915
    %10080 = vmatprep.subr.bf16.mxu0 %v6920
    %10081 = vmatpush1.bf16.msra.mxu0 %v6919
    %10082 = vmatprep.subr.bf16.mxu0 %v6924
    %10083 = vmatpush1.bf16.msra.mxu0 %v6923
    %10084 = vmatprep.subr.bf16.mxu0 %v6928
    %10085 = vmatpush1.bf16.msra.mxu0 %v6927
    %10086 = vmatprep.subr.bf16.mxu0 %v6932
    %10087 = vmatpush1.bf16.msra.mxu0 %v6931
    %10088 = vmatprep.subr.bf16.mxu0 %v6936
    %10089 = vmatpush1.bf16.msra.mxu0 %v6935
    %10090 = vmatprep.subr.bf16.mxu0 %v6940
    %10091 = vmatpush1.bf16.msra.mxu0 %v6939
    %10092 = vmatprep.subr.bf16.mxu0 %v6944
    %10093 = vmatpush1.bf16.msra.mxu0 %v6943
    %10094 = vmatprep.subr.bf16.mxu0 %v6948
    %10095 = vmatpush1.bf16.msra.mxu0 %v6947
    %10096 = vmatprep.mubr.bf16.mxu0 %v1704
    %10097 = vmatmul.mubr.bf16.gmra.mrb[0].mxu0 %v1702
    %v10098 = vpop.f32.mrb[0].mxu0
    %v10099 = vadd.f32 %v10058, %v10098
    %v10100 = vpop.f32.mrb[0].mxu0
    %v10101 = vadd.f32 %v10060, %v10100
    %v10102 = vpop.f32.mrb[0].mxu0
    %v10103 = vpop.f32.mrb[0].mxu0
    %10104 = vdwg.mxu0
    %10105 = vmatprep.subr.bf16.mxu0 %v6952
    %10106 = vmatpush1.bf16.msra.mxu0 %v6951
    %10107 = vmatprep.subr.bf16.mxu0 %v6956
    %10108 = vmatpush1.bf16.msra.mxu0 %v6955
    %10109 = vmatprep.subr.bf16.mxu0 %v6960
    %10110 = vmatpush1.bf16.msra.mxu0 %v6959
    %10111 = vmatprep.subr.bf16.mxu0 %v6964
    %10112 = vmatpush1.bf16.msra.mxu0 %v6963
    %10113 = vmatprep.subr.bf16.mxu0 %v6968
    %10114 = vmatpush1.bf16.msra.mxu0 %v6967
    %10115 = vmatprep.subr.bf16.mxu0 %v6972
    %10116 = vmatpush1.bf16.msra.mxu0 %v6971
    %10117 = vmatprep.subr.bf16.mxu0 %v6976
    %10118 = vmatpush1.bf16.msra.mxu0 %v6975
    %10119 = vmatprep.subr.bf16.mxu0 %v6980
    %10120 = vmatpush1.bf16.msra.mxu0 %v6979
    %10121 = vmatprep.subr.bf16.mxu0 %v6984
    %10122 = vmatpush1.bf16.msra.mxu0 %v6983
    %10123 = vmatprep.subr.bf16.mxu0 %v6988
    %10124 = vmatpush1.bf16.msra.mxu0 %v6987
    %10125 = vmatprep.subr.bf16.mxu0 %v6992
    %10126 = vmatpush1.bf16.msra.mxu0 %v6991
    %10127 = vmatprep.subr.bf16.mxu0 %v6996
    %10128 = vmatpush1.bf16.msra.mxu0 %v6995
    %10129 = vmatprep.subr.bf16.mxu0 %v7000
    %10130 = vmatpush1.bf16.msra.mxu0 %v6999
    %10131 = vmatprep.subr.bf16.mxu0 %v7004
    %10132 = vmatpush1.bf16.msra.mxu0 %v7003
    %10133 = vmatprep.subr.bf16.mxu0 %v7008
    %10134 = vmatpush1.bf16.msra.mxu0 %v7007
    %10135 = vmatprep.subr.bf16.mxu0 %v7012
    %10136 = vmatpush1.bf16.msra.mxu0 %v7011
    %10137 = vmatprep.mubr.bf16.mxu0 %v1701
    %10138 = vmatmul.mubr.bf16.gmra.mrb[0].mxu0 %v1687
    %v10139 = vpop.f32.mrb[0].mxu0
    %v10140 = vadd.f32 %v10099, %v10139
    %v10141 = vpop.f32.mrb[0].mxu0
    %v10142 = vadd.f32 %v10101, %v10141
    %v10143 = vpop.f32.mrb[0].mxu0
    %v10144 = vpop.f32.mrb[0].mxu0
    %10145 = vdwg.mxu0
    %10146 = vmatprep.subr.bf16.mxu0 %v7016
    %10147 = vmatpush1.bf16.msra.mxu0 %v7015
    %10148 = vmatprep.subr.bf16.mxu0 %v7020
    %10149 = vmatpush1.bf16.msra.mxu0 %v7019
    %10150 = vmatprep.subr.bf16.mxu0 %v7024
    %10151 = vmatpush1.bf16.msra.mxu0 %v7023
    %10152 = vmatprep.subr.bf16.mxu0 %v7028
    %10153 = vmatpush1.bf16.msra.mxu0 %v7027
    %10154 = vmatprep.subr.bf16.mxu0 %v7032
    %10155 = vmatpush1.bf16.msra.mxu0 %v7031
    %10156 = vmatprep.subr.bf16.mxu0 %v7036
    %10157 = vmatpush1.bf16.msra.mxu0 %v7035
    %10158 = vmatprep.subr.bf16.mxu0 %v7040
    %10159 = vmatpush1.bf16.msra.mxu0 %v7039
    %10160 = vmatprep.subr.bf16.mxu0 %v7044
    %10161 = vmatpush1.bf16.msra.mxu0 %v7043
    %10162 = vmatprep.subr.bf16.mxu0 %v7048
    %10163 = vmatpush1.bf16.msra.mxu0 %v7047
    %10164 = vmatprep.subr.bf16.mxu0 %v7052
    %10165 = vmatpush1.bf16.msra.mxu0 %v7051
    %10166 = vmatprep.subr.bf16.mxu0 %v7056
    %10167 = vmatpush1.bf16.msra.mxu0 %v7055
    %10168 = vmatprep.subr.bf16.mxu0 %v7060
    %10169 = vmatpush1.bf16.msra.mxu0 %v7059
    %10170 = vmatprep.subr.bf16.mxu0 %v7064
    %10171 = vmatpush1.bf16.msra.mxu0 %v7063
    %10172 = vmatprep.subr.bf16.mxu0 %v7068
    %10173 = vmatpush1.bf16.msra.mxu0 %v7067
    %10174 = vmatprep.subr.bf16.mxu0 %v7072
    %10175 = vmatpush1.bf16.msra.mxu0 %v7071
    %10176 = vmatprep.subr.bf16.mxu0 %v7076
    %10177 = vmatpush1.bf16.msra.mxu0 %v7075
    %10178 = vmatprep.mubr.bf16.mxu0 %v1705
    %10179 = vmatmul.mubr.bf16.gmra.mrb[0].mxu0 %v1703
    %v10180 = vpop.f32.mrb[0].mxu0
    %v10181 = vadd.f32 %v10140, %v10180
    %v10182 = vpop.f32.mrb[0].mxu0
    %v10183 = vadd.f32 %v10142, %v10182
    %v10184 = vpop.f32.mrb[0].mxu0
    %v10185 = vpop.f32.mrb[0].mxu0
    %10186 = vdwg.mxu0
    %10187 = vmatprep.subr.bf16.mxu0 %v7080
    %10188 = vmatpush1.bf16.msra.mxu0 %v7079
    %10189 = vmatprep.subr.bf16.mxu0 %v7084
    %10190 = vmatpush1.bf16.msra.mxu0 %v7083
    %10191 = vmatprep.subr.bf16.mxu0 %v7088
    %10192 = vmatpush1.bf16.msra.mxu0 %v7087
    %10193 = vmatprep.subr.bf16.mxu0 %v7092
    %10194 = vmatpush1.bf16.msra.mxu0 %v7091
    %10195 = vmatprep.subr.bf16.mxu0 %v7096
    %10196 = vmatpush1.bf16.msra.mxu0 %v7095
    %10197 = vmatprep.subr.bf16.mxu0 %v7100
    %10198 = vmatpush1.bf16.msra.mxu0 %v7099
    %10199 = vmatprep.subr.bf16.mxu0 %v7104
    %10200 = vmatpush1.bf16.msra.mxu0 %v7103
    %10201 = vmatprep.subr.bf16.mxu0 %v7108
    %10202 = vmatpush1.bf16.msra.mxu0 %v7107
    %10203 = vmatprep.subr.bf16.mxu0 %v7112
    %10204 = vmatpush1.bf16.msra.mxu0 %v7111
    %10205 = vmatprep.subr.bf16.mxu0 %v7116
    %10206 = vmatpush1.bf16.msra.mxu0 %v7115
    %10207 = vmatprep.subr.bf16.mxu0 %v7120
    %10208 = vmatpush1.bf16.msra.mxu0 %v7119
    %10209 = vmatprep.subr.bf16.mxu0 %v7124
    %10210 = vmatpush1.bf16.msra.mxu0 %v7123
    %10211 = vmatprep.subr.bf16.mxu0 %v7128
    %10212 = vmatpush1.bf16.msra.mxu0 %v7127
    %10213 = vmatprep.subr.bf16.mxu0 %v7132
    %10214 = vmatpush1.bf16.msra.mxu0 %v7131
    %10215 = vmatprep.subr.bf16.mxu0 %v7136
    %10216 = vmatpush1.bf16.msra.mxu0 %v7135
    %10217 = vmatprep.subr.bf16.mxu0 %v7140
    %10218 = vmatpush1.bf16.msra.mxu0 %v7139
    %10219 = vmatprep.mubr.bf16.mxu0 %v1743
    %10220 = vmatmul.mubr.bf16.gmra.mrb[0].mxu0 %v1729
    %v10221 = vpop.f32.mrb[0].mxu0
    %v10222 = vadd.f32 %v10181, %v10221
    %v10223 = vpop.f32.mrb[0].mxu0
    %v10224 = vadd.f32 %v10183, %v10223
    %v10225 = vpop.f32.mrb[0].mxu0
    %v10226 = vpop.f32.mrb[0].mxu0
    %10227 = vdwg.mxu0
    %10228 = vmatprep.subr.bf16.mxu0 %v7144
    %10229 = vmatpush1.bf16.msra.mxu0 %v7143
    %10230 = vmatprep.subr.bf16.mxu0 %v7148
    %10231 = vmatpush1.bf16.msra.mxu0 %v7147
    %10232 = vmatprep.subr.bf16.mxu0 %v7152
    %10233 = vmatpush1.bf16.msra.mxu0 %v7151
    %10234 = vmatprep.subr.bf16.mxu0 %v7156
    %10235 = vmatpush1.bf16.msra.mxu0 %v7155
    %10236 = vmatprep.subr.bf16.mxu0 %v7160
    %10237 = vmatpush1.bf16.msra.mxu0 %v7159
    %10238 = vmatprep.subr.bf16.mxu0 %v7164
    %10239 = vmatpush1.bf16.msra.mxu0 %v7163
    %10240 = vmatprep.subr.bf16.mxu0 %v7168
    %10241 = vmatpush1.bf16.msra.mxu0 %v7167
    %10242 = vmatprep.subr.bf16.mxu0 %v7172
    %10243 = vmatpush1.bf16.msra.mxu0 %v7171
    %10244 = vmatprep.subr.bf16.mxu0 %v7176
    %10245 = vmatpush1.bf16.msra.mxu0 %v7175
    %10246 = vmatprep.subr.bf16.mxu0 %v7180
    %10247 = vmatpush1.bf16.msra.mxu0 %v7179
    %10248 = vmatprep.subr.bf16.mxu0 %v7184
    %10249 = vmatpush1.bf16.msra.mxu0 %v7183
    %10250 = vmatprep.subr.bf16.mxu0 %v7188
    %10251 = vmatpush1.bf16.msra.mxu0 %v7187
    %10252 = vmatprep.subr.bf16.mxu0 %v7192
    %10253 = vmatpush1.bf16.msra.mxu0 %v7191
    %10254 = vmatprep.subr.bf16.mxu0 %v7196
    %10255 = vmatpush1.bf16.msra.mxu0 %v7195
    %10256 = vmatprep.subr.bf16.mxu0 %v7200
    %10257 = vmatpush1.bf16.msra.mxu0 %v7199
    %10258 = vmatprep.subr.bf16.mxu0 %v7204
    %10259 = vmatpush1.bf16.msra.mxu0 %v7203
    %10260 = vmatprep.mubr.bf16.mxu0 %v1753
    %10261 = vmatmul.mubr.bf16.gmra.mrb[0].mxu0 %v1751
    %v10262 = vpop.f32.mrb[0].mxu0
    %v10263 = vadd.f32 %v10222, %v10262
    %v10264 = vpop.f32.mrb[0].mxu0
    %v10265 = vadd.f32 %v10224, %v10264
    %v10266 = vpop.f32.mrb[0].mxu0
    %v10267 = vpop.f32.mrb[0].mxu0
    %10268 = vdwg.mxu0
    %10269 = vmatprep.subr.bf16.mxu0 %v7208
    %10270 = vmatpush1.bf16.msra.mxu0 %v7207
    %10271 = vmatprep.subr.bf16.mxu0 %v7212
    %10272 = vmatpush1.bf16.msra.mxu0 %v7211
    %10273 = vmatprep.subr.bf16.mxu0 %v7216
    %10274 = vmatpush1.bf16.msra.mxu0 %v7215
    %10275 = vmatprep.subr.bf16.mxu0 %v7220
    %10276 = vmatpush1.bf16.msra.mxu0 %v7219
    %10277 = vmatprep.subr.bf16.mxu0 %v7224
    %10278 = vmatpush1.bf16.msra.mxu0 %v7223
    %10279 = vmatprep.subr.bf16.mxu0 %v7228
    %10280 = vmatpush1.bf16.msra.mxu0 %v7227
    %10281 = vmatprep.subr.bf16.mxu0 %v7232
    %10282 = vmatpush1.bf16.msra.mxu0 %v7231
    %10283 = vmatprep.subr.bf16.mxu0 %v7236
    %10284 = vmatpush1.bf16.msra.mxu0 %v7235
    %10285 = vmatprep.subr.bf16.mxu0 %v7240
    %10286 = vmatpush1.bf16.msra.mxu0 %v7239
    %10287 = vmatprep.subr.bf16.mxu0 %v7244
    %10288 = vmatpush1.bf16.msra.mxu0 %v7243
    %10289 = vmatprep.subr.bf16.mxu0 %v7248
    %10290 = vmatpush1.bf16.msra.mxu0 %v7247
    %10291 = vmatprep.subr.bf16.mxu0 %v7252
    %10292 = vmatpush1.bf16.msra.mxu0 %v7251
    %10293 = vmatprep.subr.bf16.mxu0 %v7256
    %10294 = vmatpush1.bf16.msra.mxu0 %v7255
    %10295 = vmatprep.subr.bf16.mxu0 %v7260
    %10296 = vmatpush1.bf16.msra.mxu0 %v7259
    %10297 = vmatprep.subr.bf16.mxu0 %v7264
    %10298 = vmatpush1.bf16.msra.mxu0 %v7263
    %10299 = vmatprep.subr.bf16.mxu0 %v7268
    %10300 = vmatpush1.bf16.msra.mxu0 %v7267
    %10301 = vmatprep.mubr.bf16.mxu0 %v1750
    %10302 = vmatmul.mubr.bf16.gmra.mrb[0].mxu0 %v1736
    %v10303 = vpop.f32.mrb[0].mxu0
    %v10304 = vadd.f32 %v10263, %v10303
    %v10305 = vpop.f32.mrb[0].mxu0
    %v10306 = vadd.f32 %v10265, %v10305
    %v10307 = vpop.f32.mrb[0].mxu0
    %v10308 = vpop.f32.mrb[0].mxu0
    %10309 = vdwg.mxu0
    %10310 = vmatprep.subr.bf16.mxu0 %v7272
    %10311 = vmatpush1.bf16.msra.mxu0 %v7271
    %10312 = vmatprep.subr.bf16.mxu0 %v7276
    %10313 = vmatpush1.bf16.msra.mxu0 %v7275
    %10314 = vmatprep.subr.bf16.mxu0 %v7280
    %10315 = vmatpush1.bf16.msra.mxu0 %v7279
    %10316 = vmatprep.subr.bf16.mxu0 %v7284
    %10317 = vmatpush1.bf16.msra.mxu0 %v7283
    %10318 = vmatprep.subr.bf16.mxu0 %v7288
    %10319 = vmatpush1.bf16.msra.mxu0 %v7287
    %10320 = vmatprep.subr.bf16.mxu0 %v7292
    %10321 = vmatpush1.bf16.msra.mxu0 %v7291
    %10322 = vmatprep.subr.bf16.mxu0 %v7296
    %10323 = vmatpush1.bf16.msra.mxu0 %v7295
    %10324 = vmatprep.subr.bf16.mxu0 %v7300
    %10325 = vmatpush1.bf16.msra.mxu0 %v7299
    %10326 = vmatprep.subr.bf16.mxu0 %v7304
    %10327 = vmatpush1.bf16.msra.mxu0 %v7303
    %10328 = vmatprep.subr.bf16.mxu0 %v7308
    %10329 = vmatpush1.bf16.msra.mxu0 %v7307
    %10330 = vmatprep.subr.bf16.mxu0 %v7312
    %10331 = vmatpush1.bf16.msra.mxu0 %v7311
    %10332 = vmatprep.subr.bf16.mxu0 %v7316
    %10333 = vmatpush1.bf16.msra.mxu0 %v7315
    %10334 = vmatprep.subr.bf16.mxu0 %v7320
    %10335 = vmatpush1.bf16.msra.mxu0 %v7319
    %10336 = vmatprep.subr.bf16.mxu0 %v7324
    %10337 = vmatpush1.bf16.msra.mxu0 %v7323
    %10338 = vmatprep.subr.bf16.mxu0 %v7328
    %10339 = vmatpush1.bf16.msra.mxu0 %v7327
    %10340 = vmatprep.subr.bf16.mxu0 %v7332
    %10341 = vmatpush1.bf16.msra.mxu0 %v7331
    %10342 = vmatprep.mubr.bf16.mxu0 %v1754
    %10343 = vmatmul.mubr.bf16.gmra.mrb[0].mxu0 %v1752
    %v10344 = vpop.f32.mrb[0].mxu0
    %v10345 = vadd.f32 %v10304, %v10344
    %v10346 = vpop.f32.mrb[0].mxu0
    %v10347 = vadd.f32 %v10306, %v10346
    %v10348 = vpop.f32.mrb[0].mxu0
    %v10349 = vpop.f32.mrb[0].mxu0
    %10350 = vdwg.mxu0
    %10351 = vmatprep.subr.bf16.mxu0 %v7336
    %10352 = vmatpush1.bf16.msra.mxu0 %v7335
    %10353 = vmatprep.subr.bf16.mxu0 %v7340
    %10354 = vmatpush1.bf16.msra.mxu0 %v7339
    %10355 = vmatprep.subr.bf16.mxu0 %v7344
    %10356 = vmatpush1.bf16.msra.mxu0 %v7343
    %10357 = vmatprep.subr.bf16.mxu0 %v7348
    %10358 = vmatpush1.bf16.msra.mxu0 %v7347
    %10359 = vmatprep.subr.bf16.mxu0 %v7352
    %10360 = vmatpush1.bf16.msra.mxu0 %v7351
    %10361 = vmatprep.subr.bf16.mxu0 %v7356
    %10362 = vmatpush1.bf16.msra.mxu0 %v7355
    %10363 = vmatprep.subr.bf16.mxu0 %v7360
    %10364 = vmatpush1.bf16.msra.mxu0 %v7359
    %10365 = vmatprep.subr.bf16.mxu0 %v7364
    %10366 = vmatpush1.bf16.msra.mxu0 %v7363
    %10367 = vmatprep.subr.bf16.mxu0 %v7368
    %10368 = vmatpush1.bf16.msra.mxu0 %v7367
    %10369 = vmatprep.subr.bf16.mxu0 %v7372
    %10370 = vmatpush1.bf16.msra.mxu0 %v7371
    %10371 = vmatprep.subr.bf16.mxu0 %v7376
    %10372 = vmatpush1.bf16.msra.mxu0 %v7375
    %10373 = vmatprep.subr.bf16.mxu0 %v7380
    %10374 = vmatpush1.bf16.msra.mxu0 %v7379
    %10375 = vmatprep.subr.bf16.mxu0 %v7384
    %10376 = vmatpush1.bf16.msra.mxu0 %v7383
    %10377 = vmatprep.subr.bf16.mxu0 %v7388
    %10378 = vmatpush1.bf16.msra.mxu0 %v7387
    %10379 = vmatprep.subr.bf16.mxu0 %v7392
    %10380 = vmatpush1.bf16.msra.mxu0 %v7391
    %10381 = vmatprep.subr.bf16.mxu0 %v7396
    %10382 = vmatpush1.bf16.msra.mxu0 %v7395
    %10383 = vmatprep.mubr.bf16.mxu0 %v1792
    %10384 = vmatmul.mubr.bf16.gmra.mrb[0].mxu0 %v1778
    %v10385 = vpop.f32.mrb[0].mxu0
    %v10386 = vadd.f32 %v10345, %v10385
    %v10387 = vpop.f32.mrb[0].mxu0
    %v10388 = vadd.f32 %v10347, %v10387
    %v10389 = vpop.f32.mrb[0].mxu0
    %v10390 = vpop.f32.mrb[0].mxu0
    %10391 = vdwg.mxu0
    %10392 = vmatprep.subr.bf16.mxu0 %v7400
    %10393 = vmatpush1.bf16.msra.mxu0 %v7399
    %10394 = vmatprep.subr.bf16.mxu0 %v7404
    %10395 = vmatpush1.bf16.msra.mxu0 %v7403
    %10396 = vmatprep.subr.bf16.mxu0 %v7408
    %10397 = vmatpush1.bf16.msra.mxu0 %v7407
    %10398 = vmatprep.subr.bf16.mxu0 %v7412
    %10399 = vmatpush1.bf16.msra.mxu0 %v7411
    %10400 = vmatprep.subr.bf16.mxu0 %v7416
    %10401 = vmatpush1.bf16.msra.mxu0 %v7415
    %10402 = vmatprep.subr.bf16.mxu0 %v7420
    %10403 = vmatpush1.bf16.msra.mxu0 %v7419
    %10404 = vmatprep.subr.bf16.mxu0 %v7424
    %10405 = vmatpush1.bf16.msra.mxu0 %v7423
    %10406 = vmatprep.subr.bf16.mxu0 %v7428
    %10407 = vmatpush1.bf16.msra.mxu0 %v7427
    %10408 = vmatprep.subr.bf16.mxu0 %v7432
    %10409 = vmatpush1.bf16.msra.mxu0 %v7431
    %10410 = vmatprep.subr.bf16.mxu0 %v7436
    %10411 = vmatpush1.bf16.msra.mxu0 %v7435
    %10412 = vmatprep.subr.bf16.mxu0 %v7440
    %10413 = vmatpush1.bf16.msra.mxu0 %v7439
    %10414 = vmatprep.subr.bf16.mxu0 %v7444
    %10415 = vmatpush1.bf16.msra.mxu0 %v7443
    %10416 = vmatprep.subr.bf16.mxu0 %v7448
    %10417 = vmatpush1.bf16.msra.mxu0 %v7447
    %10418 = vmatprep.subr.bf16.mxu0 %v7452
    %10419 = vmatpush1.bf16.msra.mxu0 %v7451
    %10420 = vmatprep.subr.bf16.mxu0 %v7456
    %10421 = vmatpush1.bf16.msra.mxu0 %v7455
    %10422 = vmatprep.subr.bf16.mxu0 %v7460
    %10423 = vmatpush1.bf16.msra.mxu0 %v7459
    %10424 = vmatprep.mubr.bf16.mxu0 %v1802
    %10425 = vmatmul.mubr.bf16.gmra.mrb[0].mxu0 %v1800
    %v10426 = vpop.f32.mrb[0].mxu0
    %v10427 = vadd.f32 %v10386, %v10426
    %v10428 = vpop.f32.mrb[0].mxu0
    %v10429 = vadd.f32 %v10388, %v10428
    %v10430 = vpop.f32.mrb[0].mxu0
    %v10431 = vpop.f32.mrb[0].mxu0
    %10432 = vdwg.mxu0
    %10433 = vmatprep.subr.bf16.mxu0 %v7464
    %10434 = vmatpush1.bf16.msra.mxu0 %v7463
    %10435 = vmatprep.subr.bf16.mxu0 %v7468
    %10436 = vmatpush1.bf16.msra.mxu0 %v7467
    %10437 = vmatprep.subr.bf16.mxu0 %v7472
    %10438 = vmatpush1.bf16.msra.mxu0 %v7471
    %10439 = vmatprep.subr.bf16.mxu0 %v7476
    %10440 = vmatpush1.bf16.msra.mxu0 %v7475
    %10441 = vmatprep.subr.bf16.mxu0 %v7480
    %10442 = vmatpush1.bf16.msra.mxu0 %v7479
    %10443 = vmatprep.subr.bf16.mxu0 %v7484
    %10444 = vmatpush1.bf16.msra.mxu0 %v7483
    %10445 = vmatprep.subr.bf16.mxu0 %v7488
    %10446 = vmatpush1.bf16.msra.mxu0 %v7487
    %10447 = vmatprep.subr.bf16.mxu0 %v7492
    %10448 = vmatpush1.bf16.msra.mxu0 %v7491
    %10449 = vmatprep.subr.bf16.mxu0 %v7496
    %10450 = vmatpush1.bf16.msra.mxu0 %v7495
    %10451 = vmatprep.subr.bf16.mxu0 %v7500
    %10452 = vmatpush1.bf16.msra.mxu0 %v7499
    %10453 = vmatprep.subr.bf16.mxu0 %v7504
    %10454 = vmatpush1.bf16.msra.mxu0 %v7503
    %10455 = vmatprep.subr.bf16.mxu0 %v7508
    %10456 = vmatpush1.bf16.msra.mxu0 %v7507
    %10457 = vmatprep.subr.bf16.mxu0 %v7512
    %10458 = vmatpush1.bf16.msra.mxu0 %v7511
    %10459 = vmatprep.subr.bf16.mxu0 %v7516
    %10460 = vmatpush1.bf16.msra.mxu0 %v7515
    %10461 = vmatprep.subr.bf16.mxu0 %v7520
    %10462 = vmatpush1.bf16.msra.mxu0 %v7519
    %10463 = vmatprep.subr.bf16.mxu0 %v7524
    %10464 = vmatpush1.bf16.msra.mxu0 %v7523
    %10465 = vmatprep.mubr.bf16.mxu0 %v1799
    %10466 = vmatmul.mubr.bf16.gmra.mrb[0].mxu0 %v1785
    %v10467 = vpop.f32.mrb[0].mxu0
    %v10468 = vadd.f32 %v10427, %v10467
    %v10469 = vpop.f32.mrb[0].mxu0
    %v10470 = vadd.f32 %v10429, %v10469
    %v10471 = vpop.f32.mrb[0].mxu0
    %v10472 = vpop.f32.mrb[0].mxu0
    %10473 = vdwg.mxu0
    %10474 = vmatprep.subr.bf16.mxu0 %v7528
    %10475 = vmatpush1.bf16.msra.mxu0 %v7527
    %10476 = vmatprep.subr.bf16.mxu0 %v7532
    %10477 = vmatpush1.bf16.msra.mxu0 %v7531
    %10478 = vmatprep.subr.bf16.mxu0 %v7536
    %10479 = vmatpush1.bf16.msra.mxu0 %v7535
    %10480 = vmatprep.subr.bf16.mxu0 %v7540
    %10481 = vmatpush1.bf16.msra.mxu0 %v7539
    %10482 = vmatprep.subr.bf16.mxu0 %v7544
    %10483 = vmatpush1.bf16.msra.mxu0 %v7543
    %10484 = vmatprep.subr.bf16.mxu0 %v7548
    %10485 = vmatpush1.bf16.msra.mxu0 %v7547
    %10486 = vmatprep.subr.bf16.mxu0 %v7552
    %10487 = vmatpush1.bf16.msra.mxu0 %v7551
    %10488 = vmatprep.subr.bf16.mxu0 %v7556
    %10489 = vmatpush1.bf16.msra.mxu0 %v7555
    %10490 = vmatprep.subr.bf16.mxu0 %v7560
    %10491 = vmatpush1.bf16.msra.mxu0 %v7559
    %10492 = vmatprep.subr.bf16.mxu0 %v7564
    %10493 = vmatpush1.bf16.msra.mxu0 %v7563
    %10494 = vmatprep.subr.bf16.mxu0 %v7568
    %10495 = vmatpush1.bf16.msra.mxu0 %v7567
    %10496 = vmatprep.subr.bf16.mxu0 %v7572
    %10497 = vmatpush1.bf16.msra.mxu0 %v7571
    %10498 = vmatprep.subr.bf16.mxu0 %v7576
    %10499 = vmatpush1.bf16.msra.mxu0 %v7575
    %10500 = vmatprep.subr.bf16.mxu0 %v7580
    %10501 = vmatpush1.bf16.msra.mxu0 %v7579
    %10502 = vmatprep.subr.bf16.mxu0 %v7584
    %10503 = vmatpush1.bf16.msra.mxu0 %v7583
    %10504 = vmatprep.subr.bf16.mxu0 %v7588
    %10505 = vmatpush1.bf16.msra.mxu0 %v7587
    %10506 = vmatprep.mubr.bf16.mxu0 %v1803
    %10507 = vmatmul.mubr.bf16.gmra.mrb[0].mxu0 %v1801
    %v10508 = vpop.f32.mrb[0].mxu0
    %v10509 = vadd.f32 %v10468, %v10508
    %v10510 = vpop.f32.mrb[0].mxu0
    %v10511 = vadd.f32 %v10470, %v10510
    %v10512 = vpop.f32.mrb[0].mxu0
    %v10513 = vpop.f32.mrb[0].mxu0
    %10514 = vdwg.mxu0
    %10515 = vmatprep.subr.bf16.mxu0 %v7592
    %10516 = vmatpush1.bf16.msra.mxu0 %v7591
    %10517 = vmatprep.subr.bf16.mxu0 %v7596
    %10518 = vmatpush1.bf16.msra.mxu0 %v7595
    %10519 = vmatprep.subr.bf16.mxu0 %v7600
    %10520 = vmatpush1.bf16.msra.mxu0 %v7599
    %10521 = vmatprep.subr.bf16.mxu0 %v7604
    %10522 = vmatpush1.bf16.msra.mxu0 %v7603
    %10523 = vmatprep.subr.bf16.mxu0 %v7608
    %10524 = vmatpush1.bf16.msra.mxu0 %v7607
    %10525 = vmatprep.subr.bf16.mxu0 %v7612
    %10526 = vmatpush1.bf16.msra.mxu0 %v7611
    %10527 = vmatprep.subr.bf16.mxu0 %v7616
    %10528 = vmatpush1.bf16.msra.mxu0 %v7615
    %10529 = vmatprep.subr.bf16.mxu0 %v7620
    %10530 = vmatpush1.bf16.msra.mxu0 %v7619
    %10531 = vmatprep.subr.bf16.mxu0 %v7624
    %10532 = vmatpush1.bf16.msra.mxu0 %v7623
    %10533 = vmatprep.subr.bf16.mxu0 %v7628
    %10534 = vmatpush1.bf16.msra.mxu0 %v7627
    %10535 = vmatprep.subr.bf16.mxu0 %v7632
    %10536 = vmatpush1.bf16.msra.mxu0 %v7631
    %10537 = vmatprep.subr.bf16.mxu0 %v7636
    %10538 = vmatpush1.bf16.msra.mxu0 %v7635
    %10539 = vmatprep.subr.bf16.mxu0 %v7640
    %10540 = vmatpush1.bf16.msra.mxu0 %v7639
    %10541 = vmatprep.subr.bf16.mxu0 %v7644
    %10542 = vmatpush1.bf16.msra.mxu0 %v7643
    %10543 = vmatprep.subr.bf16.mxu0 %v7648
    %10544 = vmatpush1.bf16.msra.mxu0 %v7647
    %10545 = vmatprep.subr.bf16.mxu0 %v7652
    %10546 = vmatpush1.bf16.msra.mxu0 %v7651
    %10547 = vmatprep.mubr.bf16.mxu0 %v1841
    %10548 = vmatmul.mubr.bf16.gmra.mrb[0].mxu0 %v1827
    %v10549 = vpop.f32.mrb[0].mxu0
    %v10550 = vadd.f32 %v10509, %v10549
    %v10551 = vpop.f32.mrb[0].mxu0
    %v10552 = vadd.f32 %v10511, %v10551
    %v10553 = vpop.f32.mrb[0].mxu0
    %v10554 = vpop.f32.mrb[0].mxu0
    %10555 = vdwg.mxu0
    %10556 = vmatprep.subr.bf16.mxu0 %v7656
    %10557 = vmatpush1.bf16.msra.mxu0 %v7655
    %10558 = vmatprep.subr.bf16.mxu0 %v7660
    %10559 = vmatpush1.bf16.msra.mxu0 %v7659
    %10560 = vmatprep.subr.bf16.mxu0 %v7664
    %10561 = vmatpush1.bf16.msra.mxu0 %v7663
    %10562 = vmatprep.subr.bf16.mxu0 %v7668
    %10563 = vmatpush1.bf16.msra.mxu0 %v7667
    %10564 = vmatprep.subr.bf16.mxu0 %v7672
    %10565 = vmatpush1.bf16.msra.mxu0 %v7671
    %10566 = vmatprep.subr.bf16.mxu0 %v7676
    %10567 = vmatpush1.bf16.msra.mxu0 %v7675
    %10568 = vmatprep.subr.bf16.mxu0 %v7680
    %10569 = vmatpush1.bf16.msra.mxu0 %v7679
    %10570 = vmatprep.subr.bf16.mxu0 %v7684
    %10571 = vmatpush1.bf16.msra.mxu0 %v7683
    %10572 = vmatprep.subr.bf16.mxu0 %v7688
    %10573 = vmatpush1.bf16.msra.mxu0 %v7687
    %10574 = vmatprep.subr.bf16.mxu0 %v7692
    %10575 = vmatpush1.bf16.msra.mxu0 %v7691
    %10576 = vmatprep.subr.bf16.mxu0 %v7696
    %10577 = vmatpush1.bf16.msra.mxu0 %v7695
    %10578 = vmatprep.subr.bf16.mxu0 %v7700
    %10579 = vmatpush1.bf16.msra.mxu0 %v7699
    %10580 = vmatprep.subr.bf16.mxu0 %v7704
    %10581 = vmatpush1.bf16.msra.mxu0 %v7703
    %10582 = vmatprep.subr.bf16.mxu0 %v7708
    %10583 = vmatpush1.bf16.msra.mxu0 %v7707
    %10584 = vmatprep.subr.bf16.mxu0 %v7712
    %10585 = vmatpush1.bf16.msra.mxu0 %v7711
    %10586 = vmatprep.subr.bf16.mxu0 %v7716
    %10587 = vmatpush1.bf16.msra.mxu0 %v7715
    %10588 = vmatprep.mubr.bf16.mxu0 %v1851
    %10589 = vmatmul.mubr.bf16.gmra.mrb[0].mxu0 %v1849
    %v10590 = vpop.f32.mrb[0].mxu0
    %v10591 = vadd.f32 %v10550, %v10590
    %v10592 = vpop.f32.mrb[0].mxu0
    %v10593 = vadd.f32 %v10552, %v10592
    %v10594 = vpop.f32.mrb[0].mxu0
    %v10595 = vpop.f32.mrb[0].mxu0
    %10596 = vdwg.mxu0
    %10597 = vmatprep.subr.bf16.mxu0 %v7720
    %10598 = vmatpush1.bf16.msra.mxu0 %v7719
    %10599 = vmatprep.subr.bf16.mxu0 %v7724
    %10600 = vmatpush1.bf16.msra.mxu0 %v7723
    %10601 = vmatprep.subr.bf16.mxu0 %v7728
    %10602 = vmatpush1.bf16.msra.mxu0 %v7727
    %10603 = vmatprep.subr.bf16.mxu0 %v7732
    %10604 = vmatpush1.bf16.msra.mxu0 %v7731
    %10605 = vmatprep.subr.bf16.mxu0 %v7736
    %10606 = vmatpush1.bf16.msra.mxu0 %v7735
    %10607 = vmatprep.subr.bf16.mxu0 %v7740
    %10608 = vmatpush1.bf16.msra.mxu0 %v7739
    %10609 = vmatprep.subr.bf16.mxu0 %v7744
    %10610 = vmatpush1.bf16.msra.mxu0 %v7743
    %10611 = vmatprep.subr.bf16.mxu0 %v7748
    %10612 = vmatpush1.bf16.msra.mxu0 %v7747
    %10613 = vmatprep.subr.bf16.mxu0 %v7752
    %10614 = vmatpush1.bf16.msra.mxu0 %v7751
    %10615 = vmatprep.subr.bf16.mxu0 %v7756
    %10616 = vmatpush1.bf16.msra.mxu0 %v7755
    %10617 = vmatprep.subr.bf16.mxu0 %v7760
    %10618 = vmatpush1.bf16.msra.mxu0 %v7759
    %10619 = vmatprep.subr.bf16.mxu0 %v7764
    %10620 = vmatpush1.bf16.msra.mxu0 %v7763
    %10621 = vmatprep.subr.bf16.mxu0 %v7768
    %10622 = vmatpush1.bf16.msra.mxu0 %v7767
    %10623 = vmatprep.subr.bf16.mxu0 %v7772
    %10624 = vmatpush1.bf16.msra.mxu0 %v7771
    %10625 = vmatprep.subr.bf16.mxu0 %v7776
    %10626 = vmatpush1.bf16.msra.mxu0 %v7775
    %10627 = vmatprep.subr.bf16.mxu0 %v7780
    %10628 = vmatpush1.bf16.msra.mxu0 %v7779
    %10629 = vmatprep.mubr.bf16.mxu0 %v1848
    %10630 = vmatmul.mubr.bf16.gmra.mrb[0].mxu0 %v1834
    %v10631 = vpop.f32.mrb[0].mxu0
    %v10632 = vadd.f32 %v10591, %v10631
    %v10633 = vpop.f32.mrb[0].mxu0
    %v10634 = vadd.f32 %v10593, %v10633
    %v10635 = vpop.f32.mrb[0].mxu0
    %v10636 = vpop.f32.mrb[0].mxu0
    %10637 = vdwg.mxu0
    %10638 = vmatprep.subr.bf16.mxu0 %v7784
    %10639 = vmatpush1.bf16.msra.mxu0 %v7783
    %10640 = vmatprep.subr.bf16.mxu0 %v7788
    %10641 = vmatpush1.bf16.msra.mxu0 %v7787
    %10642 = vmatprep.subr.bf16.mxu0 %v7792
    %10643 = vmatpush1.bf16.msra.mxu0 %v7791
    %10644 = vmatprep.subr.bf16.mxu0 %v7796
    %10645 = vmatpush1.bf16.msra.mxu0 %v7795
    %10646 = vmatprep.subr.bf16.mxu0 %v7800
    %10647 = vmatpush1.bf16.msra.mxu0 %v7799
    %10648 = vmatprep.subr.bf16.mxu0 %v7804
    %10649 = vmatpush1.bf16.msra.mxu0 %v7803
    %10650 = vmatprep.subr.bf16.mxu0 %v7808
    %10651 = vmatpush1.bf16.msra.mxu0 %v7807
    %10652 = vmatprep.subr.bf16.mxu0 %v7812
    %10653 = vmatpush1.bf16.msra.mxu0 %v7811
    %10654 = vmatprep.subr.bf16.mxu0 %v7816
    %10655 = vmatpush1.bf16.msra.mxu0 %v7815
    %10656 = vmatprep.subr.bf16.mxu0 %v7820
    %10657 = vmatpush1.bf16.msra.mxu0 %v7819
    %10658 = vmatprep.subr.bf16.mxu0 %v7824
    %10659 = vmatpush1.bf16.msra.mxu0 %v7823
    %10660 = vmatprep.subr.bf16.mxu0 %v7828
    %10661 = vmatpush1.bf16.msra.mxu0 %v7827
    %10662 = vmatprep.subr.bf16.mxu0 %v7832
    %10663 = vmatpush1.bf16.msra.mxu0 %v7831
    %10664 = vmatprep.subr.bf16.mxu0 %v7836
    %10665 = vmatpush1.bf16.msra.mxu0 %v7835
    %10666 = vmatprep.subr.bf16.mxu0 %v7840
    %10667 = vmatpush1.bf16.msra.mxu0 %v7839
    %10668 = vmatprep.subr.bf16.mxu0 %v7844
    %10669 = vmatpush1.bf16.msra.mxu0 %v7843
    %10670 = vmatprep.mubr.bf16.mxu0 %v1852
    %10671 = vmatmul.mubr.bf16.gmra.mrb[0].mxu0 %v1850
    %v10672 = vpop.f32.mrb[0].mxu0
    %v10673 = vadd.f32 %v10632, %v10672
    %v10674 = vpop.f32.mrb[0].mxu0
    %v10675 = vadd.f32 %v10634, %v10674
    %v10676 = vpop.f32.mrb[0].mxu0
    %v10677 = vpop.f32.mrb[0].mxu0
    %10678 = vdwg.mxu0
    %10679 = vmatprep.subr.bf16.mxu0 %v7848
    %10680 = vmatpush1.bf16.msra.mxu0 %v7847
    %10681 = vmatprep.subr.bf16.mxu0 %v7852
    %10682 = vmatpush1.bf16.msra.mxu0 %v7851
    %10683 = vmatprep.subr.bf16.mxu0 %v7856
    %10684 = vmatpush1.bf16.msra.mxu0 %v7855
    %10685 = vmatprep.subr.bf16.mxu0 %v7860
    %10686 = vmatpush1.bf16.msra.mxu0 %v7859
    %10687 = vmatprep.subr.bf16.mxu0 %v7864
    %10688 = vmatpush1.bf16.msra.mxu0 %v7863
    %10689 = vmatprep.subr.bf16.mxu0 %v7868
    %10690 = vmatpush1.bf16.msra.mxu0 %v7867
    %10691 = vmatprep.subr.bf16.mxu0 %v7872
    %10692 = vmatpush1.bf16.msra.mxu0 %v7871
    %10693 = vmatprep.subr.bf16.mxu0 %v7876
    %10694 = vmatpush1.bf16.msra.mxu0 %v7875
    %10695 = vmatprep.subr.bf16.mxu0 %v7880
    %10696 = vmatpush1.bf16.msra.mxu0 %v7879
    %10697 = vmatprep.subr.bf16.mxu0 %v7884
    %10698 = vmatpush1.bf16.msra.mxu0 %v7883
    %10699 = vmatprep.subr.bf16.mxu0 %v7888
    %10700 = vmatpush1.bf16.msra.mxu0 %v7887
    %10701 = vmatprep.subr.bf16.mxu0 %v7892
    %10702 = vmatpush1.bf16.msra.mxu0 %v7891
    %10703 = vmatprep.subr.bf16.mxu0 %v7896
    %10704 = vmatpush1.bf16.msra.mxu0 %v7895
    %10705 = vmatprep.subr.bf16.mxu0 %v7900
    %10706 = vmatpush1.bf16.msra.mxu0 %v7899
    %10707 = vmatprep.subr.bf16.mxu0 %v7904
    %10708 = vmatpush1.bf16.msra.mxu0 %v7903
    %10709 = vmatprep.subr.bf16.mxu0 %v7908
    %10710 = vmatpush1.bf16.msra.mxu0 %v7907
    %10711 = vmatprep.mubr.bf16.mxu0 %v1890
    %10712 = vmatmul.mubr.bf16.gmra.mrb[0].mxu0 %v1876
    %v10713 = vpop.f32.mrb[0].mxu0
    %v10714 = vadd.f32 %v10673, %v10713
    %v10715 = vpop.f32.mrb[0].mxu0
    %v10716 = vadd.f32 %v10675, %v10715
    %v10717 = vpop.f32.mrb[0].mxu0
    %v10718 = vpop.f32.mrb[0].mxu0
    %10719 = vdwg.mxu0
    %10720 = vmatprep.subr.bf16.mxu0 %v7912
    %10721 = vmatpush1.bf16.msra.mxu0 %v7911
    %10722 = vmatprep.subr.bf16.mxu0 %v7916
    %10723 = vmatpush1.bf16.msra.mxu0 %v7915
    %10724 = vmatprep.subr.bf16.mxu0 %v7920
    %10725 = vmatpush1.bf16.msra.mxu0 %v7919
    %10726 = vmatprep.subr.bf16.mxu0 %v7924
    %10727 = vmatpush1.bf16.msra.mxu0 %v7923
    %10728 = vmatprep.subr.bf16.mxu0 %v7928
    %10729 = vmatpush1.bf16.msra.mxu0 %v7927
    %10730 = vmatprep.subr.bf16.mxu0 %v7932
    %10731 = vmatpush1.bf16.msra.mxu0 %v7931
    %10732 = vmatprep.subr.bf16.mxu0 %v7936
    %10733 = vmatpush1.bf16.msra.mxu0 %v7935
    %10734 = vmatprep.subr.bf16.mxu0 %v7940
    %10735 = vmatpush1.bf16.msra.mxu0 %v7939
    %10736 = vmatprep.subr.bf16.mxu0 %v7944
    %10737 = vmatpush1.bf16.msra.mxu0 %v7943
    %10738 = vmatprep.subr.bf16.mxu0 %v7948
    %10739 = vmatpush1.bf16.msra.mxu0 %v7947
    %10740 = vmatprep.subr.bf16.mxu0 %v7952
    %10741 = vmatpush1.bf16.msra.mxu0 %v7951
    %10742 = vmatprep.subr.bf16.mxu0 %v7956
    %10743 = vmatpush1.bf16.msra.mxu0 %v7955
    %10744 = vmatprep.subr.bf16.mxu0 %v7960
    %10745 = vmatpush1.bf16.msra.mxu0 %v7959
    %10746 = vmatprep.subr.bf16.mxu0 %v7964
    %10747 = vmatpush1.bf16.msra.mxu0 %v7963
    %10748 = vmatprep.subr.bf16.mxu0 %v7968
    %10749 = vmatpush1.bf16.msra.mxu0 %v7967
    %10750 = vmatprep.subr.bf16.mxu0 %v7972
    %10751 = vmatpush1.bf16.msra.mxu0 %v7971
    %10752 = vmatprep.mubr.bf16.mxu0 %v1900
    %10753 = vmatmul.mubr.bf16.gmra.mrb[0].mxu0 %v1898
    %v10754 = vpop.f32.mrb[0].mxu0
    %v10755 = vadd.f32 %v10714, %v10754
    %v10756 = vpop.f32.mrb[0].mxu0
    %v10757 = vadd.f32 %v10716, %v10756
    %v10758 = vpop.f32.mrb[0].mxu0
    %v10759 = vpop.f32.mrb[0].mxu0
    %10760 = vdwg.mxu0
    %10761 = vmatprep.subr.bf16.mxu0 %v7976
    %10762 = vmatpush1.bf16.msra.mxu0 %v7975
    %10763 = vmatprep.subr.bf16.mxu0 %v7980
    %10764 = vmatpush1.bf16.msra.mxu0 %v7979
    %10765 = vmatprep.subr.bf16.mxu0 %v7984
    %10766 = vmatpush1.bf16.msra.mxu0 %v7983
    %10767 = vmatprep.subr.bf16.mxu0 %v7988
    %10768 = vmatpush1.bf16.msra.mxu0 %v7987
    %10769 = vmatprep.subr.bf16.mxu0 %v7992
    %10770 = vmatpush1.bf16.msra.mxu0 %v7991
    %10771 = vmatprep.subr.bf16.mxu0 %v7996
    %10772 = vmatpush1.bf16.msra.mxu0 %v7995
    %10773 = vmatprep.subr.bf16.mxu0 %v8000
    %10774 = vmatpush1.bf16.msra.mxu0 %v7999
    %10775 = vmatprep.subr.bf16.mxu0 %v8004
    %10776 = vmatpush1.bf16.msra.mxu0 %v8003
    %10777 = vmatprep.subr.bf16.mxu0 %v8008
    %10778 = vmatpush1.bf16.msra.mxu0 %v8007
    %10779 = vmatprep.subr.bf16.mxu0 %v8012
    %10780 = vmatpush1.bf16.msra.mxu0 %v8011
    %10781 = vmatprep.subr.bf16.mxu0 %v8016
    %10782 = vmatpush1.bf16.msra.mxu0 %v8015
    %10783 = vmatprep.subr.bf16.mxu0 %v8020
    %10784 = vmatpush1.bf16.msra.mxu0 %v8019
    %10785 = vmatprep.subr.bf16.mxu0 %v8024
    %10786 = vmatpush1.bf16.msra.mxu0 %v8023
    %10787 = vmatprep.subr.bf16.mxu0 %v8028
    %10788 = vmatpush1.bf16.msra.mxu0 %v8027
    %10789 = vmatprep.subr.bf16.mxu0 %v8032
    %10790 = vmatpush1.bf16.msra.mxu0 %v8031
    %10791 = vmatprep.subr.bf16.mxu0 %v8036
    %10792 = vmatpush1.bf16.msra.mxu0 %v8035
    %10793 = vmatprep.mubr.bf16.mxu0 %v1897
    %10794 = vmatmul.mubr.bf16.gmra.mrb[0].mxu0 %v1883
    %v10795 = vpop.f32.mrb[0].mxu0
    %v10796 = vadd.f32 %v10755, %v10795
    %v10797 = vpop.f32.mrb[0].mxu0
    %v10798 = vadd.f32 %v10757, %v10797
    %v10799 = vpop.f32.mrb[0].mxu0
    %v10800 = vpop.f32.mrb[0].mxu0
    %10801 = vdwg.mxu0
    %10802 = vmatprep.subr.bf16.mxu0 %v8040
    %10803 = vmatpush1.bf16.msra.mxu0 %v8039
    %10804 = vmatprep.subr.bf16.mxu0 %v8044
    %10805 = vmatpush1.bf16.msra.mxu0 %v8043
    %10806 = vmatprep.subr.bf16.mxu0 %v8048
    %10807 = vmatpush1.bf16.msra.mxu0 %v8047
    %10808 = vmatprep.subr.bf16.mxu0 %v8052
    %10809 = vmatpush1.bf16.msra.mxu0 %v8051
    %10810 = vmatprep.subr.bf16.mxu0 %v8056
    %10811 = vmatpush1.bf16.msra.mxu0 %v8055
    %10812 = vmatprep.subr.bf16.mxu0 %v8060
    %10813 = vmatpush1.bf16.msra.mxu0 %v8059
    %10814 = vmatprep.subr.bf16.mxu0 %v8064
    %10815 = vmatpush1.bf16.msra.mxu0 %v8063
    %10816 = vmatprep.subr.bf16.mxu0 %v8068
    %10817 = vmatpush1.bf16.msra.mxu0 %v8067
    %10818 = vmatprep.subr.bf16.mxu0 %v8072
    %10819 = vmatpush1.bf16.msra.mxu0 %v8071
    %10820 = vmatprep.subr.bf16.mxu0 %v8076
    %10821 = vmatpush1.bf16.msra.mxu0 %v8075
    %10822 = vmatprep.subr.bf16.mxu0 %v8080
    %10823 = vmatpush1.bf16.msra.mxu0 %v8079
    %10824 = vmatprep.subr.bf16.mxu0 %v8084
    %10825 = vmatpush1.bf16.msra.mxu0 %v8083
    %10826 = vmatprep.subr.bf16.mxu0 %v8088
    %10827 = vmatpush1.bf16.msra.mxu0 %v8087
    %10828 = vmatprep.subr.bf16.mxu0 %v8092
    %10829 = vmatpush1.bf16.msra.mxu0 %v8091
    %10830 = vmatprep.subr.bf16.mxu0 %v8096
    %10831 = vmatpush1.bf16.msra.mxu0 %v8095
    %10832 = vmatprep.subr.bf16.mxu0 %v8100
    %10833 = vmatpush1.bf16.msra.mxu0 %v8099
    %10834 = vmatprep.mubr.bf16.mxu0 %v1901
    %10835 = vmatmul.mubr.bf16.gmra.mrb[0].mxu0 %v1899
    %v10836 = vpop.f32.mrb[0].mxu0
    %v10837 = vadd.f32 %v10796, %v10836
    %v10838 = vpop.f32.mrb[0].mxu0
    %v10839 = vadd.f32 %v10798, %v10838
    %v10840 = vpop.f32.mrb[0].mxu0
    %v10841 = vpop.f32.mrb[0].mxu0
    %10842 = vdwg.mxu0
    %10843 = vmatprep.subr.bf16.mxu0 %v8104
    %10844 = vmatpush1.bf16.msra.mxu0 %v8103
    %10845 = vmatprep.subr.bf16.mxu0 %v8108
    %10846 = vmatpush1.bf16.msra.mxu0 %v8107
    %10847 = vmatprep.subr.bf16.mxu0 %v8112
    %10848 = vmatpush1.bf16.msra.mxu0 %v8111
    %10849 = vmatprep.subr.bf16.mxu0 %v8116
    %10850 = vmatpush1.bf16.msra.mxu0 %v8115
    %10851 = vmatprep.subr.bf16.mxu0 %v8120
    %10852 = vmatpush1.bf16.msra.mxu0 %v8119
    %10853 = vmatprep.subr.bf16.mxu0 %v8124
    %10854 = vmatpush1.bf16.msra.mxu0 %v8123
    %10855 = vmatprep.subr.bf16.mxu0 %v8128
    %10856 = vmatpush1.bf16.msra.mxu0 %v8127
    %10857 = vmatprep.subr.bf16.mxu0 %v8132
    %10858 = vmatpush1.bf16.msra.mxu0 %v8131
    %10859 = vmatprep.subr.bf16.mxu0 %v8136
    %10860 = vmatpush1.bf16.msra.mxu0 %v8135
    %10861 = vmatprep.subr.bf16.mxu0 %v8140
    %10862 = vmatpush1.bf16.msra.mxu0 %v8139
    %10863 = vmatprep.subr.bf16.mxu0 %v8144
    %10864 = vmatpush1.bf16.msra.mxu0 %v8143
    %10865 = vmatprep.subr.bf16.mxu0 %v8148
    %10866 = vmatpush1.bf16.msra.mxu0 %v8147
    %10867 = vmatprep.subr.bf16.mxu0 %v8152
    %10868 = vmatpush1.bf16.msra.mxu0 %v8151
    %10869 = vmatprep.subr.bf16.mxu0 %v8156
    %10870 = vmatpush1.bf16.msra.mxu0 %v8155
    %10871 = vmatprep.subr.bf16.mxu0 %v8160
    %10872 = vmatpush1.bf16.msra.mxu0 %v8159
    %10873 = vmatprep.subr.bf16.mxu0 %v8164
    %10874 = vmatpush1.bf16.msra.mxu0 %v8163
    %10875 = vmatprep.mubr.bf16.mxu0 %v1939
    %10876 = vmatmul.mubr.bf16.gmra.mrb[0].mxu0 %v1925
    %v10877 = vpop.f32.mrb[0].mxu0
    %v10878 = vadd.f32 %v10837, %v10877
    %v10879 = vpop.f32.mrb[0].mxu0
    %v10880 = vadd.f32 %v10839, %v10879
    %v10881 = vpop.f32.mrb[0].mxu0
    %v10882 = vpop.f32.mrb[0].mxu0
    %10883 = vdwg.mxu0
    %10884 = vmatprep.subr.bf16.mxu0 %v8168
    %10885 = vmatpush1.bf16.msra.mxu0 %v8167
    %10886 = vmatprep.subr.bf16.mxu0 %v8172
    %10887 = vmatpush1.bf16.msra.mxu0 %v8171
    %10888 = vmatprep.subr.bf16.mxu0 %v8176
    %10889 = vmatpush1.bf16.msra.mxu0 %v8175
    %10890 = vmatprep.subr.bf16.mxu0 %v8180
    %10891 = vmatpush1.bf16.msra.mxu0 %v8179
    %10892 = vmatprep.subr.bf16.mxu0 %v8184
    %10893 = vmatpush1.bf16.msra.mxu0 %v8183
    %10894 = vmatprep.subr.bf16.mxu0 %v8188
    %10895 = vmatpush1.bf16.msra.mxu0 %v8187
    %10896 = vmatprep.subr.bf16.mxu0 %v8192
    %10897 = vmatpush1.bf16.msra.mxu0 %v8191
    %10898 = vmatprep.subr.bf16.mxu0 %v8196
    %10899 = vmatpush1.bf16.msra.mxu0 %v8195
    %10900 = vmatprep.subr.bf16.mxu0 %v8200
    %10901 = vmatpush1.bf16.msra.mxu0 %v8199
    %10902 = vmatprep.subr.bf16.mxu0 %v8204
    %10903 = vmatpush1.bf16.msra.mxu0 %v8203
    %10904 = vmatprep.subr.bf16.mxu0 %v8208
    %10905 = vmatpush1.bf16.msra.mxu0 %v8207
    %10906 = vmatprep.subr.bf16.mxu0 %v8212
    %10907 = vmatpush1.bf16.msra.mxu0 %v8211
    %10908 = vmatprep.subr.bf16.mxu0 %v8216
    %10909 = vmatpush1.bf16.msra.mxu0 %v8215
    %10910 = vmatprep.subr.bf16.mxu0 %v8220
    %10911 = vmatpush1.bf16.msra.mxu0 %v8219
    %10912 = vmatprep.subr.bf16.mxu0 %v8224
    %10913 = vmatpush1.bf16.msra.mxu0 %v8223
    %10914 = vmatprep.subr.bf16.mxu0 %v8228
    %10915 = vmatpush1.bf16.msra.mxu0 %v8227
    %10916 = vmatprep.mubr.bf16.mxu0 %v1949
    %10917 = vmatmul.mubr.bf16.gmra.mrb[0].mxu0 %v1947
    %v10918 = vpop.f32.mrb[0].mxu0
    %v10919 = vadd.f32 %v10878, %v10918
    %v10920 = vpop.f32.mrb[0].mxu0
    %v10921 = vadd.f32 %v10880, %v10920
    %v10922 = vpop.f32.mrb[0].mxu0
    %v10923 = vpop.f32.mrb[0].mxu0
    %10924 = vdwg.mxu0
    %10925 = vmatprep.subr.bf16.mxu0 %v8232
    %10926 = vmatpush1.bf16.msra.mxu0 %v8231
    %10927 = vmatprep.subr.bf16.mxu0 %v8236
    %10928 = vmatpush1.bf16.msra.mxu0 %v8235
    %10929 = vmatprep.subr.bf16.mxu0 %v8240
    %10930 = vmatpush1.bf16.msra.mxu0 %v8239
    %10931 = vmatprep.subr.bf16.mxu0 %v8244
    %10932 = vmatpush1.bf16.msra.mxu0 %v8243
    %10933 = vmatprep.subr.bf16.mxu0 %v8248
    %10934 = vmatpush1.bf16.msra.mxu0 %v8247
    %10935 = vmatprep.subr.bf16.mxu0 %v8252
    %10936 = vmatpush1.bf16.msra.mxu0 %v8251
    %10937 = vmatprep.subr.bf16.mxu0 %v8256
    %10938 = vmatpush1.bf16.msra.mxu0 %v8255
    %10939 = vmatprep.subr.bf16.mxu0 %v8260
    %10940 = vmatpush1.bf16.msra.mxu0 %v8259
    %10941 = vmatprep.subr.bf16.mxu0 %v8264
    %10942 = vmatpush1.bf16.msra.mxu0 %v8263
    %10943 = vmatprep.subr.bf16.mxu0 %v8268
    %10944 = vmatpush1.bf16.msra.mxu0 %v8267
    %10945 = vmatprep.subr.bf16.mxu0 %v8272
    %10946 = vmatpush1.bf16.msra.mxu0 %v8271
    %10947 = vmatprep.subr.bf16.mxu0 %v8276
    %10948 = vmatpush1.bf16.msra.mxu0 %v8275
    %10949 = vmatprep.subr.bf16.mxu0 %v8280
    %10950 = vmatpush1.bf16.msra.mxu0 %v8279
    %10951 = vmatprep.subr.bf16.mxu0 %v8284
    %10952 = vmatpush1.bf16.msra.mxu0 %v8283
    %10953 = vmatprep.subr.bf16.mxu0 %v8288
    %10954 = vmatpush1.bf16.msra.mxu0 %v8287
    %10955 = vmatprep.subr.bf16.mxu0 %v8292
    %10956 = vmatpush1.bf16.msra.mxu0 %v8291
    %10957 = vmatprep.mubr.bf16.mxu0 %v1946
    %10958 = vmatmul.mubr.bf16.gmra.mrb[0].mxu0 %v1932
    %v10959 = vpop.f32.mrb[0].mxu0
    %v10960 = vadd.f32 %v10919, %v10959
    %v10961 = vpop.f32.mrb[0].mxu0
    %v10962 = vadd.f32 %v10921, %v10961
    %v10963 = vpop.f32.mrb[0].mxu0
    %v10964 = vpop.f32.mrb[0].mxu0
    %10965 = vdwg.mxu0
    %10966 = vmatprep.subr.bf16.mxu0 %v8296
    %10967 = vmatpush1.bf16.msra.mxu0 %v8295
    %10968 = vmatprep.subr.bf16.mxu0 %v8300
    %10969 = vmatpush1.bf16.msra.mxu0 %v8299
    %10970 = vmatprep.subr.bf16.mxu0 %v8304
    %10971 = vmatpush1.bf16.msra.mxu0 %v8303
    %10972 = vmatprep.subr.bf16.mxu0 %v8308
    %10973 = vmatpush1.bf16.msra.mxu0 %v8307
    %10974 = vmatprep.subr.bf16.mxu0 %v8312
    %10975 = vmatpush1.bf16.msra.mxu0 %v8311
    %10976 = vmatprep.subr.bf16.mxu0 %v8316
    %10977 = vmatpush1.bf16.msra.mxu0 %v8315
    %10978 = vmatprep.subr.bf16.mxu0 %v8320
    %10979 = vmatpush1.bf16.msra.mxu0 %v8319
    %10980 = vmatprep.subr.bf16.mxu0 %v8324
    %10981 = vmatpush1.bf16.msra.mxu0 %v8323
    %10982 = vmatprep.subr.bf16.mxu0 %v8328
    %10983 = vmatpush1.bf16.msra.mxu0 %v8327
    %10984 = vmatprep.subr.bf16.mxu0 %v8332
    %10985 = vmatpush1.bf16.msra.mxu0 %v8331
    %10986 = vmatprep.subr.bf16.mxu0 %v8336
    %10987 = vmatpush1.bf16.msra.mxu0 %v8335
    %10988 = vmatprep.subr.bf16.mxu0 %v8340
    %10989 = vmatpush1.bf16.msra.mxu0 %v8339
    %10990 = vmatprep.subr.bf16.mxu0 %v8344
    %10991 = vmatpush1.bf16.msra.mxu0 %v8343
    %10992 = vmatprep.subr.bf16.mxu0 %v8348
    %10993 = vmatpush1.bf16.msra.mxu0 %v8347
    %10994 = vmatprep.subr.bf16.mxu0 %v8352
    %10995 = vmatpush1.bf16.msra.mxu0 %v8351
    %10996 = vmatprep.subr.bf16.mxu0 %v8356
    %10997 = vmatpush1.bf16.msra.mxu0 %v8355
    %10998 = vmatprep.mubr.bf16.mxu0 %v1950
    %10999 = vmatmul.mubr.bf16.gmra.mrb[0].mxu0 %v1948
    %v11000 = vpop.f32.mrb[0].mxu0
    %v11001 = vadd.f32 %v10960, %v11000
    %v11002 = vpop.f32.mrb[0].mxu0
    %v11003 = vadd.f32 %v10962, %v11002
    %v11004 = vpop.f32.mrb[0].mxu0
    %v11005 = vpop.f32.mrb[0].mxu0
    %11006 = vdwg.mxu0
    %11007 = vmatprep.subr.bf16.mxu0 %v8360
    %11008 = vmatpush1.bf16.msra.mxu0 %v8359
    %11009 = vmatprep.subr.bf16.mxu0 %v8364
    %11010 = vmatpush1.bf16.msra.mxu0 %v8363
    %11011 = vmatprep.subr.bf16.mxu0 %v8368
    %11012 = vmatpush1.bf16.msra.mxu0 %v8367
    %11013 = vmatprep.subr.bf16.mxu0 %v8372
    %11014 = vmatpush1.bf16.msra.mxu0 %v8371
    %11015 = vmatprep.subr.bf16.mxu0 %v8376
    %11016 = vmatpush1.bf16.msra.mxu0 %v8375
    %11017 = vmatprep.subr.bf16.mxu0 %v8380
    %11018 = vmatpush1.bf16.msra.mxu0 %v8379
    %11019 = vmatprep.subr.bf16.mxu0 %v8384
    %11020 = vmatpush1.bf16.msra.mxu0 %v8383
    %11021 = vmatprep.subr.bf16.mxu0 %v8388
    %11022 = vmatpush1.bf16.msra.mxu0 %v8387
    %11023 = vmatprep.subr.bf16.mxu0 %v8392
    %11024 = vmatpush1.bf16.msra.mxu0 %v8391
    %11025 = vmatprep.subr.bf16.mxu0 %v8396
    %11026 = vmatpush1.bf16.msra.mxu0 %v8395
    %11027 = vmatprep.subr.bf16.mxu0 %v8400
    %11028 = vmatpush1.bf16.msra.mxu0 %v8399
    %11029 = vmatprep.subr.bf16.mxu0 %v8404
    %11030 = vmatpush1.bf16.msra.mxu0 %v8403
    %11031 = vmatprep.subr.bf16.mxu0 %v8408
    %11032 = vmatpush1.bf16.msra.mxu0 %v8407
    %11033 = vmatprep.subr.bf16.mxu0 %v8412
    %11034 = vmatpush1.bf16.msra.mxu0 %v8411
    %11035 = vmatprep.subr.bf16.mxu0 %v8416
    %11036 = vmatpush1.bf16.msra.mxu0 %v8415
    %11037 = vmatprep.subr.bf16.mxu0 %v8420
    %11038 = vmatpush1.bf16.msra.mxu0 %v8419
    %11039 = vmatprep.mubr.bf16.mxu0 %v1972
    %11040 = vmatmul.mubr.bf16.gmra.mrb[0].mxu0 %v1965
    %v11041 = vpop.f32.mrb[0].mxu0
    %v11042 = vadd.f32 %v11001, %v11041
    %v11043 = vpop.f32.mrb[0].mxu0
    %v11044 = vadd.f32 %v11003, %v11043
    %v11045 = vpop.f32.mrb[0].mxu0
    %v11046 = vpop.f32.mrb[0].mxu0
    %11047 = vdwg.mxu0
    %11048 = vmatprep.subr.bf16.mxu0 %v6826
    %11049 = vmatpush1.bf16.msra.mxu0 %v6825
    %11050 = vmatprep.subr.bf16.mxu0 %v6830
    %11051 = vmatpush1.bf16.msra.mxu0 %v6829
    %11052 = vmatprep.subr.bf16.mxu0 %v6834
    %11053 = vmatpush1.bf16.msra.mxu0 %v6833
    %11054 = vmatprep.subr.bf16.mxu0 %v6838
    %11055 = vmatpush1.bf16.msra.mxu0 %v6837
    %11056 = vmatprep.subr.bf16.mxu0 %v6842
    %11057 = vmatpush1.bf16.msra.mxu0 %v6841
    %11058 = vmatprep.subr.bf16.mxu0 %v6846
    %11059 = vmatpush1.bf16.msra.mxu0 %v6845
    %11060 = vmatprep.subr.bf16.mxu0 %v6850
    %11061 = vmatpush1.bf16.msra.mxu0 %v6849
    %11062 = vmatprep.subr.bf16.mxu0 %v6854
    %11063 = vmatpush1.bf16.msra.mxu0 %v6853
    %11064 = vmatprep.subr.bf16.mxu0 %v6858
    %11065 = vmatpush1.bf16.msra.mxu0 %v6857
    %11066 = vmatprep.subr.bf16.mxu0 %v6862
    %11067 = vmatpush1.bf16.msra.mxu0 %v6861
    %11068 = vmatprep.subr.bf16.mxu0 %v6866
    %11069 = vmatpush1.bf16.msra.mxu0 %v6865
    %11070 = vmatprep.subr.bf16.mxu0 %v6870
    %11071 = vmatpush1.bf16.msra.mxu0 %v6869
    %11072 = vmatprep.subr.bf16.mxu0 %v6874
    %11073 = vmatpush1.bf16.msra.mxu0 %v6873
    %11074 = vmatprep.subr.bf16.mxu0 %v6878
    %11075 = vmatpush1.bf16.msra.mxu0 %v6877
    %11076 = vmatprep.subr.bf16.mxu0 %v6882
    %11077 = vmatpush1.bf16.msra.mxu0 %v6881
    %11078 = vmatprep.subr.bf16.mxu0 %v6886
    %11079 = vmatpush1.bf16.msra.mxu0 %v6885
    %11080 = vmatprep.mubr.bf16.mxu0 %v1694
    %11081 = vmatmul.mubr.bf16.gmra.mrb[0].mxu0 %v1680
    %v11082 = vpop.f32.mrb[0].mxu0
    %v11083 = vadd.f32 %v1641, %v11082
    %v11084 = vpop.f32.mrb[0].mxu0
    %v11085 = vadd.f32 %v1645, %v11084
    %v11086 = vpop.f32.mrb[0].mxu0
    %v11087 = vpop.f32.mrb[0].mxu0
    %11088 = vdwg.mxu0
    %11089 = vmatprep.subr.bf16.mxu0 %v6890
    %11090 = vmatpush1.bf16.msra.mxu0 %v6889
    %11091 = vmatprep.subr.bf16.mxu0 %v6894
    %11092 = vmatpush1.bf16.msra.mxu0 %v6893
    %11093 = vmatprep.subr.bf16.mxu0 %v6898
    %11094 = vmatpush1.bf16.msra.mxu0 %v6897
    %11095 = vmatprep.subr.bf16.mxu0 %v6902
    %11096 = vmatpush1.bf16.msra.mxu0 %v6901
    %11097 = vmatprep.subr.bf16.mxu0 %v6906
    %11098 = vmatpush1.bf16.msra.mxu0 %v6905
    %11099 = vmatprep.subr.bf16.mxu0 %v6910
    %11100 = vmatpush1.bf16.msra.mxu0 %v6909
    %11101 = vmatprep.subr.bf16.mxu0 %v6914
    %11102 = vmatpush1.bf16.msra.mxu0 %v6913
    %11103 = vmatprep.subr.bf16.mxu0 %v6918
    %11104 = vmatpush1.bf16.msra.mxu0 %v6917
    %11105 = vmatprep.subr.bf16.mxu0 %v6922
    %11106 = vmatpush1.bf16.msra.mxu0 %v6921
    %11107 = vmatprep.subr.bf16.mxu0 %v6926
    %11108 = vmatpush1.bf16.msra.mxu0 %v6925
    %11109 = vmatprep.subr.bf16.mxu0 %v6930
    %11110 = vmatpush1.bf16.msra.mxu0 %v6929
    %11111 = vmatprep.subr.bf16.mxu0 %v6934
    %11112 = vmatpush1.bf16.msra.mxu0 %v6933
    %11113 = vmatprep.subr.bf16.mxu0 %v6938
    %11114 = vmatpush1.bf16.msra.mxu0 %v6937
    %11115 = vmatprep.subr.bf16.mxu0 %v6942
    %11116 = vmatpush1.bf16.msra.mxu0 %v6941
    %11117 = vmatprep.subr.bf16.mxu0 %v6946
    %11118 = vmatpush1.bf16.msra.mxu0 %v6945
    %11119 = vmatprep.subr.bf16.mxu0 %v6950
    %11120 = vmatpush1.bf16.msra.mxu0 %v6949
    %11121 = vmatprep.mubr.bf16.mxu0 %v1704
    %11122 = vmatmul.mubr.bf16.gmra.mrb[0].mxu0 %v1702
    %v11123 = vpop.f32.mrb[0].mxu0
    %v11124 = vadd.f32 %v11083, %v11123
    %v11125 = vpop.f32.mrb[0].mxu0
    %v11126 = vadd.f32 %v11085, %v11125
    %v11127 = vpop.f32.mrb[0].mxu0
    %v11128 = vpop.f32.mrb[0].mxu0
    %11129 = vdwg.mxu0
    %11130 = vmatprep.subr.bf16.mxu0 %v6954
    %11131 = vmatpush1.bf16.msra.mxu0 %v6953
    %11132 = vmatprep.subr.bf16.mxu0 %v6958
    %11133 = vmatpush1.bf16.msra.mxu0 %v6957
    %11134 = vmatprep.subr.bf16.mxu0 %v6962
    %11135 = vmatpush1.bf16.msra.mxu0 %v6961
    %11136 = vmatprep.subr.bf16.mxu0 %v6966
    %11137 = vmatpush1.bf16.msra.mxu0 %v6965
    %11138 = vmatprep.subr.bf16.mxu0 %v6970
    %11139 = vmatpush1.bf16.msra.mxu0 %v6969
    %11140 = vmatprep.subr.bf16.mxu0 %v6974
    %11141 = vmatpush1.bf16.msra.mxu0 %v6973
    %11142 = vmatprep.subr.bf16.mxu0 %v6978
    %11143 = vmatpush1.bf16.msra.mxu0 %v6977
    %11144 = vmatprep.subr.bf16.mxu0 %v6982
    %11145 = vmatpush1.bf16.msra.mxu0 %v6981
    %11146 = vmatprep.subr.bf16.mxu0 %v6986
    %11147 = vmatpush1.bf16.msra.mxu0 %v6985
    %11148 = vmatprep.subr.bf16.mxu0 %v6990
    %11149 = vmatpush1.bf16.msra.mxu0 %v6989
    %11150 = vmatprep.subr.bf16.mxu0 %v6994
    %11151 = vmatpush1.bf16.msra.mxu0 %v6993
    %11152 = vmatprep.subr.bf16.mxu0 %v6998
    %11153 = vmatpush1.bf16.msra.mxu0 %v6997
    %11154 = vmatprep.subr.bf16.mxu0 %v7002
    %11155 = vmatpush1.bf16.msra.mxu0 %v7001
    %11156 = vmatprep.subr.bf16.mxu0 %v7006
    %11157 = vmatpush1.bf16.msra.mxu0 %v7005
    %11158 = vmatprep.subr.bf16.mxu0 %v7010
    %11159 = vmatpush1.bf16.msra.mxu0 %v7009
    %11160 = vmatprep.subr.bf16.mxu0 %v7014
    %11161 = vmatpush1.bf16.msra.mxu0 %v7013
    %11162 = vmatprep.mubr.bf16.mxu0 %v1701
    %11163 = vmatmul.mubr.bf16.gmra.mrb[0].mxu0 %v1687
    %v11164 = vpop.f32.mrb[0].mxu0
    %v11165 = vadd.f32 %v11124, %v11164
    %v11166 = vpop.f32.mrb[0].mxu0
    %v11167 = vadd.f32 %v11126, %v11166
    %v11168 = vpop.f32.mrb[0].mxu0
    %v11169 = vpop.f32.mrb[0].mxu0
    %11170 = vdwg.mxu0
    %11171 = vmatprep.subr.bf16.mxu0 %v7018
    %11172 = vmatpush1.bf16.msra.mxu0 %v7017
    %11173 = vmatprep.subr.bf16.mxu0 %v7022
    %11174 = vmatpush1.bf16.msra.mxu0 %v7021
    %11175 = vmatprep.subr.bf16.mxu0 %v7026
    %11176 = vmatpush1.bf16.msra.mxu0 %v7025
    %11177 = vmatprep.subr.bf16.mxu0 %v7030
    %11178 = vmatpush1.bf16.msra.mxu0 %v7029
    %11179 = vmatprep.subr.bf16.mxu0 %v7034
    %11180 = vmatpush1.bf16.msra.mxu0 %v7033
    %11181 = vmatprep.subr.bf16.mxu0 %v7038
    %11182 = vmatpush1.bf16.msra.mxu0 %v7037
    %11183 = vmatprep.subr.bf16.mxu0 %v7042
    %11184 = vmatpush1.bf16.msra.mxu0 %v7041
    %11185 = vmatprep.subr.bf16.mxu0 %v7046
    %11186 = vmatpush1.bf16.msra.mxu0 %v7045
    %11187 = vmatprep.subr.bf16.mxu0 %v7050
    %11188 = vmatpush1.bf16.msra.mxu0 %v7049
    %11189 = vmatprep.subr.bf16.mxu0 %v7054
    %11190 = vmatpush1.bf16.msra.mxu0 %v7053
    %11191 = vmatprep.subr.bf16.mxu0 %v7058
    %11192 = vmatpush1.bf16.msra.mxu0 %v7057
    %11193 = vmatprep.subr.bf16.mxu0 %v7062
    %11194 = vmatpush1.bf16.msra.mxu0 %v7061
    %11195 = vmatprep.subr.bf16.mxu0 %v7066
    %11196 = vmatpush1.bf16.msra.mxu0 %v7065
    %11197 = vmatprep.subr.bf16.mxu0 %v7070
    %11198 = vmatpush1.bf16.msra.mxu0 %v7069
    %11199 = vmatprep.subr.bf16.mxu0 %v7074
    %11200 = vmatpush1.bf16.msra.mxu0 %v7073
    %11201 = vmatprep.subr.bf16.mxu0 %v7078
    %11202 = vmatpush1.bf16.msra.mxu0 %v7077
    %11203 = vmatprep.mubr.bf16.mxu0 %v1705
    %11204 = vmatmul.mubr.bf16.gmra.mrb[0].mxu0 %v1703
    %v11205 = vpop.f32.mrb[0].mxu0
    %v11206 = vadd.f32 %v11165, %v11205
    %v11207 = vpop.f32.mrb[0].mxu0
    %v11208 = vadd.f32 %v11167, %v11207
    %v11209 = vpop.f32.mrb[0].mxu0
    %v11210 = vpop.f32.mrb[0].mxu0
    %11211 = vdwg.mxu0
    %11212 = vmatprep.subr.bf16.mxu0 %v7082
    %11213 = vmatpush1.bf16.msra.mxu0 %v7081
    %11214 = vmatprep.subr.bf16.mxu0 %v7086
    %11215 = vmatpush1.bf16.msra.mxu0 %v7085
    %11216 = vmatprep.subr.bf16.mxu0 %v7090
    %11217 = vmatpush1.bf16.msra.mxu0 %v7089
    %11218 = vmatprep.subr.bf16.mxu0 %v7094
    %11219 = vmatpush1.bf16.msra.mxu0 %v7093
    %11220 = vmatprep.subr.bf16.mxu0 %v7098
    %11221 = vmatpush1.bf16.msra.mxu0 %v7097
    %11222 = vmatprep.subr.bf16.mxu0 %v7102
    %11223 = vmatpush1.bf16.msra.mxu0 %v7101
    %11224 = vmatprep.subr.bf16.mxu0 %v7106
    %11225 = vmatpush1.bf16.msra.mxu0 %v7105
    %11226 = vmatprep.subr.bf16.mxu0 %v7110
    %11227 = vmatpush1.bf16.msra.mxu0 %v7109
    %11228 = vmatprep.subr.bf16.mxu0 %v7114
    %11229 = vmatpush1.bf16.msra.mxu0 %v7113
    %11230 = vmatprep.subr.bf16.mxu0 %v7118
    %11231 = vmatpush1.bf16.msra.mxu0 %v7117
    %11232 = vmatprep.subr.bf16.mxu0 %v7122
    %11233 = vmatpush1.bf16.msra.mxu0 %v7121
    %11234 = vmatprep.subr.bf16.mxu0 %v7126
    %11235 = vmatpush1.bf16.msra.mxu0 %v7125
    %11236 = vmatprep.subr.bf16.mxu0 %v7130
    %11237 = vmatpush1.bf16.msra.mxu0 %v7129
    %11238 = vmatprep.subr.bf16.mxu0 %v7134
    %11239 = vmatpush1.bf16.msra.mxu0 %v7133
    %11240 = vmatprep.subr.bf16.mxu0 %v7138
    %11241 = vmatpush1.bf16.msra.mxu0 %v7137
    %11242 = vmatprep.subr.bf16.mxu0 %v7142
    %11243 = vmatpush1.bf16.msra.mxu0 %v7141
    %11244 = vmatprep.mubr.bf16.mxu0 %v1743
    %11245 = vmatmul.mubr.bf16.gmra.mrb[0].mxu0 %v1729
    %v11246 = vpop.f32.mrb[0].mxu0
    %v11247 = vadd.f32 %v11206, %v11246
    %v11248 = vpop.f32.mrb[0].mxu0
    %v11249 = vadd.f32 %v11208, %v11248
    %v11250 = vpop.f32.mrb[0].mxu0
    %v11251 = vpop.f32.mrb[0].mxu0
    %11252 = vdwg.mxu0
    %11253 = vmatprep.subr.bf16.mxu0 %v7146
    %11254 = vmatpush1.bf16.msra.mxu0 %v7145
    %11255 = vmatprep.subr.bf16.mxu0 %v7150
    %11256 = vmatpush1.bf16.msra.mxu0 %v7149
    %11257 = vmatprep.subr.bf16.mxu0 %v7154
    %11258 = vmatpush1.bf16.msra.mxu0 %v7153
    %11259 = vmatprep.subr.bf16.mxu0 %v7158
    %11260 = vmatpush1.bf16.msra.mxu0 %v7157
    %11261 = vmatprep.subr.bf16.mxu0 %v7162
    %11262 = vmatpush1.bf16.msra.mxu0 %v7161
    %11263 = vmatprep.subr.bf16.mxu0 %v7166
    %11264 = vmatpush1.bf16.msra.mxu0 %v7165
    %11265 = vmatprep.subr.bf16.mxu0 %v7170
    %11266 = vmatpush1.bf16.msra.mxu0 %v7169
    %11267 = vmatprep.subr.bf16.mxu0 %v7174
    %11268 = vmatpush1.bf16.msra.mxu0 %v7173
    %11269 = vmatprep.subr.bf16.mxu0 %v7178
    %11270 = vmatpush1.bf16.msra.mxu0 %v7177
    %11271 = vmatprep.subr.bf16.mxu0 %v7182
    %11272 = vmatpush1.bf16.msra.mxu0 %v7181
    %11273 = vmatprep.subr.bf16.mxu0 %v7186
    %11274 = vmatpush1.bf16.msra.mxu0 %v7185
    %11275 = vmatprep.subr.bf16.mxu0 %v7190
    %11276 = vmatpush1.bf16.msra.mxu0 %v7189
    %11277 = vmatprep.subr.bf16.mxu0 %v7194
    %11278 = vmatpush1.bf16.msra.mxu0 %v7193
    %11279 = vmatprep.subr.bf16.mxu0 %v7198
    %11280 = vmatpush1.bf16.msra.mxu0 %v7197
    %11281 = vmatprep.subr.bf16.mxu0 %v7202
    %11282 = vmatpush1.bf16.msra.mxu0 %v7201
    %11283 = vmatprep.subr.bf16.mxu0 %v7206
    %11284 = vmatpush1.bf16.msra.mxu0 %v7205
    %11285 = vmatprep.mubr.bf16.mxu0 %v1753
    %11286 = vmatmul.mubr.bf16.gmra.mrb[0].mxu0 %v1751
    %v11287 = vpop.f32.mrb[0].mxu0
    %v11288 = vadd.f32 %v11247, %v11287
    %v11289 = vpop.f32.mrb[0].mxu0
    %v11290 = vadd.f32 %v11249, %v11289
    %v11291 = vpop.f32.mrb[0].mxu0
    %v11292 = vpop.f32.mrb[0].mxu0
    %11293 = vdwg.mxu0
    %11294 = vmatprep.subr.bf16.mxu0 %v7210
    %11295 = vmatpush1.bf16.msra.mxu0 %v7209
    %11296 = vmatprep.subr.bf16.mxu0 %v7214
    %11297 = vmatpush1.bf16.msra.mxu0 %v7213
    %11298 = vmatprep.subr.bf16.mxu0 %v7218
    %11299 = vmatpush1.bf16.msra.mxu0 %v7217
    %11300 = vmatprep.subr.bf16.mxu0 %v7222
    %11301 = vmatpush1.bf16.msra.mxu0 %v7221
    %11302 = vmatprep.subr.bf16.mxu0 %v7226
    %11303 = vmatpush1.bf16.msra.mxu0 %v7225
    %11304 = vmatprep.subr.bf16.mxu0 %v7230
    %11305 = vmatpush1.bf16.msra.mxu0 %v7229
    %11306 = vmatprep.subr.bf16.mxu0 %v7234
    %11307 = vmatpush1.bf16.msra.mxu0 %v7233
    %11308 = vmatprep.subr.bf16.mxu0 %v7238
    %11309 = vmatpush1.bf16.msra.mxu0 %v7237
    %11310 = vmatprep.subr.bf16.mxu0 %v7242
    %11311 = vmatpush1.bf16.msra.mxu0 %v7241
    %11312 = vmatprep.subr.bf16.mxu0 %v7246
    %11313 = vmatpush1.bf16.msra.mxu0 %v7245
    %11314 = vmatprep.subr.bf16.mxu0 %v7250
    %11315 = vmatpush1.bf16.msra.mxu0 %v7249
    %11316 = vmatprep.subr.bf16.mxu0 %v7254
    %11317 = vmatpush1.bf16.msra.mxu0 %v7253
    %11318 = vmatprep.subr.bf16.mxu0 %v7258
    %11319 = vmatpush1.bf16.msra.mxu0 %v7257
    %11320 = vmatprep.subr.bf16.mxu0 %v7262
    %11321 = vmatpush1.bf16.msra.mxu0 %v7261
    %11322 = vmatprep.subr.bf16.mxu0 %v7266
    %11323 = vmatpush1.bf16.msra.mxu0 %v7265
    %11324 = vmatprep.subr.bf16.mxu0 %v7270
    %11325 = vmatpush1.bf16.msra.mxu0 %v7269
    %11326 = vmatprep.mubr.bf16.mxu0 %v1750
    %11327 = vmatmul.mubr.bf16.gmra.mrb[0].mxu0 %v1736
    %v11328 = vpop.f32.mrb[0].mxu0
    %v11329 = vadd.f32 %v11288, %v11328
    %v11330 = vpop.f32.mrb[0].mxu0
    %v11331 = vadd.f32 %v11290, %v11330
    %v11332 = vpop.f32.mrb[0].mxu0
    %v11333 = vpop.f32.mrb[0].mxu0
    %11334 = vdwg.mxu0
    %11335 = vmatprep.subr.bf16.mxu0 %v7274
    %11336 = vmatpush1.bf16.msra.mxu0 %v7273
    %11337 = vmatprep.subr.bf16.mxu0 %v7278
    %11338 = vmatpush1.bf16.msra.mxu0 %v7277
    %11339 = vmatprep.subr.bf16.mxu0 %v7282
    %11340 = vmatpush1.bf16.msra.mxu0 %v7281
    %11341 = vmatprep.subr.bf16.mxu0 %v7286
    %11342 = vmatpush1.bf16.msra.mxu0 %v7285
    %11343 = vmatprep.subr.bf16.mxu0 %v7290
    %11344 = vmatpush1.bf16.msra.mxu0 %v7289
    %11345 = vmatprep.subr.bf16.mxu0 %v7294
    %11346 = vmatpush1.bf16.msra.mxu0 %v7293
    %11347 = vmatprep.subr.bf16.mxu0 %v7298
    %11348 = vmatpush1.bf16.msra.mxu0 %v7297
    %11349 = vmatprep.subr.bf16.mxu0 %v7302
    %11350 = vmatpush1.bf16.msra.mxu0 %v7301
    %11351 = vmatprep.subr.bf16.mxu0 %v7306
    %11352 = vmatpush1.bf16.msra.mxu0 %v7305
    %11353 = vmatprep.subr.bf16.mxu0 %v7310
    %11354 = vmatpush1.bf16.msra.mxu0 %v7309
    %11355 = vmatprep.subr.bf16.mxu0 %v7314
    %11356 = vmatpush1.bf16.msra.mxu0 %v7313
    %11357 = vmatprep.subr.bf16.mxu0 %v7318
    %11358 = vmatpush1.bf16.msra.mxu0 %v7317
    %11359 = vmatprep.subr.bf16.mxu0 %v7322
    %11360 = vmatpush1.bf16.msra.mxu0 %v7321
    %11361 = vmatprep.subr.bf16.mxu0 %v7326
    %11362 = vmatpush1.bf16.msra.mxu0 %v7325
    %11363 = vmatprep.subr.bf16.mxu0 %v7330
    %11364 = vmatpush1.bf16.msra.mxu0 %v7329
    %11365 = vmatprep.subr.bf16.mxu0 %v7334
    %11366 = vmatpush1.bf16.msra.mxu0 %v7333
    %11367 = vmatprep.mubr.bf16.mxu0 %v1754
    %11368 = vmatmul.mubr.bf16.gmra.mrb[0].mxu0 %v1752
    %v11369 = vpop.f32.mrb[0].mxu0
    %v11370 = vadd.f32 %v11329, %v11369
    %v11371 = vpop.f32.mrb[0].mxu0
    %v11372 = vadd.f32 %v11331, %v11371
    %v11373 = vpop.f32.mrb[0].mxu0
    %v11374 = vpop.f32.mrb[0].mxu0
    %11375 = vdwg.mxu0
    %11376 = vmatprep.subr.bf16.mxu0 %v7338
    %11377 = vmatpush1.bf16.msra.mxu0 %v7337
    %11378 = vmatprep.subr.bf16.mxu0 %v7342
    %11379 = vmatpush1.bf16.msra.mxu0 %v7341
    %11380 = vmatprep.subr.bf16.mxu0 %v7346
    %11381 = vmatpush1.bf16.msra.mxu0 %v7345
    %11382 = vmatprep.subr.bf16.mxu0 %v7350
    %11383 = vmatpush1.bf16.msra.mxu0 %v7349
    %11384 = vmatprep.subr.bf16.mxu0 %v7354
    %11385 = vmatpush1.bf16.msra.mxu0 %v7353
    %11386 = vmatprep.subr.bf16.mxu0 %v7358
    %11387 = vmatpush1.bf16.msra.mxu0 %v7357
    %11388 = vmatprep.subr.bf16.mxu0 %v7362
    %11389 = vmatpush1.bf16.msra.mxu0 %v7361
    %11390 = vmatprep.subr.bf16.mxu0 %v7366
    %11391 = vmatpush1.bf16.msra.mxu0 %v7365
    %11392 = vmatprep.subr.bf16.mxu0 %v7370
    %11393 = vmatpush1.bf16.msra.mxu0 %v7369
    %11394 = vmatprep.subr.bf16.mxu0 %v7374
    %11395 = vmatpush1.bf16.msra.mxu0 %v7373
    %11396 = vmatprep.subr.bf16.mxu0 %v7378
    %11397 = vmatpush1.bf16.msra.mxu0 %v7377
    %11398 = vmatprep.subr.bf16.mxu0 %v7382
    %11399 = vmatpush1.bf16.msra.mxu0 %v7381
    %11400 = vmatprep.subr.bf16.mxu0 %v7386
    %11401 = vmatpush1.bf16.msra.mxu0 %v7385
    %11402 = vmatprep.subr.bf16.mxu0 %v7390
    %11403 = vmatpush1.bf16.msra.mxu0 %v7389
    %11404 = vmatprep.subr.bf16.mxu0 %v7394
    %11405 = vmatpush1.bf16.msra.mxu0 %v7393
    %11406 = vmatprep.subr.bf16.mxu0 %v7398
    %11407 = vmatpush1.bf16.msra.mxu0 %v7397
    %11408 = vmatprep.mubr.bf16.mxu0 %v1792
    %11409 = vmatmul.mubr.bf16.gmra.mrb[0].mxu0 %v1778
    %v11410 = vpop.f32.mrb[0].mxu0
    %v11411 = vadd.f32 %v11370, %v11410
    %v11412 = vpop.f32.mrb[0].mxu0
    %v11413 = vadd.f32 %v11372, %v11412
    %v11414 = vpop.f32.mrb[0].mxu0
    %v11415 = vpop.f32.mrb[0].mxu0
    %11416 = vdwg.mxu0
    %11417 = vmatprep.subr.bf16.mxu0 %v7402
    %11418 = vmatpush1.bf16.msra.mxu0 %v7401
    %11419 = vmatprep.subr.bf16.mxu0 %v7406
    %11420 = vmatpush1.bf16.msra.mxu0 %v7405
    %11421 = vmatprep.subr.bf16.mxu0 %v7410
    %11422 = vmatpush1.bf16.msra.mxu0 %v7409
    %11423 = vmatprep.subr.bf16.mxu0 %v7414
    %11424 = vmatpush1.bf16.msra.mxu0 %v7413
    %11425 = vmatprep.subr.bf16.mxu0 %v7418
    %11426 = vmatpush1.bf16.msra.mxu0 %v7417
    %11427 = vmatprep.subr.bf16.mxu0 %v7422
    %11428 = vmatpush1.bf16.msra.mxu0 %v7421
    %11429 = vmatprep.subr.bf16.mxu0 %v7426
    %11430 = vmatpush1.bf16.msra.mxu0 %v7425
    %11431 = vmatprep.subr.bf16.mxu0 %v7430
    %11432 = vmatpush1.bf16.msra.mxu0 %v7429
    %11433 = vmatprep.subr.bf16.mxu0 %v7434
    %11434 = vmatpush1.bf16.msra.mxu0 %v7433
    %11435 = vmatprep.subr.bf16.mxu0 %v7438
    %11436 = vmatpush1.bf16.msra.mxu0 %v7437
    %11437 = vmatprep.subr.bf16.mxu0 %v7442
    %11438 = vmatpush1.bf16.msra.mxu0 %v7441
    %11439 = vmatprep.subr.bf16.mxu0 %v7446
    %11440 = vmatpush1.bf16.msra.mxu0 %v7445
    %11441 = vmatprep.subr.bf16.mxu0 %v7450
    %11442 = vmatpush1.bf16.msra.mxu0 %v7449
    %11443 = vmatprep.subr.bf16.mxu0 %v7454
    %11444 = vmatpush1.bf16.msra.mxu0 %v7453
    %11445 = vmatprep.subr.bf16.mxu0 %v7458
    %11446 = vmatpush1.bf16.msra.mxu0 %v7457
    %11447 = vmatprep.subr.bf16.mxu0 %v7462
    %11448 = vmatpush1.bf16.msra.mxu0 %v7461
    %11449 = vmatprep.mubr.bf16.mxu0 %v1802
    %11450 = vmatmul.mubr.bf16.gmra.mrb[0].mxu0 %v1800
    %v11451 = vpop.f32.mrb[0].mxu0
    %v11452 = vadd.f32 %v11411, %v11451
    %v11453 = vpop.f32.mrb[0].mxu0
    %v11454 = vadd.f32 %v11413, %v11453
    %v11455 = vpop.f32.mrb[0].mxu0
    %v11456 = vpop.f32.mrb[0].mxu0
    %11457 = vdwg.mxu0
    %11458 = vmatprep.subr.bf16.mxu0 %v7466
    %11459 = vmatpush1.bf16.msra.mxu0 %v7465
    %11460 = vmatprep.subr.bf16.mxu0 %v7470
    %11461 = vmatpush1.bf16.msra.mxu0 %v7469
    %11462 = vmatprep.subr.bf16.mxu0 %v7474
    %11463 = vmatpush1.bf16.msra.mxu0 %v7473
    %11464 = vmatprep.subr.bf16.mxu0 %v7478
    %11465 = vmatpush1.bf16.msra.mxu0 %v7477
    %11466 = vmatprep.subr.bf16.mxu0 %v7482
    %11467 = vmatpush1.bf16.msra.mxu0 %v7481
    %11468 = vmatprep.subr.bf16.mxu0 %v7486
    %11469 = vmatpush1.bf16.msra.mxu0 %v7485
    %11470 = vmatprep.subr.bf16.mxu0 %v7490
    %11471 = vmatpush1.bf16.msra.mxu0 %v7489
    %11472 = vmatprep.subr.bf16.mxu0 %v7494
    %11473 = vmatpush1.bf16.msra.mxu0 %v7493
    %11474 = vmatprep.subr.bf16.mxu0 %v7498
    %11475 = vmatpush1.bf16.msra.mxu0 %v7497
    %11476 = vmatprep.subr.bf16.mxu0 %v7502
    %11477 = vmatpush1.bf16.msra.mxu0 %v7501
    %11478 = vmatprep.subr.bf16.mxu0 %v7506
    %11479 = vmatpush1.bf16.msra.mxu0 %v7505
    %11480 = vmatprep.subr.bf16.mxu0 %v7510
    %11481 = vmatpush1.bf16.msra.mxu0 %v7509
    %11482 = vmatprep.subr.bf16.mxu0 %v7514
    %11483 = vmatpush1.bf16.msra.mxu0 %v7513
    %11484 = vmatprep.subr.bf16.mxu0 %v7518
    %11485 = vmatpush1.bf16.msra.mxu0 %v7517
    %11486 = vmatprep.subr.bf16.mxu0 %v7522
    %11487 = vmatpush1.bf16.msra.mxu0 %v7521
    %11488 = vmatprep.subr.bf16.mxu0 %v7526
    %11489 = vmatpush1.bf16.msra.mxu0 %v7525
    %11490 = vmatprep.mubr.bf16.mxu0 %v1799
    %11491 = vmatmul.mubr.bf16.gmra.mrb[0].mxu0 %v1785
    %v11492 = vpop.f32.mrb[0].mxu0
    %v11493 = vadd.f32 %v11452, %v11492
    %v11494 = vpop.f32.mrb[0].mxu0
    %v11495 = vadd.f32 %v11454, %v11494
    %v11496 = vpop.f32.mrb[0].mxu0
    %v11497 = vpop.f32.mrb[0].mxu0
    %11498 = vdwg.mxu0
    %11499 = vmatprep.subr.bf16.mxu0 %v7530
    %11500 = vmatpush1.bf16.msra.mxu0 %v7529
    %11501 = vmatprep.subr.bf16.mxu0 %v7534
    %11502 = vmatpush1.bf16.msra.mxu0 %v7533
    %11503 = vmatprep.subr.bf16.mxu0 %v7538
    %11504 = vmatpush1.bf16.msra.mxu0 %v7537
    %11505 = vmatprep.subr.bf16.mxu0 %v7542
    %11506 = vmatpush1.bf16.msra.mxu0 %v7541
    %11507 = vmatprep.subr.bf16.mxu0 %v7546
    %11508 = vmatpush1.bf16.msra.mxu0 %v7545
    %11509 = vmatprep.subr.bf16.mxu0 %v7550
    %11510 = vmatpush1.bf16.msra.mxu0 %v7549
    %11511 = vmatprep.subr.bf16.mxu0 %v7554
    %11512 = vmatpush1.bf16.msra.mxu0 %v7553
    %11513 = vmatprep.subr.bf16.mxu0 %v7558
    %11514 = vmatpush1.bf16.msra.mxu0 %v7557
    %11515 = vmatprep.subr.bf16.mxu0 %v7562
    %11516 = vmatpush1.bf16.msra.mxu0 %v7561
    %11517 = vmatprep.subr.bf16.mxu0 %v7566
    %11518 = vmatpush1.bf16.msra.mxu0 %v7565
    %11519 = vmatprep.subr.bf16.mxu0 %v7570
    %11520 = vmatpush1.bf16.msra.mxu0 %v7569
    %11521 = vmatprep.subr.bf16.mxu0 %v7574
    %11522 = vmatpush1.bf16.msra.mxu0 %v7573
    %11523 = vmatprep.subr.bf16.mxu0 %v7578
    %11524 = vmatpush1.bf16.msra.mxu0 %v7577
    %11525 = vmatprep.subr.bf16.mxu0 %v7582
    %11526 = vmatpush1.bf16.msra.mxu0 %v7581
    %11527 = vmatprep.subr.bf16.mxu0 %v7586
    %11528 = vmatpush1.bf16.msra.mxu0 %v7585
    %11529 = vmatprep.subr.bf16.mxu0 %v7590
    %11530 = vmatpush1.bf16.msra.mxu0 %v7589
    %11531 = vmatprep.mubr.bf16.mxu0 %v1803
    %11532 = vmatmul.mubr.bf16.gmra.mrb[0].mxu0 %v1801
    %v11533 = vpop.f32.mrb[0].mxu0
    %v11534 = vadd.f32 %v11493, %v11533
    %v11535 = vpop.f32.mrb[0].mxu0
    %v11536 = vadd.f32 %v11495, %v11535
    %v11537 = vpop.f32.mrb[0].mxu0
    %v11538 = vpop.f32.mrb[0].mxu0
    %11539 = vdwg.mxu0
    %11540 = vmatprep.subr.bf16.mxu0 %v7594
    %11541 = vmatpush1.bf16.msra.mxu0 %v7593
    %11542 = vmatprep.subr.bf16.mxu0 %v7598
    %11543 = vmatpush1.bf16.msra.mxu0 %v7597
    %11544 = vmatprep.subr.bf16.mxu0 %v7602
    %11545 = vmatpush1.bf16.msra.mxu0 %v7601
    %11546 = vmatprep.subr.bf16.mxu0 %v7606
    %11547 = vmatpush1.bf16.msra.mxu0 %v7605
    %11548 = vmatprep.subr.bf16.mxu0 %v7610
    %11549 = vmatpush1.bf16.msra.mxu0 %v7609
    %11550 = vmatprep.subr.bf16.mxu0 %v7614
    %11551 = vmatpush1.bf16.msra.mxu0 %v7613
    %11552 = vmatprep.subr.bf16.mxu0 %v7618
    %11553 = vmatpush1.bf16.msra.mxu0 %v7617
    %11554 = vmatprep.subr.bf16.mxu0 %v7622
    %11555 = vmatpush1.bf16.msra.mxu0 %v7621
    %11556 = vmatprep.subr.bf16.mxu0 %v7626
    %11557 = vmatpush1.bf16.msra.mxu0 %v7625
    %11558 = vmatprep.subr.bf16.mxu0 %v7630
    %11559 = vmatpush1.bf16.msra.mxu0 %v7629
    %11560 = vmatprep.subr.bf16.mxu0 %v7634
    %11561 = vmatpush1.bf16.msra.mxu0 %v7633
    %11562 = vmatprep.subr.bf16.mxu0 %v7638
    %11563 = vmatpush1.bf16.msra.mxu0 %v7637
    %11564 = vmatprep.subr.bf16.mxu0 %v7642
    %11565 = vmatpush1.bf16.msra.mxu0 %v7641
    %11566 = vmatprep.subr.bf16.mxu0 %v7646
    %11567 = vmatpush1.bf16.msra.mxu0 %v7645
    %11568 = vmatprep.subr.bf16.mxu0 %v7650
    %11569 = vmatpush1.bf16.msra.mxu0 %v7649
    %11570 = vmatprep.subr.bf16.mxu0 %v7654
    %11571 = vmatpush1.bf16.msra.mxu0 %v7653
    %11572 = vmatprep.mubr.bf16.mxu0 %v1841
    %11573 = vmatmul.mubr.bf16.gmra.mrb[0].mxu0 %v1827
    %v11574 = vpop.f32.mrb[0].mxu0
    %v11575 = vadd.f32 %v11534, %v11574
    %v11576 = vpop.f32.mrb[0].mxu0
    %v11577 = vadd.f32 %v11536, %v11576
    %v11578 = vpop.f32.mrb[0].mxu0
    %v11579 = vpop.f32.mrb[0].mxu0
    %11580 = vdwg.mxu0
    %11581 = vmatprep.subr.bf16.mxu0 %v7658
    %11582 = vmatpush1.bf16.msra.mxu0 %v7657
    %11583 = vmatprep.subr.bf16.mxu0 %v7662
    %11584 = vmatpush1.bf16.msra.mxu0 %v7661
    %11585 = vmatprep.subr.bf16.mxu0 %v7666
    %11586 = vmatpush1.bf16.msra.mxu0 %v7665
    %11587 = vmatprep.subr.bf16.mxu0 %v7670
    %11588 = vmatpush1.bf16.msra.mxu0 %v7669
    %11589 = vmatprep.subr.bf16.mxu0 %v7674
    %11590 = vmatpush1.bf16.msra.mxu0 %v7673
    %11591 = vmatprep.subr.bf16.mxu0 %v7678
    %11592 = vmatpush1.bf16.msra.mxu0 %v7677
    %11593 = vmatprep.subr.bf16.mxu0 %v7682
    %11594 = vmatpush1.bf16.msra.mxu0 %v7681
    %11595 = vmatprep.subr.bf16.mxu0 %v7686
    %11596 = vmatpush1.bf16.msra.mxu0 %v7685
    %11597 = vmatprep.subr.bf16.mxu0 %v7690
    %11598 = vmatpush1.bf16.msra.mxu0 %v7689
    %11599 = vmatprep.subr.bf16.mxu0 %v7694
    %11600 = vmatpush1.bf16.msra.mxu0 %v7693
    %11601 = vmatprep.subr.bf16.mxu0 %v7698
    %11602 = vmatpush1.bf16.msra.mxu0 %v7697
    %11603 = vmatprep.subr.bf16.mxu0 %v7702
    %11604 = vmatpush1.bf16.msra.mxu0 %v7701
    %11605 = vmatprep.subr.bf16.mxu0 %v7706
    %11606 = vmatpush1.bf16.msra.mxu0 %v7705
    %11607 = vmatprep.subr.bf16.mxu0 %v7710
    %11608 = vmatpush1.bf16.msra.mxu0 %v7709
    %11609 = vmatprep.subr.bf16.mxu0 %v7714
    %11610 = vmatpush1.bf16.msra.mxu0 %v7713
    %11611 = vmatprep.subr.bf16.mxu0 %v7718
    %11612 = vmatpush1.bf16.msra.mxu0 %v7717
    %11613 = vmatprep.mubr.bf16.mxu0 %v1851
    %11614 = vmatmul.mubr.bf16.gmra.mrb[0].mxu0 %v1849
    %v11615 = vpop.f32.mrb[0].mxu0
    %v11616 = vadd.f32 %v11575, %v11615
    %v11617 = vpop.f32.mrb[0].mxu0
    %v11618 = vadd.f32 %v11577, %v11617
    %v11619 = vpop.f32.mrb[0].mxu0
    %v11620 = vpop.f32.mrb[0].mxu0
    %11621 = vdwg.mxu0
    %11622 = vmatprep.subr.bf16.mxu0 %v7722
    %11623 = vmatpush1.bf16.msra.mxu0 %v7721
    %11624 = vmatprep.subr.bf16.mxu0 %v7726
    %11625 = vmatpush1.bf16.msra.mxu0 %v7725
    %11626 = vmatprep.subr.bf16.mxu0 %v7730
    %11627 = vmatpush1.bf16.msra.mxu0 %v7729
    %11628 = vmatprep.subr.bf16.mxu0 %v7734
    %11629 = vmatpush1.bf16.msra.mxu0 %v7733
    %11630 = vmatprep.subr.bf16.mxu0 %v7738
    %11631 = vmatpush1.bf16.msra.mxu0 %v7737
    %11632 = vmatprep.subr.bf16.mxu0 %v7742
    %11633 = vmatpush1.bf16.msra.mxu0 %v7741
    %11634 = vmatprep.subr.bf16.mxu0 %v7746
    %11635 = vmatpush1.bf16.msra.mxu0 %v7745
    %11636 = vmatprep.subr.bf16.mxu0 %v7750
    %11637 = vmatpush1.bf16.msra.mxu0 %v7749
    %11638 = vmatprep.subr.bf16.mxu0 %v7754
    %11639 = vmatpush1.bf16.msra.mxu0 %v7753
    %11640 = vmatprep.subr.bf16.mxu0 %v7758
    %11641 = vmatpush1.bf16.msra.mxu0 %v7757
    %11642 = vmatprep.subr.bf16.mxu0 %v7762
    %11643 = vmatpush1.bf16.msra.mxu0 %v7761
    %11644 = vmatprep.subr.bf16.mxu0 %v7766
    %11645 = vmatpush1.bf16.msra.mxu0 %v7765
    %11646 = vmatprep.subr.bf16.mxu0 %v7770
    %11647 = vmatpush1.bf16.msra.mxu0 %v7769
    %11648 = vmatprep.subr.bf16.mxu0 %v7774
    %11649 = vmatpush1.bf16.msra.mxu0 %v7773
    %11650 = vmatprep.subr.bf16.mxu0 %v7778
    %11651 = vmatpush1.bf16.msra.mxu0 %v7777
    %11652 = vmatprep.subr.bf16.mxu0 %v7782
    %11653 = vmatpush1.bf16.msra.mxu0 %v7781
    %11654 = vmatprep.mubr.bf16.mxu0 %v1848
    %11655 = vmatmul.mubr.bf16.gmra.mrb[0].mxu0 %v1834
    %v11656 = vpop.f32.mrb[0].mxu0
    %v11657 = vadd.f32 %v11616, %v11656
    %v11658 = vpop.f32.mrb[0].mxu0
    %v11659 = vadd.f32 %v11618, %v11658
    %v11660 = vpop.f32.mrb[0].mxu0
    %v11661 = vpop.f32.mrb[0].mxu0
    %11662 = vdwg.mxu0
    %11663 = vmatprep.subr.bf16.mxu0 %v7786
    %11664 = vmatpush1.bf16.msra.mxu0 %v7785
    %11665 = vmatprep.subr.bf16.mxu0 %v7790
    %11666 = vmatpush1.bf16.msra.mxu0 %v7789
    %11667 = vmatprep.subr.bf16.mxu0 %v7794
    %11668 = vmatpush1.bf16.msra.mxu0 %v7793
    %11669 = vmatprep.subr.bf16.mxu0 %v7798
    %11670 = vmatpush1.bf16.msra.mxu0 %v7797
    %11671 = vmatprep.subr.bf16.mxu0 %v7802
    %11672 = vmatpush1.bf16.msra.mxu0 %v7801
    %11673 = vmatprep.subr.bf16.mxu0 %v7806
    %11674 = vmatpush1.bf16.msra.mxu0 %v7805
    %11675 = vmatprep.subr.bf16.mxu0 %v7810
    %11676 = vmatpush1.bf16.msra.mxu0 %v7809
    %11677 = vmatprep.subr.bf16.mxu0 %v7814
    %11678 = vmatpush1.bf16.msra.mxu0 %v7813
    %11679 = vmatprep.subr.bf16.mxu0 %v7818
    %11680 = vmatpush1.bf16.msra.mxu0 %v7817
    %11681 = vmatprep.subr.bf16.mxu0 %v7822
    %11682 = vmatpush1.bf16.msra.mxu0 %v7821
    %11683 = vmatprep.subr.bf16.mxu0 %v7826
    %11684 = vmatpush1.bf16.msra.mxu0 %v7825
    %11685 = vmatprep.subr.bf16.mxu0 %v7830
    %11686 = vmatpush1.bf16.msra.mxu0 %v7829
    %11687 = vmatprep.subr.bf16.mxu0 %v7834
    %11688 = vmatpush1.bf16.msra.mxu0 %v7833
    %11689 = vmatprep.subr.bf16.mxu0 %v7838
    %11690 = vmatpush1.bf16.msra.mxu0 %v7837
    %11691 = vmatprep.subr.bf16.mxu0 %v7842
    %11692 = vmatpush1.bf16.msra.mxu0 %v7841
    %11693 = vmatprep.subr.bf16.mxu0 %v7846
    %11694 = vmatpush1.bf16.msra.mxu0 %v7845
    %11695 = vmatprep.mubr.bf16.mxu0 %v1852
    %11696 = vmatmul.mubr.bf16.gmra.mrb[0].mxu0 %v1850
    %v11697 = vpop.f32.mrb[0].mxu0
    %v11698 = vadd.f32 %v11657, %v11697
    %v11699 = vpop.f32.mrb[0].mxu0
    %v11700 = vadd.f32 %v11659, %v11699
    %v11701 = vpop.f32.mrb[0].mxu0
    %v11702 = vpop.f32.mrb[0].mxu0
    %11703 = vdwg.mxu0
    %11704 = vmatprep.subr.bf16.mxu0 %v7850
    %11705 = vmatpush1.bf16.msra.mxu0 %v7849
    %11706 = vmatprep.subr.bf16.mxu0 %v7854
    %11707 = vmatpush1.bf16.msra.mxu0 %v7853
    %11708 = vmatprep.subr.bf16.mxu0 %v7858
    %11709 = vmatpush1.bf16.msra.mxu0 %v7857
    %11710 = vmatprep.subr.bf16.mxu0 %v7862
    %11711 = vmatpush1.bf16.msra.mxu0 %v7861
    %11712 = vmatprep.subr.bf16.mxu0 %v7866
    %11713 = vmatpush1.bf16.msra.mxu0 %v7865
    %11714 = vmatprep.subr.bf16.mxu0 %v7870
    %11715 = vmatpush1.bf16.msra.mxu0 %v7869
    %11716 = vmatprep.subr.bf16.mxu0 %v7874
    %11717 = vmatpush1.bf16.msra.mxu0 %v7873
    %11718 = vmatprep.subr.bf16.mxu0 %v7878
    %11719 = vmatpush1.bf16.msra.mxu0 %v7877
    %11720 = vmatprep.subr.bf16.mxu0 %v7882
    %11721 = vmatpush1.bf16.msra.mxu0 %v7881
    %11722 = vmatprep.subr.bf16.mxu0 %v7886
    %11723 = vmatpush1.bf16.msra.mxu0 %v7885
    %11724 = vmatprep.subr.bf16.mxu0 %v7890
    %11725 = vmatpush1.bf16.msra.mxu0 %v7889
    %11726 = vmatprep.subr.bf16.mxu0 %v7894
    %11727 = vmatpush1.bf16.msra.mxu0 %v7893
    %11728 = vmatprep.subr.bf16.mxu0 %v7898
    %11729 = vmatpush1.bf16.msra.mxu0 %v7897
    %11730 = vmatprep.subr.bf16.mxu0 %v7902
    %11731 = vmatpush1.bf16.msra.mxu0 %v7901
    %11732 = vmatprep.subr.bf16.mxu0 %v7906
    %11733 = vmatpush1.bf16.msra.mxu0 %v7905
    %11734 = vmatprep.subr.bf16.mxu0 %v7910
    %11735 = vmatpush1.bf16.msra.mxu0 %v7909
    %11736 = vmatprep.mubr.bf16.mxu0 %v1890
    %11737 = vmatmul.mubr.bf16.gmra.mrb[0].mxu0 %v1876
    %v11738 = vpop.f32.mrb[0].mxu0
    %v11739 = vadd.f32 %v11698, %v11738
    %v11740 = vpop.f32.mrb[0].mxu0
    %v11741 = vadd.f32 %v11700, %v11740
    %v11742 = vpop.f32.mrb[0].mxu0
    %v11743 = vpop.f32.mrb[0].mxu0
    %11744 = vdwg.mxu0
    %11745 = vmatprep.subr.bf16.mxu0 %v7914
    %11746 = vmatpush1.bf16.msra.mxu0 %v7913
    %11747 = vmatprep.subr.bf16.mxu0 %v7918
    %11748 = vmatpush1.bf16.msra.mxu0 %v7917
    %11749 = vmatprep.subr.bf16.mxu0 %v7922
    %11750 = vmatpush1.bf16.msra.mxu0 %v7921
    %11751 = vmatprep.subr.bf16.mxu0 %v7926
    %11752 = vmatpush1.bf16.msra.mxu0 %v7925
    %11753 = vmatprep.subr.bf16.mxu0 %v7930
    %11754 = vmatpush1.bf16.msra.mxu0 %v7929
    %11755 = vmatprep.subr.bf16.mxu0 %v7934
    %11756 = vmatpush1.bf16.msra.mxu0 %v7933
    %11757 = vmatprep.subr.bf16.mxu0 %v7938
    %11758 = vmatpush1.bf16.msra.mxu0 %v7937
    %11759 = vmatprep.subr.bf16.mxu0 %v7942
    %11760 = vmatpush1.bf16.msra.mxu0 %v7941
    %11761 = vmatprep.subr.bf16.mxu0 %v7946
    %11762 = vmatpush1.bf16.msra.mxu0 %v7945
    %11763 = vmatprep.subr.bf16.mxu0 %v7950
    %11764 = vmatpush1.bf16.msra.mxu0 %v7949
    %11765 = vmatprep.subr.bf16.mxu0 %v7954
    %11766 = vmatpush1.bf16.msra.mxu0 %v7953
    %11767 = vmatprep.subr.bf16.mxu0 %v7958
    %11768 = vmatpush1.bf16.msra.mxu0 %v7957
    %11769 = vmatprep.subr.bf16.mxu0 %v7962
    %11770 = vmatpush1.bf16.msra.mxu0 %v7961
    %11771 = vmatprep.subr.bf16.mxu0 %v7966
    %11772 = vmatpush1.bf16.msra.mxu0 %v7965
    %11773 = vmatprep.subr.bf16.mxu0 %v7970
    %11774 = vmatpush1.bf16.msra.mxu0 %v7969
    %11775 = vmatprep.subr.bf16.mxu0 %v7974
    %11776 = vmatpush1.bf16.msra.mxu0 %v7973
    %11777 = vmatprep.mubr.bf16.mxu0 %v1900
    %11778 = vmatmul.mubr.bf16.gmra.mrb[0].mxu0 %v1898
    %v11779 = vpop.f32.mrb[0].mxu0
    %v11780 = vadd.f32 %v11739, %v11779
    %v11781 = vpop.f32.mrb[0].mxu0
    %v11782 = vadd.f32 %v11741, %v11781
    %v11783 = vpop.f32.mrb[0].mxu0
    %v11784 = vpop.f32.mrb[0].mxu0
    %11785 = vdwg.mxu0
    %11786 = vmatprep.subr.bf16.mxu0 %v7978
    %11787 = vmatpush1.bf16.msra.mxu0 %v7977
    %11788 = vmatprep.subr.bf16.mxu0 %v7982
    %11789 = vmatpush1.bf16.msra.mxu0 %v7981
    %11790 = vmatprep.subr.bf16.mxu0 %v7986
    %11791 = vmatpush1.bf16.msra.mxu0 %v7985
    %11792 = vmatprep.subr.bf16.mxu0 %v7990
    %11793 = vmatpush1.bf16.msra.mxu0 %v7989
    %11794 = vmatprep.subr.bf16.mxu0 %v7994
    %11795 = vmatpush1.bf16.msra.mxu0 %v7993
    %11796 = vmatprep.subr.bf16.mxu0 %v7998
    %11797 = vmatpush1.bf16.msra.mxu0 %v7997
    %11798 = vmatprep.subr.bf16.mxu0 %v8002
    %11799 = vmatpush1.bf16.msra.mxu0 %v8001
    %11800 = vmatprep.subr.bf16.mxu0 %v8006
    %11801 = vmatpush1.bf16.msra.mxu0 %v8005
    %11802 = vmatprep.subr.bf16.mxu0 %v8010
    %11803 = vmatpush1.bf16.msra.mxu0 %v8009
    %11804 = vmatprep.subr.bf16.mxu0 %v8014
    %11805 = vmatpush1.bf16.msra.mxu0 %v8013
    %11806 = vmatprep.subr.bf16.mxu0 %v8018
    %11807 = vmatpush1.bf16.msra.mxu0 %v8017
    %11808 = vmatprep.subr.bf16.mxu0 %v8022
    %11809 = vmatpush1.bf16.msra.mxu0 %v8021
    %11810 = vmatprep.subr.bf16.mxu0 %v8026
    %11811 = vmatpush1.bf16.msra.mxu0 %v8025
    %11812 = vmatprep.subr.bf16.mxu0 %v8030
    %11813 = vmatpush1.bf16.msra.mxu0 %v8029
    %11814 = vmatprep.subr.bf16.mxu0 %v8034
    %11815 = vmatpush1.bf16.msra.mxu0 %v8033
    %11816 = vmatprep.subr.bf16.mxu0 %v8038
    %11817 = vmatpush1.bf16.msra.mxu0 %v8037
    %11818 = vmatprep.mubr.bf16.mxu0 %v1897
    %11819 = vmatmul.mubr.bf16.gmra.mrb[0].mxu0 %v1883
    %v11820 = vpop.f32.mrb[0].mxu0
    %v11821 = vadd.f32 %v11780, %v11820
    %v11822 = vpop.f32.mrb[0].mxu0
    %v11823 = vadd.f32 %v11782, %v11822
    %v11824 = vpop.f32.mrb[0].mxu0
    %v11825 = vpop.f32.mrb[0].mxu0
    %11826 = vdwg.mxu0
    %11827 = vmatprep.subr.bf16.mxu0 %v8042
    %11828 = vmatpush1.bf16.msra.mxu0 %v8041
    %11829 = vmatprep.subr.bf16.mxu0 %v8046
    %11830 = vmatpush1.bf16.msra.mxu0 %v8045
    %11831 = vmatprep.subr.bf16.mxu0 %v8050
    %11832 = vmatpush1.bf16.msra.mxu0 %v8049
    %11833 = vmatprep.subr.bf16.mxu0 %v8054
    %11834 = vmatpush1.bf16.msra.mxu0 %v8053
    %11835 = vmatprep.subr.bf16.mxu0 %v8058
    %11836 = vmatpush1.bf16.msra.mxu0 %v8057
    %11837 = vmatprep.subr.bf16.mxu0 %v8062
    %11838 = vmatpush1.bf16.msra.mxu0 %v8061
    %11839 = vmatprep.subr.bf16.mxu0 %v8066
    %11840 = vmatpush1.bf16.msra.mxu0 %v8065
    %11841 = vmatprep.subr.bf16.mxu0 %v8070
    %11842 = vmatpush1.bf16.msra.mxu0 %v8069
    %11843 = vmatprep.subr.bf16.mxu0 %v8074
    %11844 = vmatpush1.bf16.msra.mxu0 %v8073
    %11845 = vmatprep.subr.bf16.mxu0 %v8078
    %11846 = vmatpush1.bf16.msra.mxu0 %v8077
    %11847 = vmatprep.subr.bf16.mxu0 %v8082
    %11848 = vmatpush1.bf16.msra.mxu0 %v8081
    %11849 = vmatprep.subr.bf16.mxu0 %v8086
    %11850 = vmatpush1.bf16.msra.mxu0 %v8085
    %11851 = vmatprep.subr.bf16.mxu0 %v8090
    %11852 = vmatpush1.bf16.msra.mxu0 %v8089
    %11853 = vmatprep.subr.bf16.mxu0 %v8094
    %11854 = vmatpush1.bf16.msra.mxu0 %v8093
    %11855 = vmatprep.subr.bf16.mxu0 %v8098
    %11856 = vmatpush1.bf16.msra.mxu0 %v8097
    %11857 = vmatprep.subr.bf16.mxu0 %v8102
    %11858 = vmatpush1.bf16.msra.mxu0 %v8101
    %11859 = vmatprep.mubr.bf16.mxu0 %v1901
    %11860 = vmatmul.mubr.bf16.gmra.mrb[0].mxu0 %v1899
    %v11861 = vpop.f32.mrb[0].mxu0
    %v11862 = vadd.f32 %v11821, %v11861
    %v11863 = vpop.f32.mrb[0].mxu0
    %v11864 = vadd.f32 %v11823, %v11863
    %v11865 = vpop.f32.mrb[0].mxu0
    %v11866 = vpop.f32.mrb[0].mxu0
    %11867 = vdwg.mxu0
    %11868 = vmatprep.subr.bf16.mxu0 %v8106
    %11869 = vmatpush1.bf16.msra.mxu0 %v8105
    %11870 = vmatprep.subr.bf16.mxu0 %v8110
    %11871 = vmatpush1.bf16.msra.mxu0 %v8109
    %11872 = vmatprep.subr.bf16.mxu0 %v8114
    %11873 = vmatpush1.bf16.msra.mxu0 %v8113
    %11874 = vmatprep.subr.bf16.mxu0 %v8118
    %11875 = vmatpush1.bf16.msra.mxu0 %v8117
    %11876 = vmatprep.subr.bf16.mxu0 %v8122
    %11877 = vmatpush1.bf16.msra.mxu0 %v8121
    %11878 = vmatprep.subr.bf16.mxu0 %v8126
    %11879 = vmatpush1.bf16.msra.mxu0 %v8125
    %11880 = vmatprep.subr.bf16.mxu0 %v8130
    %11881 = vmatpush1.bf16.msra.mxu0 %v8129
    %11882 = vmatprep.subr.bf16.mxu0 %v8134
    %11883 = vmatpush1.bf16.msra.mxu0 %v8133
    %11884 = vmatprep.subr.bf16.mxu0 %v8138
    %11885 = vmatpush1.bf16.msra.mxu0 %v8137
    %11886 = vmatprep.subr.bf16.mxu0 %v8142
    %11887 = vmatpush1.bf16.msra.mxu0 %v8141
    %11888 = vmatprep.subr.bf16.mxu0 %v8146
    %11889 = vmatpush1.bf16.msra.mxu0 %v8145
    %11890 = vmatprep.subr.bf16.mxu0 %v8150
    %11891 = vmatpush1.bf16.msra.mxu0 %v8149
    %11892 = vmatprep.subr.bf16.mxu0 %v8154
    %11893 = vmatpush1.bf16.msra.mxu0 %v8153
    %11894 = vmatprep.subr.bf16.mxu0 %v8158
    %11895 = vmatpush1.bf16.msra.mxu0 %v8157
    %11896 = vmatprep.subr.bf16.mxu0 %v8162
    %11897 = vmatpush1.bf16.msra.mxu0 %v8161
    %11898 = vmatprep.subr.bf16.mxu0 %v8166
    %11899 = vmatpush1.bf16.msra.mxu0 %v8165
    %11900 = vmatprep.mubr.bf16.mxu0 %v1939
    %11901 = vmatmul.mubr.bf16.gmra.mrb[0].mxu0 %v1925
    %v11902 = vpop.f32.mrb[0].mxu0
    %v11903 = vadd.f32 %v11862, %v11902
    %v11904 = vpop.f32.mrb[0].mxu0
    %v11905 = vadd.f32 %v11864, %v11904
    %v11906 = vpop.f32.mrb[0].mxu0
    %v11907 = vpop.f32.mrb[0].mxu0
    %11908 = vdwg.mxu0
    %11909 = vmatprep.subr.bf16.mxu0 %v8170
    %11910 = vmatpush1.bf16.msra.mxu0 %v8169
    %11911 = vmatprep.subr.bf16.mxu0 %v8174
    %11912 = vmatpush1.bf16.msra.mxu0 %v8173
    %11913 = vmatprep.subr.bf16.mxu0 %v8178
    %11914 = vmatpush1.bf16.msra.mxu0 %v8177
    %11915 = vmatprep.subr.bf16.mxu0 %v8182
    %11916 = vmatpush1.bf16.msra.mxu0 %v8181
    %11917 = vmatprep.subr.bf16.mxu0 %v8186
    %11918 = vmatpush1.bf16.msra.mxu0 %v8185
    %11919 = vmatprep.subr.bf16.mxu0 %v8190
    %11920 = vmatpush1.bf16.msra.mxu0 %v8189
    %11921 = vmatprep.subr.bf16.mxu0 %v8194
    %11922 = vmatpush1.bf16.msra.mxu0 %v8193
    %11923 = vmatprep.subr.bf16.mxu0 %v8198
    %11924 = vmatpush1.bf16.msra.mxu0 %v8197
    %11925 = vmatprep.subr.bf16.mxu0 %v8202
    %11926 = vmatpush1.bf16.msra.mxu0 %v8201
    %11927 = vmatprep.subr.bf16.mxu0 %v8206
    %11928 = vmatpush1.bf16.msra.mxu0 %v8205
    %11929 = vmatprep.subr.bf16.mxu0 %v8210
    %11930 = vmatpush1.bf16.msra.mxu0 %v8209
    %11931 = vmatprep.subr.bf16.mxu0 %v8214
    %11932 = vmatpush1.bf16.msra.mxu0 %v8213
    %11933 = vmatprep.subr.bf16.mxu0 %v8218
    %11934 = vmatpush1.bf16.msra.mxu0 %v8217
    %11935 = vmatprep.subr.bf16.mxu0 %v8222
    %11936 = vmatpush1.bf16.msra.mxu0 %v8221
    %11937 = vmatprep.subr.bf16.mxu0 %v8226
    %11938 = vmatpush1.bf16.msra.mxu0 %v8225
    %11939 = vmatprep.subr.bf16.mxu0 %v8230
    %11940 = vmatpush1.bf16.msra.mxu0 %v8229
    %11941 = vmatprep.mubr.bf16.mxu0 %v1949
    %11942 = vmatmul.mubr.bf16.gmra.mrb[0].mxu0 %v1947
    %v11943 = vpop.f32.mrb[0].mxu0
    %v11944 = vadd.f32 %v11903, %v11943
    %v11945 = vpop.f32.mrb[0].mxu0
    %v11946 = vadd.f32 %v11905, %v11945
    %v11947 = vpop.f32.mrb[0].mxu0
    %v11948 = vpop.f32.mrb[0].mxu0
    %11949 = vdwg.mxu0
    %11950 = vmatprep.subr.bf16.mxu0 %v8234
    %11951 = vmatpush1.bf16.msra.mxu0 %v8233
    %11952 = vmatprep.subr.bf16.mxu0 %v8238
    %11953 = vmatpush1.bf16.msra.mxu0 %v8237
    %11954 = vmatprep.subr.bf16.mxu0 %v8242
    %11955 = vmatpush1.bf16.msra.mxu0 %v8241
    %11956 = vmatprep.subr.bf16.mxu0 %v8246
    %11957 = vmatpush1.bf16.msra.mxu0 %v8245
    %11958 = vmatprep.subr.bf16.mxu0 %v8250
    %11959 = vmatpush1.bf16.msra.mxu0 %v8249
    %11960 = vmatprep.subr.bf16.mxu0 %v8254
    %11961 = vmatpush1.bf16.msra.mxu0 %v8253
    %11962 = vmatprep.subr.bf16.mxu0 %v8258
    %11963 = vmatpush1.bf16.msra.mxu0 %v8257
    %11964 = vmatprep.subr.bf16.mxu0 %v8262
    %11965 = vmatpush1.bf16.msra.mxu0 %v8261
    %11966 = vmatprep.subr.bf16.mxu0 %v8266
    %11967 = vmatpush1.bf16.msra.mxu0 %v8265
    %11968 = vmatprep.subr.bf16.mxu0 %v8270
    %11969 = vmatpush1.bf16.msra.mxu0 %v8269
    %11970 = vmatprep.subr.bf16.mxu0 %v8274
    %11971 = vmatpush1.bf16.msra.mxu0 %v8273
    %11972 = vmatprep.subr.bf16.mxu0 %v8278
    %11973 = vmatpush1.bf16.msra.mxu0 %v8277
    %11974 = vmatprep.subr.bf16.mxu0 %v8282
    %11975 = vmatpush1.bf16.msra.mxu0 %v8281
    %11976 = vmatprep.subr.bf16.mxu0 %v8286
    %11977 = vmatpush1.bf16.msra.mxu0 %v8285
    %11978 = vmatprep.subr.bf16.mxu0 %v8290
    %11979 = vmatpush1.bf16.msra.mxu0 %v8289
    %11980 = vmatprep.subr.bf16.mxu0 %v8294
    %11981 = vmatpush1.bf16.msra.mxu0 %v8293
    %11982 = vmatprep.mubr.bf16.mxu0 %v1946
    %11983 = vmatmul.mubr.bf16.gmra.mrb[0].mxu0 %v1932
    %v11984 = vpop.f32.mrb[0].mxu0
    %v11985 = vadd.f32 %v11944, %v11984
    %v11986 = vpop.f32.mrb[0].mxu0
    %v11987 = vadd.f32 %v11946, %v11986
    %v11988 = vpop.f32.mrb[0].mxu0
    %v11989 = vpop.f32.mrb[0].mxu0
    %11990 = vdwg.mxu0
    %11991 = vmatprep.subr.bf16.mxu0 %v8298
    %11992 = vmatpush1.bf16.msra.mxu0 %v8297
    %11993 = vmatprep.subr.bf16.mxu0 %v8302
    %11994 = vmatpush1.bf16.msra.mxu0 %v8301
    %11995 = vmatprep.subr.bf16.mxu0 %v8306
    %11996 = vmatpush1.bf16.msra.mxu0 %v8305
    %11997 = vmatprep.subr.bf16.mxu0 %v8310
    %11998 = vmatpush1.bf16.msra.mxu0 %v8309
    %11999 = vmatprep.subr.bf16.mxu0 %v8314
    %12000 = vmatpush1.bf16.msra.mxu0 %v8313
    %12001 = vmatprep.subr.bf16.mxu0 %v8318
    %12002 = vmatpush1.bf16.msra.mxu0 %v8317
    %12003 = vmatprep.subr.bf16.mxu0 %v8322
    %12004 = vmatpush1.bf16.msra.mxu0 %v8321
    %12005 = vmatprep.subr.bf16.mxu0 %v8326
    %12006 = vmatpush1.bf16.msra.mxu0 %v8325
    %12007 = vmatprep.subr.bf16.mxu0 %v8330
    %12008 = vmatpush1.bf16.msra.mxu0 %v8329
    %12009 = vmatprep.subr.bf16.mxu0 %v8334
    %12010 = vmatpush1.bf16.msra.mxu0 %v8333
    %12011 = vmatprep.subr.bf16.mxu0 %v8338
    %12012 = vmatpush1.bf16.msra.mxu0 %v8337
    %12013 = vmatprep.subr.bf16.mxu0 %v8342
    %12014 = vmatpush1.bf16.msra.mxu0 %v8341
    %12015 = vmatprep.subr.bf16.mxu0 %v8346
    %12016 = vmatpush1.bf16.msra.mxu0 %v8345
    %12017 = vmatprep.subr.bf16.mxu0 %v8350
    %12018 = vmatpush1.bf16.msra.mxu0 %v8349
    %12019 = vmatprep.subr.bf16.mxu0 %v8354
    %12020 = vmatpush1.bf16.msra.mxu0 %v8353
    %12021 = vmatprep.subr.bf16.mxu0 %v8358
    %12022 = vmatpush1.bf16.msra.mxu0 %v8357
    %12023 = vmatprep.mubr.bf16.mxu0 %v1950
    %12024 = vmatmul.mubr.bf16.gmra.mrb[0].mxu0 %v1948
    %v12025 = vpop.f32.mrb[0].mxu0
    %v12026 = vadd.f32 %v11985, %v12025
    %v12027 = vpop.f32.mrb[0].mxu0
    %v12028 = vadd.f32 %v11987, %v12027
    %v12029 = vpop.f32.mrb[0].mxu0
    %v12030 = vpop.f32.mrb[0].mxu0
    %12031 = vdwg.mxu0
    %12032 = vmatprep.subr.bf16.mxu0 %v8362
    %12033 = vmatpush1.bf16.msra.mxu0 %v8361
    %12034 = vmatprep.subr.bf16.mxu0 %v8366
    %12035 = vmatpush1.bf16.msra.mxu0 %v8365
    %12036 = vmatprep.subr.bf16.mxu0 %v8370
    %12037 = vmatpush1.bf16.msra.mxu0 %v8369
    %12038 = vmatprep.subr.bf16.mxu0 %v8374
    %12039 = vmatpush1.bf16.msra.mxu0 %v8373
    %12040 = vmatprep.subr.bf16.mxu0 %v8378
    %12041 = vmatpush1.bf16.msra.mxu0 %v8377
    %12042 = vmatprep.subr.bf16.mxu0 %v8382
    %12043 = vmatpush1.bf16.msra.mxu0 %v8381
    %12044 = vmatprep.subr.bf16.mxu0 %v8386
    %12045 = vmatpush1.bf16.msra.mxu0 %v8385
    %12046 = vmatprep.subr.bf16.mxu0 %v8390
    %12047 = vmatpush1.bf16.msra.mxu0 %v8389
    %12048 = vmatprep.subr.bf16.mxu0 %v8394
    %12049 = vmatpush1.bf16.msra.mxu0 %v8393
    %12050 = vmatprep.subr.bf16.mxu0 %v8398
    %12051 = vmatpush1.bf16.msra.mxu0 %v8397
    %12052 = vmatprep.subr.bf16.mxu0 %v8402
    %12053 = vmatpush1.bf16.msra.mxu0 %v8401
    %12054 = vmatprep.subr.bf16.mxu0 %v8406
    %12055 = vmatpush1.bf16.msra.mxu0 %v8405
    %12056 = vmatprep.subr.bf16.mxu0 %v8410
    %12057 = vmatpush1.bf16.msra.mxu0 %v8409
    %12058 = vmatprep.subr.bf16.mxu0 %v8414
    %12059 = vmatpush1.bf16.msra.mxu0 %v8413
    %12060 = vmatprep.subr.bf16.mxu0 %v8418
    %12061 = vmatpush1.bf16.msra.mxu0 %v8417
    %12062 = vmatprep.subr.bf16.mxu0 %v8422
    %12063 = vmatpush1.bf16.msra.mxu0 %v8421
    %12064 = vmatprep.mubr.bf16.mxu0 %v1972
    %12065 = vmatmul.mubr.bf16.gmra.mrb[0].mxu0 %v1965
    %v12066 = vpop.f32.mrb[0].mxu0
    %v12067 = vadd.f32 %v12026, %v12066
    %v12068 = vpop.f32.mrb[0].mxu0
    %v12069 = vadd.f32 %v12028, %v12068
    %v12070 = vpop.f32.mrb[0].mxu0
    %v12071 = vpop.f32.mrb[0].mxu0
    %12072 = vdwg.mxu0
    %v12073 = vmax.f32 %v11042, 0.0
    %v12074 = vmax.f32 %v11044, 0.0
    %v12075 = vmax.f32 %v12067, 0.0
    %v12076 = vmax.f32 %v12069, 0.0
    %v12077 = vld [vmem:[%s3] sm:$0xff]
    %v12078 = vld [vmem:[%s3 + $0x8] sm:$0xff]
    %v12079 = vld [vmem:[%s3 + $0x10] sm:$0xff]
    %v12080 = vld [vmem:[%s3 + $0x18] sm:$0xff]
    %v12081 = vld [vmem:[%s3 + $0x20] sm:$0xff]
    %v12082 = vld [vmem:[%s3 + $0x28] sm:$0xff]
    %v12083 = vld [vmem:[%s3 + $0x30] sm:$0xff]
    %v12084 = vld [vmem:[%s3 + $0x38] sm:$0xff]
    %v12085 = vld [vmem:[%s3 + $0x40] sm:$0xff]
    %v12086 = vld [vmem:[%s3 + $0x48] sm:$0xff]
    %v12087 = vld [vmem:[%s3 + $0x50] sm:$0xff]
    %v12088 = vld [vmem:[%s3 + $0x58] sm:$0xff]
    %v12089 = vld [vmem:[%s3 + $0x60] sm:$0xff]
    %v12090 = vld [vmem:[%s3 + $0x68] sm:$0xff]
    %v12091 = vld [vmem:[%s3 + $0x70] sm:$0xff]
    %v12092 = vld [vmem:[%s3 + $0x78] sm:$0xff]
    %v12093 = vld [vmem:[%s3 + $0x80] sm:$0xff]
    %v12094 = vld [vmem:[%s3 + $0x88] sm:$0xff]
    %v12095 = vld [vmem:[%s3 + $0x90] sm:$0xff]
    %v12096 = vld [vmem:[%s3 + $0x98] sm:$0xff]
    %v12097 = vld [vmem:[%s3 + $0xa0] sm:$0xff]
    %v12098 = vld [vmem:[%s3 + $0xa8] sm:$0xff]
    %v12099 = vld [vmem:[%s3 + $0xb0] sm:$0xff]
    %v12100 = vld [vmem:[%s3 + $0xb8] sm:$0xff]
    %v12101 = vld [vmem:[%s3 + $0xc0] sm:$0xff]
    %v12102 = vld [vmem:[%s3 + $0xc8] sm:$0xff]
    %v12103 = vld [vmem:[%s3 + $0xd0] sm:$0xff]
    %v12104 = vld [vmem:[%s3 + $0xd8] sm:$0xff]
    %v12105 = vld [vmem:[%s3 + $0xe0] sm:$0xff]
    %v12106 = vld [vmem:[%s3 + $0xe8] sm:$0xff]
    %v12107 = vld [vmem:[%s3 + $0xf0] sm:$0xff]
    %v12108 = vld [vmem:[%s3 + $0xf8] sm:$0xff]
    %v12109 = vld [vmem:[%s3 + $0x100] sm:$0xff]
    %v12110 = vld [vmem:[%s3 + $0x108] sm:$0xff]
    %v12111 = vld [vmem:[%s3 + $0x110] sm:$0xff]
    %v12112 = vld [vmem:[%s3 + $0x118] sm:$0xff]
    %v12113 = vld [vmem:[%s3 + $0x120] sm:$0xff]
    %v12114 = vld [vmem:[%s3 + $0x128] sm:$0xff]
    %v12115 = vld [vmem:[%s3 + $0x130] sm:$0xff]
    %v12116 = vld [vmem:[%s3 + $0x138] sm:$0xff]
    %v12117 = vld [vmem:[%s3 + $0x140] sm:$0xff]
    %v12118 = vld [vmem:[%s3 + $0x148] sm:$0xff]
    %v12119 = vld [vmem:[%s3 + $0x150] sm:$0xff]
    %v12120 = vld [vmem:[%s3 + $0x158] sm:$0xff]
    %v12121 = vld [vmem:[%s3 + $0x160] sm:$0xff]
    %v12122 = vld [vmem:[%s3 + $0x168] sm:$0xff]
    %v12123 = vld [vmem:[%s3 + $0x170] sm:$0xff]
    %v12124 = vld [vmem:[%s3 + $0x178] sm:$0xff]
    %v12125 = vld [vmem:[%s3 + $0x180] sm:$0xff]
    %v12126 = vld [vmem:[%s3 + $0x188] sm:$0xff]
    %v12127 = vld [vmem:[%s3 + $0x190] sm:$0xff]
    %v12128 = vld [vmem:[%s3 + $0x198] sm:$0xff]
    %v12129 = vld [vmem:[%s3 + $0x1a0] sm:$0xff]
    %v12130 = vld [vmem:[%s3 + $0x1a8] sm:$0xff]
    %v12131 = vld [vmem:[%s3 + $0x1b0] sm:$0xff]
    %v12132 = vld [vmem:[%s3 + $0x1b8] sm:$0xff]
    %v12133 = vld [vmem:[%s3 + $0x1c0] sm:$0xff]
    %v12134 = vld [vmem:[%s3 + $0x1c8] sm:$0xff]
    %v12135 = vld [vmem:[%s3 + $0x1d0] sm:$0xff]
    %v12136 = vld [vmem:[%s3 + $0x1d8] sm:$0xff]
    %v12137 = vld [vmem:[%s3 + $0x1e0] sm:$0xff]
    %v12138 = vld [vmem:[%s3 + $0x1e8] sm:$0xff]
    %v12139 = vld [vmem:[%s3 + $0x1f0] sm:$0xff]
    %v12140 = vld [vmem:[%s3 + $0x1f8] sm:$0xff]
    %v12141 = vld [vmem:[%s4] sm:$0x1]
    %v12143 = vlaneseq
    %v12144 = vshrl.u32 %v12143, 7
    %v12145 = vsub.s32 0, %v12144
    %v12146 = vrot.slane %v12141, %v12145
    %12148 = vmatprep.subr.mxu0 0.0
    %12149 = vmatpush1.msra.mxu0 %v12077
    %12150 = vmatprep.subr.mxu0 0.0
    %12151 = vmatpush1.msra.mxu0 %v12078
    %12152 = vmatprep.subr.mxu0 0.0
    %12153 = vmatpush1.msra.mxu0 %v12079
    %12154 = vmatprep.subr.mxu0 0.0
    %12155 = vmatpush1.msra.mxu0 %v12080
    %12156 = vmatprep.subr.mxu0 0.0
    %12157 = vmatpush1.msra.mxu0 %v12081
    %12158 = vmatprep.subr.mxu0 0.0
    %12159 = vmatpush1.msra.mxu0 %v12082
    %12160 = vmatprep.subr.mxu0 0.0
    %12161 = vmatpush1.msra.mxu0 %v12083
    %12162 = vmatprep.subr.mxu0 0.0
    %12163 = vmatpush1.msra.mxu0 %v12084
    %12164 = vmatprep.subr.mxu0 0.0
    %12165 = vmatpush1.msra.mxu0 %v12085
    %12166 = vmatprep.subr.mxu0 0.0
    %12167 = vmatpush1.msra.mxu0 %v12086
    %12168 = vmatprep.subr.mxu0 0.0
    %12169 = vmatpush1.msra.mxu0 %v12087
    %12170 = vmatprep.subr.mxu0 0.0
    %12171 = vmatpush1.msra.mxu0 %v12088
    %12172 = vmatprep.subr.mxu0 0.0
    %12173 = vmatpush1.msra.mxu0 %v12089
    %12174 = vmatprep.subr.mxu0 0.0
    %12175 = vmatpush1.msra.mxu0 %v12090
    %12176 = vmatprep.subr.mxu0 0.0
    %12177 = vmatpush1.msra.mxu0 %v12091
    %12178 = vmatprep.subr.mxu0 0.0
    %12179 = vmatpush1.msra.mxu0 %v12092
    %12180 = vmatprep.subr.mxu0 0.0
    %12181 = vmatpush1.msra.mxu0 %v12093
    %12182 = vmatprep.subr.mxu0 0.0
    %12183 = vmatpush1.msra.mxu0 %v12094
    %12184 = vmatprep.subr.mxu0 0.0
    %12185 = vmatpush1.msra.mxu0 %v12095
    %12186 = vmatprep.subr.mxu0 0.0
    %12187 = vmatpush1.msra.mxu0 %v12096
    %12188 = vmatprep.subr.mxu0 0.0
    %12189 = vmatpush1.msra.mxu0 %v12097
    %12190 = vmatprep.subr.mxu0 0.0
    %12191 = vmatpush1.msra.mxu0 %v12098
    %12192 = vmatprep.subr.mxu0 0.0
    %12193 = vmatpush1.msra.mxu0 %v12099
    %12194 = vmatprep.subr.mxu0 0.0
    %12195 = vmatpush1.msra.mxu0 %v12100
    %12196 = vmatprep.subr.mxu0 0.0
    %12197 = vmatpush1.msra.mxu0 %v12101
    %12198 = vmatprep.subr.mxu0 0.0
    %12199 = vmatpush1.msra.mxu0 %v12102
    %12200 = vmatprep.subr.mxu0 0.0
    %12201 = vmatpush1.msra.mxu0 %v12103
    %12202 = vmatprep.subr.mxu0 0.0
    %12203 = vmatpush1.msra.mxu0 %v12104
    %12204 = vmatprep.subr.mxu0 0.0
    %12205 = vmatpush1.msra.mxu0 %v12105
    %12206 = vmatprep.subr.mxu0 0.0
    %12207 = vmatpush1.msra.mxu0 %v12106
    %12208 = vmatprep.subr.mxu0 0.0
    %12209 = vmatpush1.msra.mxu0 %v12107
    %12210 = vmatprep.subr.mxu0 0.0
    %12211 = vmatpush1.msra.mxu0 %v12108
    %12212 = vmatprep.mubr.f32.mxu0 %v12074
    %12213 = vmatmul.mubr.f32.gmra.mrb[0].mxu0 %v12073
    %v12214 = vpop.f32.mrb[0].mxu0
    %v12215 = vadd.f32 %v12146, %v12214
    %v12216 = vpop.f32.mrb[0].mxu0
    %12217 = vdwg.mxu0
    %12218 = vmatprep.subr.mxu0 0.0
    %12219 = vmatpush1.msra.mxu0 %v12109
    %12220 = vmatprep.subr.mxu0 0.0
    %12221 = vmatpush1.msra.mxu0 %v12110
    %12222 = vmatprep.subr.mxu0 0.0
    %12223 = vmatpush1.msra.mxu0 %v12111
    %12224 = vmatprep.subr.mxu0 0.0
    %12225 = vmatpush1.msra.mxu0 %v12112
    %12226 = vmatprep.subr.mxu0 0.0
    %12227 = vmatpush1.msra.mxu0 %v12113
    %12228 = vmatprep.subr.mxu0 0.0
    %12229 = vmatpush1.msra.mxu0 %v12114
    %12230 = vmatprep.subr.mxu0 0.0
    %12231 = vmatpush1.msra.mxu0 %v12115
    %12232 = vmatprep.subr.mxu0 0.0
    %12233 = vmatpush1.msra.mxu0 %v12116
    %12234 = vmatprep.subr.mxu0 0.0
    %12235 = vmatpush1.msra.mxu0 %v12117
    %12236 = vmatprep.subr.mxu0 0.0
    %12237 = vmatpush1.msra.mxu0 %v12118
    %12238 = vmatprep.subr.mxu0 0.0
    %12239 = vmatpush1.msra.mxu0 %v12119
    %12240 = vmatprep.subr.mxu0 0.0
    %12241 = vmatpush1.msra.mxu0 %v12120
    %12242 = vmatprep.subr.mxu0 0.0
    %12243 = vmatpush1.msra.mxu0 %v12121
    %12244 = vmatprep.subr.mxu0 0.0
    %12245 = vmatpush1.msra.mxu0 %v12122
    %12246 = vmatprep.subr.mxu0 0.0
    %12247 = vmatpush1.msra.mxu0 %v12123
    %12248 = vmatprep.subr.mxu0 0.0
    %12249 = vmatpush1.msra.mxu0 %v12124
    %12250 = vmatprep.subr.mxu0 0.0
    %12251 = vmatpush1.msra.mxu0 %v12125
    %12252 = vmatprep.subr.mxu0 0.0
    %12253 = vmatpush1.msra.mxu0 %v12126
    %12254 = vmatprep.subr.mxu0 0.0
    %12255 = vmatpush1.msra.mxu0 %v12127
    %12256 = vmatprep.subr.mxu0 0.0
    %12257 = vmatpush1.msra.mxu0 %v12128
    %12258 = vmatprep.subr.mxu0 0.0
    %12259 = vmatpush1.msra.mxu0 %v12129
    %12260 = vmatprep.subr.mxu0 0.0
    %12261 = vmatpush1.msra.mxu0 %v12130
    %12262 = vmatprep.subr.mxu0 0.0
    %12263 = vmatpush1.msra.mxu0 %v12131
    %12264 = vmatprep.subr.mxu0 0.0
    %12265 = vmatpush1.msra.mxu0 %v12132
    %12266 = vmatprep.subr.mxu0 0.0
    %12267 = vmatpush1.msra.mxu0 %v12133
    %12268 = vmatprep.subr.mxu0 0.0
    %12269 = vmatpush1.msra.mxu0 %v12134
    %12270 = vmatprep.subr.mxu0 0.0
    %12271 = vmatpush1.msra.mxu0 %v12135
    %12272 = vmatprep.subr.mxu0 0.0
    %12273 = vmatpush1.msra.mxu0 %v12136
    %12274 = vmatprep.subr.mxu0 0.0
    %12275 = vmatpush1.msra.mxu0 %v12137
    %12276 = vmatprep.subr.mxu0 0.0
    %12277 = vmatpush1.msra.mxu0 %v12138
    %12278 = vmatprep.subr.mxu0 0.0
    %12279 = vmatpush1.msra.mxu0 %v12139
    %12280 = vmatprep.subr.mxu0 0.0
    %12281 = vmatpush1.msra.mxu0 %v12140
    %12282 = vmatprep.mubr.f32.mxu0 %v12076
    %12283 = vmatmul.mubr.f32.gmra.mrb[0].mxu0 %v12075
    %v12284 = vpop.f32.mrb[0].mxu0
    %v12285 = vadd.f32 %v12215, %v12284
    %v12286 = vpop.f32.mrb[0].mxu0
    %12287 = vdwg.mxu0
    %12288 = vst [vmem:[#allocation2] sm:$0x3] %v12285
    // Predicated region
    $region22: #{encoder_like_dqn_forward.7} parent=1 // pred_check
      _
    $region23: #{encoder_like_dqn_forward.7} parent=1 // pred_check_branch
      %12290 = sbr.rel (0) target = $region25
    $region24: #{encoder_like_dqn_forward.7} parent=1 // pred_region
      %s12292 = ssub.s32 32, 32
      %12293 = vsyncadd [#allocation3], %s12292
      %s12295 = sshll.u32 [#allocation2], 4
      %s12296 = int_to_ptr.vmem [resolvable:$true] %s12295
      %12298 = dma.vmem_to_hbm [thread:$0]  %s12296, 32, %s5, [#allocation3]
    $region25: #{encoder_like_dqn_forward.7} parent=1 // pred_fallthru
      _
    // Predicated region
    $region26: #{encoder_like_dqn_forward.7} parent=1 // pred_check
      _
    $region27: #{encoder_like_dqn_forward.7} parent=1 // pred_check_branch
      %12300 = sbr.rel (0) target = $region29
    $region28: #{encoder_like_dqn_forward.7} parent=1 // pred_region
      %12301 = dma.done [#allocation3], 32
    $region29: #{encoder_like_dqn_forward.7} parent=1 // pred_fallthru
      _
    %12302 = vsyncpa [#allocation3], 1

</llo_original>
